<compile_context>
chip_gen: v7x
topology: tpu7x:2x2x1
jax: 0.10.0
libtpu: 0.0.40
codegen_flags: <defaults>
</compile_context>

<pallas_src>
import functools

import jax
import jax.numpy as jnp
from jax.experimental import pallas as pl
from jax.experimental.pallas import tpu as pltpu

SOS_TOKEN = 1

VOCAB = 128       # vocabulary size (lane-aligned)
HIDDEN = 128      # GRU hidden size (lane-aligned)
GATES = 3 * HIDDEN
SEQ_LEN = 8       # encoder input length (padded)
MAX_LENGTH = 10   # greedy decoding steps
N_LAYERS = 1      # decoder.n_layers (hidden[:n_layers] is the identity here)


def _gru_cell(gi, h, whh_bf, bhh):
    """Exact PyTorch GRUCell step given the precomputed input-side activation.

    gi : (1, 3H) f32 = x @ W_ih + b_ih   (gate order r, z, n)
    h  : (1, H)  f32
    whh_bf : (H, 3H) bf16, bhh : (1, 3H) f32
    """
    H = HIDDEN
    gh = jnp.dot(h.astype(jnp.bfloat16), whh_bf,
                 preferred_element_type=jnp.float32) + bhh               # (1, 3H)
    r = jax.nn.sigmoid(gi[:, 0:H] + gh[:, 0:H])
    z = jax.nn.sigmoid(gi[:, H:2 * H] + gh[:, H:2 * H])
    n = jnp.tanh(gi[:, 2 * H:3 * H] + r * gh[:, 2 * H:3 * H])
    return (1.0 - z) * n + z * h


def greedy_search_kernel(seq_ref, len_ref, enc_ref, dec_ref, proj_ref, bias_ref,
                         tokens_ref, scores_ref):
    H, V, G = HIDDEN, VOCAB, GATES
    S = seq_ref.shape[0]
    max_len = tokens_ref.shape[0]
    length = len_ref[0]

    # Loop-invariant small values hoisted once (the Python unroll would re-emit
    # these loads/iotas 8-18x; large weight tables stay as per-use ref loads so
    # regalloc does not have to keep ~70 vregs live across the unrolled loops).
    bias = bias_ref[...]                                     # (1, 2G+H+V) f32
    enc_bhh = bias[:, 0:G]
    dec_bhh = bias[:, G:2 * G]
    b_concat = bias[:, 2 * G:2 * G + H]
    b_out = bias[:, 2 * G + H:2 * G + H + V]
    lane_v = jax.lax.broadcasted_iota(jnp.int32, (1, V), 1)

    # ---------------- Encoder: single-layer GRU, fully unrolled ----------------
    # All x-side gate activations in ONE MXU dot: onehot (S,V) @ gi_table (V,3H).
    onehot_rows = [(lane_v == seq_ref[t]).astype(jnp.float32) for t in range(S)]
    onehot_s = jnp.concatenate(onehot_rows, axis=0).astype(jnp.bfloat16)   # (S, V)
    gi_all = jnp.dot(onehot_s, enc_ref[0:V, :],
                     preferred_element_type=jnp.float32)                   # (S, 3H)

    h = jnp.zeros((1, H), jnp.float32)
    enc_rows = []
    for t in range(S):                                       # static trip count
        gi_t = gi_all[t:t + 1, :]                            # static sublane slice
        h_new = _gru_cell(gi_t, h, enc_ref[V:V + H, :], enc_bhh)
        valid = t < length
        enc_rows.append(jnp.where(valid, h_new, jnp.zeros_like(h_new)))  # pad -> 0
        h = jnp.where(valid, h_new, h)                       # freeze hidden past len
    enc_o = jnp.concatenate(enc_rows, axis=0)                # (S, H) f32, in vregs
    enc_o_bf = enc_o.astype(jnp.bfloat16)                    # ctx matmul RHS
    enc_o_t_bf = jnp.transpose(enc_o).astype(jnp.bfloat16)   # (H, S): one transpose
                                                             # shared by all 10 steps

    # decoder_hidden = encoder_hidden[:n_layers]  (n_layers == 1 here)
    # ---------------- Greedy decoding, fully unrolled (Luong dot attention) ----
    onehot0 = (lane_v == SOS_TOKEN).astype(jnp.bfloat16)
    gi = jnp.dot(onehot0, dec_ref[0:V, :], preferred_element_type=jnp.float32)

    for t in range(max_len):                                 # static trip count
        h = _gru_cell(gi, h, dec_ref[V:V + H, :], dec_bhh)
        h_bf = h.astype(jnp.bfloat16)

        # dot-attention energies: (1, H) @ (H, S) -> (1, S)
        energies = jnp.dot(h_bf, enc_o_t_bf, preferred_element_type=jnp.float32)
        e_e = jnp.exp(energies - jnp.max(energies, axis=1, keepdims=True))
        attn = e_e / jnp.sum(e_e, axis=1, keepdims=True)     # exact (feeds recurrence)
        ctx = jnp.dot(attn.astype(jnp.bfloat16), enc_o_bf,
                      preferred_element_type=jnp.float32)                    # (1, H)

        # concat([h, ctx]) @ W_concat as ONE (1,2H)@(2H,H) dot, then tanh.
        hc = jnp.concatenate([h, ctx], axis=1).astype(jnp.bfloat16)          # (1, 2H)
        concat_out = jnp.tanh(
            jnp.dot(hc, proj_ref[0:2 * H, :], preferred_element_type=jnp.float32)
            + b_concat)                                                      # (1, H)
        logits = (jnp.dot(concat_out.astype(jnp.bfloat16), proj_ref[2 * H:3 * H, :],
                          preferred_element_type=jnp.float32)
                  + b_out)                                                   # (1, V)

        # torch.max(softmax(logits), dim=1): argmax(probs) == argmax(logits);
        # best prob = 1 / sum(exp(logits - max))   (exact division: output only).
        m_l = jnp.max(logits, axis=1, keepdims=True)
        best = 1.0 / jnp.sum(jnp.exp(logits - m_l), axis=1, keepdims=True)
        idx_vec = jnp.where(logits == m_l, lane_v, V)
        min_idx = jnp.minimum(jnp.min(idx_vec, axis=1, keepdims=True), V - 1)  # (1,1)

        # Next-step input-side activation stays in the vector domain: onehot @ gi
        # table is a single MXU dot on the argmax -> next-gates critical path.
        onehot = (lane_v == min_idx).astype(jnp.bfloat16)                    # (1, V)
        gi = jnp.dot(onehot, dec_ref[0:V, :], preferred_element_type=jnp.float32)

        # Scalar writes (off the recurrence critical path), static SMEM indices.
        tokens_ref[t] = min_idx[0, 0]
        scores_ref[t] = best[0, 0]


@functools.partial(jax.jit, static_argnames=("max_length",))
def greedy_search_decode(params, input_seq, input_length, max_length):
    out_shape = (jax.ShapeDtypeStruct((max_length,), jnp.int32),    # all_tokens
                 jax.ShapeDtypeStruct((max_length,), jnp.float32))  # all_scores
    smem = pl.BlockSpec(memory_space=pltpu.MemorySpace.SMEM)
    vmem = pl.BlockSpec(memory_space=pltpu.MemorySpace.VMEM)
    tokens, scores = pl.pallas_call(
        greedy_search_kernel,
        out_shape=out_shape,
        in_specs=[smem, smem, vmem, vmem, vmem, vmem],
        out_specs=(smem, smem),
    )(input_seq.astype(jnp.int32),
      jnp.reshape(input_length.astype(jnp.int32), (1,)),
      params["enc_slab"], params["dec_slab"], params["proj_slab"],
      params["bias_slab"])
    return tokens, scores


def init_params(key):
    ks = jax.random.split(key, 12)
    scale = 0.1
    H, V, G = HIDDEN, VOCAB, GATES

    def nrm(k, shape):
        return jax.random.normal(k, shape, jnp.float32) * scale

    # Raw PyTorch-layout parameters (x @ W convention, gate order r, z, n).
    enc_emb = nrm(ks[0], (V, H))
    enc_wih = nrm(ks[1], (H, G))
    enc_whh = nrm(ks[2], (H, G))
    enc_bih = nrm(ks[3], (1, G))
    enc_bhh = nrm(ks[4], (1, G))
    dec_emb = nrm(ks[5], (V, H))
    dec_wih = nrm(ks[6], (H, G))
    dec_whh = nrm(ks[7], (H, G))
    dec_bih = nrm(ks[8], (1, G))
    dec_bhh = nrm(ks[9], (1, G))
    w_concat = nrm(ks[10], (2 * H, H))   # (2H, H)
    w_out = nrm(ks[11], (H, V))          # (H, V)
    b_concat = jnp.zeros((1, H), jnp.float32)
    b_out = jnp.zeros((1, V), jnp.float32)

    # Pre-fold the input-side GRU matmul into per-vocab gi tables.
    enc_gi = enc_emb @ enc_wih + enc_bih   # (V, 3H)
    dec_gi = dec_emb @ dec_wih + dec_bih   # (V, 3H)

    bf = jnp.bfloat16
    # Pack into 4 slabs (fewer prologue DMAs; bf16 everywhere the MXU consumes).
    # Note: proj slab concat requires H == V (true here: both 128).
    return dict(
        enc_slab=jnp.concatenate([enc_gi, enc_whh], axis=0).astype(bf),    # (V+H, 3H)
        dec_slab=jnp.concatenate([dec_gi, dec_whh], axis=0).astype(bf),    # (V+H, 3H)
        proj_slab=jnp.concatenate([w_concat, w_out], axis=0).astype(bf),   # (3H, H)
        bias_slab=jnp.concatenate([enc_bhh, dec_bhh, b_concat, b_out],
                                  axis=1),                                 # (1, 2G+H+V) f32
    )


if __name__ == "__main__":
    key = jax.random.PRNGKey(0)
    pkey, skey = jax.random.split(key)
    params = init_params(pkey)

    # batch = 1 (as in the reference module); tokens avoid PAD=0 / SOS=1
    input_seq = jax.random.randint(skey, (SEQ_LEN,), 2, VOCAB, dtype=jnp.int32)
    input_length = jnp.asarray(6, jnp.int32)   # valid prefix length (rest is padding)

    all_tokens, all_scores = greedy_search_decode(params, input_seq, input_length,
                                                  MAX_LENGTH)
    all_tokens, all_scores = jax.block_until_ready((all_tokens, all_scores))

    # Sanity checks on greedy-search semantics.
    assert all_tokens.shape == (MAX_LENGTH,) and all_tokens.dtype == jnp.int32
    assert all_scores.shape == (MAX_LENGTH,) and all_scores.dtype == jnp.float32
    assert bool(jnp.all((all_tokens >= 0) & (all_tokens < VOCAB)))
    assert bool(jnp.all(jnp.isfinite(all_scores)))
    assert bool(jnp.all((all_scores > 0.0) & (all_scores <= 1.0 + 1e-6)))

    # TODO(synk): reference uses torch.long (int64) token ids; int32 used here under
    # JAX's default x32 mode. Batch stays 1 as in the reference; batching sequences
    # along the sublane/M dim (and a "parallel" grid axis over the 2 TCs on v7x)
    # is the remaining throughput lever.
    print("KERNEL_OK")
</pallas_src>

<mosaic_0001>
module attributes {stable_mosaic.version = 11 : i64} {
  func.func @greedy_search_kernel(%arg0: memref<8xi32, #tpu.memory_space<smem>>, %arg1: memref<1xi32, #tpu.memory_space<smem>>, %arg2: memref<256x384xbf16, #tpu.memory_space<vmem>>, %arg3: memref<256x384xbf16, #tpu.memory_space<vmem>>, %arg4: memref<384x128xbf16, #tpu.memory_space<vmem>>, %arg5: memref<1x1024xf32, #tpu.memory_space<vmem>>, %arg6: memref<10xi32, #tpu.memory_space<smem>>, %arg7: memref<10xf32, #tpu.memory_space<smem>>) attributes {dimension_semantics = [], scalar_prefetch = 0 : i64, scratch_operands = 0 : i64, tpu.core_type = #tpu.core_type<tc>} {
    %c0 = arith.constant 0 : index
    %0 = memref.load %arg1[%c0] : memref<1xi32, #tpu.memory_space<smem>>
    %c0_0 = arith.constant 0 : index
    %c0_1 = arith.constant 0 : index
    %1 = vector.load %arg5[%c0_0, %c0_1] : memref<1x1024xf32, #tpu.memory_space<vmem>>, vector<1x1024xf32>
    %2 = vector.extract_strided_slice %1 {offsets = [0, 0], sizes = [1, 384], strides = [1, 1]} : vector<1x1024xf32> to vector<1x384xf32>
    %3 = vector.extract_strided_slice %1 {offsets = [0, 384], sizes = [1, 384], strides = [1, 1]} : vector<1x1024xf32> to vector<1x384xf32>
    %4 = vector.extract_strided_slice %1 {offsets = [0, 768], sizes = [1, 128], strides = [1, 1]} : vector<1x1024xf32> to vector<1x128xf32>
    %5 = vector.extract_strided_slice %1 {offsets = [0, 896], sizes = [1, 128], strides = [1, 1]} : vector<1x1024xf32> to vector<1x128xf32>
    %6 = tpu.iota {dimensions = array<i32: 1>} : vector<1x128xi32>
    %c0_2 = arith.constant 0 : index
    %7 = memref.load %arg0[%c0_2] : memref<8xi32, #tpu.memory_space<smem>>
    %8 = vector.broadcast %7 : i32 to vector<1x128xi32>
    %9 = arith.cmpi eq, %6, %8 : vector<1x128xi32>
    %10 = arith.extui %9 : vector<1x128xi1> to vector<1x128xi32>
    %11 = arith.sitofp %10 : vector<1x128xi32> to vector<1x128xf32>
    %c1 = arith.constant 1 : index
    %12 = memref.load %arg0[%c1] : memref<8xi32, #tpu.memory_space<smem>>
    %13 = vector.broadcast %12 : i32 to vector<1x128xi32>
    %14 = arith.cmpi eq, %6, %13 : vector<1x128xi32>
    %15 = arith.extui %14 : vector<1x128xi1> to vector<1x128xi32>
    %16 = arith.sitofp %15 : vector<1x128xi32> to vector<1x128xf32>
    %c2 = arith.constant 2 : index
    %17 = memref.load %arg0[%c2] : memref<8xi32, #tpu.memory_space<smem>>
    %18 = vector.broadcast %17 : i32 to vector<1x128xi32>
    %19 = arith.cmpi eq, %6, %18 : vector<1x128xi32>
    %20 = arith.extui %19 : vector<1x128xi1> to vector<1x128xi32>
    %21 = arith.sitofp %20 : vector<1x128xi32> to vector<1x128xf32>
    %c3 = arith.constant 3 : index
    %22 = memref.load %arg0[%c3] : memref<8xi32, #tpu.memory_space<smem>>
    %23 = vector.broadcast %22 : i32 to vector<1x128xi32>
    %24 = arith.cmpi eq, %6, %23 : vector<1x128xi32>
    %25 = arith.extui %24 : vector<1x128xi1> to vector<1x128xi32>
    %26 = arith.sitofp %25 : vector<1x128xi32> to vector<1x128xf32>
    %c4 = arith.constant 4 : index
    %27 = memref.load %arg0[%c4] : memref<8xi32, #tpu.memory_space<smem>>
    %28 = vector.broadcast %27 : i32 to vector<1x128xi32>
    %29 = arith.cmpi eq, %6, %28 : vector<1x128xi32>
    %30 = arith.extui %29 : vector<1x128xi1> to vector<1x128xi32>
    %31 = arith.sitofp %30 : vector<1x128xi32> to vector<1x128xf32>
    %c5 = arith.constant 5 : index
    %32 = memref.load %arg0[%c5] : memref<8xi32, #tpu.memory_space<smem>>
    %33 = vector.broadcast %32 : i32 to vector<1x128xi32>
    %34 = arith.cmpi eq, %6, %33 : vector<1x128xi32>
    %35 = arith.extui %34 : vector<1x128xi1> to vector<1x128xi32>
    %36 = arith.sitofp %35 : vector<1x128xi32> to vector<1x128xf32>
    %c6 = arith.constant 6 : index
    %37 = memref.load %arg0[%c6] : memref<8xi32, #tpu.memory_space<smem>>
    %38 = vector.broadcast %37 : i32 to vector<1x128xi32>
    %39 = arith.cmpi eq, %6, %38 : vector<1x128xi32>
    %40 = arith.extui %39 : vector<1x128xi1> to vector<1x128xi32>
    %41 = arith.sitofp %40 : vector<1x128xi32> to vector<1x128xf32>
    %c7 = arith.constant 7 : index
    %42 = memref.load %arg0[%c7] : memref<8xi32, #tpu.memory_space<smem>>
    %43 = vector.broadcast %42 : i32 to vector<1x128xi32>
    %44 = arith.cmpi eq, %6, %43 : vector<1x128xi32>
    %45 = arith.extui %44 : vector<1x128xi1> to vector<1x128xi32>
    %46 = arith.sitofp %45 : vector<1x128xi32> to vector<1x128xf32>
    %47 = tpu.concatenate %11, %16, %21, %26, %31, %36, %41, %46 in 0 : vector<1x128xf32>, vector<1x128xf32>, vector<1x128xf32>, vector<1x128xf32>, vector<1x128xf32>, vector<1x128xf32>, vector<1x128xf32>, vector<1x128xf32> -> vector<8x128xf32>
    %48 = arith.truncf %47 : vector<8x128xf32> to vector<8x128xbf16>
    %c0_3 = arith.constant 0 : index
    %c0_4 = arith.constant 0 : index
    %49 = vector.load %arg2[%c0_3, %c0_4] : memref<256x384xbf16, #tpu.memory_space<vmem>>, vector<128x384xbf16>
    %cst = arith.constant dense<0.000000e+00> : vector<8x384xf32>
    %50 = tpu.matmul %48, %49, %cst {dimension_numbers = #tpu.dot_dimension_numbers<[1], [0], [0], [1], [0, 0, 1, 1], [], []>} : vector<8x128xbf16>, vector<128x384xbf16>, vector<8x384xf32> -> vector<8x384xf32>
    %cst_5 = arith.constant 0.000000e+00 : f32
    %51 = vector.broadcast %cst_5 : f32 to vector<1x128xf32>
    %52 = vector.extract_strided_slice %50 {offsets = [0, 0], sizes = [1, 384], strides = [1, 1]} : vector<8x384xf32> to vector<1x384xf32>
    %c128 = arith.constant 128 : index
    %c0_6 = arith.constant 0 : index
    %53 = vector.load %arg2[%c128, %c0_6] : memref<256x384xbf16, #tpu.memory_space<vmem>>, vector<128x384xbf16>
    %54 = arith.truncf %51 : vector<1x128xf32> to vector<1x128xbf16>
    %cst_7 = arith.constant dense<0.000000e+00> : vector<1x384xf32>
    %55 = tpu.matmul %54, %53, %cst_7 {dimension_numbers = #tpu.dot_dimension_numbers<[1], [0], [0], [1], [0, 0, 1, 1], [], []>} : vector<1x128xbf16>, vector<128x384xbf16>, vector<1x384xf32> -> vector<1x384xf32>
    %56 = arith.addf %55, %2 : vector<1x384xf32>
    %57 = vector.extract_strided_slice %52 {offsets = [0, 0], sizes = [1, 128], strides = [1, 1]} : vector<1x384xf32> to vector<1x128xf32>
    %58 = vector.extract_strided_slice %56 {offsets = [0, 0], sizes = [1, 128], strides = [1, 1]} : vector<1x384xf32> to vector<1x128xf32>
    %59 = arith.addf %57, %58 : vector<1x128xf32>
    %60 = arith.negf %59 : vector<1x128xf32>
    %61 = math.exp %60 : vector<1x128xf32>
    %cst_8 = arith.constant 1.000000e+00 : f32
    %62 = vector.broadcast %cst_8 : f32 to vector<1x128xf32>
    %63 = arith.addf %62, %61 : vector<1x128xf32>
    %64 = arith.divf %62, %63 : vector<1x128xf32>
    %65 = vector.extract_strided_slice %52 {offsets = [0, 128], sizes = [1, 128], strides = [1, 1]} : vector<1x384xf32> to vector<1x128xf32>
    %66 = vector.extract_strided_slice %56 {offsets = [0, 128], sizes = [1, 128], strides = [1, 1]} : vector<1x384xf32> to vector<1x128xf32>
    %67 = arith.addf %65, %66 : vector<1x128xf32>
    %68 = arith.negf %67 : vector<1x128xf32>
    %69 = math.exp %68 : vector<1x128xf32>
    %cst_9 = arith.constant 1.000000e+00 : f32
    %70 = vector.broadcast %cst_9 : f32 to vector<1x128xf32>
    %71 = arith.addf %70, %69 : vector<1x128xf32>
    %72 = arith.divf %70, %71 : vector<1x128xf32>
    %73 = vector.extract_strided_slice %52 {offsets = [0, 256], sizes = [1, 128], strides = [1, 1]} : vector<1x384xf32> to vector<1x128xf32>
    %74 = vector.extract_strided_slice %56 {offsets = [0, 256], sizes = [1, 128], strides = [1, 1]} : vector<1x384xf32> to vector<1x128xf32>
    %75 = arith.mulf %64, %74 : vector<1x128xf32>
    %76 = arith.addf %73, %75 : vector<1x128xf32>
    %77 = math.tanh %76 : vector<1x128xf32>
    %cst_10 = arith.constant 1.000000e+00 : f32
    %78 = vector.broadcast %cst_10 : f32 to vector<1x128xf32>
    %79 = arith.subf %78, %72 : vector<1x128xf32>
    %80 = arith.mulf %79, %77 : vector<1x128xf32>
    %81 = arith.mulf %72, %51 : vector<1x128xf32>
    %82 = arith.addf %80, %81 : vector<1x128xf32>
    %c0_i32 = arith.constant 0 : i32
    %83 = arith.cmpi sgt, %0, %c0_i32 : i32
    %cst_11 = arith.constant 0.000000e+00 : f32
    %84 = vector.broadcast %cst_11 : f32 to vector<1x128xf32>
    %85 = arith.select %83, %82, %84 : vector<1x128xf32>
    %86 = arith.select %83, %82, %51 : vector<1x128xf32>
    %87 = vector.extract_strided_slice %50 {offsets = [1, 0], sizes = [1, 384], strides = [1, 1]} : vector<8x384xf32> to vector<1x384xf32>
    %c128_12 = arith.constant 128 : index
    %c0_13 = arith.constant 0 : index
    %88 = vector.load %arg2[%c128_12, %c0_13] : memref<256x384xbf16, #tpu.memory_space<vmem>>, vector<128x384xbf16>
    %89 = arith.truncf %86 : vector<1x128xf32> to vector<1x128xbf16>
    %cst_14 = arith.constant dense<0.000000e+00> : vector<1x384xf32>
    %90 = tpu.matmul %89, %88, %cst_14 {dimension_numbers = #tpu.dot_dimension_numbers<[1], [0], [0], [1], [0, 0, 1, 1], [], []>} : vector<1x128xbf16>, vector<128x384xbf16>, vector<1x384xf32> -> vector<1x384xf32>
    %91 = arith.addf %90, %2 : vector<1x384xf32>
    %92 = vector.extract_strided_slice %87 {offsets = [0, 0], sizes = [1, 128], strides = [1, 1]} : vector<1x384xf32> to vector<1x128xf32>
    %93 = vector.extract_strided_slice %91 {offsets = [0, 0], sizes = [1, 128], strides = [1, 1]} : vector<1x384xf32> to vector<1x128xf32>
    %94 = arith.addf %92, %93 : vector<1x128xf32>
    %95 = arith.negf %94 : vector<1x128xf32>
    %96 = math.exp %95 : vector<1x128xf32>
    %cst_15 = arith.constant 1.000000e+00 : f32
    %97 = vector.broadcast %cst_15 : f32 to vector<1x128xf32>
    %98 = arith.addf %97, %96 : vector<1x128xf32>
    %99 = arith.divf %97, %98 : vector<1x128xf32>
    %100 = vector.extract_strided_slice %87 {offsets = [0, 128], sizes = [1, 128], strides = [1, 1]} : vector<1x384xf32> to vector<1x128xf32>
    %101 = vector.extract_strided_slice %91 {offsets = [0, 128], sizes = [1, 128], strides = [1, 1]} : vector<1x384xf32> to vector<1x128xf32>
    %102 = arith.addf %100, %101 : vector<1x128xf32>
    %103 = arith.negf %102 : vector<1x128xf32>
    %104 = math.exp %103 : vector<1x128xf32>
    %cst_16 = arith.constant 1.000000e+00 : f32
    %105 = vector.broadcast %cst_16 : f32 to vector<1x128xf32>
    %106 = arith.addf %105, %104 : vector<1x128xf32>
    %107 = arith.divf %105, %106 : vector<1x128xf32>
    %108 = vector.extract_strided_slice %87 {offsets = [0, 256], sizes = [1, 128], strides = [1, 1]} : vector<1x384xf32> to vector<1x128xf32>
    %109 = vector.extract_strided_slice %91 {offsets = [0, 256], sizes = [1, 128], strides = [1, 1]} : vector<1x384xf32> to vector<1x128xf32>
    %110 = arith.mulf %99, %109 : vector<1x128xf32>
    %111 = arith.addf %108, %110 : vector<1x128xf32>
    %112 = math.tanh %111 : vector<1x128xf32>
    %cst_17 = arith.constant 1.000000e+00 : f32
    %113 = vector.broadcast %cst_17 : f32 to vector<1x128xf32>
    %114 = arith.subf %113, %107 : vector<1x128xf32>
    %115 = arith.mulf %114, %112 : vector<1x128xf32>
    %116 = arith.mulf %107, %86 : vector<1x128xf32>
    %117 = arith.addf %115, %116 : vector<1x128xf32>
    %c1_i32 = arith.constant 1 : i32
    %118 = arith.cmpi sgt, %0, %c1_i32 : i32
    %cst_18 = arith.constant 0.000000e+00 : f32
    %119 = vector.broadcast %cst_18 : f32 to vector<1x128xf32>
    %120 = arith.select %118, %117, %119 : vector<1x128xf32>
    %121 = arith.select %118, %117, %86 : vector<1x128xf32>
    %122 = vector.extract_strided_slice %50 {offsets = [2, 0], sizes = [1, 384], strides = [1, 1]} : vector<8x384xf32> to vector<1x384xf32>
    %c128_19 = arith.constant 128 : index
    %c0_20 = arith.constant 0 : index
    %123 = vector.load %arg2[%c128_19, %c0_20] : memref<256x384xbf16, #tpu.memory_space<vmem>>, vector<128x384xbf16>
    %124 = arith.truncf %121 : vector<1x128xf32> to vector<1x128xbf16>
    %cst_21 = arith.constant dense<0.000000e+00> : vector<1x384xf32>
    %125 = tpu.matmul %124, %123, %cst_21 {dimension_numbers = #tpu.dot_dimension_numbers<[1], [0], [0], [1], [0, 0, 1, 1], [], []>} : vector<1x128xbf16>, vector<128x384xbf16>, vector<1x384xf32> -> vector<1x384xf32>
    %126 = arith.addf %125, %2 : vector<1x384xf32>
    %127 = vector.extract_strided_slice %122 {offsets = [0, 0], sizes = [1, 128], strides = [1, 1]} : vector<1x384xf32> to vector<1x128xf32>
    %128 = vector.extract_strided_slice %126 {offsets = [0, 0], sizes = [1, 128], strides = [1, 1]} : vector<1x384xf32> to vector<1x128xf32>
    %129 = arith.addf %127, %128 : vector<1x128xf32>
    %130 = arith.negf %129 : vector<1x128xf32>
    %131 = math.exp %130 : vector<1x128xf32>
    %cst_22 = arith.constant 1.000000e+00 : f32
    %132 = vector.broadcast %cst_22 : f32 to vector<1x128xf32>
    %133 = arith.addf %132, %131 : vector<1x128xf32>
    %134 = arith.divf %132, %133 : vector<1x128xf32>
    %135 = vector.extract_strided_slice %122 {offsets = [0, 128], sizes = [1, 128], strides = [1, 1]} : vector<1x384xf32> to vector<1x128xf32>
    %136 = vector.extract_strided_slice %126 {offsets = [0, 128], sizes = [1, 128], strides = [1, 1]} : vector<1x384xf32> to vector<1x128xf32>
    %137 = arith.addf %135, %136 : vector<1x128xf32>
    %138 = arith.negf %137 : vector<1x128xf32>
    %139 = math.exp %138 : vector<1x128xf32>
    %cst_23 = arith.constant 1.000000e+00 : f32
    %140 = vector.broadcast %cst_23 : f32 to vector<1x128xf32>
    %141 = arith.addf %140, %139 : vector<1x128xf32>
    %142 = arith.divf %140, %141 : vector<1x128xf32>
    %143 = vector.extract_strided_slice %122 {offsets = [0, 256], sizes = [1, 128], strides = [1, 1]} : vector<1x384xf32> to vector<1x128xf32>
    %144 = vector.extract_strided_slice %126 {offsets = [0, 256], sizes = [1, 128], strides = [1, 1]} : vector<1x384xf32> to vector<1x128xf32>
    %145 = arith.mulf %134, %144 : vector<1x128xf32>
    %146 = arith.addf %143, %145 : vector<1x128xf32>
    %147 = math.tanh %146 : vector<1x128xf32>
    %cst_24 = arith.constant 1.000000e+00 : f32
    %148 = vector.broadcast %cst_24 : f32 to vector<1x128xf32>
    %149 = arith.subf %148, %142 : vector<1x128xf32>
    %150 = arith.mulf %149, %147 : vector<1x128xf32>
    %151 = arith.mulf %142, %121 : vector<1x128xf32>
    %152 = arith.addf %150, %151 : vector<1x128xf32>
    %c2_i32 = arith.constant 2 : i32
    %153 = arith.cmpi sgt, %0, %c2_i32 : i32
    %cst_25 = arith.constant 0.000000e+00 : f32
    %154 = vector.broadcast %cst_25 : f32 to vector<1x128xf32>
    %155 = arith.select %153, %152, %154 : vector<1x128xf32>
    %156 = arith.select %153, %152, %121 : vector<1x128xf32>
    %157 = vector.extract_strided_slice %50 {offsets = [3, 0], sizes = [1, 384], strides = [1, 1]} : vector<8x384xf32> to vector<1x384xf32>
    %c128_26 = arith.constant 128 : index
    %c0_27 = arith.constant 0 : index
    %158 = vector.load %arg2[%c128_26, %c0_27] : memref<256x384xbf16, #tpu.memory_space<vmem>>, vector<128x384xbf16>
    %159 = arith.truncf %156 : vector<1x128xf32> to vector<1x128xbf16>
    %cst_28 = arith.constant dense<0.000000e+00> : vector<1x384xf32>
    %160 = tpu.matmul %159, %158, %cst_28 {dimension_numbers = #tpu.dot_dimension_numbers<[1], [0], [0], [1], [0, 0, 1, 1], [], []>} : vector<1x128xbf16>, vector<128x384xbf16>, vector<1x384xf32> -> vector<1x384xf32>
    %161 = arith.addf %160, %2 : vector<1x384xf32>
    %162 = vector.extract_strided_slice %157 {offsets = [0, 0], sizes = [1, 128], strides = [1, 1]} : vector<1x384xf32> to vector<1x128xf32>
    %163 = vector.extract_strided_slice %161 {offsets = [0, 0], sizes = [1, 128], strides = [1, 1]} : vector<1x384xf32> to vector<1x128xf32>
    %164 = arith.addf %162, %163 : vector<1x128xf32>
    %165 = arith.negf %164 : vector<1x128xf32>
    %166 = math.exp %165 : vector<1x128xf32>
    %cst_29 = arith.constant 1.000000e+00 : f32
    %167 = vector.broadcast %cst_29 : f32 to vector<1x128xf32>
    %168 = arith.addf %167, %166 : vector<1x128xf32>
    %169 = arith.divf %167, %168 : vector<1x128xf32>
    %170 = vector.extract_strided_slice %157 {offsets = [0, 128], sizes = [1, 128], strides = [1, 1]} : vector<1x384xf32> to vector<1x128xf32>
    %171 = vector.extract_strided_slice %161 {offsets = [0, 128], sizes = [1, 128], strides = [1, 1]} : vector<1x384xf32> to vector<1x128xf32>
    %172 = arith.addf %170, %171 : vector<1x128xf32>
    %173 = arith.negf %172 : vector<1x128xf32>
    %174 = math.exp %173 : vector<1x128xf32>
    %cst_30 = arith.constant 1.000000e+00 : f32
    %175 = vector.broadcast %cst_30 : f32 to vector<1x128xf32>
    %176 = arith.addf %175, %174 : vector<1x128xf32>
    %177 = arith.divf %175, %176 : vector<1x128xf32>
    %178 = vector.extract_strided_slice %157 {offsets = [0, 256], sizes = [1, 128], strides = [1, 1]} : vector<1x384xf32> to vector<1x128xf32>
    %179 = vector.extract_strided_slice %161 {offsets = [0, 256], sizes = [1, 128], strides = [1, 1]} : vector<1x384xf32> to vector<1x128xf32>
    %180 = arith.mulf %169, %179 : vector<1x128xf32>
    %181 = arith.addf %178, %180 : vector<1x128xf32>
    %182 = math.tanh %181 : vector<1x128xf32>
    %cst_31 = arith.constant 1.000000e+00 : f32
    %183 = vector.broadcast %cst_31 : f32 to vector<1x128xf32>
    %184 = arith.subf %183, %177 : vector<1x128xf32>
    %185 = arith.mulf %184, %182 : vector<1x128xf32>
    %186 = arith.mulf %177, %156 : vector<1x128xf32>
    %187 = arith.addf %185, %186 : vector<1x128xf32>
    %c3_i32 = arith.constant 3 : i32
    %188 = arith.cmpi sgt, %0, %c3_i32 : i32
    %cst_32 = arith.constant 0.000000e+00 : f32
    %189 = vector.broadcast %cst_32 : f32 to vector<1x128xf32>
    %190 = arith.select %188, %187, %189 : vector<1x128xf32>
    %191 = arith.select %188, %187, %156 : vector<1x128xf32>
    %192 = vector.extract_strided_slice %50 {offsets = [4, 0], sizes = [1, 384], strides = [1, 1]} : vector<8x384xf32> to vector<1x384xf32>
    %c128_33 = arith.constant 128 : index
    %c0_34 = arith.constant 0 : index
    %193 = vector.load %arg2[%c128_33, %c0_34] : memref<256x384xbf16, #tpu.memory_space<vmem>>, vector<128x384xbf16>
    %194 = arith.truncf %191 : vector<1x128xf32> to vector<1x128xbf16>
    %cst_35 = arith.constant dense<0.000000e+00> : vector<1x384xf32>
    %195 = tpu.matmul %194, %193, %cst_35 {dimension_numbers = #tpu.dot_dimension_numbers<[1], [0], [0], [1], [0, 0, 1, 1], [], []>} : vector<1x128xbf16>, vector<128x384xbf16>, vector<1x384xf32> -> vector<1x384xf32>
    %196 = arith.addf %195, %2 : vector<1x384xf32>
    %197 = vector.extract_strided_slice %192 {offsets = [0, 0], sizes = [1, 128], strides = [1, 1]} : vector<1x384xf32> to vector<1x128xf32>
    %198 = vector.extract_strided_slice %196 {offsets = [0, 0], sizes = [1, 128], strides = [1, 1]} : vector<1x384xf32> to vector<1x128xf32>
    %199 = arith.addf %197, %198 : vector<1x128xf32>
    %200 = arith.negf %199 : vector<1x128xf32>
    %201 = math.exp %200 : vector<1x128xf32>
    %cst_36 = arith.constant 1.000000e+00 : f32
    %202 = vector.broadcast %cst_36 : f32 to vector<1x128xf32>
    %203 = arith.addf %202, %201 : vector<1x128xf32>
    %204 = arith.divf %202, %203 : vector<1x128xf32>
    %205 = vector.extract_strided_slice %192 {offsets = [0, 128], sizes = [1, 128], strides = [1, 1]} : vector<1x384xf32> to vector<1x128xf32>
    %206 = vector.extract_strided_slice %196 {offsets = [0, 128], sizes = [1, 128], strides = [1, 1]} : vector<1x384xf32> to vector<1x128xf32>
    %207 = arith.addf %205, %206 : vector<1x128xf32>
    %208 = arith.negf %207 : vector<1x128xf32>
    %209 = math.exp %208 : vector<1x128xf32>
    %cst_37 = arith.constant 1.000000e+00 : f32
    %210 = vector.broadcast %cst_37 : f32 to vector<1x128xf32>
    %211 = arith.addf %210, %209 : vector<1x128xf32>
    %212 = arith.divf %210, %211 : vector<1x128xf32>
    %213 = vector.extract_strided_slice %192 {offsets = [0, 256], sizes = [1, 128], strides = [1, 1]} : vector<1x384xf32> to vector<1x128xf32>
    %214 = vector.extract_strided_slice %196 {offsets = [0, 256], sizes = [1, 128], strides = [1, 1]} : vector<1x384xf32> to vector<1x128xf32>
    %215 = arith.mulf %204, %214 : vector<1x128xf32>
    %216 = arith.addf %213, %215 : vector<1x128xf32>
    %217 = math.tanh %216 : vector<1x128xf32>
    %cst_38 = arith.constant 1.000000e+00 : f32
    %218 = vector.broadcast %cst_38 : f32 to vector<1x128xf32>
    %219 = arith.subf %218, %212 : vector<1x128xf32>
    %220 = arith.mulf %219, %217 : vector<1x128xf32>
    %221 = arith.mulf %212, %191 : vector<1x128xf32>
    %222 = arith.addf %220, %221 : vector<1x128xf32>
    %c4_i32 = arith.constant 4 : i32
    %223 = arith.cmpi sgt, %0, %c4_i32 : i32
    %cst_39 = arith.constant 0.000000e+00 : f32
    %224 = vector.broadcast %cst_39 : f32 to vector<1x128xf32>
    %225 = arith.select %223, %222, %224 : vector<1x128xf32>
    %226 = arith.select %223, %222, %191 : vector<1x128xf32>
    %227 = vector.extract_strided_slice %50 {offsets = [5, 0], sizes = [1, 384], strides = [1, 1]} : vector<8x384xf32> to vector<1x384xf32>
    %c128_40 = arith.constant 128 : index
    %c0_41 = arith.constant 0 : index
    %228 = vector.load %arg2[%c128_40, %c0_41] : memref<256x384xbf16, #tpu.memory_space<vmem>>, vector<128x384xbf16>
    %229 = arith.truncf %226 : vector<1x128xf32> to vector<1x128xbf16>
    %cst_42 = arith.constant dense<0.000000e+00> : vector<1x384xf32>
    %230 = tpu.matmul %229, %228, %cst_42 {dimension_numbers = #tpu.dot_dimension_numbers<[1], [0], [0], [1], [0, 0, 1, 1], [], []>} : vector<1x128xbf16>, vector<128x384xbf16>, vector<1x384xf32> -> vector<1x384xf32>
    %231 = arith.addf %230, %2 : vector<1x384xf32>
    %232 = vector.extract_strided_slice %227 {offsets = [0, 0], sizes = [1, 128], strides = [1, 1]} : vector<1x384xf32> to vector<1x128xf32>
    %233 = vector.extract_strided_slice %231 {offsets = [0, 0], sizes = [1, 128], strides = [1, 1]} : vector<1x384xf32> to vector<1x128xf32>
    %234 = arith.addf %232, %233 : vector<1x128xf32>
    %235 = arith.negf %234 : vector<1x128xf32>
    %236 = math.exp %235 : vector<1x128xf32>
    %cst_43 = arith.constant 1.000000e+00 : f32
    %237 = vector.broadcast %cst_43 : f32 to vector<1x128xf32>
    %238 = arith.addf %237, %236 : vector<1x128xf32>
    %239 = arith.divf %237, %238 : vector<1x128xf32>
    %240 = vector.extract_strided_slice %227 {offsets = [0, 128], sizes = [1, 128], strides = [1, 1]} : vector<1x384xf32> to vector<1x128xf32>
    %241 = vector.extract_strided_slice %231 {offsets = [0, 128], sizes = [1, 128], strides = [1, 1]} : vector<1x384xf32> to vector<1x128xf32>
    %242 = arith.addf %240, %241 : vector<1x128xf32>
    %243 = arith.negf %242 : vector<1x128xf32>
    %244 = math.exp %243 : vector<1x128xf32>
    %cst_44 = arith.constant 1.000000e+00 : f32
    %245 = vector.broadcast %cst_44 : f32 to vector<1x128xf32>
    %246 = arith.addf %245, %244 : vector<1x128xf32>
    %247 = arith.divf %245, %246 : vector<1x128xf32>
    %248 = vector.extract_strided_slice %227 {offsets = [0, 256], sizes = [1, 128], strides = [1, 1]} : vector<1x384xf32> to vector<1x128xf32>
    %249 = vector.extract_strided_slice %231 {offsets = [0, 256], sizes = [1, 128], strides = [1, 1]} : vector<1x384xf32> to vector<1x128xf32>
    %250 = arith.mulf %239, %249 : vector<1x128xf32>
    %251 = arith.addf %248, %250 : vector<1x128xf32>
    %252 = math.tanh %251 : vector<1x128xf32>
    %cst_45 = arith.constant 1.000000e+00 : f32
    %253 = vector.broadcast %cst_45 : f32 to vector<1x128xf32>
    %254 = arith.subf %253, %247 : vector<1x128xf32>
    %255 = arith.mulf %254, %252 : vector<1x128xf32>
    %256 = arith.mulf %247, %226 : vector<1x128xf32>
    %257 = arith.addf %255, %256 : vector<1x128xf32>
    %c5_i32 = arith.constant 5 : i32
    %258 = arith.cmpi sgt, %0, %c5_i32 : i32
    %cst_46 = arith.constant 0.000000e+00 : f32
    %259 = vector.broadcast %cst_46 : f32 to vector<1x128xf32>
    %260 = arith.select %258, %257, %259 : vector<1x128xf32>
    %261 = arith.select %258, %257, %226 : vector<1x128xf32>
    %262 = vector.extract_strided_slice %50 {offsets = [6, 0], sizes = [1, 384], strides = [1, 1]} : vector<8x384xf32> to vector<1x384xf32>
    %c128_47 = arith.constant 128 : index
    %c0_48 = arith.constant 0 : index
    %263 = vector.load %arg2[%c128_47, %c0_48] : memref<256x384xbf16, #tpu.memory_space<vmem>>, vector<128x384xbf16>
    %264 = arith.truncf %261 : vector<1x128xf32> to vector<1x128xbf16>
    %cst_49 = arith.constant dense<0.000000e+00> : vector<1x384xf32>
    %265 = tpu.matmul %264, %263, %cst_49 {dimension_numbers = #tpu.dot_dimension_numbers<[1], [0], [0], [1], [0, 0, 1, 1], [], []>} : vector<1x128xbf16>, vector<128x384xbf16>, vector<1x384xf32> -> vector<1x384xf32>
    %266 = arith.addf %265, %2 : vector<1x384xf32>
    %267 = vector.extract_strided_slice %262 {offsets = [0, 0], sizes = [1, 128], strides = [1, 1]} : vector<1x384xf32> to vector<1x128xf32>
    %268 = vector.extract_strided_slice %266 {offsets = [0, 0], sizes = [1, 128], strides = [1, 1]} : vector<1x384xf32> to vector<1x128xf32>
    %269 = arith.addf %267, %268 : vector<1x128xf32>
    %270 = arith.negf %269 : vector<1x128xf32>
    %271 = math.exp %270 : vector<1x128xf32>
    %cst_50 = arith.constant 1.000000e+00 : f32
    %272 = vector.broadcast %cst_50 : f32 to vector<1x128xf32>
    %273 = arith.addf %272, %271 : vector<1x128xf32>
    %274 = arith.divf %272, %273 : vector<1x128xf32>
    %275 = vector.extract_strided_slice %262 {offsets = [0, 128], sizes = [1, 128], strides = [1, 1]} : vector<1x384xf32> to vector<1x128xf32>
    %276 = vector.extract_strided_slice %266 {offsets = [0, 128], sizes = [1, 128], strides = [1, 1]} : vector<1x384xf32> to vector<1x128xf32>
    %277 = arith.addf %275, %276 : vector<1x128xf32>
    %278 = arith.negf %277 : vector<1x128xf32>
    %279 = math.exp %278 : vector<1x128xf32>
    %cst_51 = arith.constant 1.000000e+00 : f32
    %280 = vector.broadcast %cst_51 : f32 to vector<1x128xf32>
    %281 = arith.addf %280, %279 : vector<1x128xf32>
    %282 = arith.divf %280, %281 : vector<1x128xf32>
    %283 = vector.extract_strided_slice %262 {offsets = [0, 256], sizes = [1, 128], strides = [1, 1]} : vector<1x384xf32> to vector<1x128xf32>
    %284 = vector.extract_strided_slice %266 {offsets = [0, 256], sizes = [1, 128], strides = [1, 1]} : vector<1x384xf32> to vector<1x128xf32>
    %285 = arith.mulf %274, %284 : vector<1x128xf32>
    %286 = arith.addf %283, %285 : vector<1x128xf32>
    %287 = math.tanh %286 : vector<1x128xf32>
    %cst_52 = arith.constant 1.000000e+00 : f32
    %288 = vector.broadcast %cst_52 : f32 to vector<1x128xf32>
    %289 = arith.subf %288, %282 : vector<1x128xf32>
    %290 = arith.mulf %289, %287 : vector<1x128xf32>
    %291 = arith.mulf %282, %261 : vector<1x128xf32>
    %292 = arith.addf %290, %291 : vector<1x128xf32>
    %c6_i32 = arith.constant 6 : i32
    %293 = arith.cmpi sgt, %0, %c6_i32 : i32
    %cst_53 = arith.constant 0.000000e+00 : f32
    %294 = vector.broadcast %cst_53 : f32 to vector<1x128xf32>
    %295 = arith.select %293, %292, %294 : vector<1x128xf32>
    %296 = arith.select %293, %292, %261 : vector<1x128xf32>
    %297 = vector.extract_strided_slice %50 {offsets = [7, 0], sizes = [1, 384], strides = [1, 1]} : vector<8x384xf32> to vector<1x384xf32>
    %c128_54 = arith.constant 128 : index
    %c0_55 = arith.constant 0 : index
    %298 = vector.load %arg2[%c128_54, %c0_55] : memref<256x384xbf16, #tpu.memory_space<vmem>>, vector<128x384xbf16>
    %299 = arith.truncf %296 : vector<1x128xf32> to vector<1x128xbf16>
    %cst_56 = arith.constant dense<0.000000e+00> : vector<1x384xf32>
    %300 = tpu.matmul %299, %298, %cst_56 {dimension_numbers = #tpu.dot_dimension_numbers<[1], [0], [0], [1], [0, 0, 1, 1], [], []>} : vector<1x128xbf16>, vector<128x384xbf16>, vector<1x384xf32> -> vector<1x384xf32>
    %301 = arith.addf %300, %2 : vector<1x384xf32>
    %302 = vector.extract_strided_slice %297 {offsets = [0, 0], sizes = [1, 128], strides = [1, 1]} : vector<1x384xf32> to vector<1x128xf32>
    %303 = vector.extract_strided_slice %301 {offsets = [0, 0], sizes = [1, 128], strides = [1, 1]} : vector<1x384xf32> to vector<1x128xf32>
    %304 = arith.addf %302, %303 : vector<1x128xf32>
    %305 = arith.negf %304 : vector<1x128xf32>
    %306 = math.exp %305 : vector<1x128xf32>
    %cst_57 = arith.constant 1.000000e+00 : f32
    %307 = vector.broadcast %cst_57 : f32 to vector<1x128xf32>
    %308 = arith.addf %307, %306 : vector<1x128xf32>
    %309 = arith.divf %307, %308 : vector<1x128xf32>
    %310 = vector.extract_strided_slice %297 {offsets = [0, 128], sizes = [1, 128], strides = [1, 1]} : vector<1x384xf32> to vector<1x128xf32>
    %311 = vector.extract_strided_slice %301 {offsets = [0, 128], sizes = [1, 128], strides = [1, 1]} : vector<1x384xf32> to vector<1x128xf32>
    %312 = arith.addf %310, %311 : vector<1x128xf32>
    %313 = arith.negf %312 : vector<1x128xf32>
    %314 = math.exp %313 : vector<1x128xf32>
    %cst_58 = arith.constant 1.000000e+00 : f32
    %315 = vector.broadcast %cst_58 : f32 to vector<1x128xf32>
    %316 = arith.addf %315, %314 : vector<1x128xf32>
    %317 = arith.divf %315, %316 : vector<1x128xf32>
    %318 = vector.extract_strided_slice %297 {offsets = [0, 256], sizes = [1, 128], strides = [1, 1]} : vector<1x384xf32> to vector<1x128xf32>
    %319 = vector.extract_strided_slice %301 {offsets = [0, 256], sizes = [1, 128], strides = [1, 1]} : vector<1x384xf32> to vector<1x128xf32>
    %320 = arith.mulf %309, %319 : vector<1x128xf32>
    %321 = arith.addf %318, %320 : vector<1x128xf32>
    %322 = math.tanh %321 : vector<1x128xf32>
    %cst_59 = arith.constant 1.000000e+00 : f32
    %323 = vector.broadcast %cst_59 : f32 to vector<1x128xf32>
    %324 = arith.subf %323, %317 : vector<1x128xf32>
    %325 = arith.mulf %324, %322 : vector<1x128xf32>
    %326 = arith.mulf %317, %296 : vector<1x128xf32>
    %327 = arith.addf %325, %326 : vector<1x128xf32>
    %c7_i32 = arith.constant 7 : i32
    %328 = arith.cmpi sgt, %0, %c7_i32 : i32
    %cst_60 = arith.constant 0.000000e+00 : f32
    %329 = vector.broadcast %cst_60 : f32 to vector<1x128xf32>
    %330 = arith.select %328, %327, %329 : vector<1x128xf32>
    %331 = arith.select %328, %327, %296 : vector<1x128xf32>
    %332 = tpu.concatenate %85, %120, %155, %190, %225, %260, %295, %330 in 0 : vector<1x128xf32>, vector<1x128xf32>, vector<1x128xf32>, vector<1x128xf32>, vector<1x128xf32>, vector<1x128xf32>, vector<1x128xf32>, vector<1x128xf32> -> vector<8x128xf32>
    %333 = arith.truncf %332 : vector<8x128xf32> to vector<8x128xbf16>
    %334 = tpu.transpose %332, [1, 0] : vector<8x128xf32> -> vector<128x8xf32>
    %335 = arith.truncf %334 : vector<128x8xf32> to vector<128x8xbf16>
    %c1_i32_61 = arith.constant 1 : i32
    %336 = vector.broadcast %c1_i32_61 : i32 to vector<1x128xi32>
    %337 = arith.cmpi eq, %6, %336 : vector<1x128xi32>
    %338 = arith.extui %337 : vector<1x128xi1> to vector<1x128xi32>
    %339 = arith.sitofp %338 : vector<1x128xi32> to vector<1x128xf32>
    %340 = arith.truncf %339 : vector<1x128xf32> to vector<1x128xbf16>
    %c0_62 = arith.constant 0 : index
    %c0_63 = arith.constant 0 : index
    %341 = vector.load %arg3[%c0_62, %c0_63] : memref<256x384xbf16, #tpu.memory_space<vmem>>, vector<128x384xbf16>
    %cst_64 = arith.constant dense<0.000000e+00> : vector<1x384xf32>
    %342 = tpu.matmul %340, %341, %cst_64 {dimension_numbers = #tpu.dot_dimension_numbers<[1], [0], [0], [1], [0, 0, 1, 1], [], []>} : vector<1x128xbf16>, vector<128x384xbf16>, vector<1x384xf32> -> vector<1x384xf32>
    %c128_65 = arith.constant 128 : index
    %c0_66 = arith.constant 0 : index
    %343 = vector.load %arg3[%c128_65, %c0_66] : memref<256x384xbf16, #tpu.memory_space<vmem>>, vector<128x384xbf16>
    %344 = arith.truncf %331 : vector<1x128xf32> to vector<1x128xbf16>
    %cst_67 = arith.constant dense<0.000000e+00> : vector<1x384xf32>
    %345 = tpu.matmul %344, %343, %cst_67 {dimension_numbers = #tpu.dot_dimension_numbers<[1], [0], [0], [1], [0, 0, 1, 1], [], []>} : vector<1x128xbf16>, vector<128x384xbf16>, vector<1x384xf32> -> vector<1x384xf32>
    %346 = arith.addf %345, %3 : vector<1x384xf32>
    %347 = vector.extract_strided_slice %342 {offsets = [0, 0], sizes = [1, 128], strides = [1, 1]} : vector<1x384xf32> to vector<1x128xf32>
    %348 = vector.extract_strided_slice %346 {offsets = [0, 0], sizes = [1, 128], strides = [1, 1]} : vector<1x384xf32> to vector<1x128xf32>
    %349 = arith.addf %347, %348 : vector<1x128xf32>
    %350 = arith.negf %349 : vector<1x128xf32>
    %351 = math.exp %350 : vector<1x128xf32>
    %cst_68 = arith.constant 1.000000e+00 : f32
    %352 = vector.broadcast %cst_68 : f32 to vector<1x128xf32>
    %353 = arith.addf %352, %351 : vector<1x128xf32>
    %354 = arith.divf %352, %353 : vector<1x128xf32>
    %355 = vector.extract_strided_slice %342 {offsets = [0, 128], sizes = [1, 128], strides = [1, 1]} : vector<1x384xf32> to vector<1x128xf32>
    %356 = vector.extract_strided_slice %346 {offsets = [0, 128], sizes = [1, 128], strides = [1, 1]} : vector<1x384xf32> to vector<1x128xf32>
    %357 = arith.addf %355, %356 : vector<1x128xf32>
    %358 = arith.negf %357 : vector<1x128xf32>
    %359 = math.exp %358 : vector<1x128xf32>
    %cst_69 = arith.constant 1.000000e+00 : f32
    %360 = vector.broadcast %cst_69 : f32 to vector<1x128xf32>
    %361 = arith.addf %360, %359 : vector<1x128xf32>
    %362 = arith.divf %360, %361 : vector<1x128xf32>
    %363 = vector.extract_strided_slice %342 {offsets = [0, 256], sizes = [1, 128], strides = [1, 1]} : vector<1x384xf32> to vector<1x128xf32>
    %364 = vector.extract_strided_slice %346 {offsets = [0, 256], sizes = [1, 128], strides = [1, 1]} : vector<1x384xf32> to vector<1x128xf32>
    %365 = arith.mulf %354, %364 : vector<1x128xf32>
    %366 = arith.addf %363, %365 : vector<1x128xf32>
    %367 = math.tanh %366 : vector<1x128xf32>
    %cst_70 = arith.constant 1.000000e+00 : f32
    %368 = vector.broadcast %cst_70 : f32 to vector<1x128xf32>
    %369 = arith.subf %368, %362 : vector<1x128xf32>
    %370 = arith.mulf %369, %367 : vector<1x128xf32>
    %371 = arith.mulf %362, %331 : vector<1x128xf32>
    %372 = arith.addf %370, %371 : vector<1x128xf32>
    %373 = arith.truncf %372 : vector<1x128xf32> to vector<1x128xbf16>
    %cst_71 = arith.constant dense<0.000000e+00> : vector<1x8xf32>
    %374 = tpu.matmul %373, %335, %cst_71 {dimension_numbers = #tpu.dot_dimension_numbers<[1], [0], [0], [1], [0, 0, 1, 1], [], []>} : vector<1x128xbf16>, vector<128x8xbf16>, vector<1x8xf32> -> vector<1x8xf32>
    %cst_72 = arith.constant dense<0xFF800000> : vector<1xf32>
    %375 = vector.multi_reduction <maximumf>, %374, %cst_72 [1] : vector<1x8xf32> to vector<1xf32>
    %376 = vector.shape_cast %375 : vector<1xf32> to vector<1x1xf32>
    %377 = vector.broadcast %376 : vector<1x1xf32> to vector<1x8xf32>
    %378 = arith.subf %374, %377 : vector<1x8xf32>
    %379 = math.exp %378 : vector<1x8xf32>
    %cst_73 = arith.constant dense<0.000000e+00> : vector<1xf32>
    %380 = vector.multi_reduction <add>, %379, %cst_73 [1] : vector<1x8xf32> to vector<1xf32>
    %381 = vector.shape_cast %380 : vector<1xf32> to vector<1x1xf32>
    %382 = vector.broadcast %381 : vector<1x1xf32> to vector<1x8xf32>
    %383 = arith.divf %379, %382 : vector<1x8xf32>
    %384 = arith.truncf %383 : vector<1x8xf32> to vector<1x8xbf16>
    %cst_74 = arith.constant dense<0.000000e+00> : vector<1x128xf32>
    %385 = tpu.matmul %384, %333, %cst_74 {dimension_numbers = #tpu.dot_dimension_numbers<[1], [0], [0], [1], [0, 0, 1, 1], [], []>} : vector<1x8xbf16>, vector<8x128xbf16>, vector<1x128xf32> -> vector<1x128xf32>
    %386 = tpu.concatenate %372, %385 in 1 : vector<1x128xf32>, vector<1x128xf32> -> vector<1x256xf32>
    %387 = arith.truncf %386 : vector<1x256xf32> to vector<1x256xbf16>
    %c0_75 = arith.constant 0 : index
    %c0_76 = arith.constant 0 : index
    %388 = vector.load %arg4[%c0_75, %c0_76] : memref<384x128xbf16, #tpu.memory_space<vmem>>, vector<256x128xbf16>
    %cst_77 = arith.constant dense<0.000000e+00> : vector<1x128xf32>
    %389 = tpu.matmul %387, %388, %cst_77 {dimension_numbers = #tpu.dot_dimension_numbers<[1], [0], [0], [1], [0, 0, 1, 1], [], []>} : vector<1x256xbf16>, vector<256x128xbf16>, vector<1x128xf32> -> vector<1x128xf32>
    %390 = arith.addf %389, %4 : vector<1x128xf32>
    %391 = math.tanh %390 : vector<1x128xf32>
    %392 = arith.truncf %391 : vector<1x128xf32> to vector<1x128xbf16>
    %c256 = arith.constant 256 : index
    %c0_78 = arith.constant 0 : index
    %393 = vector.load %arg4[%c256, %c0_78] : memref<384x128xbf16, #tpu.memory_space<vmem>>, vector<128x128xbf16>
    %cst_79 = arith.constant dense<0.000000e+00> : vector<1x128xf32>
    %394 = tpu.matmul %392, %393, %cst_79 {dimension_numbers = #tpu.dot_dimension_numbers<[1], [0], [0], [1], [0, 0, 1, 1], [], []>} : vector<1x128xbf16>, vector<128x128xbf16>, vector<1x128xf32> -> vector<1x128xf32>
    %395 = arith.addf %394, %5 : vector<1x128xf32>
    %cst_80 = arith.constant dense<0xFF800000> : vector<1xf32>
    %396 = vector.multi_reduction <maximumf>, %395, %cst_80 [1] : vector<1x128xf32> to vector<1xf32>
    %397 = vector.shape_cast %396 : vector<1xf32> to vector<1x1xf32>
    %398 = vector.broadcast %397 : vector<1x1xf32> to vector<1x128xf32>
    %399 = arith.subf %395, %398 : vector<1x128xf32>
    %400 = math.exp %399 : vector<1x128xf32>
    %cst_81 = arith.constant dense<0.000000e+00> : vector<1xf32>
    %401 = vector.multi_reduction <add>, %400, %cst_81 [1] : vector<1x128xf32> to vector<1xf32>
    %402 = vector.shape_cast %401 : vector<1xf32> to vector<1x1xf32>
    %cst_82 = arith.constant 1.000000e+00 : f32
    %403 = vector.broadcast %cst_82 : f32 to vector<1x1xf32>
    %404 = arith.divf %403, %402 : vector<1x1xf32>
    %405 = vector.broadcast %397 : vector<1x1xf32> to vector<1x128xf32>
    %406 = arith.cmpf oeq, %395, %405 : vector<1x128xf32>
    %c128_i32 = arith.constant 128 : i32
    %407 = vector.broadcast %c128_i32 : i32 to vector<1x128xi32>
    %408 = arith.select %406, %6, %407 : vector<1x128xi1>, vector<1x128xi32>
    %cst_83 = arith.constant dense<2147483647> : vector<1xi32>
    %409 = vector.multi_reduction <minsi>, %408, %cst_83 [1] : vector<1x128xi32> to vector<1xi32>
    %410 = vector.shape_cast %409 : vector<1xi32> to vector<1x1xi32>
    %c127_i32 = arith.constant 127 : i32
    %411 = vector.broadcast %c127_i32 : i32 to vector<1x1xi32>
    %412 = arith.minsi %410, %411 : vector<1x1xi32>
    %413 = vector.broadcast %412 : vector<1x1xi32> to vector<1x128xi32>
    %414 = arith.cmpi eq, %6, %413 : vector<1x128xi32>
    %415 = arith.extui %414 : vector<1x128xi1> to vector<1x128xi32>
    %416 = arith.sitofp %415 : vector<1x128xi32> to vector<1x128xf32>
    %417 = arith.truncf %416 : vector<1x128xf32> to vector<1x128xbf16>
    %c0_84 = arith.constant 0 : index
    %c0_85 = arith.constant 0 : index
    %418 = vector.load %arg3[%c0_84, %c0_85] : memref<256x384xbf16, #tpu.memory_space<vmem>>, vector<128x384xbf16>
    %cst_86 = arith.constant dense<0.000000e+00> : vector<1x384xf32>
    %419 = tpu.matmul %417, %418, %cst_86 {dimension_numbers = #tpu.dot_dimension_numbers<[1], [0], [0], [1], [0, 0, 1, 1], [], []>} : vector<1x128xbf16>, vector<128x384xbf16>, vector<1x384xf32> -> vector<1x384xf32>
    %420 = vector.extract %412[0, 0] : i32 from vector<1x1xi32>
    %c0_87 = arith.constant 0 : index
    %421 = memref.load %arg6[%c0_87] : memref<10xi32, #tpu.memory_space<smem>>
    memref.store %420, %arg6[%c0_87] : memref<10xi32, #tpu.memory_space<smem>>
    %422 = vector.extract %404[0, 0] : f32 from vector<1x1xf32>
    %c0_88 = arith.constant 0 : index
    %423 = memref.load %arg7[%c0_88] : memref<10xf32, #tpu.memory_space<smem>>
    memref.store %422, %arg7[%c0_88] : memref<10xf32, #tpu.memory_space<smem>>
    %c128_89 = arith.constant 128 : index
    %c0_90 = arith.constant 0 : index
    %424 = vector.load %arg3[%c128_89, %c0_90] : memref<256x384xbf16, #tpu.memory_space<vmem>>, vector<128x384xbf16>
    %425 = arith.truncf %372 : vector<1x128xf32> to vector<1x128xbf16>
    %cst_91 = arith.constant dense<0.000000e+00> : vector<1x384xf32>
    %426 = tpu.matmul %425, %424, %cst_91 {dimension_numbers = #tpu.dot_dimension_numbers<[1], [0], [0], [1], [0, 0, 1, 1], [], []>} : vector<1x128xbf16>, vector<128x384xbf16>, vector<1x384xf32> -> vector<1x384xf32>
    %427 = arith.addf %426, %3 : vector<1x384xf32>
    %428 = vector.extract_strided_slice %419 {offsets = [0, 0], sizes = [1, 128], strides = [1, 1]} : vector<1x384xf32> to vector<1x128xf32>
    %429 = vector.extract_strided_slice %427 {offsets = [0, 0], sizes = [1, 128], strides = [1, 1]} : vector<1x384xf32> to vector<1x128xf32>
    %430 = arith.addf %428, %429 : vector<1x128xf32>
    %431 = arith.negf %430 : vector<1x128xf32>
    %432 = math.exp %431 : vector<1x128xf32>
    %cst_92 = arith.constant 1.000000e+00 : f32
    %433 = vector.broadcast %cst_92 : f32 to vector<1x128xf32>
    %434 = arith.addf %433, %432 : vector<1x128xf32>
    %435 = arith.divf %433, %434 : vector<1x128xf32>
    %436 = vector.extract_strided_slice %419 {offsets = [0, 128], sizes = [1, 128], strides = [1, 1]} : vector<1x384xf32> to vector<1x128xf32>
    %437 = vector.extract_strided_slice %427 {offsets = [0, 128], sizes = [1, 128], strides = [1, 1]} : vector<1x384xf32> to vector<1x128xf32>
    %438 = arith.addf %436, %437 : vector<1x128xf32>
    %439 = arith.negf %438 : vector<1x128xf32>
    %440 = math.exp %439 : vector<1x128xf32>
    %cst_93 = arith.constant 1.000000e+00 : f32
    %441 = vector.broadcast %cst_93 : f32 to vector<1x128xf32>
    %442 = arith.addf %441, %440 : vector<1x128xf32>
    %443 = arith.divf %441, %442 : vector<1x128xf32>
    %444 = vector.extract_strided_slice %419 {offsets = [0, 256], sizes = [1, 128], strides = [1, 1]} : vector<1x384xf32> to vector<1x128xf32>
    %445 = vector.extract_strided_slice %427 {offsets = [0, 256], sizes = [1, 128], strides = [1, 1]} : vector<1x384xf32> to vector<1x128xf32>
    %446 = arith.mulf %435, %445 : vector<1x128xf32>
    %447 = arith.addf %444, %446 : vector<1x128xf32>
    %448 = math.tanh %447 : vector<1x128xf32>
    %cst_94 = arith.constant 1.000000e+00 : f32
    %449 = vector.broadcast %cst_94 : f32 to vector<1x128xf32>
    %450 = arith.subf %449, %443 : vector<1x128xf32>
    %451 = arith.mulf %450, %448 : vector<1x128xf32>
    %452 = arith.mulf %443, %372 : vector<1x128xf32>
    %453 = arith.addf %451, %452 : vector<1x128xf32>
    %454 = arith.truncf %453 : vector<1x128xf32> to vector<1x128xbf16>
    %cst_95 = arith.constant dense<0.000000e+00> : vector<1x8xf32>
    %455 = tpu.matmul %454, %335, %cst_95 {dimension_numbers = #tpu.dot_dimension_numbers<[1], [0], [0], [1], [0, 0, 1, 1], [], []>} : vector<1x128xbf16>, vector<128x8xbf16>, vector<1x8xf32> -> vector<1x8xf32>
    %cst_96 = arith.constant dense<0xFF800000> : vector<1xf32>
    %456 = vector.multi_reduction <maximumf>, %455, %cst_96 [1] : vector<1x8xf32> to vector<1xf32>
    %457 = vector.shape_cast %456 : vector<1xf32> to vector<1x1xf32>
    %458 = vector.broadcast %457 : vector<1x1xf32> to vector<1x8xf32>
    %459 = arith.subf %455, %458 : vector<1x8xf32>
    %460 = math.exp %459 : vector<1x8xf32>
    %cst_97 = arith.constant dense<0.000000e+00> : vector<1xf32>
    %461 = vector.multi_reduction <add>, %460, %cst_97 [1] : vector<1x8xf32> to vector<1xf32>
    %462 = vector.shape_cast %461 : vector<1xf32> to vector<1x1xf32>
    %463 = vector.broadcast %462 : vector<1x1xf32> to vector<1x8xf32>
    %464 = arith.divf %460, %463 : vector<1x8xf32>
    %465 = arith.truncf %464 : vector<1x8xf32> to vector<1x8xbf16>
    %cst_98 = arith.constant dense<0.000000e+00> : vector<1x128xf32>
    %466 = tpu.matmul %465, %333, %cst_98 {dimension_numbers = #tpu.dot_dimension_numbers<[1], [0], [0], [1], [0, 0, 1, 1], [], []>} : vector<1x8xbf16>, vector<8x128xbf16>, vector<1x128xf32> -> vector<1x128xf32>
    %467 = tpu.concatenate %453, %466 in 1 : vector<1x128xf32>, vector<1x128xf32> -> vector<1x256xf32>
    %468 = arith.truncf %467 : vector<1x256xf32> to vector<1x256xbf16>
    %c0_99 = arith.constant 0 : index
    %c0_100 = arith.constant 0 : index
    %469 = vector.load %arg4[%c0_99, %c0_100] : memref<384x128xbf16, #tpu.memory_space<vmem>>, vector<256x128xbf16>
    %cst_101 = arith.constant dense<0.000000e+00> : vector<1x128xf32>
    %470 = tpu.matmul %468, %469, %cst_101 {dimension_numbers = #tpu.dot_dimension_numbers<[1], [0], [0], [1], [0, 0, 1, 1], [], []>} : vector<1x256xbf16>, vector<256x128xbf16>, vector<1x128xf32> -> vector<1x128xf32>
    %471 = arith.addf %470, %4 : vector<1x128xf32>
    %472 = math.tanh %471 : vector<1x128xf32>
    %473 = arith.truncf %472 : vector<1x128xf32> to vector<1x128xbf16>
    %c256_102 = arith.constant 256 : index
    %c0_103 = arith.constant 0 : index
    %474 = vector.load %arg4[%c256_102, %c0_103] : memref<384x128xbf16, #tpu.memory_space<vmem>>, vector<128x128xbf16>
    %cst_104 = arith.constant dense<0.000000e+00> : vector<1x128xf32>
    %475 = tpu.matmul %473, %474, %cst_104 {dimension_numbers = #tpu.dot_dimension_numbers<[1], [0], [0], [1], [0, 0, 1, 1], [], []>} : vector<1x128xbf16>, vector<128x128xbf16>, vector<1x128xf32> -> vector<1x128xf32>
    %476 = arith.addf %475, %5 : vector<1x128xf32>
    %cst_105 = arith.constant dense<0xFF800000> : vector<1xf32>
    %477 = vector.multi_reduction <maximumf>, %476, %cst_105 [1] : vector<1x128xf32> to vector<1xf32>
    %478 = vector.shape_cast %477 : vector<1xf32> to vector<1x1xf32>
    %479 = vector.broadcast %478 : vector<1x1xf32> to vector<1x128xf32>
    %480 = arith.subf %476, %479 : vector<1x128xf32>
    %481 = math.exp %480 : vector<1x128xf32>
    %cst_106 = arith.constant dense<0.000000e+00> : vector<1xf32>
    %482 = vector.multi_reduction <add>, %481, %cst_106 [1] : vector<1x128xf32> to vector<1xf32>
    %483 = vector.shape_cast %482 : vector<1xf32> to vector<1x1xf32>
    %cst_107 = arith.constant 1.000000e+00 : f32
    %484 = vector.broadcast %cst_107 : f32 to vector<1x1xf32>
    %485 = arith.divf %484, %483 : vector<1x1xf32>
    %486 = vector.broadcast %478 : vector<1x1xf32> to vector<1x128xf32>
    %487 = arith.cmpf oeq, %476, %486 : vector<1x128xf32>
    %c128_i32_108 = arith.constant 128 : i32
    %488 = vector.broadcast %c128_i32_108 : i32 to vector<1x128xi32>
    %489 = arith.select %487, %6, %488 : vector<1x128xi1>, vector<1x128xi32>
    %cst_109 = arith.constant dense<2147483647> : vector<1xi32>
    %490 = vector.multi_reduction <minsi>, %489, %cst_109 [1] : vector<1x128xi32> to vector<1xi32>
    %491 = vector.shape_cast %490 : vector<1xi32> to vector<1x1xi32>
    %c127_i32_110 = arith.constant 127 : i32
    %492 = vector.broadcast %c127_i32_110 : i32 to vector<1x1xi32>
    %493 = arith.minsi %491, %492 : vector<1x1xi32>
    %494 = vector.broadcast %493 : vector<1x1xi32> to vector<1x128xi32>
    %495 = arith.cmpi eq, %6, %494 : vector<1x128xi32>
    %496 = arith.extui %495 : vector<1x128xi1> to vector<1x128xi32>
    %497 = arith.sitofp %496 : vector<1x128xi32> to vector<1x128xf32>
    %498 = arith.truncf %497 : vector<1x128xf32> to vector<1x128xbf16>
    %c0_111 = arith.constant 0 : index
    %c0_112 = arith.constant 0 : index
    %499 = vector.load %arg3[%c0_111, %c0_112] : memref<256x384xbf16, #tpu.memory_space<vmem>>, vector<128x384xbf16>
    %cst_113 = arith.constant dense<0.000000e+00> : vector<1x384xf32>
    %500 = tpu.matmul %498, %499, %cst_113 {dimension_numbers = #tpu.dot_dimension_numbers<[1], [0], [0], [1], [0, 0, 1, 1], [], []>} : vector<1x128xbf16>, vector<128x384xbf16>, vector<1x384xf32> -> vector<1x384xf32>
    %501 = vector.extract %493[0, 0] : i32 from vector<1x1xi32>
    %c1_114 = arith.constant 1 : index
    %502 = memref.load %arg6[%c1_114] : memref<10xi32, #tpu.memory_space<smem>>
    memref.store %501, %arg6[%c1_114] : memref<10xi32, #tpu.memory_space<smem>>
    %503 = vector.extract %485[0, 0] : f32 from vector<1x1xf32>
    %c1_115 = arith.constant 1 : index
    %504 = memref.load %arg7[%c1_115] : memref<10xf32, #tpu.memory_space<smem>>
    memref.store %503, %arg7[%c1_115] : memref<10xf32, #tpu.memory_space<smem>>
    %c128_116 = arith.constant 128 : index
    %c0_117 = arith.constant 0 : index
    %505 = vector.load %arg3[%c128_116, %c0_117] : memref<256x384xbf16, #tpu.memory_space<vmem>>, vector<128x384xbf16>
    %506 = arith.truncf %453 : vector<1x128xf32> to vector<1x128xbf16>
    %cst_118 = arith.constant dense<0.000000e+00> : vector<1x384xf32>
    %507 = tpu.matmul %506, %505, %cst_118 {dimension_numbers = #tpu.dot_dimension_numbers<[1], [0], [0], [1], [0, 0, 1, 1], [], []>} : vector<1x128xbf16>, vector<128x384xbf16>, vector<1x384xf32> -> vector<1x384xf32>
    %508 = arith.addf %507, %3 : vector<1x384xf32>
    %509 = vector.extract_strided_slice %500 {offsets = [0, 0], sizes = [1, 128], strides = [1, 1]} : vector<1x384xf32> to vector<1x128xf32>
    %510 = vector.extract_strided_slice %508 {offsets = [0, 0], sizes = [1, 128], strides = [1, 1]} : vector<1x384xf32> to vector<1x128xf32>
    %511 = arith.addf %509, %510 : vector<1x128xf32>
    %512 = arith.negf %511 : vector<1x128xf32>
    %513 = math.exp %512 : vector<1x128xf32>
    %cst_119 = arith.constant 1.000000e+00 : f32
    %514 = vector.broadcast %cst_119 : f32 to vector<1x128xf32>
    %515 = arith.addf %514, %513 : vector<1x128xf32>
    %516 = arith.divf %514, %515 : vector<1x128xf32>
    %517 = vector.extract_strided_slice %500 {offsets = [0, 128], sizes = [1, 128], strides = [1, 1]} : vector<1x384xf32> to vector<1x128xf32>
    %518 = vector.extract_strided_slice %508 {offsets = [0, 128], sizes = [1, 128], strides = [1, 1]} : vector<1x384xf32> to vector<1x128xf32>
    %519 = arith.addf %517, %518 : vector<1x128xf32>
    %520 = arith.negf %519 : vector<1x128xf32>
    %521 = math.exp %520 : vector<1x128xf32>
    %cst_120 = arith.constant 1.000000e+00 : f32
    %522 = vector.broadcast %cst_120 : f32 to vector<1x128xf32>
    %523 = arith.addf %522, %521 : vector<1x128xf32>
    %524 = arith.divf %522, %523 : vector<1x128xf32>
    %525 = vector.extract_strided_slice %500 {offsets = [0, 256], sizes = [1, 128], strides = [1, 1]} : vector<1x384xf32> to vector<1x128xf32>
    %526 = vector.extract_strided_slice %508 {offsets = [0, 256], sizes = [1, 128], strides = [1, 1]} : vector<1x384xf32> to vector<1x128xf32>
    %527 = arith.mulf %516, %526 : vector<1x128xf32>
    %528 = arith.addf %525, %527 : vector<1x128xf32>
    %529 = math.tanh %528 : vector<1x128xf32>
    %cst_121 = arith.constant 1.000000e+00 : f32
    %530 = vector.broadcast %cst_121 : f32 to vector<1x128xf32>
    %531 = arith.subf %530, %524 : vector<1x128xf32>
    %532 = arith.mulf %531, %529 : vector<1x128xf32>
    %533 = arith.mulf %524, %453 : vector<1x128xf32>
    %534 = arith.addf %532, %533 : vector<1x128xf32>
    %535 = arith.truncf %534 : vector<1x128xf32> to vector<1x128xbf16>
    %cst_122 = arith.constant dense<0.000000e+00> : vector<1x8xf32>
    %536 = tpu.matmul %535, %335, %cst_122 {dimension_numbers = #tpu.dot_dimension_numbers<[1], [0], [0], [1], [0, 0, 1, 1], [], []>} : vector<1x128xbf16>, vector<128x8xbf16>, vector<1x8xf32> -> vector<1x8xf32>
    %cst_123 = arith.constant dense<0xFF800000> : vector<1xf32>
    %537 = vector.multi_reduction <maximumf>, %536, %cst_123 [1] : vector<1x8xf32> to vector<1xf32>
    %538 = vector.shape_cast %537 : vector<1xf32> to vector<1x1xf32>
    %539 = vector.broadcast %538 : vector<1x1xf32> to vector<1x8xf32>
    %540 = arith.subf %536, %539 : vector<1x8xf32>
    %541 = math.exp %540 : vector<1x8xf32>
    %cst_124 = arith.constant dense<0.000000e+00> : vector<1xf32>
    %542 = vector.multi_reduction <add>, %541, %cst_124 [1] : vector<1x8xf32> to vector<1xf32>
    %543 = vector.shape_cast %542 : vector<1xf32> to vector<1x1xf32>
    %544 = vector.broadcast %543 : vector<1x1xf32> to vector<1x8xf32>
    %545 = arith.divf %541, %544 : vector<1x8xf32>
    %546 = arith.truncf %545 : vector<1x8xf32> to vector<1x8xbf16>
    %cst_125 = arith.constant dense<0.000000e+00> : vector<1x128xf32>
    %547 = tpu.matmul %546, %333, %cst_125 {dimension_numbers = #tpu.dot_dimension_numbers<[1], [0], [0], [1], [0, 0, 1, 1], [], []>} : vector<1x8xbf16>, vector<8x128xbf16>, vector<1x128xf32> -> vector<1x128xf32>
    %548 = tpu.concatenate %534, %547 in 1 : vector<1x128xf32>, vector<1x128xf32> -> vector<1x256xf32>
    %549 = arith.truncf %548 : vector<1x256xf32> to vector<1x256xbf16>
    %c0_126 = arith.constant 0 : index
    %c0_127 = arith.constant 0 : index
    %550 = vector.load %arg4[%c0_126, %c0_127] : memref<384x128xbf16, #tpu.memory_space<vmem>>, vector<256x128xbf16>
    %cst_128 = arith.constant dense<0.000000e+00> : vector<1x128xf32>
    %551 = tpu.matmul %549, %550, %cst_128 {dimension_numbers = #tpu.dot_dimension_numbers<[1], [0], [0], [1], [0, 0, 1, 1], [], []>} : vector<1x256xbf16>, vector<256x128xbf16>, vector<1x128xf32> -> vector<1x128xf32>
    %552 = arith.addf %551, %4 : vector<1x128xf32>
    %553 = math.tanh %552 : vector<1x128xf32>
    %554 = arith.truncf %553 : vector<1x128xf32> to vector<1x128xbf16>
    %c256_129 = arith.constant 256 : index
    %c0_130 = arith.constant 0 : index
    %555 = vector.load %arg4[%c256_129, %c0_130] : memref<384x128xbf16, #tpu.memory_space<vmem>>, vector<128x128xbf16>
    %cst_131 = arith.constant dense<0.000000e+00> : vector<1x128xf32>
    %556 = tpu.matmul %554, %555, %cst_131 {dimension_numbers = #tpu.dot_dimension_numbers<[1], [0], [0], [1], [0, 0, 1, 1], [], []>} : vector<1x128xbf16>, vector<128x128xbf16>, vector<1x128xf32> -> vector<1x128xf32>
    %557 = arith.addf %556, %5 : vector<1x128xf32>
    %cst_132 = arith.constant dense<0xFF800000> : vector<1xf32>
    %558 = vector.multi_reduction <maximumf>, %557, %cst_132 [1] : vector<1x128xf32> to vector<1xf32>
    %559 = vector.shape_cast %558 : vector<1xf32> to vector<1x1xf32>
    %560 = vector.broadcast %559 : vector<1x1xf32> to vector<1x128xf32>
    %561 = arith.subf %557, %560 : vector<1x128xf32>
    %562 = math.exp %561 : vector<1x128xf32>
    %cst_133 = arith.constant dense<0.000000e+00> : vector<1xf32>
    %563 = vector.multi_reduction <add>, %562, %cst_133 [1] : vector<1x128xf32> to vector<1xf32>
    %564 = vector.shape_cast %563 : vector<1xf32> to vector<1x1xf32>
    %cst_134 = arith.constant 1.000000e+00 : f32
    %565 = vector.broadcast %cst_134 : f32 to vector<1x1xf32>
    %566 = arith.divf %565, %564 : vector<1x1xf32>
    %567 = vector.broadcast %559 : vector<1x1xf32> to vector<1x128xf32>
    %568 = arith.cmpf oeq, %557, %567 : vector<1x128xf32>
    %c128_i32_135 = arith.constant 128 : i32
    %569 = vector.broadcast %c128_i32_135 : i32 to vector<1x128xi32>
    %570 = arith.select %568, %6, %569 : vector<1x128xi1>, vector<1x128xi32>
    %cst_136 = arith.constant dense<2147483647> : vector<1xi32>
    %571 = vector.multi_reduction <minsi>, %570, %cst_136 [1] : vector<1x128xi32> to vector<1xi32>
    %572 = vector.shape_cast %571 : vector<1xi32> to vector<1x1xi32>
    %c127_i32_137 = arith.constant 127 : i32
    %573 = vector.broadcast %c127_i32_137 : i32 to vector<1x1xi32>
    %574 = arith.minsi %572, %573 : vector<1x1xi32>
    %575 = vector.broadcast %574 : vector<1x1xi32> to vector<1x128xi32>
    %576 = arith.cmpi eq, %6, %575 : vector<1x128xi32>
    %577 = arith.extui %576 : vector<1x128xi1> to vector<1x128xi32>
    %578 = arith.sitofp %577 : vector<1x128xi32> to vector<1x128xf32>
    %579 = arith.truncf %578 : vector<1x128xf32> to vector<1x128xbf16>
    %c0_138 = arith.constant 0 : index
    %c0_139 = arith.constant 0 : index
    %580 = vector.load %arg3[%c0_138, %c0_139] : memref<256x384xbf16, #tpu.memory_space<vmem>>, vector<128x384xbf16>
    %cst_140 = arith.constant dense<0.000000e+00> : vector<1x384xf32>
    %581 = tpu.matmul %579, %580, %cst_140 {dimension_numbers = #tpu.dot_dimension_numbers<[1], [0], [0], [1], [0, 0, 1, 1], [], []>} : vector<1x128xbf16>, vector<128x384xbf16>, vector<1x384xf32> -> vector<1x384xf32>
    %582 = vector.extract %574[0, 0] : i32 from vector<1x1xi32>
    %c2_141 = arith.constant 2 : index
    %583 = memref.load %arg6[%c2_141] : memref<10xi32, #tpu.memory_space<smem>>
    memref.store %582, %arg6[%c2_141] : memref<10xi32, #tpu.memory_space<smem>>
    %584 = vector.extract %566[0, 0] : f32 from vector<1x1xf32>
    %c2_142 = arith.constant 2 : index
    %585 = memref.load %arg7[%c2_142] : memref<10xf32, #tpu.memory_space<smem>>
    memref.store %584, %arg7[%c2_142] : memref<10xf32, #tpu.memory_space<smem>>
    %c128_143 = arith.constant 128 : index
    %c0_144 = arith.constant 0 : index
    %586 = vector.load %arg3[%c128_143, %c0_144] : memref<256x384xbf16, #tpu.memory_space<vmem>>, vector<128x384xbf16>
    %587 = arith.truncf %534 : vector<1x128xf32> to vector<1x128xbf16>
    %cst_145 = arith.constant dense<0.000000e+00> : vector<1x384xf32>
    %588 = tpu.matmul %587, %586, %cst_145 {dimension_numbers = #tpu.dot_dimension_numbers<[1], [0], [0], [1], [0, 0, 1, 1], [], []>} : vector<1x128xbf16>, vector<128x384xbf16>, vector<1x384xf32> -> vector<1x384xf32>
    %589 = arith.addf %588, %3 : vector<1x384xf32>
    %590 = vector.extract_strided_slice %581 {offsets = [0, 0], sizes = [1, 128], strides = [1, 1]} : vector<1x384xf32> to vector<1x128xf32>
    %591 = vector.extract_strided_slice %589 {offsets = [0, 0], sizes = [1, 128], strides = [1, 1]} : vector<1x384xf32> to vector<1x128xf32>
    %592 = arith.addf %590, %591 : vector<1x128xf32>
    %593 = arith.negf %592 : vector<1x128xf32>
    %594 = math.exp %593 : vector<1x128xf32>
    %cst_146 = arith.constant 1.000000e+00 : f32
    %595 = vector.broadcast %cst_146 : f32 to vector<1x128xf32>
    %596 = arith.addf %595, %594 : vector<1x128xf32>
    %597 = arith.divf %595, %596 : vector<1x128xf32>
    %598 = vector.extract_strided_slice %581 {offsets = [0, 128], sizes = [1, 128], strides = [1, 1]} : vector<1x384xf32> to vector<1x128xf32>
    %599 = vector.extract_strided_slice %589 {offsets = [0, 128], sizes = [1, 128], strides = [1, 1]} : vector<1x384xf32> to vector<1x128xf32>
    %600 = arith.addf %598, %599 : vector<1x128xf32>
    %601 = arith.negf %600 : vector<1x128xf32>
    %602 = math.exp %601 : vector<1x128xf32>
    %cst_147 = arith.constant 1.000000e+00 : f32
    %603 = vector.broadcast %cst_147 : f32 to vector<1x128xf32>
    %604 = arith.addf %603, %602 : vector<1x128xf32>
    %605 = arith.divf %603, %604 : vector<1x128xf32>
    %606 = vector.extract_strided_slice %581 {offsets = [0, 256], sizes = [1, 128], strides = [1, 1]} : vector<1x384xf32> to vector<1x128xf32>
    %607 = vector.extract_strided_slice %589 {offsets = [0, 256], sizes = [1, 128], strides = [1, 1]} : vector<1x384xf32> to vector<1x128xf32>
    %608 = arith.mulf %597, %607 : vector<1x128xf32>
    %609 = arith.addf %606, %608 : vector<1x128xf32>
    %610 = math.tanh %609 : vector<1x128xf32>
    %cst_148 = arith.constant 1.000000e+00 : f32
    %611 = vector.broadcast %cst_148 : f32 to vector<1x128xf32>
    %612 = arith.subf %611, %605 : vector<1x128xf32>
    %613 = arith.mulf %612, %610 : vector<1x128xf32>
    %614 = arith.mulf %605, %534 : vector<1x128xf32>
    %615 = arith.addf %613, %614 : vector<1x128xf32>
    %616 = arith.truncf %615 : vector<1x128xf32> to vector<1x128xbf16>
    %cst_149 = arith.constant dense<0.000000e+00> : vector<1x8xf32>
    %617 = tpu.matmul %616, %335, %cst_149 {dimension_numbers = #tpu.dot_dimension_numbers<[1], [0], [0], [1], [0, 0, 1, 1], [], []>} : vector<1x128xbf16>, vector<128x8xbf16>, vector<1x8xf32> -> vector<1x8xf32>
    %cst_150 = arith.constant dense<0xFF800000> : vector<1xf32>
    %618 = vector.multi_reduction <maximumf>, %617, %cst_150 [1] : vector<1x8xf32> to vector<1xf32>
    %619 = vector.shape_cast %618 : vector<1xf32> to vector<1x1xf32>
    %620 = vector.broadcast %619 : vector<1x1xf32> to vector<1x8xf32>
    %621 = arith.subf %617, %620 : vector<1x8xf32>
    %622 = math.exp %621 : vector<1x8xf32>
    %cst_151 = arith.constant dense<0.000000e+00> : vector<1xf32>
    %623 = vector.multi_reduction <add>, %622, %cst_151 [1] : vector<1x8xf32> to vector<1xf32>
    %624 = vector.shape_cast %623 : vector<1xf32> to vector<1x1xf32>
    %625 = vector.broadcast %624 : vector<1x1xf32> to vector<1x8xf32>
    %626 = arith.divf %622, %625 : vector<1x8xf32>
    %627 = arith.truncf %626 : vector<1x8xf32> to vector<1x8xbf16>
    %cst_152 = arith.constant dense<0.000000e+00> : vector<1x128xf32>
    %628 = tpu.matmul %627, %333, %cst_152 {dimension_numbers = #tpu.dot_dimension_numbers<[1], [0], [0], [1], [0, 0, 1, 1], [], []>} : vector<1x8xbf16>, vector<8x128xbf16>, vector<1x128xf32> -> vector<1x128xf32>
    %629 = tpu.concatenate %615, %628 in 1 : vector<1x128xf32>, vector<1x128xf32> -> vector<1x256xf32>
    %630 = arith.truncf %629 : vector<1x256xf32> to vector<1x256xbf16>
    %c0_153 = arith.constant 0 : index
    %c0_154 = arith.constant 0 : index
    %631 = vector.load %arg4[%c0_153, %c0_154] : memref<384x128xbf16, #tpu.memory_space<vmem>>, vector<256x128xbf16>
    %cst_155 = arith.constant dense<0.000000e+00> : vector<1x128xf32>
    %632 = tpu.matmul %630, %631, %cst_155 {dimension_numbers = #tpu.dot_dimension_numbers<[1], [0], [0], [1], [0, 0, 1, 1], [], []>} : vector<1x256xbf16>, vector<256x128xbf16>, vector<1x128xf32> -> vector<1x128xf32>
    %633 = arith.addf %632, %4 : vector<1x128xf32>
    %634 = math.tanh %633 : vector<1x128xf32>
    %635 = arith.truncf %634 : vector<1x128xf32> to vector<1x128xbf16>
    %c256_156 = arith.constant 256 : index
    %c0_157 = arith.constant 0 : index
    %636 = vector.load %arg4[%c256_156, %c0_157] : memref<384x128xbf16, #tpu.memory_space<vmem>>, vector<128x128xbf16>
    %cst_158 = arith.constant dense<0.000000e+00> : vector<1x128xf32>
    %637 = tpu.matmul %635, %636, %cst_158 {dimension_numbers = #tpu.dot_dimension_numbers<[1], [0], [0], [1], [0, 0, 1, 1], [], []>} : vector<1x128xbf16>, vector<128x128xbf16>, vector<1x128xf32> -> vector<1x128xf32>
    %638 = arith.addf %637, %5 : vector<1x128xf32>
    %cst_159 = arith.constant dense<0xFF800000> : vector<1xf32>
    %639 = vector.multi_reduction <maximumf>, %638, %cst_159 [1] : vector<1x128xf32> to vector<1xf32>
    %640 = vector.shape_cast %639 : vector<1xf32> to vector<1x1xf32>
    %641 = vector.broadcast %640 : vector<1x1xf32> to vector<1x128xf32>
    %642 = arith.subf %638, %641 : vector<1x128xf32>
    %643 = math.exp %642 : vector<1x128xf32>
    %cst_160 = arith.constant dense<0.000000e+00> : vector<1xf32>
    %644 = vector.multi_reduction <add>, %643, %cst_160 [1] : vector<1x128xf32> to vector<1xf32>
    %645 = vector.shape_cast %644 : vector<1xf32> to vector<1x1xf32>
    %cst_161 = arith.constant 1.000000e+00 : f32
    %646 = vector.broadcast %cst_161 : f32 to vector<1x1xf32>
    %647 = arith.divf %646, %645 : vector<1x1xf32>
    %648 = vector.broadcast %640 : vector<1x1xf32> to vector<1x128xf32>
    %649 = arith.cmpf oeq, %638, %648 : vector<1x128xf32>
    %c128_i32_162 = arith.constant 128 : i32
    %650 = vector.broadcast %c128_i32_162 : i32 to vector<1x128xi32>
    %651 = arith.select %649, %6, %650 : vector<1x128xi1>, vector<1x128xi32>
    %cst_163 = arith.constant dense<2147483647> : vector<1xi32>
    %652 = vector.multi_reduction <minsi>, %651, %cst_163 [1] : vector<1x128xi32> to vector<1xi32>
    %653 = vector.shape_cast %652 : vector<1xi32> to vector<1x1xi32>
    %c127_i32_164 = arith.constant 127 : i32
    %654 = vector.broadcast %c127_i32_164 : i32 to vector<1x1xi32>
    %655 = arith.minsi %653, %654 : vector<1x1xi32>
    %656 = vector.broadcast %655 : vector<1x1xi32> to vector<1x128xi32>
    %657 = arith.cmpi eq, %6, %656 : vector<1x128xi32>
    %658 = arith.extui %657 : vector<1x128xi1> to vector<1x128xi32>
    %659 = arith.sitofp %658 : vector<1x128xi32> to vector<1x128xf32>
    %660 = arith.truncf %659 : vector<1x128xf32> to vector<1x128xbf16>
    %c0_165 = arith.constant 0 : index
    %c0_166 = arith.constant 0 : index
    %661 = vector.load %arg3[%c0_165, %c0_166] : memref<256x384xbf16, #tpu.memory_space<vmem>>, vector<128x384xbf16>
    %cst_167 = arith.constant dense<0.000000e+00> : vector<1x384xf32>
    %662 = tpu.matmul %660, %661, %cst_167 {dimension_numbers = #tpu.dot_dimension_numbers<[1], [0], [0], [1], [0, 0, 1, 1], [], []>} : vector<1x128xbf16>, vector<128x384xbf16>, vector<1x384xf32> -> vector<1x384xf32>
    %663 = vector.extract %655[0, 0] : i32 from vector<1x1xi32>
    %c3_168 = arith.constant 3 : index
    %664 = memref.load %arg6[%c3_168] : memref<10xi32, #tpu.memory_space<smem>>
    memref.store %663, %arg6[%c3_168] : memref<10xi32, #tpu.memory_space<smem>>
    %665 = vector.extract %647[0, 0] : f32 from vector<1x1xf32>
    %c3_169 = arith.constant 3 : index
    %666 = memref.load %arg7[%c3_169] : memref<10xf32, #tpu.memory_space<smem>>
    memref.store %665, %arg7[%c3_169] : memref<10xf32, #tpu.memory_space<smem>>
    %c128_170 = arith.constant 128 : index
    %c0_171 = arith.constant 0 : index
    %667 = vector.load %arg3[%c128_170, %c0_171] : memref<256x384xbf16, #tpu.memory_space<vmem>>, vector<128x384xbf16>
    %668 = arith.truncf %615 : vector<1x128xf32> to vector<1x128xbf16>
    %cst_172 = arith.constant dense<0.000000e+00> : vector<1x384xf32>
    %669 = tpu.matmul %668, %667, %cst_172 {dimension_numbers = #tpu.dot_dimension_numbers<[1], [0], [0], [1], [0, 0, 1, 1], [], []>} : vector<1x128xbf16>, vector<128x384xbf16>, vector<1x384xf32> -> vector<1x384xf32>
    %670 = arith.addf %669, %3 : vector<1x384xf32>
    %671 = vector.extract_strided_slice %662 {offsets = [0, 0], sizes = [1, 128], strides = [1, 1]} : vector<1x384xf32> to vector<1x128xf32>
    %672 = vector.extract_strided_slice %670 {offsets = [0, 0], sizes = [1, 128], strides = [1, 1]} : vector<1x384xf32> to vector<1x128xf32>
    %673 = arith.addf %671, %672 : vector<1x128xf32>
    %674 = arith.negf %673 : vector<1x128xf32>
    %675 = math.exp %674 : vector<1x128xf32>
    %cst_173 = arith.constant 1.000000e+00 : f32
    %676 = vector.broadcast %cst_173 : f32 to vector<1x128xf32>
    %677 = arith.addf %676, %675 : vector<1x128xf32>
    %678 = arith.divf %676, %677 : vector<1x128xf32>
    %679 = vector.extract_strided_slice %662 {offsets = [0, 128], sizes = [1, 128], strides = [1, 1]} : vector<1x384xf32> to vector<1x128xf32>
    %680 = vector.extract_strided_slice %670 {offsets = [0, 128], sizes = [1, 128], strides = [1, 1]} : vector<1x384xf32> to vector<1x128xf32>
    %681 = arith.addf %679, %680 : vector<1x128xf32>
    %682 = arith.negf %681 : vector<1x128xf32>
    %683 = math.exp %682 : vector<1x128xf32>
    %cst_174 = arith.constant 1.000000e+00 : f32
    %684 = vector.broadcast %cst_174 : f32 to vector<1x128xf32>
    %685 = arith.addf %684, %683 : vector<1x128xf32>
    %686 = arith.divf %684, %685 : vector<1x128xf32>
    %687 = vector.extract_strided_slice %662 {offsets = [0, 256], sizes = [1, 128], strides = [1, 1]} : vector<1x384xf32> to vector<1x128xf32>
    %688 = vector.extract_strided_slice %670 {offsets = [0, 256], sizes = [1, 128], strides = [1, 1]} : vector<1x384xf32> to vector<1x128xf32>
    %689 = arith.mulf %678, %688 : vector<1x128xf32>
    %690 = arith.addf %687, %689 : vector<1x128xf32>
    %691 = math.tanh %690 : vector<1x128xf32>
    %cst_175 = arith.constant 1.000000e+00 : f32
    %692 = vector.broadcast %cst_175 : f32 to vector<1x128xf32>
    %693 = arith.subf %692, %686 : vector<1x128xf32>
    %694 = arith.mulf %693, %691 : vector<1x128xf32>
    %695 = arith.mulf %686, %615 : vector<1x128xf32>
    %696 = arith.addf %694, %695 : vector<1x128xf32>
    %697 = arith.truncf %696 : vector<1x128xf32> to vector<1x128xbf16>
    %cst_176 = arith.constant dense<0.000000e+00> : vector<1x8xf32>
    %698 = tpu.matmul %697, %335, %cst_176 {dimension_numbers = #tpu.dot_dimension_numbers<[1], [0], [0], [1], [0, 0, 1, 1], [], []>} : vector<1x128xbf16>, vector<128x8xbf16>, vector<1x8xf32> -> vector<1x8xf32>
    %cst_177 = arith.constant dense<0xFF800000> : vector<1xf32>
    %699 = vector.multi_reduction <maximumf>, %698, %cst_177 [1] : vector<1x8xf32> to vector<1xf32>
    %700 = vector.shape_cast %699 : vector<1xf32> to vector<1x1xf32>
    %701 = vector.broadcast %700 : vector<1x1xf32> to vector<1x8xf32>
    %702 = arith.subf %698, %701 : vector<1x8xf32>
    %703 = math.exp %702 : vector<1x8xf32>
    %cst_178 = arith.constant dense<0.000000e+00> : vector<1xf32>
    %704 = vector.multi_reduction <add>, %703, %cst_178 [1] : vector<1x8xf32> to vector<1xf32>
    %705 = vector.shape_cast %704 : vector<1xf32> to vector<1x1xf32>
    %706 = vector.broadcast %705 : vector<1x1xf32> to vector<1x8xf32>
    %707 = arith.divf %703, %706 : vector<1x8xf32>
    %708 = arith.truncf %707 : vector<1x8xf32> to vector<1x8xbf16>
    %cst_179 = arith.constant dense<0.000000e+00> : vector<1x128xf32>
    %709 = tpu.matmul %708, %333, %cst_179 {dimension_numbers = #tpu.dot_dimension_numbers<[1], [0], [0], [1], [0, 0, 1, 1], [], []>} : vector<1x8xbf16>, vector<8x128xbf16>, vector<1x128xf32> -> vector<1x128xf32>
    %710 = tpu.concatenate %696, %709 in 1 : vector<1x128xf32>, vector<1x128xf32> -> vector<1x256xf32>
    %711 = arith.truncf %710 : vector<1x256xf32> to vector<1x256xbf16>
    %c0_180 = arith.constant 0 : index
    %c0_181 = arith.constant 0 : index
    %712 = vector.load %arg4[%c0_180, %c0_181] : memref<384x128xbf16, #tpu.memory_space<vmem>>, vector<256x128xbf16>
    %cst_182 = arith.constant dense<0.000000e+00> : vector<1x128xf32>
    %713 = tpu.matmul %711, %712, %cst_182 {dimension_numbers = #tpu.dot_dimension_numbers<[1], [0], [0], [1], [0, 0, 1, 1], [], []>} : vector<1x256xbf16>, vector<256x128xbf16>, vector<1x128xf32> -> vector<1x128xf32>
    %714 = arith.addf %713, %4 : vector<1x128xf32>
    %715 = math.tanh %714 : vector<1x128xf32>
    %716 = arith.truncf %715 : vector<1x128xf32> to vector<1x128xbf16>
    %c256_183 = arith.constant 256 : index
    %c0_184 = arith.constant 0 : index
    %717 = vector.load %arg4[%c256_183, %c0_184] : memref<384x128xbf16, #tpu.memory_space<vmem>>, vector<128x128xbf16>
    %cst_185 = arith.constant dense<0.000000e+00> : vector<1x128xf32>
    %718 = tpu.matmul %716, %717, %cst_185 {dimension_numbers = #tpu.dot_dimension_numbers<[1], [0], [0], [1], [0, 0, 1, 1], [], []>} : vector<1x128xbf16>, vector<128x128xbf16>, vector<1x128xf32> -> vector<1x128xf32>
    %719 = arith.addf %718, %5 : vector<1x128xf32>
    %cst_186 = arith.constant dense<0xFF800000> : vector<1xf32>
    %720 = vector.multi_reduction <maximumf>, %719, %cst_186 [1] : vector<1x128xf32> to vector<1xf32>
    %721 = vector.shape_cast %720 : vector<1xf32> to vector<1x1xf32>
    %722 = vector.broadcast %721 : vector<1x1xf32> to vector<1x128xf32>
    %723 = arith.subf %719, %722 : vector<1x128xf32>
    %724 = math.exp %723 : vector<1x128xf32>
    %cst_187 = arith.constant dense<0.000000e+00> : vector<1xf32>
    %725 = vector.multi_reduction <add>, %724, %cst_187 [1] : vector<1x128xf32> to vector<1xf32>
    %726 = vector.shape_cast %725 : vector<1xf32> to vector<1x1xf32>
    %cst_188 = arith.constant 1.000000e+00 : f32
    %727 = vector.broadcast %cst_188 : f32 to vector<1x1xf32>
    %728 = arith.divf %727, %726 : vector<1x1xf32>
    %729 = vector.broadcast %721 : vector<1x1xf32> to vector<1x128xf32>
    %730 = arith.cmpf oeq, %719, %729 : vector<1x128xf32>
    %c128_i32_189 = arith.constant 128 : i32
    %731 = vector.broadcast %c128_i32_189 : i32 to vector<1x128xi32>
    %732 = arith.select %730, %6, %731 : vector<1x128xi1>, vector<1x128xi32>
    %cst_190 = arith.constant dense<2147483647> : vector<1xi32>
    %733 = vector.multi_reduction <minsi>, %732, %cst_190 [1] : vector<1x128xi32> to vector<1xi32>
    %734 = vector.shape_cast %733 : vector<1xi32> to vector<1x1xi32>
    %c127_i32_191 = arith.constant 127 : i32
    %735 = vector.broadcast %c127_i32_191 : i32 to vector<1x1xi32>
    %736 = arith.minsi %734, %735 : vector<1x1xi32>
    %737 = vector.broadcast %736 : vector<1x1xi32> to vector<1x128xi32>
    %738 = arith.cmpi eq, %6, %737 : vector<1x128xi32>
    %739 = arith.extui %738 : vector<1x128xi1> to vector<1x128xi32>
    %740 = arith.sitofp %739 : vector<1x128xi32> to vector<1x128xf32>
    %741 = arith.truncf %740 : vector<1x128xf32> to vector<1x128xbf16>
    %c0_192 = arith.constant 0 : index
    %c0_193 = arith.constant 0 : index
    %742 = vector.load %arg3[%c0_192, %c0_193] : memref<256x384xbf16, #tpu.memory_space<vmem>>, vector<128x384xbf16>
    %cst_194 = arith.constant dense<0.000000e+00> : vector<1x384xf32>
    %743 = tpu.matmul %741, %742, %cst_194 {dimension_numbers = #tpu.dot_dimension_numbers<[1], [0], [0], [1], [0, 0, 1, 1], [], []>} : vector<1x128xbf16>, vector<128x384xbf16>, vector<1x384xf32> -> vector<1x384xf32>
    %744 = vector.extract %736[0, 0] : i32 from vector<1x1xi32>
    %c4_195 = arith.constant 4 : index
    %745 = memref.load %arg6[%c4_195] : memref<10xi32, #tpu.memory_space<smem>>
    memref.store %744, %arg6[%c4_195] : memref<10xi32, #tpu.memory_space<smem>>
    %746 = vector.extract %728[0, 0] : f32 from vector<1x1xf32>
    %c4_196 = arith.constant 4 : index
    %747 = memref.load %arg7[%c4_196] : memref<10xf32, #tpu.memory_space<smem>>
    memref.store %746, %arg7[%c4_196] : memref<10xf32, #tpu.memory_space<smem>>
    %c128_197 = arith.constant 128 : index
    %c0_198 = arith.constant 0 : index
    %748 = vector.load %arg3[%c128_197, %c0_198] : memref<256x384xbf16, #tpu.memory_space<vmem>>, vector<128x384xbf16>
    %749 = arith.truncf %696 : vector<1x128xf32> to vector<1x128xbf16>
    %cst_199 = arith.constant dense<0.000000e+00> : vector<1x384xf32>
    %750 = tpu.matmul %749, %748, %cst_199 {dimension_numbers = #tpu.dot_dimension_numbers<[1], [0], [0], [1], [0, 0, 1, 1], [], []>} : vector<1x128xbf16>, vector<128x384xbf16>, vector<1x384xf32> -> vector<1x384xf32>
    %751 = arith.addf %750, %3 : vector<1x384xf32>
    %752 = vector.extract_strided_slice %743 {offsets = [0, 0], sizes = [1, 128], strides = [1, 1]} : vector<1x384xf32> to vector<1x128xf32>
    %753 = vector.extract_strided_slice %751 {offsets = [0, 0], sizes = [1, 128], strides = [1, 1]} : vector<1x384xf32> to vector<1x128xf32>
    %754 = arith.addf %752, %753 : vector<1x128xf32>
    %755 = arith.negf %754 : vector<1x128xf32>
    %756 = math.exp %755 : vector<1x128xf32>
    %cst_200 = arith.constant 1.000000e+00 : f32
    %757 = vector.broadcast %cst_200 : f32 to vector<1x128xf32>
    %758 = arith.addf %757, %756 : vector<1x128xf32>
    %759 = arith.divf %757, %758 : vector<1x128xf32>
    %760 = vector.extract_strided_slice %743 {offsets = [0, 128], sizes = [1, 128], strides = [1, 1]} : vector<1x384xf32> to vector<1x128xf32>
    %761 = vector.extract_strided_slice %751 {offsets = [0, 128], sizes = [1, 128], strides = [1, 1]} : vector<1x384xf32> to vector<1x128xf32>
    %762 = arith.addf %760, %761 : vector<1x128xf32>
    %763 = arith.negf %762 : vector<1x128xf32>
    %764 = math.exp %763 : vector<1x128xf32>
    %cst_201 = arith.constant 1.000000e+00 : f32
    %765 = vector.broadcast %cst_201 : f32 to vector<1x128xf32>
    %766 = arith.addf %765, %764 : vector<1x128xf32>
    %767 = arith.divf %765, %766 : vector<1x128xf32>
    %768 = vector.extract_strided_slice %743 {offsets = [0, 256], sizes = [1, 128], strides = [1, 1]} : vector<1x384xf32> to vector<1x128xf32>
    %769 = vector.extract_strided_slice %751 {offsets = [0, 256], sizes = [1, 128], strides = [1, 1]} : vector<1x384xf32> to vector<1x128xf32>
    %770 = arith.mulf %759, %769 : vector<1x128xf32>
    %771 = arith.addf %768, %770 : vector<1x128xf32>
    %772 = math.tanh %771 : vector<1x128xf32>
    %cst_202 = arith.constant 1.000000e+00 : f32
    %773 = vector.broadcast %cst_202 : f32 to vector<1x128xf32>
    %774 = arith.subf %773, %767 : vector<1x128xf32>
    %775 = arith.mulf %774, %772 : vector<1x128xf32>
    %776 = arith.mulf %767, %696 : vector<1x128xf32>
    %777 = arith.addf %775, %776 : vector<1x128xf32>
    %778 = arith.truncf %777 : vector<1x128xf32> to vector<1x128xbf16>
    %cst_203 = arith.constant dense<0.000000e+00> : vector<1x8xf32>
    %779 = tpu.matmul %778, %335, %cst_203 {dimension_numbers = #tpu.dot_dimension_numbers<[1], [0], [0], [1], [0, 0, 1, 1], [], []>} : vector<1x128xbf16>, vector<128x8xbf16>, vector<1x8xf32> -> vector<1x8xf32>
    %cst_204 = arith.constant dense<0xFF800000> : vector<1xf32>
    %780 = vector.multi_reduction <maximumf>, %779, %cst_204 [1] : vector<1x8xf32> to vector<1xf32>
    %781 = vector.shape_cast %780 : vector<1xf32> to vector<1x1xf32>
    %782 = vector.broadcast %781 : vector<1x1xf32> to vector<1x8xf32>
    %783 = arith.subf %779, %782 : vector<1x8xf32>
    %784 = math.exp %783 : vector<1x8xf32>
    %cst_205 = arith.constant dense<0.000000e+00> : vector<1xf32>
    %785 = vector.multi_reduction <add>, %784, %cst_205 [1] : vector<1x8xf32> to vector<1xf32>
    %786 = vector.shape_cast %785 : vector<1xf32> to vector<1x1xf32>
    %787 = vector.broadcast %786 : vector<1x1xf32> to vector<1x8xf32>
    %788 = arith.divf %784, %787 : vector<1x8xf32>
    %789 = arith.truncf %788 : vector<1x8xf32> to vector<1x8xbf16>
    %cst_206 = arith.constant dense<0.000000e+00> : vector<1x128xf32>
    %790 = tpu.matmul %789, %333, %cst_206 {dimension_numbers = #tpu.dot_dimension_numbers<[1], [0], [0], [1], [0, 0, 1, 1], [], []>} : vector<1x8xbf16>, vector<8x128xbf16>, vector<1x128xf32> -> vector<1x128xf32>
    %791 = tpu.concatenate %777, %790 in 1 : vector<1x128xf32>, vector<1x128xf32> -> vector<1x256xf32>
    %792 = arith.truncf %791 : vector<1x256xf32> to vector<1x256xbf16>
    %c0_207 = arith.constant 0 : index
    %c0_208 = arith.constant 0 : index
    %793 = vector.load %arg4[%c0_207, %c0_208] : memref<384x128xbf16, #tpu.memory_space<vmem>>, vector<256x128xbf16>
    %cst_209 = arith.constant dense<0.000000e+00> : vector<1x128xf32>
    %794 = tpu.matmul %792, %793, %cst_209 {dimension_numbers = #tpu.dot_dimension_numbers<[1], [0], [0], [1], [0, 0, 1, 1], [], []>} : vector<1x256xbf16>, vector<256x128xbf16>, vector<1x128xf32> -> vector<1x128xf32>
    %795 = arith.addf %794, %4 : vector<1x128xf32>
    %796 = math.tanh %795 : vector<1x128xf32>
    %797 = arith.truncf %796 : vector<1x128xf32> to vector<1x128xbf16>
    %c256_210 = arith.constant 256 : index
    %c0_211 = arith.constant 0 : index
    %798 = vector.load %arg4[%c256_210, %c0_211] : memref<384x128xbf16, #tpu.memory_space<vmem>>, vector<128x128xbf16>
    %cst_212 = arith.constant dense<0.000000e+00> : vector<1x128xf32>
    %799 = tpu.matmul %797, %798, %cst_212 {dimension_numbers = #tpu.dot_dimension_numbers<[1], [0], [0], [1], [0, 0, 1, 1], [], []>} : vector<1x128xbf16>, vector<128x128xbf16>, vector<1x128xf32> -> vector<1x128xf32>
    %800 = arith.addf %799, %5 : vector<1x128xf32>
    %cst_213 = arith.constant dense<0xFF800000> : vector<1xf32>
    %801 = vector.multi_reduction <maximumf>, %800, %cst_213 [1] : vector<1x128xf32> to vector<1xf32>
    %802 = vector.shape_cast %801 : vector<1xf32> to vector<1x1xf32>
    %803 = vector.broadcast %802 : vector<1x1xf32> to vector<1x128xf32>
    %804 = arith.subf %800, %803 : vector<1x128xf32>
    %805 = math.exp %804 : vector<1x128xf32>
    %cst_214 = arith.constant dense<0.000000e+00> : vector<1xf32>
    %806 = vector.multi_reduction <add>, %805, %cst_214 [1] : vector<1x128xf32> to vector<1xf32>
    %807 = vector.shape_cast %806 : vector<1xf32> to vector<1x1xf32>
    %cst_215 = arith.constant 1.000000e+00 : f32
    %808 = vector.broadcast %cst_215 : f32 to vector<1x1xf32>
    %809 = arith.divf %808, %807 : vector<1x1xf32>
    %810 = vector.broadcast %802 : vector<1x1xf32> to vector<1x128xf32>
    %811 = arith.cmpf oeq, %800, %810 : vector<1x128xf32>
    %c128_i32_216 = arith.constant 128 : i32
    %812 = vector.broadcast %c128_i32_216 : i32 to vector<1x128xi32>
    %813 = arith.select %811, %6, %812 : vector<1x128xi1>, vector<1x128xi32>
    %cst_217 = arith.constant dense<2147483647> : vector<1xi32>
    %814 = vector.multi_reduction <minsi>, %813, %cst_217 [1] : vector<1x128xi32> to vector<1xi32>
    %815 = vector.shape_cast %814 : vector<1xi32> to vector<1x1xi32>
    %c127_i32_218 = arith.constant 127 : i32
    %816 = vector.broadcast %c127_i32_218 : i32 to vector<1x1xi32>
    %817 = arith.minsi %815, %816 : vector<1x1xi32>
    %818 = vector.broadcast %817 : vector<1x1xi32> to vector<1x128xi32>
    %819 = arith.cmpi eq, %6, %818 : vector<1x128xi32>
    %820 = arith.extui %819 : vector<1x128xi1> to vector<1x128xi32>
    %821 = arith.sitofp %820 : vector<1x128xi32> to vector<1x128xf32>
    %822 = arith.truncf %821 : vector<1x128xf32> to vector<1x128xbf16>
    %c0_219 = arith.constant 0 : index
    %c0_220 = arith.constant 0 : index
    %823 = vector.load %arg3[%c0_219, %c0_220] : memref<256x384xbf16, #tpu.memory_space<vmem>>, vector<128x384xbf16>
    %cst_221 = arith.constant dense<0.000000e+00> : vector<1x384xf32>
    %824 = tpu.matmul %822, %823, %cst_221 {dimension_numbers = #tpu.dot_dimension_numbers<[1], [0], [0], [1], [0, 0, 1, 1], [], []>} : vector<1x128xbf16>, vector<128x384xbf16>, vector<1x384xf32> -> vector<1x384xf32>
    %825 = vector.extract %817[0, 0] : i32 from vector<1x1xi32>
    %c5_222 = arith.constant 5 : index
    %826 = memref.load %arg6[%c5_222] : memref<10xi32, #tpu.memory_space<smem>>
    memref.store %825, %arg6[%c5_222] : memref<10xi32, #tpu.memory_space<smem>>
    %827 = vector.extract %809[0, 0] : f32 from vector<1x1xf32>
    %c5_223 = arith.constant 5 : index
    %828 = memref.load %arg7[%c5_223] : memref<10xf32, #tpu.memory_space<smem>>
    memref.store %827, %arg7[%c5_223] : memref<10xf32, #tpu.memory_space<smem>>
    %c128_224 = arith.constant 128 : index
    %c0_225 = arith.constant 0 : index
    %829 = vector.load %arg3[%c128_224, %c0_225] : memref<256x384xbf16, #tpu.memory_space<vmem>>, vector<128x384xbf16>
    %830 = arith.truncf %777 : vector<1x128xf32> to vector<1x128xbf16>
    %cst_226 = arith.constant dense<0.000000e+00> : vector<1x384xf32>
    %831 = tpu.matmul %830, %829, %cst_226 {dimension_numbers = #tpu.dot_dimension_numbers<[1], [0], [0], [1], [0, 0, 1, 1], [], []>} : vector<1x128xbf16>, vector<128x384xbf16>, vector<1x384xf32> -> vector<1x384xf32>
    %832 = arith.addf %831, %3 : vector<1x384xf32>
    %833 = vector.extract_strided_slice %824 {offsets = [0, 0], sizes = [1, 128], strides = [1, 1]} : vector<1x384xf32> to vector<1x128xf32>
    %834 = vector.extract_strided_slice %832 {offsets = [0, 0], sizes = [1, 128], strides = [1, 1]} : vector<1x384xf32> to vector<1x128xf32>
    %835 = arith.addf %833, %834 : vector<1x128xf32>
    %836 = arith.negf %835 : vector<1x128xf32>
    %837 = math.exp %836 : vector<1x128xf32>
    %cst_227 = arith.constant 1.000000e+00 : f32
    %838 = vector.broadcast %cst_227 : f32 to vector<1x128xf32>
    %839 = arith.addf %838, %837 : vector<1x128xf32>
    %840 = arith.divf %838, %839 : vector<1x128xf32>
    %841 = vector.extract_strided_slice %824 {offsets = [0, 128], sizes = [1, 128], strides = [1, 1]} : vector<1x384xf32> to vector<1x128xf32>
    %842 = vector.extract_strided_slice %832 {offsets = [0, 128], sizes = [1, 128], strides = [1, 1]} : vector<1x384xf32> to vector<1x128xf32>
    %843 = arith.addf %841, %842 : vector<1x128xf32>
    %844 = arith.negf %843 : vector<1x128xf32>
    %845 = math.exp %844 : vector<1x128xf32>
    %cst_228 = arith.constant 1.000000e+00 : f32
    %846 = vector.broadcast %cst_228 : f32 to vector<1x128xf32>
    %847 = arith.addf %846, %845 : vector<1x128xf32>
    %848 = arith.divf %846, %847 : vector<1x128xf32>
    %849 = vector.extract_strided_slice %824 {offsets = [0, 256], sizes = [1, 128], strides = [1, 1]} : vector<1x384xf32> to vector<1x128xf32>
    %850 = vector.extract_strided_slice %832 {offsets = [0, 256], sizes = [1, 128], strides = [1, 1]} : vector<1x384xf32> to vector<1x128xf32>
    %851 = arith.mulf %840, %850 : vector<1x128xf32>
    %852 = arith.addf %849, %851 : vector<1x128xf32>
    %853 = math.tanh %852 : vector<1x128xf32>
    %cst_229 = arith.constant 1.000000e+00 : f32
    %854 = vector.broadcast %cst_229 : f32 to vector<1x128xf32>
    %855 = arith.subf %854, %848 : vector<1x128xf32>
    %856 = arith.mulf %855, %853 : vector<1x128xf32>
    %857 = arith.mulf %848, %777 : vector<1x128xf32>
    %858 = arith.addf %856, %857 : vector<1x128xf32>
    %859 = arith.truncf %858 : vector<1x128xf32> to vector<1x128xbf16>
    %cst_230 = arith.constant dense<0.000000e+00> : vector<1x8xf32>
    %860 = tpu.matmul %859, %335, %cst_230 {dimension_numbers = #tpu.dot_dimension_numbers<[1], [0], [0], [1], [0, 0, 1, 1], [], []>} : vector<1x128xbf16>, vector<128x8xbf16>, vector<1x8xf32> -> vector<1x8xf32>
    %cst_231 = arith.constant dense<0xFF800000> : vector<1xf32>
    %861 = vector.multi_reduction <maximumf>, %860, %cst_231 [1] : vector<1x8xf32> to vector<1xf32>
    %862 = vector.shape_cast %861 : vector<1xf32> to vector<1x1xf32>
    %863 = vector.broadcast %862 : vector<1x1xf32> to vector<1x8xf32>
    %864 = arith.subf %860, %863 : vector<1x8xf32>
    %865 = math.exp %864 : vector<1x8xf32>
    %cst_232 = arith.constant dense<0.000000e+00> : vector<1xf32>
    %866 = vector.multi_reduction <add>, %865, %cst_232 [1] : vector<1x8xf32> to vector<1xf32>
    %867 = vector.shape_cast %866 : vector<1xf32> to vector<1x1xf32>
    %868 = vector.broadcast %867 : vector<1x1xf32> to vector<1x8xf32>
    %869 = arith.divf %865, %868 : vector<1x8xf32>
    %870 = arith.truncf %869 : vector<1x8xf32> to vector<1x8xbf16>
    %cst_233 = arith.constant dense<0.000000e+00> : vector<1x128xf32>
    %871 = tpu.matmul %870, %333, %cst_233 {dimension_numbers = #tpu.dot_dimension_numbers<[1], [0], [0], [1], [0, 0, 1, 1], [], []>} : vector<1x8xbf16>, vector<8x128xbf16>, vector<1x128xf32> -> vector<1x128xf32>
    %872 = tpu.concatenate %858, %871 in 1 : vector<1x128xf32>, vector<1x128xf32> -> vector<1x256xf32>
    %873 = arith.truncf %872 : vector<1x256xf32> to vector<1x256xbf16>
    %c0_234 = arith.constant 0 : index
    %c0_235 = arith.constant 0 : index
    %874 = vector.load %arg4[%c0_234, %c0_235] : memref<384x128xbf16, #tpu.memory_space<vmem>>, vector<256x128xbf16>
    %cst_236 = arith.constant dense<0.000000e+00> : vector<1x128xf32>
    %875 = tpu.matmul %873, %874, %cst_236 {dimension_numbers = #tpu.dot_dimension_numbers<[1], [0], [0], [1], [0, 0, 1, 1], [], []>} : vector<1x256xbf16>, vector<256x128xbf16>, vector<1x128xf32> -> vector<1x128xf32>
    %876 = arith.addf %875, %4 : vector<1x128xf32>
    %877 = math.tanh %876 : vector<1x128xf32>
    %878 = arith.truncf %877 : vector<1x128xf32> to vector<1x128xbf16>
    %c256_237 = arith.constant 256 : index
    %c0_238 = arith.constant 0 : index
    %879 = vector.load %arg4[%c256_237, %c0_238] : memref<384x128xbf16, #tpu.memory_space<vmem>>, vector<128x128xbf16>
    %cst_239 = arith.constant dense<0.000000e+00> : vector<1x128xf32>
    %880 = tpu.matmul %878, %879, %cst_239 {dimension_numbers = #tpu.dot_dimension_numbers<[1], [0], [0], [1], [0, 0, 1, 1], [], []>} : vector<1x128xbf16>, vector<128x128xbf16>, vector<1x128xf32> -> vector<1x128xf32>
    %881 = arith.addf %880, %5 : vector<1x128xf32>
    %cst_240 = arith.constant dense<0xFF800000> : vector<1xf32>
    %882 = vector.multi_reduction <maximumf>, %881, %cst_240 [1] : vector<1x128xf32> to vector<1xf32>
    %883 = vector.shape_cast %882 : vector<1xf32> to vector<1x1xf32>
    %884 = vector.broadcast %883 : vector<1x1xf32> to vector<1x128xf32>
    %885 = arith.subf %881, %884 : vector<1x128xf32>
    %886 = math.exp %885 : vector<1x128xf32>
    %cst_241 = arith.constant dense<0.000000e+00> : vector<1xf32>
    %887 = vector.multi_reduction <add>, %886, %cst_241 [1] : vector<1x128xf32> to vector<1xf32>
    %888 = vector.shape_cast %887 : vector<1xf32> to vector<1x1xf32>
    %cst_242 = arith.constant 1.000000e+00 : f32
    %889 = vector.broadcast %cst_242 : f32 to vector<1x1xf32>
    %890 = arith.divf %889, %888 : vector<1x1xf32>
    %891 = vector.broadcast %883 : vector<1x1xf32> to vector<1x128xf32>
    %892 = arith.cmpf oeq, %881, %891 : vector<1x128xf32>
    %c128_i32_243 = arith.constant 128 : i32
    %893 = vector.broadcast %c128_i32_243 : i32 to vector<1x128xi32>
    %894 = arith.select %892, %6, %893 : vector<1x128xi1>, vector<1x128xi32>
    %cst_244 = arith.constant dense<2147483647> : vector<1xi32>
    %895 = vector.multi_reduction <minsi>, %894, %cst_244 [1] : vector<1x128xi32> to vector<1xi32>
    %896 = vector.shape_cast %895 : vector<1xi32> to vector<1x1xi32>
    %c127_i32_245 = arith.constant 127 : i32
    %897 = vector.broadcast %c127_i32_245 : i32 to vector<1x1xi32>
    %898 = arith.minsi %896, %897 : vector<1x1xi32>
    %899 = vector.broadcast %898 : vector<1x1xi32> to vector<1x128xi32>
    %900 = arith.cmpi eq, %6, %899 : vector<1x128xi32>
    %901 = arith.extui %900 : vector<1x128xi1> to vector<1x128xi32>
    %902 = arith.sitofp %901 : vector<1x128xi32> to vector<1x128xf32>
    %903 = arith.truncf %902 : vector<1x128xf32> to vector<1x128xbf16>
    %c0_246 = arith.constant 0 : index
    %c0_247 = arith.constant 0 : index
    %904 = vector.load %arg3[%c0_246, %c0_247] : memref<256x384xbf16, #tpu.memory_space<vmem>>, vector<128x384xbf16>
    %cst_248 = arith.constant dense<0.000000e+00> : vector<1x384xf32>
    %905 = tpu.matmul %903, %904, %cst_248 {dimension_numbers = #tpu.dot_dimension_numbers<[1], [0], [0], [1], [0, 0, 1, 1], [], []>} : vector<1x128xbf16>, vector<128x384xbf16>, vector<1x384xf32> -> vector<1x384xf32>
    %906 = vector.extract %898[0, 0] : i32 from vector<1x1xi32>
    %c6_249 = arith.constant 6 : index
    %907 = memref.load %arg6[%c6_249] : memref<10xi32, #tpu.memory_space<smem>>
    memref.store %906, %arg6[%c6_249] : memref<10xi32, #tpu.memory_space<smem>>
    %908 = vector.extract %890[0, 0] : f32 from vector<1x1xf32>
    %c6_250 = arith.constant 6 : index
    %909 = memref.load %arg7[%c6_250] : memref<10xf32, #tpu.memory_space<smem>>
    memref.store %908, %arg7[%c6_250] : memref<10xf32, #tpu.memory_space<smem>>
    %c128_251 = arith.constant 128 : index
    %c0_252 = arith.constant 0 : index
    %910 = vector.load %arg3[%c128_251, %c0_252] : memref<256x384xbf16, #tpu.memory_space<vmem>>, vector<128x384xbf16>
    %911 = arith.truncf %858 : vector<1x128xf32> to vector<1x128xbf16>
    %cst_253 = arith.constant dense<0.000000e+00> : vector<1x384xf32>
    %912 = tpu.matmul %911, %910, %cst_253 {dimension_numbers = #tpu.dot_dimension_numbers<[1], [0], [0], [1], [0, 0, 1, 1], [], []>} : vector<1x128xbf16>, vector<128x384xbf16>, vector<1x384xf32> -> vector<1x384xf32>
    %913 = arith.addf %912, %3 : vector<1x384xf32>
    %914 = vector.extract_strided_slice %905 {offsets = [0, 0], sizes = [1, 128], strides = [1, 1]} : vector<1x384xf32> to vector<1x128xf32>
    %915 = vector.extract_strided_slice %913 {offsets = [0, 0], sizes = [1, 128], strides = [1, 1]} : vector<1x384xf32> to vector<1x128xf32>
    %916 = arith.addf %914, %915 : vector<1x128xf32>
    %917 = arith.negf %916 : vector<1x128xf32>
    %918 = math.exp %917 : vector<1x128xf32>
    %cst_254 = arith.constant 1.000000e+00 : f32
    %919 = vector.broadcast %cst_254 : f32 to vector<1x128xf32>
    %920 = arith.addf %919, %918 : vector<1x128xf32>
    %921 = arith.divf %919, %920 : vector<1x128xf32>
    %922 = vector.extract_strided_slice %905 {offsets = [0, 128], sizes = [1, 128], strides = [1, 1]} : vector<1x384xf32> to vector<1x128xf32>
    %923 = vector.extract_strided_slice %913 {offsets = [0, 128], sizes = [1, 128], strides = [1, 1]} : vector<1x384xf32> to vector<1x128xf32>
    %924 = arith.addf %922, %923 : vector<1x128xf32>
    %925 = arith.negf %924 : vector<1x128xf32>
    %926 = math.exp %925 : vector<1x128xf32>
    %cst_255 = arith.constant 1.000000e+00 : f32
    %927 = vector.broadcast %cst_255 : f32 to vector<1x128xf32>
    %928 = arith.addf %927, %926 : vector<1x128xf32>
    %929 = arith.divf %927, %928 : vector<1x128xf32>
    %930 = vector.extract_strided_slice %905 {offsets = [0, 256], sizes = [1, 128], strides = [1, 1]} : vector<1x384xf32> to vector<1x128xf32>
    %931 = vector.extract_strided_slice %913 {offsets = [0, 256], sizes = [1, 128], strides = [1, 1]} : vector<1x384xf32> to vector<1x128xf32>
    %932 = arith.mulf %921, %931 : vector<1x128xf32>
    %933 = arith.addf %930, %932 : vector<1x128xf32>
    %934 = math.tanh %933 : vector<1x128xf32>
    %cst_256 = arith.constant 1.000000e+00 : f32
    %935 = vector.broadcast %cst_256 : f32 to vector<1x128xf32>
    %936 = arith.subf %935, %929 : vector<1x128xf32>
    %937 = arith.mulf %936, %934 : vector<1x128xf32>
    %938 = arith.mulf %929, %858 : vector<1x128xf32>
    %939 = arith.addf %937, %938 : vector<1x128xf32>
    %940 = arith.truncf %939 : vector<1x128xf32> to vector<1x128xbf16>
    %cst_257 = arith.constant dense<0.000000e+00> : vector<1x8xf32>
    %941 = tpu.matmul %940, %335, %cst_257 {dimension_numbers = #tpu.dot_dimension_numbers<[1], [0], [0], [1], [0, 0, 1, 1], [], []>} : vector<1x128xbf16>, vector<128x8xbf16>, vector<1x8xf32> -> vector<1x8xf32>
    %cst_258 = arith.constant dense<0xFF800000> : vector<1xf32>
    %942 = vector.multi_reduction <maximumf>, %941, %cst_258 [1] : vector<1x8xf32> to vector<1xf32>
    %943 = vector.shape_cast %942 : vector<1xf32> to vector<1x1xf32>
    %944 = vector.broadcast %943 : vector<1x1xf32> to vector<1x8xf32>
    %945 = arith.subf %941, %944 : vector<1x8xf32>
    %946 = math.exp %945 : vector<1x8xf32>
    %cst_259 = arith.constant dense<0.000000e+00> : vector<1xf32>
    %947 = vector.multi_reduction <add>, %946, %cst_259 [1] : vector<1x8xf32> to vector<1xf32>
    %948 = vector.shape_cast %947 : vector<1xf32> to vector<1x1xf32>
    %949 = vector.broadcast %948 : vector<1x1xf32> to vector<1x8xf32>
    %950 = arith.divf %946, %949 : vector<1x8xf32>
    %951 = arith.truncf %950 : vector<1x8xf32> to vector<1x8xbf16>
    %cst_260 = arith.constant dense<0.000000e+00> : vector<1x128xf32>
    %952 = tpu.matmul %951, %333, %cst_260 {dimension_numbers = #tpu.dot_dimension_numbers<[1], [0], [0], [1], [0, 0, 1, 1], [], []>} : vector<1x8xbf16>, vector<8x128xbf16>, vector<1x128xf32> -> vector<1x128xf32>
    %953 = tpu.concatenate %939, %952 in 1 : vector<1x128xf32>, vector<1x128xf32> -> vector<1x256xf32>
    %954 = arith.truncf %953 : vector<1x256xf32> to vector<1x256xbf16>
    %c0_261 = arith.constant 0 : index
    %c0_262 = arith.constant 0 : index
    %955 = vector.load %arg4[%c0_261, %c0_262] : memref<384x128xbf16, #tpu.memory_space<vmem>>, vector<256x128xbf16>
    %cst_263 = arith.constant dense<0.000000e+00> : vector<1x128xf32>
    %956 = tpu.matmul %954, %955, %cst_263 {dimension_numbers = #tpu.dot_dimension_numbers<[1], [0], [0], [1], [0, 0, 1, 1], [], []>} : vector<1x256xbf16>, vector<256x128xbf16>, vector<1x128xf32> -> vector<1x128xf32>
    %957 = arith.addf %956, %4 : vector<1x128xf32>
    %958 = math.tanh %957 : vector<1x128xf32>
    %959 = arith.truncf %958 : vector<1x128xf32> to vector<1x128xbf16>
    %c256_264 = arith.constant 256 : index
    %c0_265 = arith.constant 0 : index
    %960 = vector.load %arg4[%c256_264, %c0_265] : memref<384x128xbf16, #tpu.memory_space<vmem>>, vector<128x128xbf16>
    %cst_266 = arith.constant dense<0.000000e+00> : vector<1x128xf32>
    %961 = tpu.matmul %959, %960, %cst_266 {dimension_numbers = #tpu.dot_dimension_numbers<[1], [0], [0], [1], [0, 0, 1, 1], [], []>} : vector<1x128xbf16>, vector<128x128xbf16>, vector<1x128xf32> -> vector<1x128xf32>
    %962 = arith.addf %961, %5 : vector<1x128xf32>
    %cst_267 = arith.constant dense<0xFF800000> : vector<1xf32>
    %963 = vector.multi_reduction <maximumf>, %962, %cst_267 [1] : vector<1x128xf32> to vector<1xf32>
    %964 = vector.shape_cast %963 : vector<1xf32> to vector<1x1xf32>
    %965 = vector.broadcast %964 : vector<1x1xf32> to vector<1x128xf32>
    %966 = arith.subf %962, %965 : vector<1x128xf32>
    %967 = math.exp %966 : vector<1x128xf32>
    %cst_268 = arith.constant dense<0.000000e+00> : vector<1xf32>
    %968 = vector.multi_reduction <add>, %967, %cst_268 [1] : vector<1x128xf32> to vector<1xf32>
    %969 = vector.shape_cast %968 : vector<1xf32> to vector<1x1xf32>
    %cst_269 = arith.constant 1.000000e+00 : f32
    %970 = vector.broadcast %cst_269 : f32 to vector<1x1xf32>
    %971 = arith.divf %970, %969 : vector<1x1xf32>
    %972 = vector.broadcast %964 : vector<1x1xf32> to vector<1x128xf32>
    %973 = arith.cmpf oeq, %962, %972 : vector<1x128xf32>
    %c128_i32_270 = arith.constant 128 : i32
    %974 = vector.broadcast %c128_i32_270 : i32 to vector<1x128xi32>
    %975 = arith.select %973, %6, %974 : vector<1x128xi1>, vector<1x128xi32>
    %cst_271 = arith.constant dense<2147483647> : vector<1xi32>
    %976 = vector.multi_reduction <minsi>, %975, %cst_271 [1] : vector<1x128xi32> to vector<1xi32>
    %977 = vector.shape_cast %976 : vector<1xi32> to vector<1x1xi32>
    %c127_i32_272 = arith.constant 127 : i32
    %978 = vector.broadcast %c127_i32_272 : i32 to vector<1x1xi32>
    %979 = arith.minsi %977, %978 : vector<1x1xi32>
    %980 = vector.broadcast %979 : vector<1x1xi32> to vector<1x128xi32>
    %981 = arith.cmpi eq, %6, %980 : vector<1x128xi32>
    %982 = arith.extui %981 : vector<1x128xi1> to vector<1x128xi32>
    %983 = arith.sitofp %982 : vector<1x128xi32> to vector<1x128xf32>
    %984 = arith.truncf %983 : vector<1x128xf32> to vector<1x128xbf16>
    %c0_273 = arith.constant 0 : index
    %c0_274 = arith.constant 0 : index
    %985 = vector.load %arg3[%c0_273, %c0_274] : memref<256x384xbf16, #tpu.memory_space<vmem>>, vector<128x384xbf16>
    %cst_275 = arith.constant dense<0.000000e+00> : vector<1x384xf32>
    %986 = tpu.matmul %984, %985, %cst_275 {dimension_numbers = #tpu.dot_dimension_numbers<[1], [0], [0], [1], [0, 0, 1, 1], [], []>} : vector<1x128xbf16>, vector<128x384xbf16>, vector<1x384xf32> -> vector<1x384xf32>
    %987 = vector.extract %979[0, 0] : i32 from vector<1x1xi32>
    %c7_276 = arith.constant 7 : index
    %988 = memref.load %arg6[%c7_276] : memref<10xi32, #tpu.memory_space<smem>>
    memref.store %987, %arg6[%c7_276] : memref<10xi32, #tpu.memory_space<smem>>
    %989 = vector.extract %971[0, 0] : f32 from vector<1x1xf32>
    %c7_277 = arith.constant 7 : index
    %990 = memref.load %arg7[%c7_277] : memref<10xf32, #tpu.memory_space<smem>>
    memref.store %989, %arg7[%c7_277] : memref<10xf32, #tpu.memory_space<smem>>
    %c128_278 = arith.constant 128 : index
    %c0_279 = arith.constant 0 : index
    %991 = vector.load %arg3[%c128_278, %c0_279] : memref<256x384xbf16, #tpu.memory_space<vmem>>, vector<128x384xbf16>
    %992 = arith.truncf %939 : vector<1x128xf32> to vector<1x128xbf16>
    %cst_280 = arith.constant dense<0.000000e+00> : vector<1x384xf32>
    %993 = tpu.matmul %992, %991, %cst_280 {dimension_numbers = #tpu.dot_dimension_numbers<[1], [0], [0], [1], [0, 0, 1, 1], [], []>} : vector<1x128xbf16>, vector<128x384xbf16>, vector<1x384xf32> -> vector<1x384xf32>
    %994 = arith.addf %993, %3 : vector<1x384xf32>
    %995 = vector.extract_strided_slice %986 {offsets = [0, 0], sizes = [1, 128], strides = [1, 1]} : vector<1x384xf32> to vector<1x128xf32>
    %996 = vector.extract_strided_slice %994 {offsets = [0, 0], sizes = [1, 128], strides = [1, 1]} : vector<1x384xf32> to vector<1x128xf32>
    %997 = arith.addf %995, %996 : vector<1x128xf32>
    %998 = arith.negf %997 : vector<1x128xf32>
    %999 = math.exp %998 : vector<1x128xf32>
    %cst_281 = arith.constant 1.000000e+00 : f32
    %1000 = vector.broadcast %cst_281 : f32 to vector<1x128xf32>
    %1001 = arith.addf %1000, %999 : vector<1x128xf32>
    %1002 = arith.divf %1000, %1001 : vector<1x128xf32>
    %1003 = vector.extract_strided_slice %986 {offsets = [0, 128], sizes = [1, 128], strides = [1, 1]} : vector<1x384xf32> to vector<1x128xf32>
    %1004 = vector.extract_strided_slice %994 {offsets = [0, 128], sizes = [1, 128], strides = [1, 1]} : vector<1x384xf32> to vector<1x128xf32>
    %1005 = arith.addf %1003, %1004 : vector<1x128xf32>
    %1006 = arith.negf %1005 : vector<1x128xf32>
    %1007 = math.exp %1006 : vector<1x128xf32>
    %cst_282 = arith.constant 1.000000e+00 : f32
    %1008 = vector.broadcast %cst_282 : f32 to vector<1x128xf32>
    %1009 = arith.addf %1008, %1007 : vector<1x128xf32>
    %1010 = arith.divf %1008, %1009 : vector<1x128xf32>
    %1011 = vector.extract_strided_slice %986 {offsets = [0, 256], sizes = [1, 128], strides = [1, 1]} : vector<1x384xf32> to vector<1x128xf32>
    %1012 = vector.extract_strided_slice %994 {offsets = [0, 256], sizes = [1, 128], strides = [1, 1]} : vector<1x384xf32> to vector<1x128xf32>
    %1013 = arith.mulf %1002, %1012 : vector<1x128xf32>
    %1014 = arith.addf %1011, %1013 : vector<1x128xf32>
    %1015 = math.tanh %1014 : vector<1x128xf32>
    %cst_283 = arith.constant 1.000000e+00 : f32
    %1016 = vector.broadcast %cst_283 : f32 to vector<1x128xf32>
    %1017 = arith.subf %1016, %1010 : vector<1x128xf32>
    %1018 = arith.mulf %1017, %1015 : vector<1x128xf32>
    %1019 = arith.mulf %1010, %939 : vector<1x128xf32>
    %1020 = arith.addf %1018, %1019 : vector<1x128xf32>
    %1021 = arith.truncf %1020 : vector<1x128xf32> to vector<1x128xbf16>
    %cst_284 = arith.constant dense<0.000000e+00> : vector<1x8xf32>
    %1022 = tpu.matmul %1021, %335, %cst_284 {dimension_numbers = #tpu.dot_dimension_numbers<[1], [0], [0], [1], [0, 0, 1, 1], [], []>} : vector<1x128xbf16>, vector<128x8xbf16>, vector<1x8xf32> -> vector<1x8xf32>
    %cst_285 = arith.constant dense<0xFF800000> : vector<1xf32>
    %1023 = vector.multi_reduction <maximumf>, %1022, %cst_285 [1] : vector<1x8xf32> to vector<1xf32>
    %1024 = vector.shape_cast %1023 : vector<1xf32> to vector<1x1xf32>
    %1025 = vector.broadcast %1024 : vector<1x1xf32> to vector<1x8xf32>
    %1026 = arith.subf %1022, %1025 : vector<1x8xf32>
    %1027 = math.exp %1026 : vector<1x8xf32>
    %cst_286 = arith.constant dense<0.000000e+00> : vector<1xf32>
    %1028 = vector.multi_reduction <add>, %1027, %cst_286 [1] : vector<1x8xf32> to vector<1xf32>
    %1029 = vector.shape_cast %1028 : vector<1xf32> to vector<1x1xf32>
    %1030 = vector.broadcast %1029 : vector<1x1xf32> to vector<1x8xf32>
    %1031 = arith.divf %1027, %1030 : vector<1x8xf32>
    %1032 = arith.truncf %1031 : vector<1x8xf32> to vector<1x8xbf16>
    %cst_287 = arith.constant dense<0.000000e+00> : vector<1x128xf32>
    %1033 = tpu.matmul %1032, %333, %cst_287 {dimension_numbers = #tpu.dot_dimension_numbers<[1], [0], [0], [1], [0, 0, 1, 1], [], []>} : vector<1x8xbf16>, vector<8x128xbf16>, vector<1x128xf32> -> vector<1x128xf32>
    %1034 = tpu.concatenate %1020, %1033 in 1 : vector<1x128xf32>, vector<1x128xf32> -> vector<1x256xf32>
    %1035 = arith.truncf %1034 : vector<1x256xf32> to vector<1x256xbf16>
    %c0_288 = arith.constant 0 : index
    %c0_289 = arith.constant 0 : index
    %1036 = vector.load %arg4[%c0_288, %c0_289] : memref<384x128xbf16, #tpu.memory_space<vmem>>, vector<256x128xbf16>
    %cst_290 = arith.constant dense<0.000000e+00> : vector<1x128xf32>
    %1037 = tpu.matmul %1035, %1036, %cst_290 {dimension_numbers = #tpu.dot_dimension_numbers<[1], [0], [0], [1], [0, 0, 1, 1], [], []>} : vector<1x256xbf16>, vector<256x128xbf16>, vector<1x128xf32> -> vector<1x128xf32>
    %1038 = arith.addf %1037, %4 : vector<1x128xf32>
    %1039 = math.tanh %1038 : vector<1x128xf32>
    %1040 = arith.truncf %1039 : vector<1x128xf32> to vector<1x128xbf16>
    %c256_291 = arith.constant 256 : index
    %c0_292 = arith.constant 0 : index
    %1041 = vector.load %arg4[%c256_291, %c0_292] : memref<384x128xbf16, #tpu.memory_space<vmem>>, vector<128x128xbf16>
    %cst_293 = arith.constant dense<0.000000e+00> : vector<1x128xf32>
    %1042 = tpu.matmul %1040, %1041, %cst_293 {dimension_numbers = #tpu.dot_dimension_numbers<[1], [0], [0], [1], [0, 0, 1, 1], [], []>} : vector<1x128xbf16>, vector<128x128xbf16>, vector<1x128xf32> -> vector<1x128xf32>
    %1043 = arith.addf %1042, %5 : vector<1x128xf32>
    %cst_294 = arith.constant dense<0xFF800000> : vector<1xf32>
    %1044 = vector.multi_reduction <maximumf>, %1043, %cst_294 [1] : vector<1x128xf32> to vector<1xf32>
    %1045 = vector.shape_cast %1044 : vector<1xf32> to vector<1x1xf32>
    %1046 = vector.broadcast %1045 : vector<1x1xf32> to vector<1x128xf32>
    %1047 = arith.subf %1043, %1046 : vector<1x128xf32>
    %1048 = math.exp %1047 : vector<1x128xf32>
    %cst_295 = arith.constant dense<0.000000e+00> : vector<1xf32>
    %1049 = vector.multi_reduction <add>, %1048, %cst_295 [1] : vector<1x128xf32> to vector<1xf32>
    %1050 = vector.shape_cast %1049 : vector<1xf32> to vector<1x1xf32>
    %cst_296 = arith.constant 1.000000e+00 : f32
    %1051 = vector.broadcast %cst_296 : f32 to vector<1x1xf32>
    %1052 = arith.divf %1051, %1050 : vector<1x1xf32>
    %1053 = vector.broadcast %1045 : vector<1x1xf32> to vector<1x128xf32>
    %1054 = arith.cmpf oeq, %1043, %1053 : vector<1x128xf32>
    %c128_i32_297 = arith.constant 128 : i32
    %1055 = vector.broadcast %c128_i32_297 : i32 to vector<1x128xi32>
    %1056 = arith.select %1054, %6, %1055 : vector<1x128xi1>, vector<1x128xi32>
    %cst_298 = arith.constant dense<2147483647> : vector<1xi32>
    %1057 = vector.multi_reduction <minsi>, %1056, %cst_298 [1] : vector<1x128xi32> to vector<1xi32>
    %1058 = vector.shape_cast %1057 : vector<1xi32> to vector<1x1xi32>
    %c127_i32_299 = arith.constant 127 : i32
    %1059 = vector.broadcast %c127_i32_299 : i32 to vector<1x1xi32>
    %1060 = arith.minsi %1058, %1059 : vector<1x1xi32>
    %1061 = vector.broadcast %1060 : vector<1x1xi32> to vector<1x128xi32>
    %1062 = arith.cmpi eq, %6, %1061 : vector<1x128xi32>
    %1063 = arith.extui %1062 : vector<1x128xi1> to vector<1x128xi32>
    %1064 = arith.sitofp %1063 : vector<1x128xi32> to vector<1x128xf32>
    %1065 = arith.truncf %1064 : vector<1x128xf32> to vector<1x128xbf16>
    %c0_300 = arith.constant 0 : index
    %c0_301 = arith.constant 0 : index
    %1066 = vector.load %arg3[%c0_300, %c0_301] : memref<256x384xbf16, #tpu.memory_space<vmem>>, vector<128x384xbf16>
    %cst_302 = arith.constant dense<0.000000e+00> : vector<1x384xf32>
    %1067 = tpu.matmul %1065, %1066, %cst_302 {dimension_numbers = #tpu.dot_dimension_numbers<[1], [0], [0], [1], [0, 0, 1, 1], [], []>} : vector<1x128xbf16>, vector<128x384xbf16>, vector<1x384xf32> -> vector<1x384xf32>
    %1068 = vector.extract %1060[0, 0] : i32 from vector<1x1xi32>
    %c8 = arith.constant 8 : index
    %1069 = memref.load %arg6[%c8] : memref<10xi32, #tpu.memory_space<smem>>
    memref.store %1068, %arg6[%c8] : memref<10xi32, #tpu.memory_space<smem>>
    %1070 = vector.extract %1052[0, 0] : f32 from vector<1x1xf32>
    %c8_303 = arith.constant 8 : index
    %1071 = memref.load %arg7[%c8_303] : memref<10xf32, #tpu.memory_space<smem>>
    memref.store %1070, %arg7[%c8_303] : memref<10xf32, #tpu.memory_space<smem>>
    %c128_304 = arith.constant 128 : index
    %c0_305 = arith.constant 0 : index
    %1072 = vector.load %arg3[%c128_304, %c0_305] : memref<256x384xbf16, #tpu.memory_space<vmem>>, vector<128x384xbf16>
    %1073 = arith.truncf %1020 : vector<1x128xf32> to vector<1x128xbf16>
    %cst_306 = arith.constant dense<0.000000e+00> : vector<1x384xf32>
    %1074 = tpu.matmul %1073, %1072, %cst_306 {dimension_numbers = #tpu.dot_dimension_numbers<[1], [0], [0], [1], [0, 0, 1, 1], [], []>} : vector<1x128xbf16>, vector<128x384xbf16>, vector<1x384xf32> -> vector<1x384xf32>
    %1075 = arith.addf %1074, %3 : vector<1x384xf32>
    %1076 = vector.extract_strided_slice %1067 {offsets = [0, 0], sizes = [1, 128], strides = [1, 1]} : vector<1x384xf32> to vector<1x128xf32>
    %1077 = vector.extract_strided_slice %1075 {offsets = [0, 0], sizes = [1, 128], strides = [1, 1]} : vector<1x384xf32> to vector<1x128xf32>
    %1078 = arith.addf %1076, %1077 : vector<1x128xf32>
    %1079 = arith.negf %1078 : vector<1x128xf32>
    %1080 = math.exp %1079 : vector<1x128xf32>
    %cst_307 = arith.constant 1.000000e+00 : f32
    %1081 = vector.broadcast %cst_307 : f32 to vector<1x128xf32>
    %1082 = arith.addf %1081, %1080 : vector<1x128xf32>
    %1083 = arith.divf %1081, %1082 : vector<1x128xf32>
    %1084 = vector.extract_strided_slice %1067 {offsets = [0, 128], sizes = [1, 128], strides = [1, 1]} : vector<1x384xf32> to vector<1x128xf32>
    %1085 = vector.extract_strided_slice %1075 {offsets = [0, 128], sizes = [1, 128], strides = [1, 1]} : vector<1x384xf32> to vector<1x128xf32>
    %1086 = arith.addf %1084, %1085 : vector<1x128xf32>
    %1087 = arith.negf %1086 : vector<1x128xf32>
    %1088 = math.exp %1087 : vector<1x128xf32>
    %cst_308 = arith.constant 1.000000e+00 : f32
    %1089 = vector.broadcast %cst_308 : f32 to vector<1x128xf32>
    %1090 = arith.addf %1089, %1088 : vector<1x128xf32>
    %1091 = arith.divf %1089, %1090 : vector<1x128xf32>
    %1092 = vector.extract_strided_slice %1067 {offsets = [0, 256], sizes = [1, 128], strides = [1, 1]} : vector<1x384xf32> to vector<1x128xf32>
    %1093 = vector.extract_strided_slice %1075 {offsets = [0, 256], sizes = [1, 128], strides = [1, 1]} : vector<1x384xf32> to vector<1x128xf32>
    %1094 = arith.mulf %1083, %1093 : vector<1x128xf32>
    %1095 = arith.addf %1092, %1094 : vector<1x128xf32>
    %1096 = math.tanh %1095 : vector<1x128xf32>
    %cst_309 = arith.constant 1.000000e+00 : f32
    %1097 = vector.broadcast %cst_309 : f32 to vector<1x128xf32>
    %1098 = arith.subf %1097, %1091 : vector<1x128xf32>
    %1099 = arith.mulf %1098, %1096 : vector<1x128xf32>
    %1100 = arith.mulf %1091, %1020 : vector<1x128xf32>
    %1101 = arith.addf %1099, %1100 : vector<1x128xf32>
    %1102 = arith.truncf %1101 : vector<1x128xf32> to vector<1x128xbf16>
    %cst_310 = arith.constant dense<0.000000e+00> : vector<1x8xf32>
    %1103 = tpu.matmul %1102, %335, %cst_310 {dimension_numbers = #tpu.dot_dimension_numbers<[1], [0], [0], [1], [0, 0, 1, 1], [], []>} : vector<1x128xbf16>, vector<128x8xbf16>, vector<1x8xf32> -> vector<1x8xf32>
    %cst_311 = arith.constant dense<0xFF800000> : vector<1xf32>
    %1104 = vector.multi_reduction <maximumf>, %1103, %cst_311 [1] : vector<1x8xf32> to vector<1xf32>
    %1105 = vector.shape_cast %1104 : vector<1xf32> to vector<1x1xf32>
    %1106 = vector.broadcast %1105 : vector<1x1xf32> to vector<1x8xf32>
    %1107 = arith.subf %1103, %1106 : vector<1x8xf32>
    %1108 = math.exp %1107 : vector<1x8xf32>
    %cst_312 = arith.constant dense<0.000000e+00> : vector<1xf32>
    %1109 = vector.multi_reduction <add>, %1108, %cst_312 [1] : vector<1x8xf32> to vector<1xf32>
    %1110 = vector.shape_cast %1109 : vector<1xf32> to vector<1x1xf32>
    %1111 = vector.broadcast %1110 : vector<1x1xf32> to vector<1x8xf32>
    %1112 = arith.divf %1108, %1111 : vector<1x8xf32>
    %1113 = arith.truncf %1112 : vector<1x8xf32> to vector<1x8xbf16>
    %cst_313 = arith.constant dense<0.000000e+00> : vector<1x128xf32>
    %1114 = tpu.matmul %1113, %333, %cst_313 {dimension_numbers = #tpu.dot_dimension_numbers<[1], [0], [0], [1], [0, 0, 1, 1], [], []>} : vector<1x8xbf16>, vector<8x128xbf16>, vector<1x128xf32> -> vector<1x128xf32>
    %1115 = tpu.concatenate %1101, %1114 in 1 : vector<1x128xf32>, vector<1x128xf32> -> vector<1x256xf32>
    %1116 = arith.truncf %1115 : vector<1x256xf32> to vector<1x256xbf16>
    %c0_314 = arith.constant 0 : index
    %c0_315 = arith.constant 0 : index
    %1117 = vector.load %arg4[%c0_314, %c0_315] : memref<384x128xbf16, #tpu.memory_space<vmem>>, vector<256x128xbf16>
    %cst_316 = arith.constant dense<0.000000e+00> : vector<1x128xf32>
    %1118 = tpu.matmul %1116, %1117, %cst_316 {dimension_numbers = #tpu.dot_dimension_numbers<[1], [0], [0], [1], [0, 0, 1, 1], [], []>} : vector<1x256xbf16>, vector<256x128xbf16>, vector<1x128xf32> -> vector<1x128xf32>
    %1119 = arith.addf %1118, %4 : vector<1x128xf32>
    %1120 = math.tanh %1119 : vector<1x128xf32>
    %1121 = arith.truncf %1120 : vector<1x128xf32> to vector<1x128xbf16>
    %c256_317 = arith.constant 256 : index
    %c0_318 = arith.constant 0 : index
    %1122 = vector.load %arg4[%c256_317, %c0_318] : memref<384x128xbf16, #tpu.memory_space<vmem>>, vector<128x128xbf16>
    %cst_319 = arith.constant dense<0.000000e+00> : vector<1x128xf32>
    %1123 = tpu.matmul %1121, %1122, %cst_319 {dimension_numbers = #tpu.dot_dimension_numbers<[1], [0], [0], [1], [0, 0, 1, 1], [], []>} : vector<1x128xbf16>, vector<128x128xbf16>, vector<1x128xf32> -> vector<1x128xf32>
    %1124 = arith.addf %1123, %5 : vector<1x128xf32>
    %cst_320 = arith.constant dense<0xFF800000> : vector<1xf32>
    %1125 = vector.multi_reduction <maximumf>, %1124, %cst_320 [1] : vector<1x128xf32> to vector<1xf32>
    %1126 = vector.shape_cast %1125 : vector<1xf32> to vector<1x1xf32>
    %1127 = vector.broadcast %1126 : vector<1x1xf32> to vector<1x128xf32>
    %1128 = arith.subf %1124, %1127 : vector<1x128xf32>
    %1129 = math.exp %1128 : vector<1x128xf32>
    %cst_321 = arith.constant dense<0.000000e+00> : vector<1xf32>
    %1130 = vector.multi_reduction <add>, %1129, %cst_321 [1] : vector<1x128xf32> to vector<1xf32>
    %1131 = vector.shape_cast %1130 : vector<1xf32> to vector<1x1xf32>
    %cst_322 = arith.constant 1.000000e+00 : f32
    %1132 = vector.broadcast %cst_322 : f32 to vector<1x1xf32>
    %1133 = arith.divf %1132, %1131 : vector<1x1xf32>
    %1134 = vector.broadcast %1126 : vector<1x1xf32> to vector<1x128xf32>
    %1135 = arith.cmpf oeq, %1124, %1134 : vector<1x128xf32>
    %c128_i32_323 = arith.constant 128 : i32
    %1136 = vector.broadcast %c128_i32_323 : i32 to vector<1x128xi32>
    %1137 = arith.select %1135, %6, %1136 : vector<1x128xi1>, vector<1x128xi32>
    %cst_324 = arith.constant dense<2147483647> : vector<1xi32>
    %1138 = vector.multi_reduction <minsi>, %1137, %cst_324 [1] : vector<1x128xi32> to vector<1xi32>
    %1139 = vector.shape_cast %1138 : vector<1xi32> to vector<1x1xi32>
    %c127_i32_325 = arith.constant 127 : i32
    %1140 = vector.broadcast %c127_i32_325 : i32 to vector<1x1xi32>
    %1141 = arith.minsi %1139, %1140 : vector<1x1xi32>
    %1142 = vector.extract %1141[0, 0] : i32 from vector<1x1xi32>
    %c9 = arith.constant 9 : index
    %1143 = memref.load %arg6[%c9] : memref<10xi32, #tpu.memory_space<smem>>
    memref.store %1142, %arg6[%c9] : memref<10xi32, #tpu.memory_space<smem>>
    %1144 = vector.extract %1133[0, 0] : f32 from vector<1x1xf32>
    %c9_326 = arith.constant 9 : index
    %1145 = memref.load %arg7[%c9_326] : memref<10xf32, #tpu.memory_space<smem>>
    memref.store %1144, %arg7[%c9_326] : memref<10xf32, #tpu.memory_space<smem>>
    return
  }
}

</mosaic_0001>

<llo_original>
// kernel: greedy_search_decode.1
$region0: #{greedy_search_decode.1}
  #allocation0 [shape = 'u32[]', space=smem, size = 0x4, offset = 0x4, fixed_abs, tag = 'smem constant byte address 0x4 - core index']
  #allocation1 [shape = 'u32[144,128]{1,0:T(1,128)}', space=vmem, size = 0x12000, scoped, tag = 'internal scratch']
  #allocation2 [shape = 's32[1]{0:T(128)S(6)}', space=smem, size = 0x200, scoped, tag = 'scoped memory for greedy_search_decode.1']
  %s0 = inlined_call_operand.vmem [shape: s32[8], index: 0, kind: input, shape index: {}]
  %s1 = inlined_call_operand.<no memory space> [shape: s32[1], index: 1, kind: input, shape index: {}]
  %s2 = inlined_call_operand.hbm [shape: bf16[256,384], index: 2, kind: input, shape index: {}]
  %s3 = inlined_call_operand.hbm [shape: bf16[256,384], index: 3, kind: input, shape index: {}]
  %s4 = inlined_call_operand.hbm [shape: bf16[384,128], index: 4, kind: input, shape index: {}]
  %s5 = inlined_call_operand.hbm [shape: f32[1,1024], index: 5, kind: input, shape index: {}]
  %s6 = inlined_call_operand.hbm [shape: s32[10], index: 6, kind: output, shape index: {0}]
  %s7 = inlined_call_operand.hbm [shape: f32[10], index: 7, kind: output, shape index: {1}]
  %8 = xla_tuple %s6, %s7
  %s9 = sld [smem:[#allocation0]]
  $region62: #{greedy_search_decode.1} parent=0
    _
  %s11 = ssub.s32 1, %s9
  %s12 = scalar_select 0, %s11, %s9
  %13 = sst [smem:[#allocation2]] %s1
  $region1: #{greedy_search_decode.1} parent=0
    #allocation3 [shape = 'u8[512]{0}', space=smem, size = 0x200, scoped, tag = 'input window, operand 0, single buffered']
    #allocation4 [shape = 's32[1]{0}', space=sflag, size = 0x4, scoped, tag = 'scoped memory for greedy_search_decode.1']
    #allocation5 [shape = 's32[1]{0}', space=sflag, size = 0x4, scoped, tag = 'scoped memory for greedy_search_decode.1']
    #allocation6 [shape = 's32[1]{0}', space=sflag, size = 0x4, scoped, tag = 'scoped memory for greedy_search_decode.1']
    #allocation7 [shape = 'u8[196608]{0}', space=vmem, size = 0x30000, scoped, tag = 'input window, operand 2, single buffered']
    #allocation8 [shape = 'u8[196608]{0}', space=vmem, size = 0x30000, scoped, tag = 'input window, operand 3, single buffered']
    #allocation9 [shape = 's32[1]{0}', space=sflag, size = 0x4, scoped, tag = 'scoped memory for greedy_search_decode.1']
    #allocation10 [shape = 'u8[98304]{0}', space=vmem, size = 0x18000, scoped, tag = 'input window, operand 4, single buffered']
    #allocation11 [shape = 'u8[4096]{0}', space=vmem, size = 0x1000, scoped, tag = 'input window, operand 5, single buffered']
    #allocation12 [shape = 's32[1]{0}', space=sflag, size = 0x4, scoped, tag = 'scoped memory for greedy_search_decode.1']
    #allocation13 [shape = 'u8[512]{0}', space=smem, size = 0x200, scoped, tag = 'output window, operand 0, single buffered']
    #allocation14 [shape = 'u8[512]{0}', space=smem, size = 0x200, scoped, tag = 'output window, operand 1, single buffered']
    #allocation15 [shape = 's32[1]{0}', space=sflag, size = 0x4, scoped, tag = 'scoped memory for greedy_search_decode.1']
    %14 = vsyncpa [#allocation6], 0
    %15 = vsyncpa [#allocation4], 0
    %16 = vsyncpa [#allocation9], 0
    %17 = vsyncpa [#allocation12], 0
    %18 = vsyncpa [#allocation5], 0
    %19 = vsyncpa [#allocation15], 0
    // Predicated region
    $region2: #{greedy_search_decode.1} parent=1 // pred_check
      _
    $region3: #{greedy_search_decode.1} parent=1 // pred_check_branch
      %21 = sbr.rel (0) target = $region5
    $region4: #{greedy_search_decode.1} parent=1 // pred_region
      %s23 = ssub.s32 16, 16
      %24 = vsyncadd [#allocation6], %s23
      %s26 = sshll.u32 %s0, 4
      %s27 = int_to_ptr.vmem [resolvable:$true] %s26
      %29 = dma.vmem_to_smem %s27, 16, [#allocation3], [#allocation6]
    $region5: #{greedy_search_decode.1} parent=1 // pred_fallthru
      _
    // Predicated region
    $region6: #{greedy_search_decode.1} parent=1 // pred_check
      _
    $region7: #{greedy_search_decode.1} parent=1 // pred_check_branch
      %31 = sbr.rel (0) target = $region9
    $region8: #{greedy_search_decode.1} parent=1 // pred_region
      _
    $region9: #{greedy_search_decode.1} parent=1 // pred_fallthru
      _
    // Predicated region
    $region10: #{greedy_search_decode.1} parent=1 // pred_check
      _
    $region11: #{greedy_search_decode.1} parent=1 // pred_check_branch
      %33 = sbr.rel (0) target = $region13
    $region12: #{greedy_search_decode.1} parent=1 // pred_region
      %s35 = ssub.s32 6144, 6144
      %36 = vsyncadd [#allocation4], %s35
      %s37 = sshll.u32 [#allocation7], 4
      %s38 = int_to_ptr.vmem [resolvable:$true] %s37
      %43 = dma.hbm_to_vmem [thread:$0]  %s2, 6144, %s38, [#allocation4], 192, 192, 12
    $region13: #{greedy_search_decode.1} parent=1 // pred_fallthru
      _
    // Predicated region
    $region14: #{greedy_search_decode.1} parent=1 // pred_check
      _
    $region15: #{greedy_search_decode.1} parent=1 // pred_check_branch
      %45 = sbr.rel (0) target = $region17
    $region16: #{greedy_search_decode.1} parent=1 // pred_region
      %s47 = ssub.s32 6144, 6144
      %48 = vsyncadd [#allocation9], %s47
      %s49 = sshll.u32 [#allocation8], 4
      %s50 = int_to_ptr.vmem [resolvable:$true] %s49
      %55 = dma.hbm_to_vmem [thread:$0]  %s3, 6144, %s50, [#allocation9], 192, 192, 12
    $region17: #{greedy_search_decode.1} parent=1 // pred_fallthru
      _
    // Predicated region
    $region18: #{greedy_search_decode.1} parent=1 // pred_check
      _
    $region19: #{greedy_search_decode.1} parent=1 // pred_check_branch
      %57 = sbr.rel (0) target = $region21
    $region20: #{greedy_search_decode.1} parent=1 // pred_region
      %s59 = ssub.s32 3072, 3072
      %60 = vsyncadd [#allocation9], %s59
      %s61 = sshll.u32 [#allocation10], 4
      %s62 = int_to_ptr.vmem [resolvable:$true] %s61
      %67 = dma.hbm_to_vmem [thread:$0]  %s4, 3072, %s62, [#allocation9], 64, 64, 4
    $region21: #{greedy_search_decode.1} parent=1 // pred_fallthru
      _
    // Predicated region
    $region22: #{greedy_search_decode.1} parent=1 // pred_check
      _
    $region23: #{greedy_search_decode.1} parent=1 // pred_check_branch
      %69 = sbr.rel (0) target = $region25
    $region24: #{greedy_search_decode.1} parent=1 // pred_region
      %s71 = ssub.s32 128, 128
      %72 = vsyncadd [#allocation12], %s71
      %s74 = sshll.u32 [#allocation11], 4
      %s75 = int_to_ptr.vmem [resolvable:$true] %s74
      %77 = dma.hbm_to_vmem [thread:$0]  %s5, 128, %s75, [#allocation12]
    $region25: #{greedy_search_decode.1} parent=1 // pred_fallthru
      _
    // Predicated region
    $region26: #{greedy_search_decode.1} parent=1 // pred_check
      _
    $region27: #{greedy_search_decode.1} parent=1 // pred_check_branch
      %79 = sbr.rel (0) target = $region29
    $region28: #{greedy_search_decode.1} parent=1 // pred_region
      %80 = dma.done [#allocation6], 16
    $region29: #{greedy_search_decode.1} parent=1 // pred_fallthru
      _
    // Predicated region
    $region30: #{greedy_search_decode.1} parent=1 // pred_check
      _
    $region31: #{greedy_search_decode.1} parent=1 // pred_check_branch
      %82 = sbr.rel (0) target = $region33
    $region32: #{greedy_search_decode.1} parent=1 // pred_region
      %83 = dma.done [#allocation4], 6144
    $region33: #{greedy_search_decode.1} parent=1 // pred_fallthru
      _
    // Predicated region
    $region34: #{greedy_search_decode.1} parent=1 // pred_check
      _
    $region35: #{greedy_search_decode.1} parent=1 // pred_check_branch
      %85 = sbr.rel (0) target = $region37
    $region36: #{greedy_search_decode.1} parent=1 // pred_region
      %86 = dma.done [#allocation9], 6144
    $region37: #{greedy_search_decode.1} parent=1 // pred_fallthru
      _
    // Predicated region
    $region38: #{greedy_search_decode.1} parent=1 // pred_check
      _
    $region39: #{greedy_search_decode.1} parent=1 // pred_check_branch
      %88 = sbr.rel (0) target = $region41
    $region40: #{greedy_search_decode.1} parent=1 // pred_region
      %89 = dma.done [#allocation9], 3072
    $region41: #{greedy_search_decode.1} parent=1 // pred_fallthru
      _
    // Predicated region
    $region42: #{greedy_search_decode.1} parent=1 // pred_check
      _
    $region43: #{greedy_search_decode.1} parent=1 // pred_check_branch
      %91 = sbr.rel (0) target = $region45
    $region44: #{greedy_search_decode.1} parent=1 // pred_region
      %92 = dma.done [#allocation12], 128
    $region45: #{greedy_search_decode.1} parent=1 // pred_fallthru
      _
    %93 = sfence
    %s95 = sld [smem:[#allocation2]]
    %v96 = vld [vmem:[#allocation11] sm:$0xff]
    %v97 = vlaneseq
    %v98 = vand.u32 %v97, 127
    %s99 = sld [smem:[#allocation3]]
    %v100 = vstv %s99
    %vm101 = vcmp.eq.s32.totalorder %v98, %v100
    %v102 = vsel %vm101, 1, 0
    %v103 = vcvt.s32.f32 %v102
    %s104 = sld [smem:[#allocation3 + $0x1]]
    %v105 = vstv %s104
    %vm106 = vcmp.eq.s32.totalorder %v98, %v105
    %v107 = vsel %vm106, 1, 0
    %v108 = vcvt.s32.f32 %v107
    %s109 = sld [smem:[#allocation3 + $0x2]]
    %v110 = vstv %s109
    %vm111 = vcmp.eq.s32.totalorder %v98, %v110
    %v112 = vsel %vm111, 1, 0
    %v113 = vcvt.s32.f32 %v112
    %s114 = sld [smem:[#allocation3 + $0x3]]
    %v115 = vstv %s114
    %vm116 = vcmp.eq.s32.totalorder %v98, %v115
    %v117 = vsel %vm116, 1, 0
    %v118 = vcvt.s32.f32 %v117
    %s119 = sld [smem:[#allocation3 + $0x4]]
    %v120 = vstv %s119
    %vm121 = vcmp.eq.s32.totalorder %v98, %v120
    %v122 = vsel %vm121, 1, 0
    %v123 = vcvt.s32.f32 %v122
    %s124 = sld [smem:[#allocation3 + $0x5]]
    %v125 = vstv %s124
    %vm126 = vcmp.eq.s32.totalorder %v98, %v125
    %v127 = vsel %vm126, 1, 0
    %v128 = vcvt.s32.f32 %v127
    %s129 = sld [smem:[#allocation3 + $0x6]]
    %v130 = vstv %s129
    %vm131 = vcmp.eq.s32.totalorder %v98, %v130
    %v132 = vsel %vm131, 1, 0
    %v133 = vcvt.s32.f32 %v132
    %s134 = sld [smem:[#allocation3 + $0x7]]
    %v135 = vstv %s134
    %vm136 = vcmp.eq.s32.totalorder %v98, %v135
    %v137 = vsel %vm136, 1, 0
    %v138 = vcvt.s32.f32 %v137
    %vm139 = vcmask 1040384
    %v140 = vsel %vm139, %v103, %v108
    %vm141 = vcmask 1041408
    %v142 = vsel %vm141, %v140, %v113
    %vm143 = vcmask 1042432
    %v144 = vsel %vm143, %v142, %v118
    %vm145 = vcmask 1043456
    %v146 = vsel %vm145, %v144, %v123
    %vm147 = vcmask 1044480
    %v148 = vsel %vm147, %v146, %v128
    %vm149 = vcmask 1045504
    %v150 = vsel %vm149, %v148, %v133
    %vm151 = vcmask 1046528
    %v152 = vsel %vm151, %v150, %v138
    %v153 = vpack.c.bf16 %v152, %v152
    %v154 = vld [vmem:[#allocation7] sm:$0xff]
    %v155 = vld [vmem:[#allocation7 + $0x8] sm:$0xf]
    %v156 = vld [vmem:[#allocation7 + $0xc] sm:$0xff]
    %v157 = vld [vmem:[#allocation7 + $0x14] sm:$0xf]
    %v158 = vld [vmem:[#allocation7 + $0x18] sm:$0xff]
    %v159 = vld [vmem:[#allocation7 + $0x20] sm:$0xf]
    %v160 = vld [vmem:[#allocation7 + $0x24] sm:$0xff]
    %v161 = vld [vmem:[#allocation7 + $0x2c] sm:$0xf]
    %v162 = vld [vmem:[#allocation7 + $0x30] sm:$0xff]
    %v163 = vld [vmem:[#allocation7 + $0x38] sm:$0xf]
    %v164 = vld [vmem:[#allocation7 + $0x3c] sm:$0xff]
    %v165 = vld [vmem:[#allocation7 + $0x44] sm:$0xf]
    %v166 = vld [vmem:[#allocation7 + $0x48] sm:$0xff]
    %v167 = vld [vmem:[#allocation7 + $0x50] sm:$0xf]
    %v168 = vld [vmem:[#allocation7 + $0x54] sm:$0xff]
    %v169 = vld [vmem:[#allocation7 + $0x5c] sm:$0xf]
    %v170 = vld [vmem:[#allocation7 + $0x60] sm:$0xff]
    %v171 = vld [vmem:[#allocation7 + $0x68] sm:$0xf]
    %v172 = vld [vmem:[#allocation7 + $0x6c] sm:$0xff]
    %v173 = vld [vmem:[#allocation7 + $0x74] sm:$0xf]
    %v174 = vld [vmem:[#allocation7 + $0x78] sm:$0xff]
    %v175 = vld [vmem:[#allocation7 + $0x80] sm:$0xf]
    %v176 = vld [vmem:[#allocation7 + $0x84] sm:$0xff]
    %v177 = vld [vmem:[#allocation7 + $0x8c] sm:$0xf]
    %v178 = vld [vmem:[#allocation7 + $0x90] sm:$0xff]
    %v179 = vld [vmem:[#allocation7 + $0x98] sm:$0xf]
    %v180 = vld [vmem:[#allocation7 + $0x9c] sm:$0xff]
    %v181 = vld [vmem:[#allocation7 + $0xa4] sm:$0xf]
    %v182 = vld [vmem:[#allocation7 + $0xa8] sm:$0xff]
    %v183 = vld [vmem:[#allocation7 + $0xb0] sm:$0xf]
    %v184 = vld [vmem:[#allocation7 + $0xb4] sm:$0xff]
    %v185 = vld [vmem:[#allocation7 + $0xbc] sm:$0xf]
    %v218 = vunpack.c.l.b16 %v154
    %v219 = vunpack.c.h.b16 %v154
    %v220 = vunpack.c.l.b16 %v155
    %v221 = vunpack.c.l.b16 %v156
    %v222 = vunpack.c.h.b16 %v156
    %v223 = vunpack.c.l.b16 %v157
    %v224 = vunpack.c.l.b16 %v158
    %v225 = vunpack.c.h.b16 %v158
    %v226 = vunpack.c.l.b16 %v159
    %v227 = vunpack.c.l.b16 %v160
    %v228 = vunpack.c.h.b16 %v160
    %v229 = vunpack.c.l.b16 %v161
    %v230 = vunpack.c.l.b16 %v162
    %v231 = vunpack.c.h.b16 %v162
    %v232 = vunpack.c.l.b16 %v163
    %v233 = vunpack.c.l.b16 %v164
    %v234 = vunpack.c.h.b16 %v164
    %v235 = vunpack.c.l.b16 %v165
    %v236 = vunpack.c.l.b16 %v166
    %v237 = vunpack.c.h.b16 %v166
    %v238 = vunpack.c.l.b16 %v167
    %v239 = vunpack.c.l.b16 %v168
    %v240 = vunpack.c.h.b16 %v168
    %v241 = vunpack.c.l.b16 %v169
    %v242 = vunpack.c.l.b16 %v170
    %v243 = vunpack.c.h.b16 %v170
    %v244 = vunpack.c.l.b16 %v171
    %v245 = vunpack.c.l.b16 %v172
    %v246 = vunpack.c.h.b16 %v172
    %v247 = vunpack.c.l.b16 %v173
    %v248 = vunpack.c.l.b16 %v174
    %v249 = vunpack.c.h.b16 %v174
    %v250 = vunpack.c.l.b16 %v175
    %v251 = vunpack.c.l.b16 %v176
    %v252 = vunpack.c.h.b16 %v176
    %v253 = vunpack.c.l.b16 %v177
    %v254 = vunpack.c.l.b16 %v178
    %v255 = vunpack.c.h.b16 %v178
    %v256 = vunpack.c.l.b16 %v179
    %v257 = vunpack.c.l.b16 %v180
    %v258 = vunpack.c.h.b16 %v180
    %v259 = vunpack.c.l.b16 %v181
    %v260 = vunpack.c.l.b16 %v182
    %v261 = vunpack.c.h.b16 %v182
    %v262 = vunpack.c.l.b16 %v183
    %v263 = vunpack.c.l.b16 %v184
    %v264 = vunpack.c.h.b16 %v184
    %v265 = vunpack.c.l.b16 %v185
    %v266 = vpack.c.b16 %v221, %v218
    %v267 = vpack.c.b16 %v222, %v219
    %v268 = vpack.c.b16 %v223, %v220
    %v269 = vpack.c.b16 %v227, %v224
    %v270 = vpack.c.b16 %v228, %v225
    %v271 = vpack.c.b16 %v229, %v226
    %v272 = vpack.c.b16 %v233, %v230
    %v273 = vpack.c.b16 %v234, %v231
    %v274 = vpack.c.b16 %v235, %v232
    %v275 = vpack.c.b16 %v239, %v236
    %v276 = vpack.c.b16 %v240, %v237
    %v277 = vpack.c.b16 %v241, %v238
    %v278 = vpack.c.b16 %v245, %v242
    %v279 = vpack.c.b16 %v246, %v243
    %v280 = vpack.c.b16 %v247, %v244
    %v281 = vpack.c.b16 %v251, %v248
    %v282 = vpack.c.b16 %v252, %v249
    %v283 = vpack.c.b16 %v253, %v250
    %v284 = vpack.c.b16 %v257, %v254
    %v285 = vpack.c.b16 %v258, %v255
    %v286 = vpack.c.b16 %v259, %v256
    %v287 = vpack.c.b16 %v263, %v260
    %v288 = vpack.c.b16 %v264, %v261
    %v289 = vpack.c.b16 %v265, %v262
    %314 = vmatprep.subr.bf16.mxu0 %v267
    %315 = vmatpush1.bf16.msra.mxu0 %v266
    %316 = vmatprep.subr.bf16.mxu0 %v270
    %317 = vmatpush1.bf16.msra.mxu0 %v269
    %318 = vmatprep.subr.bf16.mxu0 %v273
    %319 = vmatpush1.bf16.msra.mxu0 %v272
    %320 = vmatprep.subr.bf16.mxu0 %v276
    %321 = vmatpush1.bf16.msra.mxu0 %v275
    %322 = vmatprep.subr.bf16.mxu0 %v279
    %323 = vmatpush1.bf16.msra.mxu0 %v278
    %324 = vmatprep.subr.bf16.mxu0 %v282
    %325 = vmatpush1.bf16.msra.mxu0 %v281
    %326 = vmatprep.subr.bf16.mxu0 %v285
    %327 = vmatpush1.bf16.msra.mxu0 %v284
    %328 = vmatprep.subr.bf16.mxu0 %v288
    %329 = vmatpush1.bf16.msra.mxu0 %v287
    %330 = vmatprep.subr.bf16.mxu0 0
    %331 = vmatpush1.bf16.msra.mxu0 0
    %332 = vmatprep.subr.bf16.mxu0 0
    %333 = vmatpush1.bf16.msra.mxu0 0
    %334 = vmatprep.subr.bf16.mxu0 0
    %335 = vmatpush1.bf16.msra.mxu0 0
    %336 = vmatprep.subr.bf16.mxu0 0
    %337 = vmatpush1.bf16.msra.mxu0 0
    %338 = vmatprep.subr.bf16.mxu0 0
    %339 = vmatpush1.bf16.msra.mxu0 0
    %340 = vmatprep.subr.bf16.mxu0 0
    %341 = vmatpush1.bf16.msra.mxu0 0
    %342 = vmatprep.subr.bf16.mxu0 0
    %343 = vmatpush1.bf16.msra.mxu0 0
    %344 = vmatprep.subr.bf16.mxu0 0
    %345 = vmatpush1.bf16.msra.mxu0 0
    %346 = vmatprep.mubr.bf16.mxu0 0
    %347 = vmatmul.mubr.bf16.gmra.mrb[0].mxu0 %v153
    %v348 = vpop.f32.mrb[0].mxu0
    %v349 = vadd.f32 0.0, %v348
    %v350 = vpop.f32.mrb[0].mxu0
    %v351 = vadd.f32 0.0, %v350
    %v352 = vpop.f32.mrb[0].mxu0
    %v353 = vpop.f32.mrb[0].mxu0
    %354 = vdwg.mxu0
    %355 = vmatprep.subr.bf16.mxu0 0
    %356 = vmatpush1.bf16.msra.mxu0 %v268
    %357 = vmatprep.subr.bf16.mxu0 0
    %358 = vmatpush1.bf16.msra.mxu0 %v271
    %359 = vmatprep.subr.bf16.mxu0 0
    %360 = vmatpush1.bf16.msra.mxu0 %v274
    %361 = vmatprep.subr.bf16.mxu0 0
    %362 = vmatpush1.bf16.msra.mxu0 %v277
    %363 = vmatprep.subr.bf16.mxu0 0
    %364 = vmatpush1.bf16.msra.mxu0 %v280
    %365 = vmatprep.subr.bf16.mxu0 0
    %366 = vmatpush1.bf16.msra.mxu0 %v283
    %367 = vmatprep.subr.bf16.mxu0 0
    %368 = vmatpush1.bf16.msra.mxu0 %v286
    %369 = vmatprep.subr.bf16.mxu0 0
    %370 = vmatpush1.bf16.msra.mxu0 %v289
    %371 = vmatprep.subr.bf16.mxu0 0
    %372 = vmatpush1.bf16.msra.mxu0 0
    %373 = vmatprep.subr.bf16.mxu0 0
    %374 = vmatpush1.bf16.msra.mxu0 0
    %375 = vmatprep.subr.bf16.mxu0 0
    %376 = vmatpush1.bf16.msra.mxu0 0
    %377 = vmatprep.subr.bf16.mxu0 0
    %378 = vmatpush1.bf16.msra.mxu0 0
    %379 = vmatprep.subr.bf16.mxu0 0
    %380 = vmatpush1.bf16.msra.mxu0 0
    %381 = vmatprep.subr.bf16.mxu0 0
    %382 = vmatpush1.bf16.msra.mxu0 0
    %383 = vmatprep.subr.bf16.mxu0 0
    %384 = vmatpush1.bf16.msra.mxu0 0
    %385 = vmatprep.subr.bf16.mxu0 0
    %386 = vmatpush1.bf16.msra.mxu0 0
    %387 = vmatprep.mubr.bf16.mxu0 0
    %388 = vmatmul.mubr.bf16.gmra.mrb[0].mxu0 %v153
    %v389 = vpop.f32.mrb[0].mxu0
    %v390 = vadd.f32 0.0, %v389
    %v391 = vpop.f32.mrb[0].mxu0
    %v392 = vpop.f32.mrb[0].mxu0
    %v393 = vpop.f32.mrb[0].mxu0
    %394 = vdwg.mxu0
    %v395 = vld [vmem:[#allocation7 + $0xc0] sm:$0xff]
    %v396 = vld [vmem:[#allocation7 + $0xc8] sm:$0xf]
    %v397 = vld [vmem:[#allocation7 + $0xcc] sm:$0xff]
    %v398 = vld [vmem:[#allocation7 + $0xd4] sm:$0xf]
    %v399 = vld [vmem:[#allocation7 + $0xd8] sm:$0xff]
    %v400 = vld [vmem:[#allocation7 + $0xe0] sm:$0xf]
    %v401 = vld [vmem:[#allocation7 + $0xe4] sm:$0xff]
    %v402 = vld [vmem:[#allocation7 + $0xec] sm:$0xf]
    %v403 = vld [vmem:[#allocation7 + $0xf0] sm:$0xff]
    %v404 = vld [vmem:[#allocation7 + $0xf8] sm:$0xf]
    %v405 = vld [vmem:[#allocation7 + $0xfc] sm:$0xff]
    %v406 = vld [vmem:[#allocation7 + $0x104] sm:$0xf]
    %v407 = vld [vmem:[#allocation7 + $0x108] sm:$0xff]
    %v408 = vld [vmem:[#allocation7 + $0x110] sm:$0xf]
    %v409 = vld [vmem:[#allocation7 + $0x114] sm:$0xff]
    %v410 = vld [vmem:[#allocation7 + $0x11c] sm:$0xf]
    %v411 = vld [vmem:[#allocation7 + $0x120] sm:$0xff]
    %v412 = vld [vmem:[#allocation7 + $0x128] sm:$0xf]
    %v413 = vld [vmem:[#allocation7 + $0x12c] sm:$0xff]
    %v414 = vld [vmem:[#allocation7 + $0x134] sm:$0xf]
    %v415 = vld [vmem:[#allocation7 + $0x138] sm:$0xff]
    %v416 = vld [vmem:[#allocation7 + $0x140] sm:$0xf]
    %v417 = vld [vmem:[#allocation7 + $0x144] sm:$0xff]
    %v418 = vld [vmem:[#allocation7 + $0x14c] sm:$0xf]
    %v419 = vld [vmem:[#allocation7 + $0x150] sm:$0xff]
    %v420 = vld [vmem:[#allocation7 + $0x158] sm:$0xf]
    %v421 = vld [vmem:[#allocation7 + $0x15c] sm:$0xff]
    %v422 = vld [vmem:[#allocation7 + $0x164] sm:$0xf]
    %v423 = vld [vmem:[#allocation7 + $0x168] sm:$0xff]
    %v424 = vld [vmem:[#allocation7 + $0x170] sm:$0xf]
    %v425 = vld [vmem:[#allocation7 + $0x174] sm:$0xff]
    %v426 = vld [vmem:[#allocation7 + $0x17c] sm:$0xf]
    %v459 = vunpack.c.l.b16 %v395
    %v460 = vunpack.c.h.b16 %v395
    %v461 = vunpack.c.l.b16 %v396
    %v462 = vunpack.c.l.b16 %v397
    %v463 = vunpack.c.h.b16 %v397
    %v464 = vunpack.c.l.b16 %v398
    %v465 = vunpack.c.l.b16 %v399
    %v466 = vunpack.c.h.b16 %v399
    %v467 = vunpack.c.l.b16 %v400
    %v468 = vunpack.c.l.b16 %v401
    %v469 = vunpack.c.h.b16 %v401
    %v470 = vunpack.c.l.b16 %v402
    %v471 = vunpack.c.l.b16 %v403
    %v472 = vunpack.c.h.b16 %v403
    %v473 = vunpack.c.l.b16 %v404
    %v474 = vunpack.c.l.b16 %v405
    %v475 = vunpack.c.h.b16 %v405
    %v476 = vunpack.c.l.b16 %v406
    %v477 = vunpack.c.l.b16 %v407
    %v478 = vunpack.c.h.b16 %v407
    %v479 = vunpack.c.l.b16 %v408
    %v480 = vunpack.c.l.b16 %v409
    %v481 = vunpack.c.h.b16 %v409
    %v482 = vunpack.c.l.b16 %v410
    %v483 = vunpack.c.l.b16 %v411
    %v484 = vunpack.c.h.b16 %v411
    %v485 = vunpack.c.l.b16 %v412
    %v486 = vunpack.c.l.b16 %v413
    %v487 = vunpack.c.h.b16 %v413
    %v488 = vunpack.c.l.b16 %v414
    %v489 = vunpack.c.l.b16 %v415
    %v490 = vunpack.c.h.b16 %v415
    %v491 = vunpack.c.l.b16 %v416
    %v492 = vunpack.c.l.b16 %v417
    %v493 = vunpack.c.h.b16 %v417
    %v494 = vunpack.c.l.b16 %v418
    %v495 = vunpack.c.l.b16 %v419
    %v496 = vunpack.c.h.b16 %v419
    %v497 = vunpack.c.l.b16 %v420
    %v498 = vunpack.c.l.b16 %v421
    %v499 = vunpack.c.h.b16 %v421
    %v500 = vunpack.c.l.b16 %v422
    %v501 = vunpack.c.l.b16 %v423
    %v502 = vunpack.c.h.b16 %v423
    %v503 = vunpack.c.l.b16 %v424
    %v504 = vunpack.c.l.b16 %v425
    %v505 = vunpack.c.h.b16 %v425
    %v506 = vunpack.c.l.b16 %v426
    %v507 = vpack.c.b16 %v462, %v459
    %v508 = vpack.c.b16 %v463, %v460
    %v509 = vpack.c.b16 %v464, %v461
    %v510 = vpack.c.b16 %v468, %v465
    %v511 = vpack.c.b16 %v469, %v466
    %v512 = vpack.c.b16 %v470, %v467
    %v513 = vpack.c.b16 %v474, %v471
    %v514 = vpack.c.b16 %v475, %v472
    %v515 = vpack.c.b16 %v476, %v473
    %v516 = vpack.c.b16 %v480, %v477
    %v517 = vpack.c.b16 %v481, %v478
    %v518 = vpack.c.b16 %v482, %v479
    %v519 = vpack.c.b16 %v486, %v483
    %v520 = vpack.c.b16 %v487, %v484
    %v521 = vpack.c.b16 %v488, %v485
    %v522 = vpack.c.b16 %v492, %v489
    %v523 = vpack.c.b16 %v493, %v490
    %v524 = vpack.c.b16 %v494, %v491
    %v525 = vpack.c.b16 %v498, %v495
    %v526 = vpack.c.b16 %v499, %v496
    %v527 = vpack.c.b16 %v500, %v497
    %v528 = vpack.c.b16 %v504, %v501
    %v529 = vpack.c.b16 %v505, %v502
    %v530 = vpack.c.b16 %v506, %v503
    %v556 = vlaneseq
    %v557 = vshrl.u32 %v556, 7
    %v558 = vsub.s32 0, %v557
    %v559 = vrot.slane %v96, %v558
    %v560 = vlaneseq
    %v561 = vshrl.u32 %v560, 7
    %v562 = vsub.s32 1, %v561
    %v563 = vrot.slane %v96, %v562
    %v564 = vlaneseq
    %v565 = vshrl.u32 %v564, 7
    %v566 = vsub.s32 2, %v565
    %v567 = vrot.slane %v96, %v566
    %571 = vmatprep.subr.bf16.mxu0 %v508
    %572 = vmatpush1.bf16.msra.mxu0 %v507
    %573 = vmatprep.subr.bf16.mxu0 %v511
    %574 = vmatpush1.bf16.msra.mxu0 %v510
    %575 = vmatprep.subr.bf16.mxu0 %v514
    %576 = vmatpush1.bf16.msra.mxu0 %v513
    %577 = vmatprep.subr.bf16.mxu0 %v517
    %578 = vmatpush1.bf16.msra.mxu0 %v516
    %579 = vmatprep.subr.bf16.mxu0 %v520
    %580 = vmatpush1.bf16.msra.mxu0 %v519
    %581 = vmatprep.subr.bf16.mxu0 %v523
    %582 = vmatpush1.bf16.msra.mxu0 %v522
    %583 = vmatprep.subr.bf16.mxu0 %v526
    %584 = vmatpush1.bf16.msra.mxu0 %v525
    %585 = vmatprep.subr.bf16.mxu0 %v529
    %586 = vmatpush1.bf16.msra.mxu0 %v528
    %587 = vmatprep.subr.bf16.mxu0 0
    %588 = vmatpush1.bf16.msra.mxu0 0
    %589 = vmatprep.subr.bf16.mxu0 0
    %590 = vmatpush1.bf16.msra.mxu0 0
    %591 = vmatprep.subr.bf16.mxu0 0
    %592 = vmatpush1.bf16.msra.mxu0 0
    %593 = vmatprep.subr.bf16.mxu0 0
    %594 = vmatpush1.bf16.msra.mxu0 0
    %595 = vmatprep.subr.bf16.mxu0 0
    %596 = vmatpush1.bf16.msra.mxu0 0
    %597 = vmatprep.subr.bf16.mxu0 0
    %598 = vmatpush1.bf16.msra.mxu0 0
    %599 = vmatprep.subr.bf16.mxu0 0
    %600 = vmatpush1.bf16.msra.mxu0 0
    %601 = vmatprep.subr.bf16.mxu0 0
    %602 = vmatpush1.bf16.msra.mxu0 0
    %603 = vmatprep.mubr.bf16.mxu0 0
    %604 = vmatmul.mubr.bf16.gmra.mrb[0].mxu0 0
    %v605 = vpop.f32.mrb[0].mxu0
    %v606 = vadd.f32 %v559, %v605
    %v607 = vpop.f32.mrb[0].mxu0
    %v608 = vadd.f32 %v563, %v607
    %v609 = vpop.f32.mrb[0].mxu0
    %v610 = vpop.f32.mrb[0].mxu0
    %611 = vdwg.mxu0
    %612 = vmatprep.subr.bf16.mxu0 0
    %613 = vmatpush1.bf16.msra.mxu0 %v509
    %614 = vmatprep.subr.bf16.mxu0 0
    %615 = vmatpush1.bf16.msra.mxu0 %v512
    %616 = vmatprep.subr.bf16.mxu0 0
    %617 = vmatpush1.bf16.msra.mxu0 %v515
    %618 = vmatprep.subr.bf16.mxu0 0
    %619 = vmatpush1.bf16.msra.mxu0 %v518
    %620 = vmatprep.subr.bf16.mxu0 0
    %621 = vmatpush1.bf16.msra.mxu0 %v521
    %622 = vmatprep.subr.bf16.mxu0 0
    %623 = vmatpush1.bf16.msra.mxu0 %v524
    %624 = vmatprep.subr.bf16.mxu0 0
    %625 = vmatpush1.bf16.msra.mxu0 %v527
    %626 = vmatprep.subr.bf16.mxu0 0
    %627 = vmatpush1.bf16.msra.mxu0 %v530
    %628 = vmatprep.subr.bf16.mxu0 0
    %629 = vmatpush1.bf16.msra.mxu0 0
    %630 = vmatprep.subr.bf16.mxu0 0
    %631 = vmatpush1.bf16.msra.mxu0 0
    %632 = vmatprep.subr.bf16.mxu0 0
    %633 = vmatpush1.bf16.msra.mxu0 0
    %634 = vmatprep.subr.bf16.mxu0 0
    %635 = vmatpush1.bf16.msra.mxu0 0
    %636 = vmatprep.subr.bf16.mxu0 0
    %637 = vmatpush1.bf16.msra.mxu0 0
    %638 = vmatprep.subr.bf16.mxu0 0
    %639 = vmatpush1.bf16.msra.mxu0 0
    %640 = vmatprep.subr.bf16.mxu0 0
    %641 = vmatpush1.bf16.msra.mxu0 0
    %642 = vmatprep.subr.bf16.mxu0 0
    %643 = vmatpush1.bf16.msra.mxu0 0
    %644 = vmatprep.mubr.bf16.mxu0 0
    %645 = vmatmul.mubr.bf16.gmra.mrb[0].mxu0 0
    %v646 = vpop.f32.mrb[0].mxu0
    %v647 = vadd.f32 %v567, %v646
    %v648 = vpop.f32.mrb[0].mxu0
    %v649 = vpop.f32.mrb[0].mxu0
    %v650 = vpop.f32.mrb[0].mxu0
    %651 = vdwg.mxu0
    %v652 = vadd.f32 %v349, %v606
    %v653 = vxor.u32 %v652, 2147483648
    %v654 = vmul.f32 %v653, 1.442695
    %v655 = vpow.pop %v654
    %v656 = vadd.f32 %v655, 1.0
    %v657 = vrcp.pop %v656
    %v658 = vmul.f32 1.0, %v657
    %v659 = vadd.f32 %v351, %v608
    %v660 = vxor.u32 %v659, 2147483648
    %v661 = vmul.f32 %v660, 1.442695
    %v662 = vpow.pop %v661
    %v663 = vadd.f32 %v662, 1.0
    %v664 = vrcp.pop %v663
    %v665 = vmul.f32 1.0, %v664
    %v666 = vmul.f32 %v658, %v647
    %v667 = vadd.f32 %v390, %v666
    %v668 = vtanh.pop %v667
    %v669 = vsub.f32 1.0, %v665
    %v670 = vmul.f32 %v669, %v668
    %v671 = vmul.f32 %v665, 0.0
    %v672 = vadd.f32 %v670, %v671
    %p673 = scmp.gt.s32.totalorder %s95, 0
    %s674 = scalar_select %p673, 1, 0
    %v675 = vstv %s674
    %vm676 = vcmp.eq.s32.totalorder %v675, 1
    %v677 = vsel %vm676, %v672, 0.0
    %v678 = vpack.c.bf16 %v677, %v677
    %679 = vmatprep.subr.bf16.mxu0 %v508
    %680 = vmatpush1.bf16.msra.mxu0 %v507
    %681 = vmatprep.subr.bf16.mxu0 %v511
    %682 = vmatpush1.bf16.msra.mxu0 %v510
    %683 = vmatprep.subr.bf16.mxu0 %v514
    %684 = vmatpush1.bf16.msra.mxu0 %v513
    %685 = vmatprep.subr.bf16.mxu0 %v517
    %686 = vmatpush1.bf16.msra.mxu0 %v516
    %687 = vmatprep.subr.bf16.mxu0 %v520
    %688 = vmatpush1.bf16.msra.mxu0 %v519
    %689 = vmatprep.subr.bf16.mxu0 %v523
    %690 = vmatpush1.bf16.msra.mxu0 %v522
    %691 = vmatprep.subr.bf16.mxu0 %v526
    %692 = vmatpush1.bf16.msra.mxu0 %v525
    %693 = vmatprep.subr.bf16.mxu0 %v529
    %694 = vmatpush1.bf16.msra.mxu0 %v528
    %695 = vmatprep.subr.bf16.mxu0 0
    %696 = vmatpush1.bf16.msra.mxu0 0
    %697 = vmatprep.subr.bf16.mxu0 0
    %698 = vmatpush1.bf16.msra.mxu0 0
    %699 = vmatprep.subr.bf16.mxu0 0
    %700 = vmatpush1.bf16.msra.mxu0 0
    %701 = vmatprep.subr.bf16.mxu0 0
    %702 = vmatpush1.bf16.msra.mxu0 0
    %703 = vmatprep.subr.bf16.mxu0 0
    %704 = vmatpush1.bf16.msra.mxu0 0
    %705 = vmatprep.subr.bf16.mxu0 0
    %706 = vmatpush1.bf16.msra.mxu0 0
    %707 = vmatprep.subr.bf16.mxu0 0
    %708 = vmatpush1.bf16.msra.mxu0 0
    %709 = vmatprep.subr.bf16.mxu0 0
    %710 = vmatpush1.bf16.msra.mxu0 0
    %711 = vmatprep.mubr.bf16.mxu0 0
    %712 = vmatmul.mubr.bf16.gmra.mrb[0].mxu0 %v678
    %v713 = vpop.f32.mrb[0].mxu0
    %v714 = vadd.f32 %v559, %v713
    %v715 = vpop.f32.mrb[0].mxu0
    %v716 = vadd.f32 %v563, %v715
    %v717 = vpop.f32.mrb[0].mxu0
    %v718 = vpop.f32.mrb[0].mxu0
    %719 = vdwg.mxu0
    %720 = vmatprep.subr.bf16.mxu0 0
    %721 = vmatpush1.bf16.msra.mxu0 %v509
    %722 = vmatprep.subr.bf16.mxu0 0
    %723 = vmatpush1.bf16.msra.mxu0 %v512
    %724 = vmatprep.subr.bf16.mxu0 0
    %725 = vmatpush1.bf16.msra.mxu0 %v515
    %726 = vmatprep.subr.bf16.mxu0 0
    %727 = vmatpush1.bf16.msra.mxu0 %v518
    %728 = vmatprep.subr.bf16.mxu0 0
    %729 = vmatpush1.bf16.msra.mxu0 %v521
    %730 = vmatprep.subr.bf16.mxu0 0
    %731 = vmatpush1.bf16.msra.mxu0 %v524
    %732 = vmatprep.subr.bf16.mxu0 0
    %733 = vmatpush1.bf16.msra.mxu0 %v527
    %734 = vmatprep.subr.bf16.mxu0 0
    %735 = vmatpush1.bf16.msra.mxu0 %v530
    %736 = vmatprep.subr.bf16.mxu0 0
    %737 = vmatpush1.bf16.msra.mxu0 0
    %738 = vmatprep.subr.bf16.mxu0 0
    %739 = vmatpush1.bf16.msra.mxu0 0
    %740 = vmatprep.subr.bf16.mxu0 0
    %741 = vmatpush1.bf16.msra.mxu0 0
    %742 = vmatprep.subr.bf16.mxu0 0
    %743 = vmatpush1.bf16.msra.mxu0 0
    %744 = vmatprep.subr.bf16.mxu0 0
    %745 = vmatpush1.bf16.msra.mxu0 0
    %746 = vmatprep.subr.bf16.mxu0 0
    %747 = vmatpush1.bf16.msra.mxu0 0
    %748 = vmatprep.subr.bf16.mxu0 0
    %749 = vmatpush1.bf16.msra.mxu0 0
    %750 = vmatprep.subr.bf16.mxu0 0
    %751 = vmatpush1.bf16.msra.mxu0 0
    %752 = vmatprep.mubr.bf16.mxu0 0
    %753 = vmatmul.mubr.bf16.gmra.mrb[0].mxu0 %v678
    %v754 = vpop.f32.mrb[0].mxu0
    %v755 = vadd.f32 %v567, %v754
    %v756 = vpop.f32.mrb[0].mxu0
    %v757 = vpop.f32.mrb[0].mxu0
    %v758 = vpop.f32.mrb[0].mxu0
    %759 = vdwg.mxu0
    %v761 = vrot.slane %v714, 7
    %v763 = vadd.f32 %v349, %v761
    %v764 = vxor.u32 %v763, 2147483648
    %v765 = vmul.f32 %v764, 1.442695
    %v766 = vpow.pop %v765
    %v767 = vadd.f32 %v766, 1.0
    %v768 = vrcp.pop %v767
    %v769 = vmul.f32 1.0, %v768
    %v771 = vrot.slane %v716, 7
    %v773 = vadd.f32 %v351, %v771
    %v774 = vxor.u32 %v773, 2147483648
    %v775 = vmul.f32 %v774, 1.442695
    %v776 = vpow.pop %v775
    %v777 = vadd.f32 %v776, 1.0
    %v778 = vrcp.pop %v777
    %v779 = vmul.f32 1.0, %v778
    %v781 = vrot.slane %v755, 7
    %v783 = vmul.f32 %v769, %v781
    %v784 = vadd.f32 %v390, %v783
    %v785 = vtanh.pop %v784
    %v786 = vsub.f32 1.0, %v779
    %v787 = vmul.f32 %v786, %v785
    %v789 = vrot.slane %v677, 7
    %v791 = vmul.f32 %v779, %v789
    %v792 = vadd.f32 %v787, %v791
    %p793 = scmp.gt.s32.totalorder %s95, 1
    %s794 = scalar_select %p793, 1, 0
    %v795 = vstv %s794
    %vm796 = vcmp.eq.s32.totalorder %v795, 1
    %v797 = vsel %vm796, %v792, 0.0
    %v798 = vsel %vm796, %v792, %v789
    %v799 = vpack.c.bf16 %v798, %v798
    %v801 = vshrl.u32 %v799, 16
    %804 = vmatprep.subr.bf16.mxu0 %v508
    %805 = vmatpush1.bf16.msra.mxu0 %v507
    %806 = vmatprep.subr.bf16.mxu0 %v511
    %807 = vmatpush1.bf16.msra.mxu0 %v510
    %808 = vmatprep.subr.bf16.mxu0 %v514
    %809 = vmatpush1.bf16.msra.mxu0 %v513
    %810 = vmatprep.subr.bf16.mxu0 %v517
    %811 = vmatpush1.bf16.msra.mxu0 %v516
    %812 = vmatprep.subr.bf16.mxu0 %v520
    %813 = vmatpush1.bf16.msra.mxu0 %v519
    %814 = vmatprep.subr.bf16.mxu0 %v523
    %815 = vmatpush1.bf16.msra.mxu0 %v522
    %816 = vmatprep.subr.bf16.mxu0 %v526
    %817 = vmatpush1.bf16.msra.mxu0 %v525
    %818 = vmatprep.subr.bf16.mxu0 %v529
    %819 = vmatpush1.bf16.msra.mxu0 %v528
    %820 = vmatprep.subr.bf16.mxu0 0
    %821 = vmatpush1.bf16.msra.mxu0 0
    %822 = vmatprep.subr.bf16.mxu0 0
    %823 = vmatpush1.bf16.msra.mxu0 0
    %824 = vmatprep.subr.bf16.mxu0 0
    %825 = vmatpush1.bf16.msra.mxu0 0
    %826 = vmatprep.subr.bf16.mxu0 0
    %827 = vmatpush1.bf16.msra.mxu0 0
    %828 = vmatprep.subr.bf16.mxu0 0
    %829 = vmatpush1.bf16.msra.mxu0 0
    %830 = vmatprep.subr.bf16.mxu0 0
    %831 = vmatpush1.bf16.msra.mxu0 0
    %832 = vmatprep.subr.bf16.mxu0 0
    %833 = vmatpush1.bf16.msra.mxu0 0
    %834 = vmatprep.subr.bf16.mxu0 0
    %835 = vmatpush1.bf16.msra.mxu0 0
    %836 = vmatprep.mubr.bf16.mxu0 0
    %837 = vmatmul.mubr.bf16.gmra.mrb[0].mxu0 %v801
    %v838 = vpop.f32.mrb[0].mxu0
    %v839 = vadd.f32 %v559, %v838
    %v840 = vpop.f32.mrb[0].mxu0
    %v841 = vadd.f32 %v563, %v840
    %v842 = vpop.f32.mrb[0].mxu0
    %v843 = vpop.f32.mrb[0].mxu0
    %844 = vdwg.mxu0
    %845 = vmatprep.subr.bf16.mxu0 0
    %846 = vmatpush1.bf16.msra.mxu0 %v509
    %847 = vmatprep.subr.bf16.mxu0 0
    %848 = vmatpush1.bf16.msra.mxu0 %v512
    %849 = vmatprep.subr.bf16.mxu0 0
    %850 = vmatpush1.bf16.msra.mxu0 %v515
    %851 = vmatprep.subr.bf16.mxu0 0
    %852 = vmatpush1.bf16.msra.mxu0 %v518
    %853 = vmatprep.subr.bf16.mxu0 0
    %854 = vmatpush1.bf16.msra.mxu0 %v521
    %855 = vmatprep.subr.bf16.mxu0 0
    %856 = vmatpush1.bf16.msra.mxu0 %v524
    %857 = vmatprep.subr.bf16.mxu0 0
    %858 = vmatpush1.bf16.msra.mxu0 %v527
    %859 = vmatprep.subr.bf16.mxu0 0
    %860 = vmatpush1.bf16.msra.mxu0 %v530
    %861 = vmatprep.subr.bf16.mxu0 0
    %862 = vmatpush1.bf16.msra.mxu0 0
    %863 = vmatprep.subr.bf16.mxu0 0
    %864 = vmatpush1.bf16.msra.mxu0 0
    %865 = vmatprep.subr.bf16.mxu0 0
    %866 = vmatpush1.bf16.msra.mxu0 0
    %867 = vmatprep.subr.bf16.mxu0 0
    %868 = vmatpush1.bf16.msra.mxu0 0
    %869 = vmatprep.subr.bf16.mxu0 0
    %870 = vmatpush1.bf16.msra.mxu0 0
    %871 = vmatprep.subr.bf16.mxu0 0
    %872 = vmatpush1.bf16.msra.mxu0 0
    %873 = vmatprep.subr.bf16.mxu0 0
    %874 = vmatpush1.bf16.msra.mxu0 0
    %875 = vmatprep.subr.bf16.mxu0 0
    %876 = vmatpush1.bf16.msra.mxu0 0
    %877 = vmatprep.mubr.bf16.mxu0 0
    %878 = vmatmul.mubr.bf16.gmra.mrb[0].mxu0 %v801
    %v879 = vpop.f32.mrb[0].mxu0
    %v880 = vadd.f32 %v567, %v879
    %v881 = vpop.f32.mrb[0].mxu0
    %v882 = vpop.f32.mrb[0].mxu0
    %v883 = vpop.f32.mrb[0].mxu0
    %884 = vdwg.mxu0
    %v886 = vrot.slane %v839, 6
    %v888 = vadd.f32 %v349, %v886
    %v889 = vxor.u32 %v888, 2147483648
    %v890 = vmul.f32 %v889, 1.442695
    %v891 = vpow.pop %v890
    %v892 = vadd.f32 %v891, 1.0
    %v893 = vrcp.pop %v892
    %v894 = vmul.f32 1.0, %v893
    %v896 = vrot.slane %v841, 6
    %v898 = vadd.f32 %v351, %v896
    %v899 = vxor.u32 %v898, 2147483648
    %v900 = vmul.f32 %v899, 1.442695
    %v901 = vpow.pop %v900
    %v902 = vadd.f32 %v901, 1.0
    %v903 = vrcp.pop %v902
    %v904 = vmul.f32 1.0, %v903
    %v906 = vrot.slane %v880, 6
    %v908 = vmul.f32 %v894, %v906
    %v909 = vadd.f32 %v390, %v908
    %v910 = vtanh.pop %v909
    %v911 = vsub.f32 1.0, %v904
    %v912 = vmul.f32 %v911, %v910
    %v914 = vrot.slane %v798, 7
    %v916 = vmul.f32 %v904, %v914
    %v917 = vadd.f32 %v912, %v916
    %p918 = scmp.gt.s32.totalorder %s95, 2
    %s919 = scalar_select %p918, 1, 0
    %v920 = vstv %s919
    %vm921 = vcmp.eq.s32.totalorder %v920, 1
    %v922 = vsel %vm921, %v917, 0.0
    %v923 = vsel %vm921, %v917, %v914
    %v924 = vpack.c.bf16 %v923, %v923
    %v926 = vrot.slane %v924, 1
    %928 = vmatprep.subr.bf16.mxu0 %v508
    %929 = vmatpush1.bf16.msra.mxu0 %v507
    %930 = vmatprep.subr.bf16.mxu0 %v511
    %931 = vmatpush1.bf16.msra.mxu0 %v510
    %932 = vmatprep.subr.bf16.mxu0 %v514
    %933 = vmatpush1.bf16.msra.mxu0 %v513
    %934 = vmatprep.subr.bf16.mxu0 %v517
    %935 = vmatpush1.bf16.msra.mxu0 %v516
    %936 = vmatprep.subr.bf16.mxu0 %v520
    %937 = vmatpush1.bf16.msra.mxu0 %v519
    %938 = vmatprep.subr.bf16.mxu0 %v523
    %939 = vmatpush1.bf16.msra.mxu0 %v522
    %940 = vmatprep.subr.bf16.mxu0 %v526
    %941 = vmatpush1.bf16.msra.mxu0 %v525
    %942 = vmatprep.subr.bf16.mxu0 %v529
    %943 = vmatpush1.bf16.msra.mxu0 %v528
    %944 = vmatprep.subr.bf16.mxu0 0
    %945 = vmatpush1.bf16.msra.mxu0 0
    %946 = vmatprep.subr.bf16.mxu0 0
    %947 = vmatpush1.bf16.msra.mxu0 0
    %948 = vmatprep.subr.bf16.mxu0 0
    %949 = vmatpush1.bf16.msra.mxu0 0
    %950 = vmatprep.subr.bf16.mxu0 0
    %951 = vmatpush1.bf16.msra.mxu0 0
    %952 = vmatprep.subr.bf16.mxu0 0
    %953 = vmatpush1.bf16.msra.mxu0 0
    %954 = vmatprep.subr.bf16.mxu0 0
    %955 = vmatpush1.bf16.msra.mxu0 0
    %956 = vmatprep.subr.bf16.mxu0 0
    %957 = vmatpush1.bf16.msra.mxu0 0
    %958 = vmatprep.subr.bf16.mxu0 0
    %959 = vmatpush1.bf16.msra.mxu0 0
    %960 = vmatprep.mubr.bf16.mxu0 0
    %961 = vmatmul.mubr.bf16.gmra.mrb[0].mxu0 %v926
    %v962 = vpop.f32.mrb[0].mxu0
    %v963 = vadd.f32 %v559, %v962
    %v964 = vpop.f32.mrb[0].mxu0
    %v965 = vadd.f32 %v563, %v964
    %v966 = vpop.f32.mrb[0].mxu0
    %v967 = vpop.f32.mrb[0].mxu0
    %968 = vdwg.mxu0
    %969 = vmatprep.subr.bf16.mxu0 0
    %970 = vmatpush1.bf16.msra.mxu0 %v509
    %971 = vmatprep.subr.bf16.mxu0 0
    %972 = vmatpush1.bf16.msra.mxu0 %v512
    %973 = vmatprep.subr.bf16.mxu0 0
    %974 = vmatpush1.bf16.msra.mxu0 %v515
    %975 = vmatprep.subr.bf16.mxu0 0
    %976 = vmatpush1.bf16.msra.mxu0 %v518
    %977 = vmatprep.subr.bf16.mxu0 0
    %978 = vmatpush1.bf16.msra.mxu0 %v521
    %979 = vmatprep.subr.bf16.mxu0 0
    %980 = vmatpush1.bf16.msra.mxu0 %v524
    %981 = vmatprep.subr.bf16.mxu0 0
    %982 = vmatpush1.bf16.msra.mxu0 %v527
    %983 = vmatprep.subr.bf16.mxu0 0
    %984 = vmatpush1.bf16.msra.mxu0 %v530
    %985 = vmatprep.subr.bf16.mxu0 0
    %986 = vmatpush1.bf16.msra.mxu0 0
    %987 = vmatprep.subr.bf16.mxu0 0
    %988 = vmatpush1.bf16.msra.mxu0 0
    %989 = vmatprep.subr.bf16.mxu0 0
    %990 = vmatpush1.bf16.msra.mxu0 0
    %991 = vmatprep.subr.bf16.mxu0 0
    %992 = vmatpush1.bf16.msra.mxu0 0
    %993 = vmatprep.subr.bf16.mxu0 0
    %994 = vmatpush1.bf16.msra.mxu0 0
    %995 = vmatprep.subr.bf16.mxu0 0
    %996 = vmatpush1.bf16.msra.mxu0 0
    %997 = vmatprep.subr.bf16.mxu0 0
    %998 = vmatpush1.bf16.msra.mxu0 0
    %999 = vmatprep.subr.bf16.mxu0 0
    %1000 = vmatpush1.bf16.msra.mxu0 0
    %1001 = vmatprep.mubr.bf16.mxu0 0
    %1002 = vmatmul.mubr.bf16.gmra.mrb[0].mxu0 %v926
    %v1003 = vpop.f32.mrb[0].mxu0
    %v1004 = vadd.f32 %v567, %v1003
    %v1005 = vpop.f32.mrb[0].mxu0
    %v1006 = vpop.f32.mrb[0].mxu0
    %v1007 = vpop.f32.mrb[0].mxu0
    %1008 = vdwg.mxu0
    %v1010 = vrot.slane %v963, 5
    %v1012 = vadd.f32 %v349, %v1010
    %v1013 = vxor.u32 %v1012, 2147483648
    %v1014 = vmul.f32 %v1013, 1.442695
    %v1015 = vpow.pop %v1014
    %v1016 = vadd.f32 %v1015, 1.0
    %v1017 = vrcp.pop %v1016
    %v1018 = vmul.f32 1.0, %v1017
    %v1020 = vrot.slane %v965, 5
    %v1022 = vadd.f32 %v351, %v1020
    %v1023 = vxor.u32 %v1022, 2147483648
    %v1024 = vmul.f32 %v1023, 1.442695
    %v1025 = vpow.pop %v1024
    %v1026 = vadd.f32 %v1025, 1.0
    %v1027 = vrcp.pop %v1026
    %v1028 = vmul.f32 1.0, %v1027
    %v1030 = vrot.slane %v1004, 5
    %v1032 = vmul.f32 %v1018, %v1030
    %v1033 = vadd.f32 %v390, %v1032
    %v1034 = vtanh.pop %v1033
    %v1035 = vsub.f32 1.0, %v1028
    %v1036 = vmul.f32 %v1035, %v1034
    %v1038 = vrot.slane %v923, 7
    %v1040 = vmul.f32 %v1028, %v1038
    %v1041 = vadd.f32 %v1036, %v1040
    %p1042 = scmp.gt.s32.totalorder %s95, 3
    %s1043 = scalar_select %p1042, 1, 0
    %v1044 = vstv %s1043
    %vm1045 = vcmp.eq.s32.totalorder %v1044, 1
    %v1046 = vsel %vm1045, %v1041, 0.0
    %v1047 = vsel %vm1045, %v1041, %v1038
    %v1048 = vpack.c.bf16 %v1047, %v1047
    %v1050 = vshrl.u32 %v1048, 16
    %v1052 = vrot.slane %v1050, 1
    %1054 = vmatprep.subr.bf16.mxu0 %v508
    %1055 = vmatpush1.bf16.msra.mxu0 %v507
    %1056 = vmatprep.subr.bf16.mxu0 %v511
    %1057 = vmatpush1.bf16.msra.mxu0 %v510
    %1058 = vmatprep.subr.bf16.mxu0 %v514
    %1059 = vmatpush1.bf16.msra.mxu0 %v513
    %1060 = vmatprep.subr.bf16.mxu0 %v517
    %1061 = vmatpush1.bf16.msra.mxu0 %v516
    %1062 = vmatprep.subr.bf16.mxu0 %v520
    %1063 = vmatpush1.bf16.msra.mxu0 %v519
    %1064 = vmatprep.subr.bf16.mxu0 %v523
    %1065 = vmatpush1.bf16.msra.mxu0 %v522
    %1066 = vmatprep.subr.bf16.mxu0 %v526
    %1067 = vmatpush1.bf16.msra.mxu0 %v525
    %1068 = vmatprep.subr.bf16.mxu0 %v529
    %1069 = vmatpush1.bf16.msra.mxu0 %v528
    %1070 = vmatprep.subr.bf16.mxu0 0
    %1071 = vmatpush1.bf16.msra.mxu0 0
    %1072 = vmatprep.subr.bf16.mxu0 0
    %1073 = vmatpush1.bf16.msra.mxu0 0
    %1074 = vmatprep.subr.bf16.mxu0 0
    %1075 = vmatpush1.bf16.msra.mxu0 0
    %1076 = vmatprep.subr.bf16.mxu0 0
    %1077 = vmatpush1.bf16.msra.mxu0 0
    %1078 = vmatprep.subr.bf16.mxu0 0
    %1079 = vmatpush1.bf16.msra.mxu0 0
    %1080 = vmatprep.subr.bf16.mxu0 0
    %1081 = vmatpush1.bf16.msra.mxu0 0
    %1082 = vmatprep.subr.bf16.mxu0 0
    %1083 = vmatpush1.bf16.msra.mxu0 0
    %1084 = vmatprep.subr.bf16.mxu0 0
    %1085 = vmatpush1.bf16.msra.mxu0 0
    %1086 = vmatprep.mubr.bf16.mxu0 0
    %1087 = vmatmul.mubr.bf16.gmra.mrb[0].mxu0 %v1052
    %v1088 = vpop.f32.mrb[0].mxu0
    %v1089 = vadd.f32 %v559, %v1088
    %v1090 = vpop.f32.mrb[0].mxu0
    %v1091 = vadd.f32 %v563, %v1090
    %v1092 = vpop.f32.mrb[0].mxu0
    %v1093 = vpop.f32.mrb[0].mxu0
    %1094 = vdwg.mxu0
    %1095 = vmatprep.subr.bf16.mxu0 0
    %1096 = vmatpush1.bf16.msra.mxu0 %v509
    %1097 = vmatprep.subr.bf16.mxu0 0
    %1098 = vmatpush1.bf16.msra.mxu0 %v512
    %1099 = vmatprep.subr.bf16.mxu0 0
    %1100 = vmatpush1.bf16.msra.mxu0 %v515
    %1101 = vmatprep.subr.bf16.mxu0 0
    %1102 = vmatpush1.bf16.msra.mxu0 %v518
    %1103 = vmatprep.subr.bf16.mxu0 0
    %1104 = vmatpush1.bf16.msra.mxu0 %v521
    %1105 = vmatprep.subr.bf16.mxu0 0
    %1106 = vmatpush1.bf16.msra.mxu0 %v524
    %1107 = vmatprep.subr.bf16.mxu0 0
    %1108 = vmatpush1.bf16.msra.mxu0 %v527
    %1109 = vmatprep.subr.bf16.mxu0 0
    %1110 = vmatpush1.bf16.msra.mxu0 %v530
    %1111 = vmatprep.subr.bf16.mxu0 0
    %1112 = vmatpush1.bf16.msra.mxu0 0
    %1113 = vmatprep.subr.bf16.mxu0 0
    %1114 = vmatpush1.bf16.msra.mxu0 0
    %1115 = vmatprep.subr.bf16.mxu0 0
    %1116 = vmatpush1.bf16.msra.mxu0 0
    %1117 = vmatprep.subr.bf16.mxu0 0
    %1118 = vmatpush1.bf16.msra.mxu0 0
    %1119 = vmatprep.subr.bf16.mxu0 0
    %1120 = vmatpush1.bf16.msra.mxu0 0
    %1121 = vmatprep.subr.bf16.mxu0 0
    %1122 = vmatpush1.bf16.msra.mxu0 0
    %1123 = vmatprep.subr.bf16.mxu0 0
    %1124 = vmatpush1.bf16.msra.mxu0 0
    %1125 = vmatprep.subr.bf16.mxu0 0
    %1126 = vmatpush1.bf16.msra.mxu0 0
    %1127 = vmatprep.mubr.bf16.mxu0 0
    %1128 = vmatmul.mubr.bf16.gmra.mrb[0].mxu0 %v1052
    %v1129 = vpop.f32.mrb[0].mxu0
    %v1130 = vadd.f32 %v567, %v1129
    %v1131 = vpop.f32.mrb[0].mxu0
    %v1132 = vpop.f32.mrb[0].mxu0
    %v1133 = vpop.f32.mrb[0].mxu0
    %1134 = vdwg.mxu0
    %v1136 = vrot.slane %v1089, 4
    %v1138 = vadd.f32 %v349, %v1136
    %v1139 = vxor.u32 %v1138, 2147483648
    %v1140 = vmul.f32 %v1139, 1.442695
    %v1141 = vpow.pop %v1140
    %v1142 = vadd.f32 %v1141, 1.0
    %v1143 = vrcp.pop %v1142
    %v1144 = vmul.f32 1.0, %v1143
    %v1146 = vrot.slane %v1091, 4
    %v1148 = vadd.f32 %v351, %v1146
    %v1149 = vxor.u32 %v1148, 2147483648
    %v1150 = vmul.f32 %v1149, 1.442695
    %v1151 = vpow.pop %v1150
    %v1152 = vadd.f32 %v1151, 1.0
    %v1153 = vrcp.pop %v1152
    %v1154 = vmul.f32 1.0, %v1153
    %v1156 = vrot.slane %v1130, 4
    %v1158 = vmul.f32 %v1144, %v1156
    %v1159 = vadd.f32 %v390, %v1158
    %v1160 = vtanh.pop %v1159
    %v1161 = vsub.f32 1.0, %v1154
    %v1162 = vmul.f32 %v1161, %v1160
    %v1164 = vrot.slane %v1047, 7
    %v1166 = vmul.f32 %v1154, %v1164
    %v1167 = vadd.f32 %v1162, %v1166
    %p1168 = scmp.gt.s32.totalorder %s95, 4
    %s1169 = scalar_select %p1168, 1, 0
    %v1170 = vstv %s1169
    %vm1171 = vcmp.eq.s32.totalorder %v1170, 1
    %v1172 = vsel %vm1171, %v1167, 0.0
    %v1173 = vsel %vm1171, %v1167, %v1164
    %v1174 = vpack.c.bf16 %v1173, %v1173
    %v1176 = vrot.slane %v1174, 2
    %1178 = vmatprep.subr.bf16.mxu0 %v508
    %1179 = vmatpush1.bf16.msra.mxu0 %v507
    %1180 = vmatprep.subr.bf16.mxu0 %v511
    %1181 = vmatpush1.bf16.msra.mxu0 %v510
    %1182 = vmatprep.subr.bf16.mxu0 %v514
    %1183 = vmatpush1.bf16.msra.mxu0 %v513
    %1184 = vmatprep.subr.bf16.mxu0 %v517
    %1185 = vmatpush1.bf16.msra.mxu0 %v516
    %1186 = vmatprep.subr.bf16.mxu0 %v520
    %1187 = vmatpush1.bf16.msra.mxu0 %v519
    %1188 = vmatprep.subr.bf16.mxu0 %v523
    %1189 = vmatpush1.bf16.msra.mxu0 %v522
    %1190 = vmatprep.subr.bf16.mxu0 %v526
    %1191 = vmatpush1.bf16.msra.mxu0 %v525
    %1192 = vmatprep.subr.bf16.mxu0 %v529
    %1193 = vmatpush1.bf16.msra.mxu0 %v528
    %1194 = vmatprep.subr.bf16.mxu0 0
    %1195 = vmatpush1.bf16.msra.mxu0 0
    %1196 = vmatprep.subr.bf16.mxu0 0
    %1197 = vmatpush1.bf16.msra.mxu0 0
    %1198 = vmatprep.subr.bf16.mxu0 0
    %1199 = vmatpush1.bf16.msra.mxu0 0
    %1200 = vmatprep.subr.bf16.mxu0 0
    %1201 = vmatpush1.bf16.msra.mxu0 0
    %1202 = vmatprep.subr.bf16.mxu0 0
    %1203 = vmatpush1.bf16.msra.mxu0 0
    %1204 = vmatprep.subr.bf16.mxu0 0
    %1205 = vmatpush1.bf16.msra.mxu0 0
    %1206 = vmatprep.subr.bf16.mxu0 0
    %1207 = vmatpush1.bf16.msra.mxu0 0
    %1208 = vmatprep.subr.bf16.mxu0 0
    %1209 = vmatpush1.bf16.msra.mxu0 0
    %1210 = vmatprep.mubr.bf16.mxu0 0
    %1211 = vmatmul.mubr.bf16.gmra.mrb[0].mxu0 %v1176
    %v1212 = vpop.f32.mrb[0].mxu0
    %v1213 = vadd.f32 %v559, %v1212
    %v1214 = vpop.f32.mrb[0].mxu0
    %v1215 = vadd.f32 %v563, %v1214
    %v1216 = vpop.f32.mrb[0].mxu0
    %v1217 = vpop.f32.mrb[0].mxu0
    %1218 = vdwg.mxu0
    %1219 = vmatprep.subr.bf16.mxu0 0
    %1220 = vmatpush1.bf16.msra.mxu0 %v509
    %1221 = vmatprep.subr.bf16.mxu0 0
    %1222 = vmatpush1.bf16.msra.mxu0 %v512
    %1223 = vmatprep.subr.bf16.mxu0 0
    %1224 = vmatpush1.bf16.msra.mxu0 %v515
    %1225 = vmatprep.subr.bf16.mxu0 0
    %1226 = vmatpush1.bf16.msra.mxu0 %v518
    %1227 = vmatprep.subr.bf16.mxu0 0
    %1228 = vmatpush1.bf16.msra.mxu0 %v521
    %1229 = vmatprep.subr.bf16.mxu0 0
    %1230 = vmatpush1.bf16.msra.mxu0 %v524
    %1231 = vmatprep.subr.bf16.mxu0 0
    %1232 = vmatpush1.bf16.msra.mxu0 %v527
    %1233 = vmatprep.subr.bf16.mxu0 0
    %1234 = vmatpush1.bf16.msra.mxu0 %v530
    %1235 = vmatprep.subr.bf16.mxu0 0
    %1236 = vmatpush1.bf16.msra.mxu0 0
    %1237 = vmatprep.subr.bf16.mxu0 0
    %1238 = vmatpush1.bf16.msra.mxu0 0
    %1239 = vmatprep.subr.bf16.mxu0 0
    %1240 = vmatpush1.bf16.msra.mxu0 0
    %1241 = vmatprep.subr.bf16.mxu0 0
    %1242 = vmatpush1.bf16.msra.mxu0 0
    %1243 = vmatprep.subr.bf16.mxu0 0
    %1244 = vmatpush1.bf16.msra.mxu0 0
    %1245 = vmatprep.subr.bf16.mxu0 0
    %1246 = vmatpush1.bf16.msra.mxu0 0
    %1247 = vmatprep.subr.bf16.mxu0 0
    %1248 = vmatpush1.bf16.msra.mxu0 0
    %1249 = vmatprep.subr.bf16.mxu0 0
    %1250 = vmatpush1.bf16.msra.mxu0 0
    %1251 = vmatprep.mubr.bf16.mxu0 0
    %1252 = vmatmul.mubr.bf16.gmra.mrb[0].mxu0 %v1176
    %v1253 = vpop.f32.mrb[0].mxu0
    %v1254 = vadd.f32 %v567, %v1253
    %v1255 = vpop.f32.mrb[0].mxu0
    %v1256 = vpop.f32.mrb[0].mxu0
    %v1257 = vpop.f32.mrb[0].mxu0
    %1258 = vdwg.mxu0
    %v1260 = vrot.slane %v1213, 3
    %v1262 = vadd.f32 %v349, %v1260
    %v1263 = vxor.u32 %v1262, 2147483648
    %v1264 = vmul.f32 %v1263, 1.442695
    %v1265 = vpow.pop %v1264
    %v1266 = vadd.f32 %v1265, 1.0
    %v1267 = vrcp.pop %v1266
    %v1268 = vmul.f32 1.0, %v1267
    %v1270 = vrot.slane %v1215, 3
    %v1272 = vadd.f32 %v351, %v1270
    %v1273 = vxor.u32 %v1272, 2147483648
    %v1274 = vmul.f32 %v1273, 1.442695
    %v1275 = vpow.pop %v1274
    %v1276 = vadd.f32 %v1275, 1.0
    %v1277 = vrcp.pop %v1276
    %v1278 = vmul.f32 1.0, %v1277
    %v1280 = vrot.slane %v1254, 3
    %v1282 = vmul.f32 %v1268, %v1280
    %v1283 = vadd.f32 %v390, %v1282
    %v1284 = vtanh.pop %v1283
    %v1285 = vsub.f32 1.0, %v1278
    %v1286 = vmul.f32 %v1285, %v1284
    %v1288 = vrot.slane %v1173, 7
    %v1290 = vmul.f32 %v1278, %v1288
    %v1291 = vadd.f32 %v1286, %v1290
    %p1292 = scmp.gt.s32.totalorder %s95, 5
    %s1293 = scalar_select %p1292, 1, 0
    %v1294 = vstv %s1293
    %vm1295 = vcmp.eq.s32.totalorder %v1294, 1
    %v1296 = vsel %vm1295, %v1291, 0.0
    %v1297 = vsel %vm1295, %v1291, %v1288
    %v1298 = vpack.c.bf16 %v1297, %v1297
    %v1300 = vshrl.u32 %v1298, 16
    %v1302 = vrot.slane %v1300, 2
    %1304 = vmatprep.subr.bf16.mxu0 %v508
    %1305 = vmatpush1.bf16.msra.mxu0 %v507
    %1306 = vmatprep.subr.bf16.mxu0 %v511
    %1307 = vmatpush1.bf16.msra.mxu0 %v510
    %1308 = vmatprep.subr.bf16.mxu0 %v514
    %1309 = vmatpush1.bf16.msra.mxu0 %v513
    %1310 = vmatprep.subr.bf16.mxu0 %v517
    %1311 = vmatpush1.bf16.msra.mxu0 %v516
    %1312 = vmatprep.subr.bf16.mxu0 %v520
    %1313 = vmatpush1.bf16.msra.mxu0 %v519
    %1314 = vmatprep.subr.bf16.mxu0 %v523
    %1315 = vmatpush1.bf16.msra.mxu0 %v522
    %1316 = vmatprep.subr.bf16.mxu0 %v526
    %1317 = vmatpush1.bf16.msra.mxu0 %v525
    %1318 = vmatprep.subr.bf16.mxu0 %v529
    %1319 = vmatpush1.bf16.msra.mxu0 %v528
    %1320 = vmatprep.subr.bf16.mxu0 0
    %1321 = vmatpush1.bf16.msra.mxu0 0
    %1322 = vmatprep.subr.bf16.mxu0 0
    %1323 = vmatpush1.bf16.msra.mxu0 0
    %1324 = vmatprep.subr.bf16.mxu0 0
    %1325 = vmatpush1.bf16.msra.mxu0 0
    %1326 = vmatprep.subr.bf16.mxu0 0
    %1327 = vmatpush1.bf16.msra.mxu0 0
    %1328 = vmatprep.subr.bf16.mxu0 0
    %1329 = vmatpush1.bf16.msra.mxu0 0
    %1330 = vmatprep.subr.bf16.mxu0 0
    %1331 = vmatpush1.bf16.msra.mxu0 0
    %1332 = vmatprep.subr.bf16.mxu0 0
    %1333 = vmatpush1.bf16.msra.mxu0 0
    %1334 = vmatprep.subr.bf16.mxu0 0
    %1335 = vmatpush1.bf16.msra.mxu0 0
    %1336 = vmatprep.mubr.bf16.mxu0 0
    %1337 = vmatmul.mubr.bf16.gmra.mrb[0].mxu0 %v1302
    %v1338 = vpop.f32.mrb[0].mxu0
    %v1339 = vadd.f32 %v559, %v1338
    %v1340 = vpop.f32.mrb[0].mxu0
    %v1341 = vadd.f32 %v563, %v1340
    %v1342 = vpop.f32.mrb[0].mxu0
    %v1343 = vpop.f32.mrb[0].mxu0
    %1344 = vdwg.mxu0
    %1345 = vmatprep.subr.bf16.mxu0 0
    %1346 = vmatpush1.bf16.msra.mxu0 %v509
    %1347 = vmatprep.subr.bf16.mxu0 0
    %1348 = vmatpush1.bf16.msra.mxu0 %v512
    %1349 = vmatprep.subr.bf16.mxu0 0
    %1350 = vmatpush1.bf16.msra.mxu0 %v515
    %1351 = vmatprep.subr.bf16.mxu0 0
    %1352 = vmatpush1.bf16.msra.mxu0 %v518
    %1353 = vmatprep.subr.bf16.mxu0 0
    %1354 = vmatpush1.bf16.msra.mxu0 %v521
    %1355 = vmatprep.subr.bf16.mxu0 0
    %1356 = vmatpush1.bf16.msra.mxu0 %v524
    %1357 = vmatprep.subr.bf16.mxu0 0
    %1358 = vmatpush1.bf16.msra.mxu0 %v527
    %1359 = vmatprep.subr.bf16.mxu0 0
    %1360 = vmatpush1.bf16.msra.mxu0 %v530
    %1361 = vmatprep.subr.bf16.mxu0 0
    %1362 = vmatpush1.bf16.msra.mxu0 0
    %1363 = vmatprep.subr.bf16.mxu0 0
    %1364 = vmatpush1.bf16.msra.mxu0 0
    %1365 = vmatprep.subr.bf16.mxu0 0
    %1366 = vmatpush1.bf16.msra.mxu0 0
    %1367 = vmatprep.subr.bf16.mxu0 0
    %1368 = vmatpush1.bf16.msra.mxu0 0
    %1369 = vmatprep.subr.bf16.mxu0 0
    %1370 = vmatpush1.bf16.msra.mxu0 0
    %1371 = vmatprep.subr.bf16.mxu0 0
    %1372 = vmatpush1.bf16.msra.mxu0 0
    %1373 = vmatprep.subr.bf16.mxu0 0
    %1374 = vmatpush1.bf16.msra.mxu0 0
    %1375 = vmatprep.subr.bf16.mxu0 0
    %1376 = vmatpush1.bf16.msra.mxu0 0
    %1377 = vmatprep.mubr.bf16.mxu0 0
    %1378 = vmatmul.mubr.bf16.gmra.mrb[0].mxu0 %v1302
    %v1379 = vpop.f32.mrb[0].mxu0
    %v1380 = vadd.f32 %v567, %v1379
    %v1381 = vpop.f32.mrb[0].mxu0
    %v1382 = vpop.f32.mrb[0].mxu0
    %v1383 = vpop.f32.mrb[0].mxu0
    %1384 = vdwg.mxu0
    %v1386 = vrot.slane %v1339, 2
    %v1388 = vadd.f32 %v349, %v1386
    %v1389 = vxor.u32 %v1388, 2147483648
    %v1390 = vmul.f32 %v1389, 1.442695
    %v1391 = vpow.pop %v1390
    %v1392 = vadd.f32 %v1391, 1.0
    %v1393 = vrcp.pop %v1392
    %v1394 = vmul.f32 1.0, %v1393
    %v1396 = vrot.slane %v1341, 2
    %v1398 = vadd.f32 %v351, %v1396
    %v1399 = vxor.u32 %v1398, 2147483648
    %v1400 = vmul.f32 %v1399, 1.442695
    %v1401 = vpow.pop %v1400
    %v1402 = vadd.f32 %v1401, 1.0
    %v1403 = vrcp.pop %v1402
    %v1404 = vmul.f32 1.0, %v1403
    %v1406 = vrot.slane %v1380, 2
    %v1408 = vmul.f32 %v1394, %v1406
    %v1409 = vadd.f32 %v390, %v1408
    %v1410 = vtanh.pop %v1409
    %v1411 = vsub.f32 1.0, %v1404
    %v1412 = vmul.f32 %v1411, %v1410
    %v1414 = vrot.slane %v1297, 7
    %v1416 = vmul.f32 %v1404, %v1414
    %v1417 = vadd.f32 %v1412, %v1416
    %p1418 = scmp.gt.s32.totalorder %s95, 6
    %s1419 = scalar_select %p1418, 1, 0
    %v1420 = vstv %s1419
    %vm1421 = vcmp.eq.s32.totalorder %v1420, 1
    %v1422 = vsel %vm1421, %v1417, 0.0
    %v1423 = vsel %vm1421, %v1417, %v1414
    %v1424 = vpack.c.bf16 %v1423, %v1423
    %v1426 = vrot.slane %v1424, 3
    %1428 = vmatprep.subr.bf16.mxu0 %v508
    %1429 = vmatpush1.bf16.msra.mxu0 %v507
    %1430 = vmatprep.subr.bf16.mxu0 %v511
    %1431 = vmatpush1.bf16.msra.mxu0 %v510
    %1432 = vmatprep.subr.bf16.mxu0 %v514
    %1433 = vmatpush1.bf16.msra.mxu0 %v513
    %1434 = vmatprep.subr.bf16.mxu0 %v517
    %1435 = vmatpush1.bf16.msra.mxu0 %v516
    %1436 = vmatprep.subr.bf16.mxu0 %v520
    %1437 = vmatpush1.bf16.msra.mxu0 %v519
    %1438 = vmatprep.subr.bf16.mxu0 %v523
    %1439 = vmatpush1.bf16.msra.mxu0 %v522
    %1440 = vmatprep.subr.bf16.mxu0 %v526
    %1441 = vmatpush1.bf16.msra.mxu0 %v525
    %1442 = vmatprep.subr.bf16.mxu0 %v529
    %1443 = vmatpush1.bf16.msra.mxu0 %v528
    %1444 = vmatprep.subr.bf16.mxu0 0
    %1445 = vmatpush1.bf16.msra.mxu0 0
    %1446 = vmatprep.subr.bf16.mxu0 0
    %1447 = vmatpush1.bf16.msra.mxu0 0
    %1448 = vmatprep.subr.bf16.mxu0 0
    %1449 = vmatpush1.bf16.msra.mxu0 0
    %1450 = vmatprep.subr.bf16.mxu0 0
    %1451 = vmatpush1.bf16.msra.mxu0 0
    %1452 = vmatprep.subr.bf16.mxu0 0
    %1453 = vmatpush1.bf16.msra.mxu0 0
    %1454 = vmatprep.subr.bf16.mxu0 0
    %1455 = vmatpush1.bf16.msra.mxu0 0
    %1456 = vmatprep.subr.bf16.mxu0 0
    %1457 = vmatpush1.bf16.msra.mxu0 0
    %1458 = vmatprep.subr.bf16.mxu0 0
    %1459 = vmatpush1.bf16.msra.mxu0 0
    %1460 = vmatprep.mubr.bf16.mxu0 0
    %1461 = vmatmul.mubr.bf16.gmra.mrb[0].mxu0 %v1426
    %v1462 = vpop.f32.mrb[0].mxu0
    %v1463 = vadd.f32 %v559, %v1462
    %v1464 = vpop.f32.mrb[0].mxu0
    %v1465 = vadd.f32 %v563, %v1464
    %v1466 = vpop.f32.mrb[0].mxu0
    %v1467 = vpop.f32.mrb[0].mxu0
    %1468 = vdwg.mxu0
    %1469 = vmatprep.subr.bf16.mxu0 0
    %1470 = vmatpush1.bf16.msra.mxu0 %v509
    %1471 = vmatprep.subr.bf16.mxu0 0
    %1472 = vmatpush1.bf16.msra.mxu0 %v512
    %1473 = vmatprep.subr.bf16.mxu0 0
    %1474 = vmatpush1.bf16.msra.mxu0 %v515
    %1475 = vmatprep.subr.bf16.mxu0 0
    %1476 = vmatpush1.bf16.msra.mxu0 %v518
    %1477 = vmatprep.subr.bf16.mxu0 0
    %1478 = vmatpush1.bf16.msra.mxu0 %v521
    %1479 = vmatprep.subr.bf16.mxu0 0
    %1480 = vmatpush1.bf16.msra.mxu0 %v524
    %1481 = vmatprep.subr.bf16.mxu0 0
    %1482 = vmatpush1.bf16.msra.mxu0 %v527
    %1483 = vmatprep.subr.bf16.mxu0 0
    %1484 = vmatpush1.bf16.msra.mxu0 %v530
    %1485 = vmatprep.subr.bf16.mxu0 0
    %1486 = vmatpush1.bf16.msra.mxu0 0
    %1487 = vmatprep.subr.bf16.mxu0 0
    %1488 = vmatpush1.bf16.msra.mxu0 0
    %1489 = vmatprep.subr.bf16.mxu0 0
    %1490 = vmatpush1.bf16.msra.mxu0 0
    %1491 = vmatprep.subr.bf16.mxu0 0
    %1492 = vmatpush1.bf16.msra.mxu0 0
    %1493 = vmatprep.subr.bf16.mxu0 0
    %1494 = vmatpush1.bf16.msra.mxu0 0
    %1495 = vmatprep.subr.bf16.mxu0 0
    %1496 = vmatpush1.bf16.msra.mxu0 0
    %1497 = vmatprep.subr.bf16.mxu0 0
    %1498 = vmatpush1.bf16.msra.mxu0 0
    %1499 = vmatprep.subr.bf16.mxu0 0
    %1500 = vmatpush1.bf16.msra.mxu0 0
    %1501 = vmatprep.mubr.bf16.mxu0 0
    %1502 = vmatmul.mubr.bf16.gmra.mrb[0].mxu0 %v1426
    %v1503 = vpop.f32.mrb[0].mxu0
    %v1504 = vadd.f32 %v567, %v1503
    %v1505 = vpop.f32.mrb[0].mxu0
    %v1506 = vpop.f32.mrb[0].mxu0
    %v1507 = vpop.f32.mrb[0].mxu0
    %1508 = vdwg.mxu0
    %v1510 = vrot.slane %v1463, 1
    %v1512 = vadd.f32 %v349, %v1510
    %v1513 = vxor.u32 %v1512, 2147483648
    %v1514 = vmul.f32 %v1513, 1.442695
    %v1515 = vpow.pop %v1514
    %v1516 = vadd.f32 %v1515, 1.0
    %v1517 = vrcp.pop %v1516
    %v1518 = vmul.f32 1.0, %v1517
    %v1520 = vrot.slane %v1465, 1
    %v1522 = vadd.f32 %v351, %v1520
    %v1523 = vxor.u32 %v1522, 2147483648
    %v1524 = vmul.f32 %v1523, 1.442695
    %v1525 = vpow.pop %v1524
    %v1526 = vadd.f32 %v1525, 1.0
    %v1527 = vrcp.pop %v1526
    %v1528 = vmul.f32 1.0, %v1527
    %v1530 = vrot.slane %v1504, 1
    %v1532 = vmul.f32 %v1518, %v1530
    %v1533 = vadd.f32 %v390, %v1532
    %v1534 = vtanh.pop %v1533
    %v1535 = vsub.f32 1.0, %v1528
    %v1536 = vmul.f32 %v1535, %v1534
    %v1538 = vrot.slane %v1423, 7
    %v1540 = vmul.f32 %v1528, %v1538
    %v1541 = vadd.f32 %v1536, %v1540
    %p1542 = scmp.gt.s32.totalorder %s95, 7
    %s1543 = scalar_select %p1542, 1, 0
    %v1544 = vstv %s1543
    %vm1545 = vcmp.eq.s32.totalorder %v1544, 1
    %v1546 = vsel %vm1545, %v1541, 0.0
    %v1547 = vsel %vm1545, %v1541, %v1538
    %v1548 = vsel %vm139, %v677, %v797
    %v1549 = vsel %vm141, %v1548, %v922
    %v1550 = vsel %vm143, %v1549, %v1046
    %v1551 = vsel %vm145, %v1550, %v1172
    %v1552 = vsel %vm147, %v1551, %v1296
    %v1553 = vsel %vm149, %v1552, %v1422
    %v1554 = vsel %vm151, %v1553, %v1546
    %v1555 = vpack.c.bf16 %v1554, %v1554
    %1556 = vxpose.xlu0.b32.start [1/16] %v1554, 128
    %1557 = vxpose.xlu0.b32.cont [2/16] 0.0, 128
    %1558 = vxpose.xlu0.b32.cont [3/16] 0.0, 128
    %1559 = vxpose.xlu0.b32.cont [4/16] 0.0, 128
    %1560 = vxpose.xlu0.b32.cont [5/16] 0.0, 128
    %1561 = vxpose.xlu0.b32.cont [6/16] 0.0, 128
    %1562 = vxpose.xlu0.b32.cont [7/16] 0.0, 128
    %1563 = vxpose.xlu0.b32.cont [8/16] 0.0, 128
    %1564 = vxpose.xlu0.b32.cont [9/16] 0.0, 128
    %1565 = vxpose.xlu0.b32.cont [10/16] 0.0, 128
    %1566 = vxpose.xlu0.b32.cont [11/16] 0.0, 128
    %1567 = vxpose.xlu0.b32.cont [12/16] 0.0, 128
    %1568 = vxpose.xlu0.b32.cont [13/16] 0.0, 128
    %1569 = vxpose.xlu0.b32.cont [14/16] 0.0, 128
    %1570 = vxpose.xlu0.b32.cont [15/16] 0.0, 128
    %1571 = vxpose.xlu0.b32.end [16/16] 0.0, 128
    %v1572 = vpop.trf.xlu0
    %v1573 = vpop.trf.xlu0
    %v1574 = vpop.trf.xlu0
    %v1575 = vpop.trf.xlu0
    %v1576 = vpop.trf.xlu0
    %v1577 = vpop.trf.xlu0
    %v1578 = vpop.trf.xlu0
    %v1579 = vpop.trf.xlu0
    %v1580 = vpop.trf.xlu0
    %v1581 = vpop.trf.xlu0
    %v1582 = vpop.trf.xlu0
    %v1583 = vpop.trf.xlu0
    %v1584 = vpop.trf.xlu0
    %v1585 = vpop.trf.xlu0
    %v1586 = vpop.trf.xlu0
    %v1587 = vpop.trf.xlu0
    %v1588 = vpack.c.bf16 %v1573, %v1572
    %v1589 = vpack.c.bf16 %v1575, %v1574
    %v1590 = vpack.c.bf16 %v1577, %v1576
    %v1591 = vpack.c.bf16 %v1579, %v1578
    %v1592 = vpack.c.bf16 %v1581, %v1580
    %v1593 = vpack.c.bf16 %v1583, %v1582
    %v1594 = vpack.c.bf16 %v1585, %v1584
    %v1595 = vpack.c.bf16 %v1587, %v1586
    %vm1596 = vcmp.eq.s32.totalorder %v98, 1
    %v1597 = vsel %vm1596, 1, 0
    %v1598 = vcvt.s32.f32 %v1597
    %v1599 = vpack.c.bf16 %v1598, %v1598
    %v1600 = vld [vmem:[#allocation8] sm:$0xff]
    %v1601 = vld [vmem:[#allocation8 + $0x8] sm:$0xf]
    %v1602 = vld [vmem:[#allocation8 + $0xc] sm:$0xff]
    %v1603 = vld [vmem:[#allocation8 + $0x14] sm:$0xf]
    %v1604 = vld [vmem:[#allocation8 + $0x18] sm:$0xff]
    %v1605 = vld [vmem:[#allocation8 + $0x20] sm:$0xf]
    %v1606 = vld [vmem:[#allocation8 + $0x24] sm:$0xff]
    %v1607 = vld [vmem:[#allocation8 + $0x2c] sm:$0xf]
    %v1608 = vld [vmem:[#allocation8 + $0x30] sm:$0xff]
    %v1609 = vld [vmem:[#allocation8 + $0x38] sm:$0xf]
    %v1610 = vld [vmem:[#allocation8 + $0x3c] sm:$0xff]
    %v1611 = vld [vmem:[#allocation8 + $0x44] sm:$0xf]
    %v1612 = vld [vmem:[#allocation8 + $0x48] sm:$0xff]
    %v1613 = vld [vmem:[#allocation8 + $0x50] sm:$0xf]
    %v1614 = vld [vmem:[#allocation8 + $0x54] sm:$0xff]
    %v1615 = vld [vmem:[#allocation8 + $0x5c] sm:$0xf]
    %v1616 = vld [vmem:[#allocation8 + $0x60] sm:$0xff]
    %v1617 = vld [vmem:[#allocation8 + $0x68] sm:$0xf]
    %v1618 = vld [vmem:[#allocation8 + $0x6c] sm:$0xff]
    %v1619 = vld [vmem:[#allocation8 + $0x74] sm:$0xf]
    %v1620 = vld [vmem:[#allocation8 + $0x78] sm:$0xff]
    %v1621 = vld [vmem:[#allocation8 + $0x80] sm:$0xf]
    %v1622 = vld [vmem:[#allocation8 + $0x84] sm:$0xff]
    %v1623 = vld [vmem:[#allocation8 + $0x8c] sm:$0xf]
    %v1624 = vld [vmem:[#allocation8 + $0x90] sm:$0xff]
    %v1625 = vld [vmem:[#allocation8 + $0x98] sm:$0xf]
    %v1626 = vld [vmem:[#allocation8 + $0x9c] sm:$0xff]
    %v1627 = vld [vmem:[#allocation8 + $0xa4] sm:$0xf]
    %v1628 = vld [vmem:[#allocation8 + $0xa8] sm:$0xff]
    %v1629 = vld [vmem:[#allocation8 + $0xb0] sm:$0xf]
    %v1630 = vld [vmem:[#allocation8 + $0xb4] sm:$0xff]
    %v1631 = vld [vmem:[#allocation8 + $0xbc] sm:$0xf]
    %v1664 = vunpack.c.l.b16 %v1600
    %v1665 = vunpack.c.h.b16 %v1600
    %v1666 = vunpack.c.l.b16 %v1601
    %v1667 = vunpack.c.l.b16 %v1602
    %v1668 = vunpack.c.h.b16 %v1602
    %v1669 = vunpack.c.l.b16 %v1603
    %v1670 = vunpack.c.l.b16 %v1604
    %v1671 = vunpack.c.h.b16 %v1604
    %v1672 = vunpack.c.l.b16 %v1605
    %v1673 = vunpack.c.l.b16 %v1606
    %v1674 = vunpack.c.h.b16 %v1606
    %v1675 = vunpack.c.l.b16 %v1607
    %v1676 = vunpack.c.l.b16 %v1608
    %v1677 = vunpack.c.h.b16 %v1608
    %v1678 = vunpack.c.l.b16 %v1609
    %v1679 = vunpack.c.l.b16 %v1610
    %v1680 = vunpack.c.h.b16 %v1610
    %v1681 = vunpack.c.l.b16 %v1611
    %v1682 = vunpack.c.l.b16 %v1612
    %v1683 = vunpack.c.h.b16 %v1612
    %v1684 = vunpack.c.l.b16 %v1613
    %v1685 = vunpack.c.l.b16 %v1614
    %v1686 = vunpack.c.h.b16 %v1614
    %v1687 = vunpack.c.l.b16 %v1615
    %v1688 = vunpack.c.l.b16 %v1616
    %v1689 = vunpack.c.h.b16 %v1616
    %v1690 = vunpack.c.l.b16 %v1617
    %v1691 = vunpack.c.l.b16 %v1618
    %v1692 = vunpack.c.h.b16 %v1618
    %v1693 = vunpack.c.l.b16 %v1619
    %v1694 = vunpack.c.l.b16 %v1620
    %v1695 = vunpack.c.h.b16 %v1620
    %v1696 = vunpack.c.l.b16 %v1621
    %v1697 = vunpack.c.l.b16 %v1622
    %v1698 = vunpack.c.h.b16 %v1622
    %v1699 = vunpack.c.l.b16 %v1623
    %v1700 = vunpack.c.l.b16 %v1624
    %v1701 = vunpack.c.h.b16 %v1624
    %v1702 = vunpack.c.l.b16 %v1625
    %v1703 = vunpack.c.l.b16 %v1626
    %v1704 = vunpack.c.h.b16 %v1626
    %v1705 = vunpack.c.l.b16 %v1627
    %v1706 = vunpack.c.l.b16 %v1628
    %v1707 = vunpack.c.h.b16 %v1628
    %v1708 = vunpack.c.l.b16 %v1629
    %v1709 = vunpack.c.l.b16 %v1630
    %v1710 = vunpack.c.h.b16 %v1630
    %v1711 = vunpack.c.l.b16 %v1631
    %v1712 = vpack.c.b16 %v1667, %v1664
    %v1713 = vpack.c.b16 %v1668, %v1665
    %v1714 = vpack.c.b16 %v1669, %v1666
    %v1715 = vpack.c.b16 %v1673, %v1670
    %v1716 = vpack.c.b16 %v1674, %v1671
    %v1717 = vpack.c.b16 %v1675, %v1672
    %v1718 = vpack.c.b16 %v1679, %v1676
    %v1719 = vpack.c.b16 %v1680, %v1677
    %v1720 = vpack.c.b16 %v1681, %v1678
    %v1721 = vpack.c.b16 %v1685, %v1682
    %v1722 = vpack.c.b16 %v1686, %v1683
    %v1723 = vpack.c.b16 %v1687, %v1684
    %v1724 = vpack.c.b16 %v1691, %v1688
    %v1725 = vpack.c.b16 %v1692, %v1689
    %v1726 = vpack.c.b16 %v1693, %v1690
    %v1727 = vpack.c.b16 %v1697, %v1694
    %v1728 = vpack.c.b16 %v1698, %v1695
    %v1729 = vpack.c.b16 %v1699, %v1696
    %v1730 = vpack.c.b16 %v1703, %v1700
    %v1731 = vpack.c.b16 %v1704, %v1701
    %v1732 = vpack.c.b16 %v1705, %v1702
    %v1733 = vpack.c.b16 %v1709, %v1706
    %v1734 = vpack.c.b16 %v1710, %v1707
    %v1735 = vpack.c.b16 %v1711, %v1708
    %1760 = vmatprep.subr.bf16.mxu0 %v1713
    %1761 = vmatpush1.bf16.msra.mxu0 %v1712
    %1762 = vmatprep.subr.bf16.mxu0 %v1716
    %1763 = vmatpush1.bf16.msra.mxu0 %v1715
    %1764 = vmatprep.subr.bf16.mxu0 %v1719
    %1765 = vmatpush1.bf16.msra.mxu0 %v1718
    %1766 = vmatprep.subr.bf16.mxu0 %v1722
    %1767 = vmatpush1.bf16.msra.mxu0 %v1721
    %1768 = vmatprep.subr.bf16.mxu0 %v1725
    %1769 = vmatpush1.bf16.msra.mxu0 %v1724
    %1770 = vmatprep.subr.bf16.mxu0 %v1728
    %1771 = vmatpush1.bf16.msra.mxu0 %v1727
    %1772 = vmatprep.subr.bf16.mxu0 %v1731
    %1773 = vmatpush1.bf16.msra.mxu0 %v1730
    %1774 = vmatprep.subr.bf16.mxu0 %v1734
    %1775 = vmatpush1.bf16.msra.mxu0 %v1733
    %1776 = vmatprep.subr.bf16.mxu0 0
    %1777 = vmatpush1.bf16.msra.mxu0 0
    %1778 = vmatprep.subr.bf16.mxu0 0
    %1779 = vmatpush1.bf16.msra.mxu0 0
    %1780 = vmatprep.subr.bf16.mxu0 0
    %1781 = vmatpush1.bf16.msra.mxu0 0
    %1782 = vmatprep.subr.bf16.mxu0 0
    %1783 = vmatpush1.bf16.msra.mxu0 0
    %1784 = vmatprep.subr.bf16.mxu0 0
    %1785 = vmatpush1.bf16.msra.mxu0 0
    %1786 = vmatprep.subr.bf16.mxu0 0
    %1787 = vmatpush1.bf16.msra.mxu0 0
    %1788 = vmatprep.subr.bf16.mxu0 0
    %1789 = vmatpush1.bf16.msra.mxu0 0
    %1790 = vmatprep.subr.bf16.mxu0 0
    %1791 = vmatpush1.bf16.msra.mxu0 0
    %1792 = vmatprep.mubr.bf16.mxu0 0
    %1793 = vmatmul.mubr.bf16.gmra.mrb[0].mxu0 %v1599
    %v1794 = vpop.f32.mrb[0].mxu0
    %v1795 = vadd.f32 0.0, %v1794
    %v1796 = vpop.f32.mrb[0].mxu0
    %v1797 = vadd.f32 0.0, %v1796
    %v1798 = vpop.f32.mrb[0].mxu0
    %v1799 = vpop.f32.mrb[0].mxu0
    %1800 = vdwg.mxu0
    %1801 = vmatprep.subr.bf16.mxu0 0
    %1802 = vmatpush1.bf16.msra.mxu0 %v1714
    %1803 = vmatprep.subr.bf16.mxu0 0
    %1804 = vmatpush1.bf16.msra.mxu0 %v1717
    %1805 = vmatprep.subr.bf16.mxu0 0
    %1806 = vmatpush1.bf16.msra.mxu0 %v1720
    %1807 = vmatprep.subr.bf16.mxu0 0
    %1808 = vmatpush1.bf16.msra.mxu0 %v1723
    %1809 = vmatprep.subr.bf16.mxu0 0
    %1810 = vmatpush1.bf16.msra.mxu0 %v1726
    %1811 = vmatprep.subr.bf16.mxu0 0
    %1812 = vmatpush1.bf16.msra.mxu0 %v1729
    %1813 = vmatprep.subr.bf16.mxu0 0
    %1814 = vmatpush1.bf16.msra.mxu0 %v1732
    %1815 = vmatprep.subr.bf16.mxu0 0
    %1816 = vmatpush1.bf16.msra.mxu0 %v1735
    %1817 = vmatprep.subr.bf16.mxu0 0
    %1818 = vmatpush1.bf16.msra.mxu0 0
    %1819 = vmatprep.subr.bf16.mxu0 0
    %1820 = vmatpush1.bf16.msra.mxu0 0
    %1821 = vmatprep.subr.bf16.mxu0 0
    %1822 = vmatpush1.bf16.msra.mxu0 0
    %1823 = vmatprep.subr.bf16.mxu0 0
    %1824 = vmatpush1.bf16.msra.mxu0 0
    %1825 = vmatprep.subr.bf16.mxu0 0
    %1826 = vmatpush1.bf16.msra.mxu0 0
    %1827 = vmatprep.subr.bf16.mxu0 0
    %1828 = vmatpush1.bf16.msra.mxu0 0
    %1829 = vmatprep.subr.bf16.mxu0 0
    %1830 = vmatpush1.bf16.msra.mxu0 0
    %1831 = vmatprep.subr.bf16.mxu0 0
    %1832 = vmatpush1.bf16.msra.mxu0 0
    %1833 = vmatprep.mubr.bf16.mxu0 0
    %1834 = vmatmul.mubr.bf16.gmra.mrb[0].mxu0 %v1599
    %v1835 = vpop.f32.mrb[0].mxu0
    %v1836 = vadd.f32 0.0, %v1835
    %v1837 = vpop.f32.mrb[0].mxu0
    %v1838 = vpop.f32.mrb[0].mxu0
    %v1839 = vpop.f32.mrb[0].mxu0
    %1840 = vdwg.mxu0
    %v1841 = vld [vmem:[#allocation8 + $0xc0] sm:$0xff]
    %v1842 = vld [vmem:[#allocation8 + $0xc8] sm:$0xf]
    %v1843 = vld [vmem:[#allocation8 + $0xcc] sm:$0xff]
    %v1844 = vld [vmem:[#allocation8 + $0xd4] sm:$0xf]
    %v1845 = vld [vmem:[#allocation8 + $0xd8] sm:$0xff]
    %v1846 = vld [vmem:[#allocation8 + $0xe0] sm:$0xf]
    %v1847 = vld [vmem:[#allocation8 + $0xe4] sm:$0xff]
    %v1848 = vld [vmem:[#allocation8 + $0xec] sm:$0xf]
    %v1849 = vld [vmem:[#allocation8 + $0xf0] sm:$0xff]
    %v1850 = vld [vmem:[#allocation8 + $0xf8] sm:$0xf]
    %v1851 = vld [vmem:[#allocation8 + $0xfc] sm:$0xff]
    %v1852 = vld [vmem:[#allocation8 + $0x104] sm:$0xf]
    %v1853 = vld [vmem:[#allocation8 + $0x108] sm:$0xff]
    %v1854 = vld [vmem:[#allocation8 + $0x110] sm:$0xf]
    %v1855 = vld [vmem:[#allocation8 + $0x114] sm:$0xff]
    %v1856 = vld [vmem:[#allocation8 + $0x11c] sm:$0xf]
    %v1857 = vld [vmem:[#allocation8 + $0x120] sm:$0xff]
    %v1858 = vld [vmem:[#allocation8 + $0x128] sm:$0xf]
    %v1859 = vld [vmem:[#allocation8 + $0x12c] sm:$0xff]
    %v1860 = vld [vmem:[#allocation8 + $0x134] sm:$0xf]
    %v1861 = vld [vmem:[#allocation8 + $0x138] sm:$0xff]
    %v1862 = vld [vmem:[#allocation8 + $0x140] sm:$0xf]
    %v1863 = vld [vmem:[#allocation8 + $0x144] sm:$0xff]
    %v1864 = vld [vmem:[#allocation8 + $0x14c] sm:$0xf]
    %v1865 = vld [vmem:[#allocation8 + $0x150] sm:$0xff]
    %v1866 = vld [vmem:[#allocation8 + $0x158] sm:$0xf]
    %v1867 = vld [vmem:[#allocation8 + $0x15c] sm:$0xff]
    %v1868 = vld [vmem:[#allocation8 + $0x164] sm:$0xf]
    %v1869 = vld [vmem:[#allocation8 + $0x168] sm:$0xff]
    %v1870 = vld [vmem:[#allocation8 + $0x170] sm:$0xf]
    %v1871 = vld [vmem:[#allocation8 + $0x174] sm:$0xff]
    %v1872 = vld [vmem:[#allocation8 + $0x17c] sm:$0xf]
    %v1873 = vpack.c.bf16 %v1547, %v1547
    %v1875 = vshrl.u32 %v1873, 16
    %v1877 = vrot.slane %v1875, 3
    %v1911 = vunpack.c.l.b16 %v1841
    %v1912 = vunpack.c.h.b16 %v1841
    %v1913 = vunpack.c.l.b16 %v1842
    %v1914 = vunpack.c.l.b16 %v1843
    %v1915 = vunpack.c.h.b16 %v1843
    %v1916 = vunpack.c.l.b16 %v1844
    %v1917 = vunpack.c.l.b16 %v1845
    %v1918 = vunpack.c.h.b16 %v1845
    %v1919 = vunpack.c.l.b16 %v1846
    %v1920 = vunpack.c.l.b16 %v1847
    %v1921 = vunpack.c.h.b16 %v1847
    %v1922 = vunpack.c.l.b16 %v1848
    %v1923 = vunpack.c.l.b16 %v1849
    %v1924 = vunpack.c.h.b16 %v1849
    %v1925 = vunpack.c.l.b16 %v1850
    %v1926 = vunpack.c.l.b16 %v1851
    %v1927 = vunpack.c.h.b16 %v1851
    %v1928 = vunpack.c.l.b16 %v1852
    %v1929 = vunpack.c.l.b16 %v1853
    %v1930 = vunpack.c.h.b16 %v1853
    %v1931 = vunpack.c.l.b16 %v1854
    %v1932 = vunpack.c.l.b16 %v1855
    %v1933 = vunpack.c.h.b16 %v1855
    %v1934 = vunpack.c.l.b16 %v1856
    %v1935 = vunpack.c.l.b16 %v1857
    %v1936 = vunpack.c.h.b16 %v1857
    %v1937 = vunpack.c.l.b16 %v1858
    %v1938 = vunpack.c.l.b16 %v1859
    %v1939 = vunpack.c.h.b16 %v1859
    %v1940 = vunpack.c.l.b16 %v1860
    %v1941 = vunpack.c.l.b16 %v1861
    %v1942 = vunpack.c.h.b16 %v1861
    %v1943 = vunpack.c.l.b16 %v1862
    %v1944 = vunpack.c.l.b16 %v1863
    %v1945 = vunpack.c.h.b16 %v1863
    %v1946 = vunpack.c.l.b16 %v1864
    %v1947 = vunpack.c.l.b16 %v1865
    %v1948 = vunpack.c.h.b16 %v1865
    %v1949 = vunpack.c.l.b16 %v1866
    %v1950 = vunpack.c.l.b16 %v1867
    %v1951 = vunpack.c.h.b16 %v1867
    %v1952 = vunpack.c.l.b16 %v1868
    %v1953 = vunpack.c.l.b16 %v1869
    %v1954 = vunpack.c.h.b16 %v1869
    %v1955 = vunpack.c.l.b16 %v1870
    %v1956 = vunpack.c.l.b16 %v1871
    %v1957 = vunpack.c.h.b16 %v1871
    %v1958 = vunpack.c.l.b16 %v1872
    %v1959 = vpack.c.b16 %v1914, %v1911
    %v1960 = vpack.c.b16 %v1915, %v1912
    %v1961 = vpack.c.b16 %v1916, %v1913
    %v1962 = vpack.c.b16 %v1920, %v1917
    %v1963 = vpack.c.b16 %v1921, %v1918
    %v1964 = vpack.c.b16 %v1922, %v1919
    %v1965 = vpack.c.b16 %v1926, %v1923
    %v1966 = vpack.c.b16 %v1927, %v1924
    %v1967 = vpack.c.b16 %v1928, %v1925
    %v1968 = vpack.c.b16 %v1932, %v1929
    %v1969 = vpack.c.b16 %v1933, %v1930
    %v1970 = vpack.c.b16 %v1934, %v1931
    %v1971 = vpack.c.b16 %v1938, %v1935
    %v1972 = vpack.c.b16 %v1939, %v1936
    %v1973 = vpack.c.b16 %v1940, %v1937
    %v1974 = vpack.c.b16 %v1944, %v1941
    %v1975 = vpack.c.b16 %v1945, %v1942
    %v1976 = vpack.c.b16 %v1946, %v1943
    %v1977 = vpack.c.b16 %v1950, %v1947
    %v1978 = vpack.c.b16 %v1951, %v1948
    %v1979 = vpack.c.b16 %v1952, %v1949
    %v1980 = vpack.c.b16 %v1956, %v1953
    %v1981 = vpack.c.b16 %v1957, %v1954
    %v1982 = vpack.c.b16 %v1958, %v1955
    %v2007 = vlaneseq
    %v2008 = vshrl.u32 %v2007, 7
    %v2009 = vsub.s32 3, %v2008
    %v2010 = vrot.slane %v96, %v2009
    %v2011 = vlaneseq
    %v2012 = vshrl.u32 %v2011, 7
    %v2013 = vsub.s32 4, %v2012
    %v2014 = vrot.slane %v96, %v2013
    %v2015 = vlaneseq
    %v2016 = vshrl.u32 %v2015, 7
    %v2017 = vsub.s32 5, %v2016
    %v2018 = vrot.slane %v96, %v2017
    %2022 = vmatprep.subr.bf16.mxu0 %v1960
    %2023 = vmatpush1.bf16.msra.mxu0 %v1959
    %2024 = vmatprep.subr.bf16.mxu0 %v1963
    %2025 = vmatpush1.bf16.msra.mxu0 %v1962
    %2026 = vmatprep.subr.bf16.mxu0 %v1966
    %2027 = vmatpush1.bf16.msra.mxu0 %v1965
    %2028 = vmatprep.subr.bf16.mxu0 %v1969
    %2029 = vmatpush1.bf16.msra.mxu0 %v1968
    %2030 = vmatprep.subr.bf16.mxu0 %v1972
    %2031 = vmatpush1.bf16.msra.mxu0 %v1971
    %2032 = vmatprep.subr.bf16.mxu0 %v1975
    %2033 = vmatpush1.bf16.msra.mxu0 %v1974
    %2034 = vmatprep.subr.bf16.mxu0 %v1978
    %2035 = vmatpush1.bf16.msra.mxu0 %v1977
    %2036 = vmatprep.subr.bf16.mxu0 %v1981
    %2037 = vmatpush1.bf16.msra.mxu0 %v1980
    %2038 = vmatprep.subr.bf16.mxu0 0
    %2039 = vmatpush1.bf16.msra.mxu0 0
    %2040 = vmatprep.subr.bf16.mxu0 0
    %2041 = vmatpush1.bf16.msra.mxu0 0
    %2042 = vmatprep.subr.bf16.mxu0 0
    %2043 = vmatpush1.bf16.msra.mxu0 0
    %2044 = vmatprep.subr.bf16.mxu0 0
    %2045 = vmatpush1.bf16.msra.mxu0 0
    %2046 = vmatprep.subr.bf16.mxu0 0
    %2047 = vmatpush1.bf16.msra.mxu0 0
    %2048 = vmatprep.subr.bf16.mxu0 0
    %2049 = vmatpush1.bf16.msra.mxu0 0
    %2050 = vmatprep.subr.bf16.mxu0 0
    %2051 = vmatpush1.bf16.msra.mxu0 0
    %2052 = vmatprep.subr.bf16.mxu0 0
    %2053 = vmatpush1.bf16.msra.mxu0 0
    %2054 = vmatprep.mubr.bf16.mxu0 0
    %2055 = vmatmul.mubr.bf16.gmra.mrb[0].mxu0 %v1877
    %v2056 = vpop.f32.mrb[0].mxu0
    %v2057 = vadd.f32 %v2010, %v2056
    %v2058 = vpop.f32.mrb[0].mxu0
    %v2059 = vadd.f32 %v2014, %v2058
    %v2060 = vpop.f32.mrb[0].mxu0
    %v2061 = vpop.f32.mrb[0].mxu0
    %2062 = vdwg.mxu0
    %2063 = vmatprep.subr.bf16.mxu0 0
    %2064 = vmatpush1.bf16.msra.mxu0 %v1961
    %2065 = vmatprep.subr.bf16.mxu0 0
    %2066 = vmatpush1.bf16.msra.mxu0 %v1964
    %2067 = vmatprep.subr.bf16.mxu0 0
    %2068 = vmatpush1.bf16.msra.mxu0 %v1967
    %2069 = vmatprep.subr.bf16.mxu0 0
    %2070 = vmatpush1.bf16.msra.mxu0 %v1970
    %2071 = vmatprep.subr.bf16.mxu0 0
    %2072 = vmatpush1.bf16.msra.mxu0 %v1973
    %2073 = vmatprep.subr.bf16.mxu0 0
    %2074 = vmatpush1.bf16.msra.mxu0 %v1976
    %2075 = vmatprep.subr.bf16.mxu0 0
    %2076 = vmatpush1.bf16.msra.mxu0 %v1979
    %2077 = vmatprep.subr.bf16.mxu0 0
    %2078 = vmatpush1.bf16.msra.mxu0 %v1982
    %2079 = vmatprep.subr.bf16.mxu0 0
    %2080 = vmatpush1.bf16.msra.mxu0 0
    %2081 = vmatprep.subr.bf16.mxu0 0
    %2082 = vmatpush1.bf16.msra.mxu0 0
    %2083 = vmatprep.subr.bf16.mxu0 0
    %2084 = vmatpush1.bf16.msra.mxu0 0
    %2085 = vmatprep.subr.bf16.mxu0 0
    %2086 = vmatpush1.bf16.msra.mxu0 0
    %2087 = vmatprep.subr.bf16.mxu0 0
    %2088 = vmatpush1.bf16.msra.mxu0 0
    %2089 = vmatprep.subr.bf16.mxu0 0
    %2090 = vmatpush1.bf16.msra.mxu0 0
    %2091 = vmatprep.subr.bf16.mxu0 0
    %2092 = vmatpush1.bf16.msra.mxu0 0
    %2093 = vmatprep.subr.bf16.mxu0 0
    %2094 = vmatpush1.bf16.msra.mxu0 0
    %2095 = vmatprep.mubr.bf16.mxu0 0
    %2096 = vmatmul.mubr.bf16.gmra.mrb[0].mxu0 %v1877
    %v2097 = vpop.f32.mrb[0].mxu0
    %v2098 = vadd.f32 %v2018, %v2097
    %v2099 = vpop.f32.mrb[0].mxu0
    %v2100 = vpop.f32.mrb[0].mxu0
    %v2101 = vpop.f32.mrb[0].mxu0
    %2102 = vdwg.mxu0
    %v2103 = vadd.f32 %v1795, %v2057
    %v2104 = vxor.u32 %v2103, 2147483648
    %v2105 = vmul.f32 %v2104, 1.442695
    %v2106 = vpow.pop %v2105
    %v2107 = vadd.f32 %v2106, 1.0
    %v2108 = vrcp.pop %v2107
    %v2109 = vmul.f32 1.0, %v2108
    %v2110 = vadd.f32 %v1797, %v2059
    %v2111 = vxor.u32 %v2110, 2147483648
    %v2112 = vmul.f32 %v2111, 1.442695
    %v2113 = vpow.pop %v2112
    %v2114 = vadd.f32 %v2113, 1.0
    %v2115 = vrcp.pop %v2114
    %v2116 = vmul.f32 1.0, %v2115
    %v2117 = vmul.f32 %v2109, %v2098
    %v2118 = vadd.f32 %v1836, %v2117
    %v2119 = vtanh.pop %v2118
    %v2120 = vsub.f32 1.0, %v2116
    %v2121 = vmul.f32 %v2120, %v2119
    %v2123 = vrot.slane %v1547, 7
    %v2125 = vmul.f32 %v2116, %v2123
    %v2126 = vadd.f32 %v2121, %v2125
    %v2127 = vpack.c.bf16 %v2126, %v2126
    %2128 = vmatprep.subr.bf16.mxu0 0
    %2129 = vmatpush1.bf16.msra.mxu0 %v1588
    %2130 = vmatprep.subr.bf16.mxu0 0
    %2131 = vmatpush1.bf16.msra.mxu0 %v1589
    %2132 = vmatprep.subr.bf16.mxu0 0
    %2133 = vmatpush1.bf16.msra.mxu0 %v1590
    %2134 = vmatprep.subr.bf16.mxu0 0
    %2135 = vmatpush1.bf16.msra.mxu0 %v1591
    %2136 = vmatprep.subr.bf16.mxu0 0
    %2137 = vmatpush1.bf16.msra.mxu0 %v1592
    %2138 = vmatprep.subr.bf16.mxu0 0
    %2139 = vmatpush1.bf16.msra.mxu0 %v1593
    %2140 = vmatprep.subr.bf16.mxu0 0
    %2141 = vmatpush1.bf16.msra.mxu0 %v1594
    %2142 = vmatprep.subr.bf16.mxu0 0
    %2143 = vmatpush1.bf16.msra.mxu0 %v1595
    %2144 = vmatprep.subr.bf16.mxu0 0
    %2145 = vmatpush1.bf16.msra.mxu0 0
    %2146 = vmatprep.subr.bf16.mxu0 0
    %2147 = vmatpush1.bf16.msra.mxu0 0
    %2148 = vmatprep.subr.bf16.mxu0 0
    %2149 = vmatpush1.bf16.msra.mxu0 0
    %2150 = vmatprep.subr.bf16.mxu0 0
    %2151 = vmatpush1.bf16.msra.mxu0 0
    %2152 = vmatprep.subr.bf16.mxu0 0
    %2153 = vmatpush1.bf16.msra.mxu0 0
    %2154 = vmatprep.subr.bf16.mxu0 0
    %2155 = vmatpush1.bf16.msra.mxu0 0
    %2156 = vmatprep.subr.bf16.mxu0 0
    %2157 = vmatpush1.bf16.msra.mxu0 0
    %2158 = vmatprep.subr.bf16.mxu0 0
    %2159 = vmatpush1.bf16.msra.mxu0 0
    %2160 = vmatprep.mubr.bf16.mxu0 0
    %2161 = vmatmul.mubr.bf16.gmra.mrb[0].mxu0 %v2127
    %v2162 = vpop.f32.mrb[0].mxu0
    %v2163 = vadd.f32 0.0, %v2162
    %v2164 = vpop.f32.mrb[0].mxu0
    %v2165 = vpop.f32.mrb[0].mxu0
    %v2166 = vpop.f32.mrb[0].mxu0
    %2167 = vdwg.mxu0
    %vm2168 = vcmask 57344
    %v2169 = vsel %vm2168, %v2163, -inf
    %2170 = vmax.xlane.f32.xlu0 %v2169
    %v2171 = vpop.xlane.xlu0 %2170
    %v2172 = vsub.f32 %v2163, %v2171
    %v2173 = vmul.f32 %v2172, 1.442695
    %v2174 = vpow.pop %v2173
    %v2175 = vsel %vm2168, %v2174, 0.0
    %2176 = vadd.xlane.f32.xlu0 %v2175
    %v2177 = vpop.xlane.xlu0 %2176
    %v2178 = vrcp.pop %v2177
    %v2179 = vmul.f32 %v2174, %v2178
    %v2180 = vpack.c.bf16 %v2179, %v2179
    %vm2181 = vcmask 64512
    %v2183 = vsel %vm2181, %v2180, 0
    %v2186 = vsel %vm145, %v1555, 0
    %2188 = vmatprep.subr.bf16.mxu0 0
    %2189 = vmatpush1.bf16.msra.mxu0 %v2186
    %2190 = vmatprep.subr.bf16.mxu0 0
    %2191 = vmatpush1.bf16.msra.mxu0 0
    %2192 = vmatprep.subr.bf16.mxu0 0
    %2193 = vmatpush1.bf16.msra.mxu0 0
    %2194 = vmatprep.subr.bf16.mxu0 0
    %2195 = vmatpush1.bf16.msra.mxu0 0
    %2196 = vmatprep.subr.bf16.mxu0 0
    %2197 = vmatpush1.bf16.msra.mxu0 0
    %2198 = vmatprep.subr.bf16.mxu0 0
    %2199 = vmatpush1.bf16.msra.mxu0 0
    %2200 = vmatprep.subr.bf16.mxu0 0
    %2201 = vmatpush1.bf16.msra.mxu0 0
    %2202 = vmatprep.subr.bf16.mxu0 0
    %2203 = vmatpush1.bf16.msra.mxu0 0
    %2204 = vmatprep.subr.bf16.mxu0 0
    %2205 = vmatpush1.bf16.msra.mxu0 0
    %2206 = vmatprep.subr.bf16.mxu0 0
    %2207 = vmatpush1.bf16.msra.mxu0 0
    %2208 = vmatprep.subr.bf16.mxu0 0
    %2209 = vmatpush1.bf16.msra.mxu0 0
    %2210 = vmatprep.subr.bf16.mxu0 0
    %2211 = vmatpush1.bf16.msra.mxu0 0
    %2212 = vmatprep.subr.bf16.mxu0 0
    %2213 = vmatpush1.bf16.msra.mxu0 0
    %2214 = vmatprep.subr.bf16.mxu0 0
    %2215 = vmatpush1.bf16.msra.mxu0 0
    %2216 = vmatprep.subr.bf16.mxu0 0
    %2217 = vmatpush1.bf16.msra.mxu0 0
    %2218 = vmatprep.subr.bf16.mxu0 0
    %2219 = vmatpush1.bf16.msra.mxu0 0
    %2220 = vmatprep.mubr.bf16.mxu0 0
    %2221 = vmatmul.mubr.bf16.gmra.mrb[0].mxu0 %v2183
    %v2222 = vpop.f32.mrb[0].mxu0
    %v2223 = vadd.f32 0.0, %v2222
    %v2224 = vpop.f32.mrb[0].mxu0
    %v2225 = vpop.f32.mrb[0].mxu0
    %v2226 = vpop.f32.mrb[0].mxu0
    %2227 = vdwg.mxu0
    %v2228 = vpack.c.bf16 %v2223, %v2223
    %v2229 = vld [vmem:[#allocation10] sm:$0xf]
    %v2230 = vld [vmem:[#allocation10 + $0x4] sm:$0xf]
    %v2231 = vld [vmem:[#allocation10 + $0x8] sm:$0xf]
    %v2232 = vld [vmem:[#allocation10 + $0xc] sm:$0xf]
    %v2233 = vld [vmem:[#allocation10 + $0x10] sm:$0xf]
    %v2234 = vld [vmem:[#allocation10 + $0x14] sm:$0xf]
    %v2235 = vld [vmem:[#allocation10 + $0x18] sm:$0xf]
    %v2236 = vld [vmem:[#allocation10 + $0x1c] sm:$0xf]
    %v2237 = vld [vmem:[#allocation10 + $0x20] sm:$0xf]
    %v2238 = vld [vmem:[#allocation10 + $0x24] sm:$0xf]
    %v2239 = vld [vmem:[#allocation10 + $0x28] sm:$0xf]
    %v2240 = vld [vmem:[#allocation10 + $0x2c] sm:$0xf]
    %v2241 = vld [vmem:[#allocation10 + $0x30] sm:$0xf]
    %v2242 = vld [vmem:[#allocation10 + $0x34] sm:$0xf]
    %v2243 = vld [vmem:[#allocation10 + $0x38] sm:$0xf]
    %v2244 = vld [vmem:[#allocation10 + $0x3c] sm:$0xf]
    %v2245 = vld [vmem:[#allocation10 + $0x40] sm:$0xf]
    %v2246 = vld [vmem:[#allocation10 + $0x44] sm:$0xf]
    %v2247 = vld [vmem:[#allocation10 + $0x48] sm:$0xf]
    %v2248 = vld [vmem:[#allocation10 + $0x4c] sm:$0xf]
    %v2249 = vld [vmem:[#allocation10 + $0x50] sm:$0xf]
    %v2250 = vld [vmem:[#allocation10 + $0x54] sm:$0xf]
    %v2251 = vld [vmem:[#allocation10 + $0x58] sm:$0xf]
    %v2252 = vld [vmem:[#allocation10 + $0x5c] sm:$0xf]
    %v2253 = vld [vmem:[#allocation10 + $0x60] sm:$0xf]
    %v2254 = vld [vmem:[#allocation10 + $0x64] sm:$0xf]
    %v2255 = vld [vmem:[#allocation10 + $0x68] sm:$0xf]
    %v2256 = vld [vmem:[#allocation10 + $0x6c] sm:$0xf]
    %v2257 = vld [vmem:[#allocation10 + $0x70] sm:$0xf]
    %v2258 = vld [vmem:[#allocation10 + $0x74] sm:$0xf]
    %v2259 = vld [vmem:[#allocation10 + $0x78] sm:$0xf]
    %v2260 = vld [vmem:[#allocation10 + $0x7c] sm:$0xf]
    %v2293 = vunpack.c.l.b16 %v2229
    %v2294 = vunpack.c.l.b16 %v2230
    %v2295 = vunpack.c.l.b16 %v2231
    %v2296 = vunpack.c.l.b16 %v2232
    %v2297 = vunpack.c.l.b16 %v2233
    %v2298 = vunpack.c.l.b16 %v2234
    %v2299 = vunpack.c.l.b16 %v2235
    %v2300 = vunpack.c.l.b16 %v2236
    %v2301 = vunpack.c.l.b16 %v2237
    %v2302 = vunpack.c.l.b16 %v2238
    %v2303 = vunpack.c.l.b16 %v2239
    %v2304 = vunpack.c.l.b16 %v2240
    %v2305 = vunpack.c.l.b16 %v2241
    %v2306 = vunpack.c.l.b16 %v2242
    %v2307 = vunpack.c.l.b16 %v2243
    %v2308 = vunpack.c.l.b16 %v2244
    %v2309 = vunpack.c.l.b16 %v2245
    %v2310 = vunpack.c.l.b16 %v2246
    %v2311 = vunpack.c.l.b16 %v2247
    %v2312 = vunpack.c.l.b16 %v2248
    %v2313 = vunpack.c.l.b16 %v2249
    %v2314 = vunpack.c.l.b16 %v2250
    %v2315 = vunpack.c.l.b16 %v2251
    %v2316 = vunpack.c.l.b16 %v2252
    %v2317 = vunpack.c.l.b16 %v2253
    %v2318 = vunpack.c.l.b16 %v2254
    %v2319 = vunpack.c.l.b16 %v2255
    %v2320 = vunpack.c.l.b16 %v2256
    %v2321 = vunpack.c.l.b16 %v2257
    %v2322 = vunpack.c.l.b16 %v2258
    %v2323 = vunpack.c.l.b16 %v2259
    %v2324 = vunpack.c.l.b16 %v2260
    %v2325 = vpack.c.b16 %v2294, %v2293
    %v2326 = vpack.c.b16 %v2296, %v2295
    %v2327 = vpack.c.b16 %v2298, %v2297
    %v2328 = vpack.c.b16 %v2300, %v2299
    %v2329 = vpack.c.b16 %v2302, %v2301
    %v2330 = vpack.c.b16 %v2304, %v2303
    %v2331 = vpack.c.b16 %v2306, %v2305
    %v2332 = vpack.c.b16 %v2308, %v2307
    %v2333 = vpack.c.b16 %v2310, %v2309
    %v2334 = vpack.c.b16 %v2312, %v2311
    %v2335 = vpack.c.b16 %v2314, %v2313
    %v2336 = vpack.c.b16 %v2316, %v2315
    %v2337 = vpack.c.b16 %v2318, %v2317
    %v2338 = vpack.c.b16 %v2320, %v2319
    %v2339 = vpack.c.b16 %v2322, %v2321
    %v2340 = vpack.c.b16 %v2324, %v2323
    %v2357 = vlaneseq
    %v2358 = vshrl.u32 %v2357, 7
    %v2359 = vsub.s32 6, %v2358
    %v2360 = vrot.slane %v96, %v2359
    %2362 = vmatprep.subr.bf16.mxu0 0
    %2363 = vmatpush1.bf16.msra.mxu0 %v2325
    %2364 = vmatprep.subr.bf16.mxu0 0
    %2365 = vmatpush1.bf16.msra.mxu0 %v2326
    %2366 = vmatprep.subr.bf16.mxu0 0
    %2367 = vmatpush1.bf16.msra.mxu0 %v2327
    %2368 = vmatprep.subr.bf16.mxu0 0
    %2369 = vmatpush1.bf16.msra.mxu0 %v2328
    %2370 = vmatprep.subr.bf16.mxu0 0
    %2371 = vmatpush1.bf16.msra.mxu0 %v2329
    %2372 = vmatprep.subr.bf16.mxu0 0
    %2373 = vmatpush1.bf16.msra.mxu0 %v2330
    %2374 = vmatprep.subr.bf16.mxu0 0
    %2375 = vmatpush1.bf16.msra.mxu0 %v2331
    %2376 = vmatprep.subr.bf16.mxu0 0
    %2377 = vmatpush1.bf16.msra.mxu0 %v2332
    %2378 = vmatprep.subr.bf16.mxu0 0
    %2379 = vmatpush1.bf16.msra.mxu0 %v2333
    %2380 = vmatprep.subr.bf16.mxu0 0
    %2381 = vmatpush1.bf16.msra.mxu0 %v2334
    %2382 = vmatprep.subr.bf16.mxu0 0
    %2383 = vmatpush1.bf16.msra.mxu0 %v2335
    %2384 = vmatprep.subr.bf16.mxu0 0
    %2385 = vmatpush1.bf16.msra.mxu0 %v2336
    %2386 = vmatprep.subr.bf16.mxu0 0
    %2387 = vmatpush1.bf16.msra.mxu0 %v2337
    %2388 = vmatprep.subr.bf16.mxu0 0
    %2389 = vmatpush1.bf16.msra.mxu0 %v2338
    %2390 = vmatprep.subr.bf16.mxu0 0
    %2391 = vmatpush1.bf16.msra.mxu0 %v2339
    %2392 = vmatprep.subr.bf16.mxu0 0
    %2393 = vmatpush1.bf16.msra.mxu0 %v2340
    %2394 = vmatprep.mubr.bf16.mxu0 %v2228
    %2395 = vmatmul.mubr.bf16.gmra.mrb[0].mxu0 %v2127
    %v2396 = vpop.f32.mrb[0].mxu0
    %v2397 = vadd.f32 %v2360, %v2396
    %v2398 = vpop.f32.mrb[0].mxu0
    %v2399 = vpop.f32.mrb[0].mxu0
    %v2400 = vpop.f32.mrb[0].mxu0
    %2401 = vdwg.mxu0
    %v2402 = vtanh.pop %v2397
    %v2403 = vpack.c.bf16 %v2402, %v2402
    %v2404 = vld [vmem:[#allocation10 + $0x80] sm:$0xf]
    %v2405 = vld [vmem:[#allocation10 + $0x84] sm:$0xf]
    %v2406 = vld [vmem:[#allocation10 + $0x88] sm:$0xf]
    %v2407 = vld [vmem:[#allocation10 + $0x8c] sm:$0xf]
    %v2408 = vld [vmem:[#allocation10 + $0x90] sm:$0xf]
    %v2409 = vld [vmem:[#allocation10 + $0x94] sm:$0xf]
    %v2410 = vld [vmem:[#allocation10 + $0x98] sm:$0xf]
    %v2411 = vld [vmem:[#allocation10 + $0x9c] sm:$0xf]
    %v2412 = vld [vmem:[#allocation10 + $0xa0] sm:$0xf]
    %v2413 = vld [vmem:[#allocation10 + $0xa4] sm:$0xf]
    %v2414 = vld [vmem:[#allocation10 + $0xa8] sm:$0xf]
    %v2415 = vld [vmem:[#allocation10 + $0xac] sm:$0xf]
    %v2416 = vld [vmem:[#allocation10 + $0xb0] sm:$0xf]
    %v2417 = vld [vmem:[#allocation10 + $0xb4] sm:$0xf]
    %v2418 = vld [vmem:[#allocation10 + $0xb8] sm:$0xf]
    %v2419 = vld [vmem:[#allocation10 + $0xbc] sm:$0xf]
    %v2436 = vunpack.c.l.b16 %v2404
    %v2437 = vunpack.c.l.b16 %v2405
    %v2438 = vunpack.c.l.b16 %v2406
    %v2439 = vunpack.c.l.b16 %v2407
    %v2440 = vunpack.c.l.b16 %v2408
    %v2441 = vunpack.c.l.b16 %v2409
    %v2442 = vunpack.c.l.b16 %v2410
    %v2443 = vunpack.c.l.b16 %v2411
    %v2444 = vunpack.c.l.b16 %v2412
    %v2445 = vunpack.c.l.b16 %v2413
    %v2446 = vunpack.c.l.b16 %v2414
    %v2447 = vunpack.c.l.b16 %v2415
    %v2448 = vunpack.c.l.b16 %v2416
    %v2449 = vunpack.c.l.b16 %v2417
    %v2450 = vunpack.c.l.b16 %v2418
    %v2451 = vunpack.c.l.b16 %v2419
    %v2452 = vpack.c.b16 %v2437, %v2436
    %v2453 = vpack.c.b16 %v2439, %v2438
    %v2454 = vpack.c.b16 %v2441, %v2440
    %v2455 = vpack.c.b16 %v2443, %v2442
    %v2456 = vpack.c.b16 %v2445, %v2444
    %v2457 = vpack.c.b16 %v2447, %v2446
    %v2458 = vpack.c.b16 %v2449, %v2448
    %v2459 = vpack.c.b16 %v2451, %v2450
    %v2468 = vlaneseq
    %v2469 = vshrl.u32 %v2468, 7
    %v2470 = vsub.s32 7, %v2469
    %v2471 = vrot.slane %v96, %v2470
    %2473 = vmatprep.subr.bf16.mxu0 0
    %2474 = vmatpush1.bf16.msra.mxu0 %v2452
    %2475 = vmatprep.subr.bf16.mxu0 0
    %2476 = vmatpush1.bf16.msra.mxu0 %v2453
    %2477 = vmatprep.subr.bf16.mxu0 0
    %2478 = vmatpush1.bf16.msra.mxu0 %v2454
    %2479 = vmatprep.subr.bf16.mxu0 0
    %2480 = vmatpush1.bf16.msra.mxu0 %v2455
    %2481 = vmatprep.subr.bf16.mxu0 0
    %2482 = vmatpush1.bf16.msra.mxu0 %v2456
    %2483 = vmatprep.subr.bf16.mxu0 0
    %2484 = vmatpush1.bf16.msra.mxu0 %v2457
    %2485 = vmatprep.subr.bf16.mxu0 0
    %2486 = vmatpush1.bf16.msra.mxu0 %v2458
    %2487 = vmatprep.subr.bf16.mxu0 0
    %2488 = vmatpush1.bf16.msra.mxu0 %v2459
    %2489 = vmatprep.subr.bf16.mxu0 0
    %2490 = vmatpush1.bf16.msra.mxu0 0
    %2491 = vmatprep.subr.bf16.mxu0 0
    %2492 = vmatpush1.bf16.msra.mxu0 0
    %2493 = vmatprep.subr.bf16.mxu0 0
    %2494 = vmatpush1.bf16.msra.mxu0 0
    %2495 = vmatprep.subr.bf16.mxu0 0
    %2496 = vmatpush1.bf16.msra.mxu0 0
    %2497 = vmatprep.subr.bf16.mxu0 0
    %2498 = vmatpush1.bf16.msra.mxu0 0
    %2499 = vmatprep.subr.bf16.mxu0 0
    %2500 = vmatpush1.bf16.msra.mxu0 0
    %2501 = vmatprep.subr.bf16.mxu0 0
    %2502 = vmatpush1.bf16.msra.mxu0 0
    %2503 = vmatprep.subr.bf16.mxu0 0
    %2504 = vmatpush1.bf16.msra.mxu0 0
    %2505 = vmatprep.mubr.bf16.mxu0 0
    %2506 = vmatmul.mubr.bf16.gmra.mrb[0].mxu0 %v2403
    %v2507 = vpop.f32.mrb[0].mxu0
    %v2508 = vadd.f32 %v2471, %v2507
    %v2509 = vpop.f32.mrb[0].mxu0
    %v2510 = vpop.f32.mrb[0].mxu0
    %v2511 = vpop.f32.mrb[0].mxu0
    %2512 = vdwg.mxu0
    %v2513 = vsel %vm139, %v2508, -inf
    %2514 = vmax.xlane.f32.xlu0 %v2513
    %v2515 = vpop.xlane.xlu0 %2514
    %v2516 = vsub.f32 %v2508, %v2515
    %v2517 = vmul.f32 %v2516, 1.442695
    %v2518 = vpow.pop %v2517
    %v2519 = vsel %vm139, %v2518, 0.0
    %2520 = vadd.xlane.f32.xlu0 %v2519
    %v2521 = vpop.xlane.xlu0 %2520
    %v2522 = vrcp.pop %v2521
    %v2523 = vmul.f32 1.0, %v2522
    %vm2524 = vcmp.eq.f32.partialorder %v2508, %v2515
    %v2525 = vsel %vm2524, %v98, 128
    %v2526 = vsel %vm139, %v2525, 2147483647
    %v2527 = vand.u32 %v2526, 65535
    %v2528 = vshra.s32 %v2526, 16
    %v2529 = vcvt.s32.f32 %v2527
    %v2530 = vcvt.s32.f32 %v2528
    %2531 = vmin.xlane.f32.xlu0 %v2530
    %v2532 = vpop.xlane.xlu0 %2531
    %vm2533 = vcmp.eq.f32.partialorder %v2530, %v2532
    %v2534 = vsel %vm2533, %v2529, inf
    %2535 = vmin.xlane.f32.xlu0 %v2534
    %v2536 = vpop.xlane.xlu0 %2535
    %v2537 = vcvt.f32.s32 %v2536
    %v2538 = vcvt.f32.s32 %v2532
    %v2539 = vshll.u32 %v2538, 16
    %v2540 = vadd.s32 %v2539, %v2537
    %vm2541 = vcmp.lt.s32.totalorder %v2540, 127
    %v2542 = vsel %vm2541, %v2540, 127
    %vm2543 = vcmp.eq.s32.totalorder %v98, %v2542
    %v2544 = vsel %vm2543, 1, 0
    %v2545 = vcvt.s32.f32 %v2544
    %v2546 = vpack.c.bf16 %v2545, %v2545
    %2547 = vmatprep.subr.bf16.mxu0 %v1713
    %2548 = vmatpush1.bf16.msra.mxu0 %v1712
    %2549 = vmatprep.subr.bf16.mxu0 %v1716
    %2550 = vmatpush1.bf16.msra.mxu0 %v1715
    %2551 = vmatprep.subr.bf16.mxu0 %v1719
    %2552 = vmatpush1.bf16.msra.mxu0 %v1718
    %2553 = vmatprep.subr.bf16.mxu0 %v1722
    %2554 = vmatpush1.bf16.msra.mxu0 %v1721
    %2555 = vmatprep.subr.bf16.mxu0 %v1725
    %2556 = vmatpush1.bf16.msra.mxu0 %v1724
    %2557 = vmatprep.subr.bf16.mxu0 %v1728
    %2558 = vmatpush1.bf16.msra.mxu0 %v1727
    %2559 = vmatprep.subr.bf16.mxu0 %v1731
    %2560 = vmatpush1.bf16.msra.mxu0 %v1730
    %2561 = vmatprep.subr.bf16.mxu0 %v1734
    %2562 = vmatpush1.bf16.msra.mxu0 %v1733
    %2563 = vmatprep.subr.bf16.mxu0 0
    %2564 = vmatpush1.bf16.msra.mxu0 0
    %2565 = vmatprep.subr.bf16.mxu0 0
    %2566 = vmatpush1.bf16.msra.mxu0 0
    %2567 = vmatprep.subr.bf16.mxu0 0
    %2568 = vmatpush1.bf16.msra.mxu0 0
    %2569 = vmatprep.subr.bf16.mxu0 0
    %2570 = vmatpush1.bf16.msra.mxu0 0
    %2571 = vmatprep.subr.bf16.mxu0 0
    %2572 = vmatpush1.bf16.msra.mxu0 0
    %2573 = vmatprep.subr.bf16.mxu0 0
    %2574 = vmatpush1.bf16.msra.mxu0 0
    %2575 = vmatprep.subr.bf16.mxu0 0
    %2576 = vmatpush1.bf16.msra.mxu0 0
    %2577 = vmatprep.subr.bf16.mxu0 0
    %2578 = vmatpush1.bf16.msra.mxu0 0
    %2579 = vmatprep.mubr.bf16.mxu0 0
    %2580 = vmatmul.mubr.bf16.gmra.mrb[0].mxu0 %v2546
    %v2581 = vpop.f32.mrb[0].mxu0
    %v2582 = vadd.f32 0.0, %v2581
    %v2583 = vpop.f32.mrb[0].mxu0
    %v2584 = vadd.f32 0.0, %v2583
    %v2585 = vpop.f32.mrb[0].mxu0
    %v2586 = vpop.f32.mrb[0].mxu0
    %2587 = vdwg.mxu0
    %2588 = vmatprep.subr.bf16.mxu0 0
    %2589 = vmatpush1.bf16.msra.mxu0 %v1714
    %2590 = vmatprep.subr.bf16.mxu0 0
    %2591 = vmatpush1.bf16.msra.mxu0 %v1717
    %2592 = vmatprep.subr.bf16.mxu0 0
    %2593 = vmatpush1.bf16.msra.mxu0 %v1720
    %2594 = vmatprep.subr.bf16.mxu0 0
    %2595 = vmatpush1.bf16.msra.mxu0 %v1723
    %2596 = vmatprep.subr.bf16.mxu0 0
    %2597 = vmatpush1.bf16.msra.mxu0 %v1726
    %2598 = vmatprep.subr.bf16.mxu0 0
    %2599 = vmatpush1.bf16.msra.mxu0 %v1729
    %2600 = vmatprep.subr.bf16.mxu0 0
    %2601 = vmatpush1.bf16.msra.mxu0 %v1732
    %2602 = vmatprep.subr.bf16.mxu0 0
    %2603 = vmatpush1.bf16.msra.mxu0 %v1735
    %2604 = vmatprep.subr.bf16.mxu0 0
    %2605 = vmatpush1.bf16.msra.mxu0 0
    %2606 = vmatprep.subr.bf16.mxu0 0
    %2607 = vmatpush1.bf16.msra.mxu0 0
    %2608 = vmatprep.subr.bf16.mxu0 0
    %2609 = vmatpush1.bf16.msra.mxu0 0
    %2610 = vmatprep.subr.bf16.mxu0 0
    %2611 = vmatpush1.bf16.msra.mxu0 0
    %2612 = vmatprep.subr.bf16.mxu0 0
    %2613 = vmatpush1.bf16.msra.mxu0 0
    %2614 = vmatprep.subr.bf16.mxu0 0
    %2615 = vmatpush1.bf16.msra.mxu0 0
    %2616 = vmatprep.subr.bf16.mxu0 0
    %2617 = vmatpush1.bf16.msra.mxu0 0
    %2618 = vmatprep.subr.bf16.mxu0 0
    %2619 = vmatpush1.bf16.msra.mxu0 0
    %2620 = vmatprep.mubr.bf16.mxu0 0
    %2621 = vmatmul.mubr.bf16.gmra.mrb[0].mxu0 %v2546
    %v2622 = vpop.f32.mrb[0].mxu0
    %v2623 = vadd.f32 0.0, %v2622
    %v2624 = vpop.f32.mrb[0].mxu0
    %v2625 = vpop.f32.mrb[0].mxu0
    %v2626 = vpop.f32.mrb[0].mxu0
    %2627 = vdwg.mxu0
    %s2628 = vtos %v2542
    %s2629 = scalar_lea.smem [#allocation13], 0
    %2630 = sst [smem:[%s2629]] %s2628
    %s2631 = vtos %v2523
    %s2632 = scalar_lea.smem [#allocation14], 0
    %2633 = sst [smem:[%s2632]] %s2631
    %v2634 = vld [vmem:[#allocation8 + $0xc0] sm:$0xff]
    %v2635 = vld [vmem:[#allocation8 + $0xc8] sm:$0xf]
    %v2636 = vld [vmem:[#allocation8 + $0xcc] sm:$0xff]
    %v2637 = vld [vmem:[#allocation8 + $0xd4] sm:$0xf]
    %v2638 = vld [vmem:[#allocation8 + $0xd8] sm:$0xff]
    %v2639 = vld [vmem:[#allocation8 + $0xe0] sm:$0xf]
    %v2640 = vld [vmem:[#allocation8 + $0xe4] sm:$0xff]
    %v2641 = vld [vmem:[#allocation8 + $0xec] sm:$0xf]
    %v2642 = vld [vmem:[#allocation8 + $0xf0] sm:$0xff]
    %v2643 = vld [vmem:[#allocation8 + $0xf8] sm:$0xf]
    %v2644 = vld [vmem:[#allocation8 + $0xfc] sm:$0xff]
    %v2645 = vld [vmem:[#allocation8 + $0x104] sm:$0xf]
    %v2646 = vld [vmem:[#allocation8 + $0x108] sm:$0xff]
    %v2647 = vld [vmem:[#allocation8 + $0x110] sm:$0xf]
    %v2648 = vld [vmem:[#allocation8 + $0x114] sm:$0xff]
    %v2649 = vld [vmem:[#allocation8 + $0x11c] sm:$0xf]
    %v2650 = vld [vmem:[#allocation8 + $0x120] sm:$0xff]
    %v2651 = vld [vmem:[#allocation8 + $0x128] sm:$0xf]
    %v2652 = vld [vmem:[#allocation8 + $0x12c] sm:$0xff]
    %v2653 = vld [vmem:[#allocation8 + $0x134] sm:$0xf]
    %v2654 = vld [vmem:[#allocation8 + $0x138] sm:$0xff]
    %v2655 = vld [vmem:[#allocation8 + $0x140] sm:$0xf]
    %v2656 = vld [vmem:[#allocation8 + $0x144] sm:$0xff]
    %v2657 = vld [vmem:[#allocation8 + $0x14c] sm:$0xf]
    %v2658 = vld [vmem:[#allocation8 + $0x150] sm:$0xff]
    %v2659 = vld [vmem:[#allocation8 + $0x158] sm:$0xf]
    %v2660 = vld [vmem:[#allocation8 + $0x15c] sm:$0xff]
    %v2661 = vld [vmem:[#allocation8 + $0x164] sm:$0xf]
    %v2662 = vld [vmem:[#allocation8 + $0x168] sm:$0xff]
    %v2663 = vld [vmem:[#allocation8 + $0x170] sm:$0xf]
    %v2664 = vld [vmem:[#allocation8 + $0x174] sm:$0xff]
    %v2665 = vld [vmem:[#allocation8 + $0x17c] sm:$0xf]
    %v2698 = vunpack.c.l.b16 %v2634
    %v2699 = vunpack.c.h.b16 %v2634
    %v2700 = vunpack.c.l.b16 %v2635
    %v2701 = vunpack.c.l.b16 %v2636
    %v2702 = vunpack.c.h.b16 %v2636
    %v2703 = vunpack.c.l.b16 %v2637
    %v2704 = vunpack.c.l.b16 %v2638
    %v2705 = vunpack.c.h.b16 %v2638
    %v2706 = vunpack.c.l.b16 %v2639
    %v2707 = vunpack.c.l.b16 %v2640
    %v2708 = vunpack.c.h.b16 %v2640
    %v2709 = vunpack.c.l.b16 %v2641
    %v2710 = vunpack.c.l.b16 %v2642
    %v2711 = vunpack.c.h.b16 %v2642
    %v2712 = vunpack.c.l.b16 %v2643
    %v2713 = vunpack.c.l.b16 %v2644
    %v2714 = vunpack.c.h.b16 %v2644
    %v2715 = vunpack.c.l.b16 %v2645
    %v2716 = vunpack.c.l.b16 %v2646
    %v2717 = vunpack.c.h.b16 %v2646
    %v2718 = vunpack.c.l.b16 %v2647
    %v2719 = vunpack.c.l.b16 %v2648
    %v2720 = vunpack.c.h.b16 %v2648
    %v2721 = vunpack.c.l.b16 %v2649
    %v2722 = vunpack.c.l.b16 %v2650
    %v2723 = vunpack.c.h.b16 %v2650
    %v2724 = vunpack.c.l.b16 %v2651
    %v2725 = vunpack.c.l.b16 %v2652
    %v2726 = vunpack.c.h.b16 %v2652
    %v2727 = vunpack.c.l.b16 %v2653
    %v2728 = vunpack.c.l.b16 %v2654
    %v2729 = vunpack.c.h.b16 %v2654
    %v2730 = vunpack.c.l.b16 %v2655
    %v2731 = vunpack.c.l.b16 %v2656
    %v2732 = vunpack.c.h.b16 %v2656
    %v2733 = vunpack.c.l.b16 %v2657
    %v2734 = vunpack.c.l.b16 %v2658
    %v2735 = vunpack.c.h.b16 %v2658
    %v2736 = vunpack.c.l.b16 %v2659
    %v2737 = vunpack.c.l.b16 %v2660
    %v2738 = vunpack.c.h.b16 %v2660
    %v2739 = vunpack.c.l.b16 %v2661
    %v2740 = vunpack.c.l.b16 %v2662
    %v2741 = vunpack.c.h.b16 %v2662
    %v2742 = vunpack.c.l.b16 %v2663
    %v2743 = vunpack.c.l.b16 %v2664
    %v2744 = vunpack.c.h.b16 %v2664
    %v2745 = vunpack.c.l.b16 %v2665
    %v2746 = vpack.c.b16 %v2701, %v2698
    %v2747 = vpack.c.b16 %v2702, %v2699
    %v2748 = vpack.c.b16 %v2703, %v2700
    %v2749 = vpack.c.b16 %v2707, %v2704
    %v2750 = vpack.c.b16 %v2708, %v2705
    %v2751 = vpack.c.b16 %v2709, %v2706
    %v2752 = vpack.c.b16 %v2713, %v2710
    %v2753 = vpack.c.b16 %v2714, %v2711
    %v2754 = vpack.c.b16 %v2715, %v2712
    %v2755 = vpack.c.b16 %v2719, %v2716
    %v2756 = vpack.c.b16 %v2720, %v2717
    %v2757 = vpack.c.b16 %v2721, %v2718
    %v2758 = vpack.c.b16 %v2725, %v2722
    %v2759 = vpack.c.b16 %v2726, %v2723
    %v2760 = vpack.c.b16 %v2727, %v2724
    %v2761 = vpack.c.b16 %v2731, %v2728
    %v2762 = vpack.c.b16 %v2732, %v2729
    %v2763 = vpack.c.b16 %v2733, %v2730
    %v2764 = vpack.c.b16 %v2737, %v2734
    %v2765 = vpack.c.b16 %v2738, %v2735
    %v2766 = vpack.c.b16 %v2739, %v2736
    %v2767 = vpack.c.b16 %v2743, %v2740
    %v2768 = vpack.c.b16 %v2744, %v2741
    %v2769 = vpack.c.b16 %v2745, %v2742
    %2794 = vmatprep.subr.bf16.mxu0 %v2747
    %2795 = vmatpush1.bf16.msra.mxu0 %v2746
    %2796 = vmatprep.subr.bf16.mxu0 %v2750
    %2797 = vmatpush1.bf16.msra.mxu0 %v2749
    %2798 = vmatprep.subr.bf16.mxu0 %v2753
    %2799 = vmatpush1.bf16.msra.mxu0 %v2752
    %2800 = vmatprep.subr.bf16.mxu0 %v2756
    %2801 = vmatpush1.bf16.msra.mxu0 %v2755
    %2802 = vmatprep.subr.bf16.mxu0 %v2759
    %2803 = vmatpush1.bf16.msra.mxu0 %v2758
    %2804 = vmatprep.subr.bf16.mxu0 %v2762
    %2805 = vmatpush1.bf16.msra.mxu0 %v2761
    %2806 = vmatprep.subr.bf16.mxu0 %v2765
    %2807 = vmatpush1.bf16.msra.mxu0 %v2764
    %2808 = vmatprep.subr.bf16.mxu0 %v2768
    %2809 = vmatpush1.bf16.msra.mxu0 %v2767
    %2810 = vmatprep.subr.bf16.mxu0 0
    %2811 = vmatpush1.bf16.msra.mxu0 0
    %2812 = vmatprep.subr.bf16.mxu0 0
    %2813 = vmatpush1.bf16.msra.mxu0 0
    %2814 = vmatprep.subr.bf16.mxu0 0
    %2815 = vmatpush1.bf16.msra.mxu0 0
    %2816 = vmatprep.subr.bf16.mxu0 0
    %2817 = vmatpush1.bf16.msra.mxu0 0
    %2818 = vmatprep.subr.bf16.mxu0 0
    %2819 = vmatpush1.bf16.msra.mxu0 0
    %2820 = vmatprep.subr.bf16.mxu0 0
    %2821 = vmatpush1.bf16.msra.mxu0 0
    %2822 = vmatprep.subr.bf16.mxu0 0
    %2823 = vmatpush1.bf16.msra.mxu0 0
    %2824 = vmatprep.subr.bf16.mxu0 0
    %2825 = vmatpush1.bf16.msra.mxu0 0
    %2826 = vmatprep.mubr.bf16.mxu0 0
    %2827 = vmatmul.mubr.bf16.gmra.mrb[0].mxu0 %v2127
    %v2828 = vpop.f32.mrb[0].mxu0
    %v2829 = vadd.f32 %v2010, %v2828
    %v2830 = vpop.f32.mrb[0].mxu0
    %v2831 = vadd.f32 %v2014, %v2830
    %v2832 = vpop.f32.mrb[0].mxu0
    %v2833 = vpop.f32.mrb[0].mxu0
    %2834 = vdwg.mxu0
    %2835 = vmatprep.subr.bf16.mxu0 0
    %2836 = vmatpush1.bf16.msra.mxu0 %v2748
    %2837 = vmatprep.subr.bf16.mxu0 0
    %2838 = vmatpush1.bf16.msra.mxu0 %v2751
    %2839 = vmatprep.subr.bf16.mxu0 0
    %2840 = vmatpush1.bf16.msra.mxu0 %v2754
    %2841 = vmatprep.subr.bf16.mxu0 0
    %2842 = vmatpush1.bf16.msra.mxu0 %v2757
    %2843 = vmatprep.subr.bf16.mxu0 0
    %2844 = vmatpush1.bf16.msra.mxu0 %v2760
    %2845 = vmatprep.subr.bf16.mxu0 0
    %2846 = vmatpush1.bf16.msra.mxu0 %v2763
    %2847 = vmatprep.subr.bf16.mxu0 0
    %2848 = vmatpush1.bf16.msra.mxu0 %v2766
    %2849 = vmatprep.subr.bf16.mxu0 0
    %2850 = vmatpush1.bf16.msra.mxu0 %v2769
    %2851 = vmatprep.subr.bf16.mxu0 0
    %2852 = vmatpush1.bf16.msra.mxu0 0
    %2853 = vmatprep.subr.bf16.mxu0 0
    %2854 = vmatpush1.bf16.msra.mxu0 0
    %2855 = vmatprep.subr.bf16.mxu0 0
    %2856 = vmatpush1.bf16.msra.mxu0 0
    %2857 = vmatprep.subr.bf16.mxu0 0
    %2858 = vmatpush1.bf16.msra.mxu0 0
    %2859 = vmatprep.subr.bf16.mxu0 0
    %2860 = vmatpush1.bf16.msra.mxu0 0
    %2861 = vmatprep.subr.bf16.mxu0 0
    %2862 = vmatpush1.bf16.msra.mxu0 0
    %2863 = vmatprep.subr.bf16.mxu0 0
    %2864 = vmatpush1.bf16.msra.mxu0 0
    %2865 = vmatprep.subr.bf16.mxu0 0
    %2866 = vmatpush1.bf16.msra.mxu0 0
    %2867 = vmatprep.mubr.bf16.mxu0 0
    %2868 = vmatmul.mubr.bf16.gmra.mrb[0].mxu0 %v2127
    %v2869 = vpop.f32.mrb[0].mxu0
    %v2870 = vadd.f32 %v2018, %v2869
    %v2871 = vpop.f32.mrb[0].mxu0
    %v2872 = vpop.f32.mrb[0].mxu0
    %v2873 = vpop.f32.mrb[0].mxu0
    %2874 = vdwg.mxu0
    %v2875 = vadd.f32 %v2582, %v2829
    %v2876 = vxor.u32 %v2875, 2147483648
    %v2877 = vmul.f32 %v2876, 1.442695
    %v2878 = vpow.pop %v2877
    %v2879 = vadd.f32 %v2878, 1.0
    %v2880 = vrcp.pop %v2879
    %v2881 = vmul.f32 1.0, %v2880
    %v2882 = vadd.f32 %v2584, %v2831
    %v2883 = vxor.u32 %v2882, 2147483648
    %v2884 = vmul.f32 %v2883, 1.442695
    %v2885 = vpow.pop %v2884
    %v2886 = vadd.f32 %v2885, 1.0
    %v2887 = vrcp.pop %v2886
    %v2888 = vmul.f32 1.0, %v2887
    %v2889 = vmul.f32 %v2881, %v2870
    %v2890 = vadd.f32 %v2623, %v2889
    %v2891 = vtanh.pop %v2890
    %v2892 = vsub.f32 1.0, %v2888
    %v2893 = vmul.f32 %v2892, %v2891
    %v2894 = vmul.f32 %v2888, %v2126
    %v2895 = vadd.f32 %v2893, %v2894
    %v2896 = vpack.c.bf16 %v2895, %v2895
    %2897 = vmatprep.subr.bf16.mxu0 0
    %2898 = vmatpush1.bf16.msra.mxu0 %v1588
    %2899 = vmatprep.subr.bf16.mxu0 0
    %2900 = vmatpush1.bf16.msra.mxu0 %v1589
    %2901 = vmatprep.subr.bf16.mxu0 0
    %2902 = vmatpush1.bf16.msra.mxu0 %v1590
    %2903 = vmatprep.subr.bf16.mxu0 0
    %2904 = vmatpush1.bf16.msra.mxu0 %v1591
    %2905 = vmatprep.subr.bf16.mxu0 0
    %2906 = vmatpush1.bf16.msra.mxu0 %v1592
    %2907 = vmatprep.subr.bf16.mxu0 0
    %2908 = vmatpush1.bf16.msra.mxu0 %v1593
    %2909 = vmatprep.subr.bf16.mxu0 0
    %2910 = vmatpush1.bf16.msra.mxu0 %v1594
    %2911 = vmatprep.subr.bf16.mxu0 0
    %2912 = vmatpush1.bf16.msra.mxu0 %v1595
    %2913 = vmatprep.subr.bf16.mxu0 0
    %2914 = vmatpush1.bf16.msra.mxu0 0
    %2915 = vmatprep.subr.bf16.mxu0 0
    %2916 = vmatpush1.bf16.msra.mxu0 0
    %2917 = vmatprep.subr.bf16.mxu0 0
    %2918 = vmatpush1.bf16.msra.mxu0 0
    %2919 = vmatprep.subr.bf16.mxu0 0
    %2920 = vmatpush1.bf16.msra.mxu0 0
    %2921 = vmatprep.subr.bf16.mxu0 0
    %2922 = vmatpush1.bf16.msra.mxu0 0
    %2923 = vmatprep.subr.bf16.mxu0 0
    %2924 = vmatpush1.bf16.msra.mxu0 0
    %2925 = vmatprep.subr.bf16.mxu0 0
    %2926 = vmatpush1.bf16.msra.mxu0 0
    %2927 = vmatprep.subr.bf16.mxu0 0
    %2928 = vmatpush1.bf16.msra.mxu0 0
    %2929 = vmatprep.mubr.bf16.mxu0 0
    %2930 = vmatmul.mubr.bf16.gmra.mrb[0].mxu0 %v2896
    %v2931 = vpop.f32.mrb[0].mxu0
    %v2932 = vadd.f32 0.0, %v2931
    %v2933 = vpop.f32.mrb[0].mxu0
    %v2934 = vpop.f32.mrb[0].mxu0
    %v2935 = vpop.f32.mrb[0].mxu0
    %2936 = vdwg.mxu0
    %v2937 = vsel %vm2168, %v2932, -inf
    %2938 = vmax.xlane.f32.xlu0 %v2937
    %v2939 = vpop.xlane.xlu0 %2938
    %v2940 = vsub.f32 %v2932, %v2939
    %v2941 = vmul.f32 %v2940, 1.442695
    %v2942 = vpow.pop %v2941
    %v2943 = vsel %vm2168, %v2942, 0.0
    %2944 = vadd.xlane.f32.xlu0 %v2943
    %v2945 = vpop.xlane.xlu0 %2944
    %v2946 = vrcp.pop %v2945
    %v2947 = vmul.f32 %v2942, %v2946
    %v2948 = vpack.c.bf16 %v2947, %v2947
    %v2950 = vsel %vm2181, %v2948, 0
    %2952 = vmatprep.subr.bf16.mxu0 0
    %2953 = vmatpush1.bf16.msra.mxu0 %v2186
    %2954 = vmatprep.subr.bf16.mxu0 0
    %2955 = vmatpush1.bf16.msra.mxu0 0
    %2956 = vmatprep.subr.bf16.mxu0 0
    %2957 = vmatpush1.bf16.msra.mxu0 0
    %2958 = vmatprep.subr.bf16.mxu0 0
    %2959 = vmatpush1.bf16.msra.mxu0 0
    %2960 = vmatprep.subr.bf16.mxu0 0
    %2961 = vmatpush1.bf16.msra.mxu0 0
    %2962 = vmatprep.subr.bf16.mxu0 0
    %2963 = vmatpush1.bf16.msra.mxu0 0
    %2964 = vmatprep.subr.bf16.mxu0 0
    %2965 = vmatpush1.bf16.msra.mxu0 0
    %2966 = vmatprep.subr.bf16.mxu0 0
    %2967 = vmatpush1.bf16.msra.mxu0 0
    %2968 = vmatprep.subr.bf16.mxu0 0
    %2969 = vmatpush1.bf16.msra.mxu0 0
    %2970 = vmatprep.subr.bf16.mxu0 0
    %2971 = vmatpush1.bf16.msra.mxu0 0
    %2972 = vmatprep.subr.bf16.mxu0 0
    %2973 = vmatpush1.bf16.msra.mxu0 0
    %2974 = vmatprep.subr.bf16.mxu0 0
    %2975 = vmatpush1.bf16.msra.mxu0 0
    %2976 = vmatprep.subr.bf16.mxu0 0
    %2977 = vmatpush1.bf16.msra.mxu0 0
    %2978 = vmatprep.subr.bf16.mxu0 0
    %2979 = vmatpush1.bf16.msra.mxu0 0
    %2980 = vmatprep.subr.bf16.mxu0 0
    %2981 = vmatpush1.bf16.msra.mxu0 0
    %2982 = vmatprep.subr.bf16.mxu0 0
    %2983 = vmatpush1.bf16.msra.mxu0 0
    %2984 = vmatprep.mubr.bf16.mxu0 0
    %2985 = vmatmul.mubr.bf16.gmra.mrb[0].mxu0 %v2950
    %v2986 = vpop.f32.mrb[0].mxu0
    %v2987 = vadd.f32 0.0, %v2986
    %v2988 = vpop.f32.mrb[0].mxu0
    %v2989 = vpop.f32.mrb[0].mxu0
    %v2990 = vpop.f32.mrb[0].mxu0
    %2991 = vdwg.mxu0
    %v2992 = vpack.c.bf16 %v2987, %v2987
    %v2993 = vld [vmem:[#allocation10] sm:$0xf]
    %v2994 = vld [vmem:[#allocation10 + $0x4] sm:$0xf]
    %v2995 = vld [vmem:[#allocation10 + $0x8] sm:$0xf]
    %v2996 = vld [vmem:[#allocation10 + $0xc] sm:$0xf]
    %v2997 = vld [vmem:[#allocation10 + $0x10] sm:$0xf]
    %v2998 = vld [vmem:[#allocation10 + $0x14] sm:$0xf]
    %v2999 = vld [vmem:[#allocation10 + $0x18] sm:$0xf]
    %v3000 = vld [vmem:[#allocation10 + $0x1c] sm:$0xf]
    %v3001 = vld [vmem:[#allocation10 + $0x20] sm:$0xf]
    %v3002 = vld [vmem:[#allocation10 + $0x24] sm:$0xf]
    %v3003 = vld [vmem:[#allocation10 + $0x28] sm:$0xf]
    %v3004 = vld [vmem:[#allocation10 + $0x2c] sm:$0xf]
    %v3005 = vld [vmem:[#allocation10 + $0x30] sm:$0xf]
    %v3006 = vld [vmem:[#allocation10 + $0x34] sm:$0xf]
    %v3007 = vld [vmem:[#allocation10 + $0x38] sm:$0xf]
    %v3008 = vld [vmem:[#allocation10 + $0x3c] sm:$0xf]
    %v3009 = vld [vmem:[#allocation10 + $0x40] sm:$0xf]
    %v3010 = vld [vmem:[#allocation10 + $0x44] sm:$0xf]
    %v3011 = vld [vmem:[#allocation10 + $0x48] sm:$0xf]
    %v3012 = vld [vmem:[#allocation10 + $0x4c] sm:$0xf]
    %v3013 = vld [vmem:[#allocation10 + $0x50] sm:$0xf]
    %v3014 = vld [vmem:[#allocation10 + $0x54] sm:$0xf]
    %v3015 = vld [vmem:[#allocation10 + $0x58] sm:$0xf]
    %v3016 = vld [vmem:[#allocation10 + $0x5c] sm:$0xf]
    %v3017 = vld [vmem:[#allocation10 + $0x60] sm:$0xf]
    %v3018 = vld [vmem:[#allocation10 + $0x64] sm:$0xf]
    %v3019 = vld [vmem:[#allocation10 + $0x68] sm:$0xf]
    %v3020 = vld [vmem:[#allocation10 + $0x6c] sm:$0xf]
    %v3021 = vld [vmem:[#allocation10 + $0x70] sm:$0xf]
    %v3022 = vld [vmem:[#allocation10 + $0x74] sm:$0xf]
    %v3023 = vld [vmem:[#allocation10 + $0x78] sm:$0xf]
    %v3024 = vld [vmem:[#allocation10 + $0x7c] sm:$0xf]
    %v3057 = vunpack.c.l.b16 %v2993
    %v3058 = vunpack.c.l.b16 %v2994
    %v3059 = vunpack.c.l.b16 %v2995
    %v3060 = vunpack.c.l.b16 %v2996
    %v3061 = vunpack.c.l.b16 %v2997
    %v3062 = vunpack.c.l.b16 %v2998
    %v3063 = vunpack.c.l.b16 %v2999
    %v3064 = vunpack.c.l.b16 %v3000
    %v3065 = vunpack.c.l.b16 %v3001
    %v3066 = vunpack.c.l.b16 %v3002
    %v3067 = vunpack.c.l.b16 %v3003
    %v3068 = vunpack.c.l.b16 %v3004
    %v3069 = vunpack.c.l.b16 %v3005
    %v3070 = vunpack.c.l.b16 %v3006
    %v3071 = vunpack.c.l.b16 %v3007
    %v3072 = vunpack.c.l.b16 %v3008
    %v3073 = vunpack.c.l.b16 %v3009
    %v3074 = vunpack.c.l.b16 %v3010
    %v3075 = vunpack.c.l.b16 %v3011
    %v3076 = vunpack.c.l.b16 %v3012
    %v3077 = vunpack.c.l.b16 %v3013
    %v3078 = vunpack.c.l.b16 %v3014
    %v3079 = vunpack.c.l.b16 %v3015
    %v3080 = vunpack.c.l.b16 %v3016
    %v3081 = vunpack.c.l.b16 %v3017
    %v3082 = vunpack.c.l.b16 %v3018
    %v3083 = vunpack.c.l.b16 %v3019
    %v3084 = vunpack.c.l.b16 %v3020
    %v3085 = vunpack.c.l.b16 %v3021
    %v3086 = vunpack.c.l.b16 %v3022
    %v3087 = vunpack.c.l.b16 %v3023
    %v3088 = vunpack.c.l.b16 %v3024
    %v3089 = vpack.c.b16 %v3058, %v3057
    %v3090 = vpack.c.b16 %v3060, %v3059
    %v3091 = vpack.c.b16 %v3062, %v3061
    %v3092 = vpack.c.b16 %v3064, %v3063
    %v3093 = vpack.c.b16 %v3066, %v3065
    %v3094 = vpack.c.b16 %v3068, %v3067
    %v3095 = vpack.c.b16 %v3070, %v3069
    %v3096 = vpack.c.b16 %v3072, %v3071
    %v3097 = vpack.c.b16 %v3074, %v3073
    %v3098 = vpack.c.b16 %v3076, %v3075
    %v3099 = vpack.c.b16 %v3078, %v3077
    %v3100 = vpack.c.b16 %v3080, %v3079
    %v3101 = vpack.c.b16 %v3082, %v3081
    %v3102 = vpack.c.b16 %v3084, %v3083
    %v3103 = vpack.c.b16 %v3086, %v3085
    %v3104 = vpack.c.b16 %v3088, %v3087
    %3121 = vmatprep.subr.bf16.mxu0 0
    %3122 = vmatpush1.bf16.msra.mxu0 %v3089
    %3123 = vmatprep.subr.bf16.mxu0 0
    %3124 = vmatpush1.bf16.msra.mxu0 %v3090
    %3125 = vmatprep.subr.bf16.mxu0 0
    %3126 = vmatpush1.bf16.msra.mxu0 %v3091
    %3127 = vmatprep.subr.bf16.mxu0 0
    %3128 = vmatpush1.bf16.msra.mxu0 %v3092
    %3129 = vmatprep.subr.bf16.mxu0 0
    %3130 = vmatpush1.bf16.msra.mxu0 %v3093
    %3131 = vmatprep.subr.bf16.mxu0 0
    %3132 = vmatpush1.bf16.msra.mxu0 %v3094
    %3133 = vmatprep.subr.bf16.mxu0 0
    %3134 = vmatpush1.bf16.msra.mxu0 %v3095
    %3135 = vmatprep.subr.bf16.mxu0 0
    %3136 = vmatpush1.bf16.msra.mxu0 %v3096
    %3137 = vmatprep.subr.bf16.mxu0 0
    %3138 = vmatpush1.bf16.msra.mxu0 %v3097
    %3139 = vmatprep.subr.bf16.mxu0 0
    %3140 = vmatpush1.bf16.msra.mxu0 %v3098
    %3141 = vmatprep.subr.bf16.mxu0 0
    %3142 = vmatpush1.bf16.msra.mxu0 %v3099
    %3143 = vmatprep.subr.bf16.mxu0 0
    %3144 = vmatpush1.bf16.msra.mxu0 %v3100
    %3145 = vmatprep.subr.bf16.mxu0 0
    %3146 = vmatpush1.bf16.msra.mxu0 %v3101
    %3147 = vmatprep.subr.bf16.mxu0 0
    %3148 = vmatpush1.bf16.msra.mxu0 %v3102
    %3149 = vmatprep.subr.bf16.mxu0 0
    %3150 = vmatpush1.bf16.msra.mxu0 %v3103
    %3151 = vmatprep.subr.bf16.mxu0 0
    %3152 = vmatpush1.bf16.msra.mxu0 %v3104
    %3153 = vmatprep.mubr.bf16.mxu0 %v2992
    %3154 = vmatmul.mubr.bf16.gmra.mrb[0].mxu0 %v2896
    %v3155 = vpop.f32.mrb[0].mxu0
    %v3156 = vadd.f32 %v2360, %v3155
    %v3157 = vpop.f32.mrb[0].mxu0
    %v3158 = vpop.f32.mrb[0].mxu0
    %v3159 = vpop.f32.mrb[0].mxu0
    %3160 = vdwg.mxu0
    %v3161 = vtanh.pop %v3156
    %v3162 = vpack.c.bf16 %v3161, %v3161
    %v3163 = vld [vmem:[#allocation10 + $0x80] sm:$0xf]
    %v3164 = vld [vmem:[#allocation10 + $0x84] sm:$0xf]
    %v3165 = vld [vmem:[#allocation10 + $0x88] sm:$0xf]
    %v3166 = vld [vmem:[#allocation10 + $0x8c] sm:$0xf]
    %v3167 = vld [vmem:[#allocation10 + $0x90] sm:$0xf]
    %v3168 = vld [vmem:[#allocation10 + $0x94] sm:$0xf]
    %v3169 = vld [vmem:[#allocation10 + $0x98] sm:$0xf]
    %v3170 = vld [vmem:[#allocation10 + $0x9c] sm:$0xf]
    %v3171 = vld [vmem:[#allocation10 + $0xa0] sm:$0xf]
    %v3172 = vld [vmem:[#allocation10 + $0xa4] sm:$0xf]
    %v3173 = vld [vmem:[#allocation10 + $0xa8] sm:$0xf]
    %v3174 = vld [vmem:[#allocation10 + $0xac] sm:$0xf]
    %v3175 = vld [vmem:[#allocation10 + $0xb0] sm:$0xf]
    %v3176 = vld [vmem:[#allocation10 + $0xb4] sm:$0xf]
    %v3177 = vld [vmem:[#allocation10 + $0xb8] sm:$0xf]
    %v3178 = vld [vmem:[#allocation10 + $0xbc] sm:$0xf]
    %v3195 = vunpack.c.l.b16 %v3163
    %v3196 = vunpack.c.l.b16 %v3164
    %v3197 = vunpack.c.l.b16 %v3165
    %v3198 = vunpack.c.l.b16 %v3166
    %v3199 = vunpack.c.l.b16 %v3167
    %v3200 = vunpack.c.l.b16 %v3168
    %v3201 = vunpack.c.l.b16 %v3169
    %v3202 = vunpack.c.l.b16 %v3170
    %v3203 = vunpack.c.l.b16 %v3171
    %v3204 = vunpack.c.l.b16 %v3172
    %v3205 = vunpack.c.l.b16 %v3173
    %v3206 = vunpack.c.l.b16 %v3174
    %v3207 = vunpack.c.l.b16 %v3175
    %v3208 = vunpack.c.l.b16 %v3176
    %v3209 = vunpack.c.l.b16 %v3177
    %v3210 = vunpack.c.l.b16 %v3178
    %v3211 = vpack.c.b16 %v3196, %v3195
    %v3212 = vpack.c.b16 %v3198, %v3197
    %v3213 = vpack.c.b16 %v3200, %v3199
    %v3214 = vpack.c.b16 %v3202, %v3201
    %v3215 = vpack.c.b16 %v3204, %v3203
    %v3216 = vpack.c.b16 %v3206, %v3205
    %v3217 = vpack.c.b16 %v3208, %v3207
    %v3218 = vpack.c.b16 %v3210, %v3209
    %3227 = vmatprep.subr.bf16.mxu0 0
    %3228 = vmatpush1.bf16.msra.mxu0 %v3211
    %3229 = vmatprep.subr.bf16.mxu0 0
    %3230 = vmatpush1.bf16.msra.mxu0 %v3212
    %3231 = vmatprep.subr.bf16.mxu0 0
    %3232 = vmatpush1.bf16.msra.mxu0 %v3213
    %3233 = vmatprep.subr.bf16.mxu0 0
    %3234 = vmatpush1.bf16.msra.mxu0 %v3214
    %3235 = vmatprep.subr.bf16.mxu0 0
    %3236 = vmatpush1.bf16.msra.mxu0 %v3215
    %3237 = vmatprep.subr.bf16.mxu0 0
    %3238 = vmatpush1.bf16.msra.mxu0 %v3216
    %3239 = vmatprep.subr.bf16.mxu0 0
    %3240 = vmatpush1.bf16.msra.mxu0 %v3217
    %3241 = vmatprep.subr.bf16.mxu0 0
    %3242 = vmatpush1.bf16.msra.mxu0 %v3218
    %3243 = vmatprep.subr.bf16.mxu0 0
    %3244 = vmatpush1.bf16.msra.mxu0 0
    %3245 = vmatprep.subr.bf16.mxu0 0
    %3246 = vmatpush1.bf16.msra.mxu0 0
    %3247 = vmatprep.subr.bf16.mxu0 0
    %3248 = vmatpush1.bf16.msra.mxu0 0
    %3249 = vmatprep.subr.bf16.mxu0 0
    %3250 = vmatpush1.bf16.msra.mxu0 0
    %3251 = vmatprep.subr.bf16.mxu0 0
    %3252 = vmatpush1.bf16.msra.mxu0 0
    %3253 = vmatprep.subr.bf16.mxu0 0
    %3254 = vmatpush1.bf16.msra.mxu0 0
    %3255 = vmatprep.subr.bf16.mxu0 0
    %3256 = vmatpush1.bf16.msra.mxu0 0
    %3257 = vmatprep.subr.bf16.mxu0 0
    %3258 = vmatpush1.bf16.msra.mxu0 0
    %3259 = vmatprep.mubr.bf16.mxu0 0
    %3260 = vmatmul.mubr.bf16.gmra.mrb[0].mxu0 %v3162
    %v3261 = vpop.f32.mrb[0].mxu0
    %v3262 = vadd.f32 %v2471, %v3261
    %v3263 = vpop.f32.mrb[0].mxu0
    %v3264 = vpop.f32.mrb[0].mxu0
    %v3265 = vpop.f32.mrb[0].mxu0
    %3266 = vdwg.mxu0
    %v3267 = vsel %vm139, %v3262, -inf
    %3268 = vmax.xlane.f32.xlu0 %v3267
    %v3269 = vpop.xlane.xlu0 %3268
    %v3270 = vsub.f32 %v3262, %v3269
    %v3271 = vmul.f32 %v3270, 1.442695
    %v3272 = vpow.pop %v3271
    %v3273 = vsel %vm139, %v3272, 0.0
    %3274 = vadd.xlane.f32.xlu0 %v3273
    %v3275 = vpop.xlane.xlu0 %3274
    %v3276 = vrcp.pop %v3275
    %v3277 = vmul.f32 1.0, %v3276
    %vm3278 = vcmp.eq.f32.partialorder %v3262, %v3269
    %v3279 = vsel %vm3278, %v98, 128
    %v3280 = vsel %vm139, %v3279, 2147483647
    %v3281 = vand.u32 %v3280, 65535
    %v3282 = vshra.s32 %v3280, 16
    %v3283 = vcvt.s32.f32 %v3281
    %v3284 = vcvt.s32.f32 %v3282
    %3285 = vmin.xlane.f32.xlu0 %v3284
    %v3286 = vpop.xlane.xlu0 %3285
    %vm3287 = vcmp.eq.f32.partialorder %v3284, %v3286
    %v3288 = vsel %vm3287, %v3283, inf
    %3289 = vmin.xlane.f32.xlu0 %v3288
    %v3290 = vpop.xlane.xlu0 %3289
    %v3291 = vcvt.f32.s32 %v3290
    %v3292 = vcvt.f32.s32 %v3286
    %v3293 = vshll.u32 %v3292, 16
    %v3294 = vadd.s32 %v3293, %v3291
    %vm3295 = vcmp.lt.s32.totalorder %v3294, 127
    %v3296 = vsel %vm3295, %v3294, 127
    %vm3297 = vcmp.eq.s32.totalorder %v98, %v3296
    %v3298 = vsel %vm3297, 1, 0
    %v3299 = vcvt.s32.f32 %v3298
    %v3300 = vpack.c.bf16 %v3299, %v3299
    %v3301 = vld [vmem:[#allocation8] sm:$0xff]
    %v3302 = vld [vmem:[#allocation8 + $0x8] sm:$0xf]
    %v3303 = vld [vmem:[#allocation8 + $0xc] sm:$0xff]
    %v3304 = vld [vmem:[#allocation8 + $0x14] sm:$0xf]
    %v3305 = vld [vmem:[#allocation8 + $0x18] sm:$0xff]
    %v3306 = vld [vmem:[#allocation8 + $0x20] sm:$0xf]
    %v3307 = vld [vmem:[#allocation8 + $0x24] sm:$0xff]
    %v3308 = vld [vmem:[#allocation8 + $0x2c] sm:$0xf]
    %v3309 = vld [vmem:[#allocation8 + $0x30] sm:$0xff]
    %v3310 = vld [vmem:[#allocation8 + $0x38] sm:$0xf]
    %v3311 = vld [vmem:[#allocation8 + $0x3c] sm:$0xff]
    %v3312 = vld [vmem:[#allocation8 + $0x44] sm:$0xf]
    %v3313 = vld [vmem:[#allocation8 + $0x48] sm:$0xff]
    %v3314 = vld [vmem:[#allocation8 + $0x50] sm:$0xf]
    %v3315 = vld [vmem:[#allocation8 + $0x54] sm:$0xff]
    %v3316 = vld [vmem:[#allocation8 + $0x5c] sm:$0xf]
    %v3317 = vld [vmem:[#allocation8 + $0x60] sm:$0xff]
    %v3318 = vld [vmem:[#allocation8 + $0x68] sm:$0xf]
    %v3319 = vld [vmem:[#allocation8 + $0x6c] sm:$0xff]
    %v3320 = vld [vmem:[#allocation8 + $0x74] sm:$0xf]
    %v3321 = vld [vmem:[#allocation8 + $0x78] sm:$0xff]
    %v3322 = vld [vmem:[#allocation8 + $0x80] sm:$0xf]
    %v3323 = vld [vmem:[#allocation8 + $0x84] sm:$0xff]
    %v3324 = vld [vmem:[#allocation8 + $0x8c] sm:$0xf]
    %v3325 = vld [vmem:[#allocation8 + $0x90] sm:$0xff]
    %v3326 = vld [vmem:[#allocation8 + $0x98] sm:$0xf]
    %v3327 = vld [vmem:[#allocation8 + $0x9c] sm:$0xff]
    %v3328 = vld [vmem:[#allocation8 + $0xa4] sm:$0xf]
    %v3329 = vld [vmem:[#allocation8 + $0xa8] sm:$0xff]
    %v3330 = vld [vmem:[#allocation8 + $0xb0] sm:$0xf]
    %v3331 = vld [vmem:[#allocation8 + $0xb4] sm:$0xff]
    %v3332 = vld [vmem:[#allocation8 + $0xbc] sm:$0xf]
    %v3365 = vunpack.c.l.b16 %v3301
    %v3366 = vunpack.c.h.b16 %v3301
    %v3367 = vunpack.c.l.b16 %v3302
    %v3368 = vunpack.c.l.b16 %v3303
    %v3369 = vunpack.c.h.b16 %v3303
    %v3370 = vunpack.c.l.b16 %v3304
    %v3371 = vunpack.c.l.b16 %v3305
    %v3372 = vunpack.c.h.b16 %v3305
    %v3373 = vunpack.c.l.b16 %v3306
    %v3374 = vunpack.c.l.b16 %v3307
    %v3375 = vunpack.c.h.b16 %v3307
    %v3376 = vunpack.c.l.b16 %v3308
    %v3377 = vunpack.c.l.b16 %v3309
    %v3378 = vunpack.c.h.b16 %v3309
    %v3379 = vunpack.c.l.b16 %v3310
    %v3380 = vunpack.c.l.b16 %v3311
    %v3381 = vunpack.c.h.b16 %v3311
    %v3382 = vunpack.c.l.b16 %v3312
    %v3383 = vunpack.c.l.b16 %v3313
    %v3384 = vunpack.c.h.b16 %v3313
    %v3385 = vunpack.c.l.b16 %v3314
    %v3386 = vunpack.c.l.b16 %v3315
    %v3387 = vunpack.c.h.b16 %v3315
    %v3388 = vunpack.c.l.b16 %v3316
    %v3389 = vunpack.c.l.b16 %v3317
    %v3390 = vunpack.c.h.b16 %v3317
    %v3391 = vunpack.c.l.b16 %v3318
    %v3392 = vunpack.c.l.b16 %v3319
    %v3393 = vunpack.c.h.b16 %v3319
    %v3394 = vunpack.c.l.b16 %v3320
    %v3395 = vunpack.c.l.b16 %v3321
    %v3396 = vunpack.c.h.b16 %v3321
    %v3397 = vunpack.c.l.b16 %v3322
    %v3398 = vunpack.c.l.b16 %v3323
    %v3399 = vunpack.c.h.b16 %v3323
    %v3400 = vunpack.c.l.b16 %v3324
    %v3401 = vunpack.c.l.b16 %v3325
    %v3402 = vunpack.c.h.b16 %v3325
    %v3403 = vunpack.c.l.b16 %v3326
    %v3404 = vunpack.c.l.b16 %v3327
    %v3405 = vunpack.c.h.b16 %v3327
    %v3406 = vunpack.c.l.b16 %v3328
    %v3407 = vunpack.c.l.b16 %v3329
    %v3408 = vunpack.c.h.b16 %v3329
    %v3409 = vunpack.c.l.b16 %v3330
    %v3410 = vunpack.c.l.b16 %v3331
    %v3411 = vunpack.c.h.b16 %v3331
    %v3412 = vunpack.c.l.b16 %v3332
    %v3413 = vpack.c.b16 %v3368, %v3365
    %v3414 = vpack.c.b16 %v3369, %v3366
    %v3415 = vpack.c.b16 %v3370, %v3367
    %v3416 = vpack.c.b16 %v3374, %v3371
    %v3417 = vpack.c.b16 %v3375, %v3372
    %v3418 = vpack.c.b16 %v3376, %v3373
    %v3419 = vpack.c.b16 %v3380, %v3377
    %v3420 = vpack.c.b16 %v3381, %v3378
    %v3421 = vpack.c.b16 %v3382, %v3379
    %v3422 = vpack.c.b16 %v3386, %v3383
    %v3423 = vpack.c.b16 %v3387, %v3384
    %v3424 = vpack.c.b16 %v3388, %v3385
    %v3425 = vpack.c.b16 %v3392, %v3389
    %v3426 = vpack.c.b16 %v3393, %v3390
    %v3427 = vpack.c.b16 %v3394, %v3391
    %v3428 = vpack.c.b16 %v3398, %v3395
    %v3429 = vpack.c.b16 %v3399, %v3396
    %v3430 = vpack.c.b16 %v3400, %v3397
    %v3431 = vpack.c.b16 %v3404, %v3401
    %v3432 = vpack.c.b16 %v3405, %v3402
    %v3433 = vpack.c.b16 %v3406, %v3403
    %v3434 = vpack.c.b16 %v3410, %v3407
    %v3435 = vpack.c.b16 %v3411, %v3408
    %v3436 = vpack.c.b16 %v3412, %v3409
    %3461 = vmatprep.subr.bf16.mxu0 %v3414
    %3462 = vmatpush1.bf16.msra.mxu0 %v3413
    %3463 = vmatprep.subr.bf16.mxu0 %v3417
    %3464 = vmatpush1.bf16.msra.mxu0 %v3416
    %3465 = vmatprep.subr.bf16.mxu0 %v3420
    %3466 = vmatpush1.bf16.msra.mxu0 %v3419
    %3467 = vmatprep.subr.bf16.mxu0 %v3423
    %3468 = vmatpush1.bf16.msra.mxu0 %v3422
    %3469 = vmatprep.subr.bf16.mxu0 %v3426
    %3470 = vmatpush1.bf16.msra.mxu0 %v3425
    %3471 = vmatprep.subr.bf16.mxu0 %v3429
    %3472 = vmatpush1.bf16.msra.mxu0 %v3428
    %3473 = vmatprep.subr.bf16.mxu0 %v3432
    %3474 = vmatpush1.bf16.msra.mxu0 %v3431
    %3475 = vmatprep.subr.bf16.mxu0 %v3435
    %3476 = vmatpush1.bf16.msra.mxu0 %v3434
    %3477 = vmatprep.subr.bf16.mxu0 0
    %3478 = vmatpush1.bf16.msra.mxu0 0
    %3479 = vmatprep.subr.bf16.mxu0 0
    %3480 = vmatpush1.bf16.msra.mxu0 0
    %3481 = vmatprep.subr.bf16.mxu0 0
    %3482 = vmatpush1.bf16.msra.mxu0 0
    %3483 = vmatprep.subr.bf16.mxu0 0
    %3484 = vmatpush1.bf16.msra.mxu0 0
    %3485 = vmatprep.subr.bf16.mxu0 0
    %3486 = vmatpush1.bf16.msra.mxu0 0
    %3487 = vmatprep.subr.bf16.mxu0 0
    %3488 = vmatpush1.bf16.msra.mxu0 0
    %3489 = vmatprep.subr.bf16.mxu0 0
    %3490 = vmatpush1.bf16.msra.mxu0 0
    %3491 = vmatprep.subr.bf16.mxu0 0
    %3492 = vmatpush1.bf16.msra.mxu0 0
    %3493 = vmatprep.mubr.bf16.mxu0 0
    %3494 = vmatmul.mubr.bf16.gmra.mrb[0].mxu0 %v3300
    %v3495 = vpop.f32.mrb[0].mxu0
    %v3496 = vadd.f32 0.0, %v3495
    %v3497 = vpop.f32.mrb[0].mxu0
    %v3498 = vadd.f32 0.0, %v3497
    %v3499 = vpop.f32.mrb[0].mxu0
    %v3500 = vpop.f32.mrb[0].mxu0
    %3501 = vdwg.mxu0
    %3502 = vmatprep.subr.bf16.mxu0 0
    %3503 = vmatpush1.bf16.msra.mxu0 %v3415
    %3504 = vmatprep.subr.bf16.mxu0 0
    %3505 = vmatpush1.bf16.msra.mxu0 %v3418
    %3506 = vmatprep.subr.bf16.mxu0 0
    %3507 = vmatpush1.bf16.msra.mxu0 %v3421
    %3508 = vmatprep.subr.bf16.mxu0 0
    %3509 = vmatpush1.bf16.msra.mxu0 %v3424
    %3510 = vmatprep.subr.bf16.mxu0 0
    %3511 = vmatpush1.bf16.msra.mxu0 %v3427
    %3512 = vmatprep.subr.bf16.mxu0 0
    %3513 = vmatpush1.bf16.msra.mxu0 %v3430
    %3514 = vmatprep.subr.bf16.mxu0 0
    %3515 = vmatpush1.bf16.msra.mxu0 %v3433
    %3516 = vmatprep.subr.bf16.mxu0 0
    %3517 = vmatpush1.bf16.msra.mxu0 %v3436
    %3518 = vmatprep.subr.bf16.mxu0 0
    %3519 = vmatpush1.bf16.msra.mxu0 0
    %3520 = vmatprep.subr.bf16.mxu0 0
    %3521 = vmatpush1.bf16.msra.mxu0 0
    %3522 = vmatprep.subr.bf16.mxu0 0
    %3523 = vmatpush1.bf16.msra.mxu0 0
    %3524 = vmatprep.subr.bf16.mxu0 0
    %3525 = vmatpush1.bf16.msra.mxu0 0
    %3526 = vmatprep.subr.bf16.mxu0 0
    %3527 = vmatpush1.bf16.msra.mxu0 0
    %3528 = vmatprep.subr.bf16.mxu0 0
    %3529 = vmatpush1.bf16.msra.mxu0 0
    %3530 = vmatprep.subr.bf16.mxu0 0
    %3531 = vmatpush1.bf16.msra.mxu0 0
    %3532 = vmatprep.subr.bf16.mxu0 0
    %3533 = vmatpush1.bf16.msra.mxu0 0
    %3534 = vmatprep.mubr.bf16.mxu0 0
    %3535 = vmatmul.mubr.bf16.gmra.mrb[0].mxu0 %v3300
    %v3536 = vpop.f32.mrb[0].mxu0
    %v3537 = vadd.f32 0.0, %v3536
    %v3538 = vpop.f32.mrb[0].mxu0
    %v3539 = vpop.f32.mrb[0].mxu0
    %v3540 = vpop.f32.mrb[0].mxu0
    %3541 = vdwg.mxu0
    %s3542 = vtos %v3296
    %s3543 = scalar_lea.smem [#allocation13], 1
    %3544 = sst [smem:[%s3543]] %s3542
    %s3545 = vtos %v3277
    %s3546 = scalar_lea.smem [#allocation14], 1
    %3547 = sst [smem:[%s3546]] %s3545
    %v3548 = vld [vmem:[#allocation8 + $0xc0] sm:$0xff]
    %v3549 = vld [vmem:[#allocation8 + $0xc8] sm:$0xf]
    %v3550 = vld [vmem:[#allocation8 + $0xcc] sm:$0xff]
    %v3551 = vld [vmem:[#allocation8 + $0xd4] sm:$0xf]
    %v3552 = vld [vmem:[#allocation8 + $0xd8] sm:$0xff]
    %v3553 = vld [vmem:[#allocation8 + $0xe0] sm:$0xf]
    %v3554 = vld [vmem:[#allocation8 + $0xe4] sm:$0xff]
    %v3555 = vld [vmem:[#allocation8 + $0xec] sm:$0xf]
    %v3556 = vld [vmem:[#allocation8 + $0xf0] sm:$0xff]
    %v3557 = vld [vmem:[#allocation8 + $0xf8] sm:$0xf]
    %v3558 = vld [vmem:[#allocation8 + $0xfc] sm:$0xff]
    %v3559 = vld [vmem:[#allocation8 + $0x104] sm:$0xf]
    %v3560 = vld [vmem:[#allocation8 + $0x108] sm:$0xff]
    %v3561 = vld [vmem:[#allocation8 + $0x110] sm:$0xf]
    %v3562 = vld [vmem:[#allocation8 + $0x114] sm:$0xff]
    %v3563 = vld [vmem:[#allocation8 + $0x11c] sm:$0xf]
    %v3564 = vld [vmem:[#allocation8 + $0x120] sm:$0xff]
    %v3565 = vld [vmem:[#allocation8 + $0x128] sm:$0xf]
    %v3566 = vld [vmem:[#allocation8 + $0x12c] sm:$0xff]
    %v3567 = vld [vmem:[#allocation8 + $0x134] sm:$0xf]
    %v3568 = vld [vmem:[#allocation8 + $0x138] sm:$0xff]
    %v3569 = vld [vmem:[#allocation8 + $0x140] sm:$0xf]
    %v3570 = vld [vmem:[#allocation8 + $0x144] sm:$0xff]
    %v3571 = vld [vmem:[#allocation8 + $0x14c] sm:$0xf]
    %v3572 = vld [vmem:[#allocation8 + $0x150] sm:$0xff]
    %v3573 = vld [vmem:[#allocation8 + $0x158] sm:$0xf]
    %v3574 = vld [vmem:[#allocation8 + $0x15c] sm:$0xff]
    %v3575 = vld [vmem:[#allocation8 + $0x164] sm:$0xf]
    %v3576 = vld [vmem:[#allocation8 + $0x168] sm:$0xff]
    %v3577 = vld [vmem:[#allocation8 + $0x170] sm:$0xf]
    %v3578 = vld [vmem:[#allocation8 + $0x174] sm:$0xff]
    %v3579 = vld [vmem:[#allocation8 + $0x17c] sm:$0xf]
    %v3612 = vunpack.c.l.b16 %v3548
    %v3613 = vunpack.c.h.b16 %v3548
    %v3614 = vunpack.c.l.b16 %v3549
    %v3615 = vunpack.c.l.b16 %v3550
    %v3616 = vunpack.c.h.b16 %v3550
    %v3617 = vunpack.c.l.b16 %v3551
    %v3618 = vunpack.c.l.b16 %v3552
    %v3619 = vunpack.c.h.b16 %v3552
    %v3620 = vunpack.c.l.b16 %v3553
    %v3621 = vunpack.c.l.b16 %v3554
    %v3622 = vunpack.c.h.b16 %v3554
    %v3623 = vunpack.c.l.b16 %v3555
    %v3624 = vunpack.c.l.b16 %v3556
    %v3625 = vunpack.c.h.b16 %v3556
    %v3626 = vunpack.c.l.b16 %v3557
    %v3627 = vunpack.c.l.b16 %v3558
    %v3628 = vunpack.c.h.b16 %v3558
    %v3629 = vunpack.c.l.b16 %v3559
    %v3630 = vunpack.c.l.b16 %v3560
    %v3631 = vunpack.c.h.b16 %v3560
    %v3632 = vunpack.c.l.b16 %v3561
    %v3633 = vunpack.c.l.b16 %v3562
    %v3634 = vunpack.c.h.b16 %v3562
    %v3635 = vunpack.c.l.b16 %v3563
    %v3636 = vunpack.c.l.b16 %v3564
    %v3637 = vunpack.c.h.b16 %v3564
    %v3638 = vunpack.c.l.b16 %v3565
    %v3639 = vunpack.c.l.b16 %v3566
    %v3640 = vunpack.c.h.b16 %v3566
    %v3641 = vunpack.c.l.b16 %v3567
    %v3642 = vunpack.c.l.b16 %v3568
    %v3643 = vunpack.c.h.b16 %v3568
    %v3644 = vunpack.c.l.b16 %v3569
    %v3645 = vunpack.c.l.b16 %v3570
    %v3646 = vunpack.c.h.b16 %v3570
    %v3647 = vunpack.c.l.b16 %v3571
    %v3648 = vunpack.c.l.b16 %v3572
    %v3649 = vunpack.c.h.b16 %v3572
    %v3650 = vunpack.c.l.b16 %v3573
    %v3651 = vunpack.c.l.b16 %v3574
    %v3652 = vunpack.c.h.b16 %v3574
    %v3653 = vunpack.c.l.b16 %v3575
    %v3654 = vunpack.c.l.b16 %v3576
    %v3655 = vunpack.c.h.b16 %v3576
    %v3656 = vunpack.c.l.b16 %v3577
    %v3657 = vunpack.c.l.b16 %v3578
    %v3658 = vunpack.c.h.b16 %v3578
    %v3659 = vunpack.c.l.b16 %v3579
    %v3660 = vpack.c.b16 %v3615, %v3612
    %v3661 = vpack.c.b16 %v3616, %v3613
    %v3662 = vpack.c.b16 %v3617, %v3614
    %v3663 = vpack.c.b16 %v3621, %v3618
    %v3664 = vpack.c.b16 %v3622, %v3619
    %v3665 = vpack.c.b16 %v3623, %v3620
    %v3666 = vpack.c.b16 %v3627, %v3624
    %v3667 = vpack.c.b16 %v3628, %v3625
    %v3668 = vpack.c.b16 %v3629, %v3626
    %v3669 = vpack.c.b16 %v3633, %v3630
    %v3670 = vpack.c.b16 %v3634, %v3631
    %v3671 = vpack.c.b16 %v3635, %v3632
    %v3672 = vpack.c.b16 %v3639, %v3636
    %v3673 = vpack.c.b16 %v3640, %v3637
    %v3674 = vpack.c.b16 %v3641, %v3638
    %v3675 = vpack.c.b16 %v3645, %v3642
    %v3676 = vpack.c.b16 %v3646, %v3643
    %v3677 = vpack.c.b16 %v3647, %v3644
    %v3678 = vpack.c.b16 %v3651, %v3648
    %v3679 = vpack.c.b16 %v3652, %v3649
    %v3680 = vpack.c.b16 %v3653, %v3650
    %v3681 = vpack.c.b16 %v3657, %v3654
    %v3682 = vpack.c.b16 %v3658, %v3655
    %v3683 = vpack.c.b16 %v3659, %v3656
    %3708 = vmatprep.subr.bf16.mxu0 %v3661
    %3709 = vmatpush1.bf16.msra.mxu0 %v3660
    %3710 = vmatprep.subr.bf16.mxu0 %v3664
    %3711 = vmatpush1.bf16.msra.mxu0 %v3663
    %3712 = vmatprep.subr.bf16.mxu0 %v3667
    %3713 = vmatpush1.bf16.msra.mxu0 %v3666
    %3714 = vmatprep.subr.bf16.mxu0 %v3670
    %3715 = vmatpush1.bf16.msra.mxu0 %v3669
    %3716 = vmatprep.subr.bf16.mxu0 %v3673
    %3717 = vmatpush1.bf16.msra.mxu0 %v3672
    %3718 = vmatprep.subr.bf16.mxu0 %v3676
    %3719 = vmatpush1.bf16.msra.mxu0 %v3675
    %3720 = vmatprep.subr.bf16.mxu0 %v3679
    %3721 = vmatpush1.bf16.msra.mxu0 %v3678
    %3722 = vmatprep.subr.bf16.mxu0 %v3682
    %3723 = vmatpush1.bf16.msra.mxu0 %v3681
    %3724 = vmatprep.subr.bf16.mxu0 0
    %3725 = vmatpush1.bf16.msra.mxu0 0
    %3726 = vmatprep.subr.bf16.mxu0 0
    %3727 = vmatpush1.bf16.msra.mxu0 0
    %3728 = vmatprep.subr.bf16.mxu0 0
    %3729 = vmatpush1.bf16.msra.mxu0 0
    %3730 = vmatprep.subr.bf16.mxu0 0
    %3731 = vmatpush1.bf16.msra.mxu0 0
    %3732 = vmatprep.subr.bf16.mxu0 0
    %3733 = vmatpush1.bf16.msra.mxu0 0
    %3734 = vmatprep.subr.bf16.mxu0 0
    %3735 = vmatpush1.bf16.msra.mxu0 0
    %3736 = vmatprep.subr.bf16.mxu0 0
    %3737 = vmatpush1.bf16.msra.mxu0 0
    %3738 = vmatprep.subr.bf16.mxu0 0
    %3739 = vmatpush1.bf16.msra.mxu0 0
    %3740 = vmatprep.mubr.bf16.mxu0 0
    %3741 = vmatmul.mubr.bf16.gmra.mrb[0].mxu0 %v2896
    %v3742 = vpop.f32.mrb[0].mxu0
    %v3743 = vadd.f32 %v2010, %v3742
    %v3744 = vpop.f32.mrb[0].mxu0
    %v3745 = vadd.f32 %v2014, %v3744
    %v3746 = vpop.f32.mrb[0].mxu0
    %v3747 = vpop.f32.mrb[0].mxu0
    %3748 = vdwg.mxu0
    %3749 = vmatprep.subr.bf16.mxu0 0
    %3750 = vmatpush1.bf16.msra.mxu0 %v3662
    %3751 = vmatprep.subr.bf16.mxu0 0
    %3752 = vmatpush1.bf16.msra.mxu0 %v3665
    %3753 = vmatprep.subr.bf16.mxu0 0
    %3754 = vmatpush1.bf16.msra.mxu0 %v3668
    %3755 = vmatprep.subr.bf16.mxu0 0
    %3756 = vmatpush1.bf16.msra.mxu0 %v3671
    %3757 = vmatprep.subr.bf16.mxu0 0
    %3758 = vmatpush1.bf16.msra.mxu0 %v3674
    %3759 = vmatprep.subr.bf16.mxu0 0
    %3760 = vmatpush1.bf16.msra.mxu0 %v3677
    %3761 = vmatprep.subr.bf16.mxu0 0
    %3762 = vmatpush1.bf16.msra.mxu0 %v3680
    %3763 = vmatprep.subr.bf16.mxu0 0
    %3764 = vmatpush1.bf16.msra.mxu0 %v3683
    %3765 = vmatprep.subr.bf16.mxu0 0
    %3766 = vmatpush1.bf16.msra.mxu0 0
    %3767 = vmatprep.subr.bf16.mxu0 0
    %3768 = vmatpush1.bf16.msra.mxu0 0
    %3769 = vmatprep.subr.bf16.mxu0 0
    %3770 = vmatpush1.bf16.msra.mxu0 0
    %3771 = vmatprep.subr.bf16.mxu0 0
    %3772 = vmatpush1.bf16.msra.mxu0 0
    %3773 = vmatprep.subr.bf16.mxu0 0
    %3774 = vmatpush1.bf16.msra.mxu0 0
    %3775 = vmatprep.subr.bf16.mxu0 0
    %3776 = vmatpush1.bf16.msra.mxu0 0
    %3777 = vmatprep.subr.bf16.mxu0 0
    %3778 = vmatpush1.bf16.msra.mxu0 0
    %3779 = vmatprep.subr.bf16.mxu0 0
    %3780 = vmatpush1.bf16.msra.mxu0 0
    %3781 = vmatprep.mubr.bf16.mxu0 0
    %3782 = vmatmul.mubr.bf16.gmra.mrb[0].mxu0 %v2896
    %v3783 = vpop.f32.mrb[0].mxu0
    %v3784 = vadd.f32 %v2018, %v3783
    %v3785 = vpop.f32.mrb[0].mxu0
    %v3786 = vpop.f32.mrb[0].mxu0
    %v3787 = vpop.f32.mrb[0].mxu0
    %3788 = vdwg.mxu0
    %v3789 = vadd.f32 %v3496, %v3743
    %v3790 = vxor.u32 %v3789, 2147483648
    %v3791 = vmul.f32 %v3790, 1.442695
    %v3792 = vpow.pop %v3791
    %v3793 = vadd.f32 %v3792, 1.0
    %v3794 = vrcp.pop %v3793
    %v3795 = vmul.f32 1.0, %v3794
    %v3796 = vadd.f32 %v3498, %v3745
    %v3797 = vxor.u32 %v3796, 2147483648
    %v3798 = vmul.f32 %v3797, 1.442695
    %v3799 = vpow.pop %v3798
    %v3800 = vadd.f32 %v3799, 1.0
    %v3801 = vrcp.pop %v3800
    %v3802 = vmul.f32 1.0, %v3801
    %v3803 = vmul.f32 %v3795, %v3784
    %v3804 = vadd.f32 %v3537, %v3803
    %v3805 = vtanh.pop %v3804
    %v3806 = vsub.f32 1.0, %v3802
    %v3807 = vmul.f32 %v3806, %v3805
    %v3808 = vmul.f32 %v3802, %v2895
    %v3809 = vadd.f32 %v3807, %v3808
    %v3810 = vpack.c.bf16 %v3809, %v3809
    %3811 = vmatprep.subr.bf16.mxu0 0
    %3812 = vmatpush1.bf16.msra.mxu0 %v1588
    %3813 = vmatprep.subr.bf16.mxu0 0
    %3814 = vmatpush1.bf16.msra.mxu0 %v1589
    %3815 = vmatprep.subr.bf16.mxu0 0
    %3816 = vmatpush1.bf16.msra.mxu0 %v1590
    %3817 = vmatprep.subr.bf16.mxu0 0
    %3818 = vmatpush1.bf16.msra.mxu0 %v1591
    %3819 = vmatprep.subr.bf16.mxu0 0
    %3820 = vmatpush1.bf16.msra.mxu0 %v1592
    %3821 = vmatprep.subr.bf16.mxu0 0
    %3822 = vmatpush1.bf16.msra.mxu0 %v1593
    %3823 = vmatprep.subr.bf16.mxu0 0
    %3824 = vmatpush1.bf16.msra.mxu0 %v1594
    %3825 = vmatprep.subr.bf16.mxu0 0
    %3826 = vmatpush1.bf16.msra.mxu0 %v1595
    %3827 = vmatprep.subr.bf16.mxu0 0
    %3828 = vmatpush1.bf16.msra.mxu0 0
    %3829 = vmatprep.subr.bf16.mxu0 0
    %3830 = vmatpush1.bf16.msra.mxu0 0
    %3831 = vmatprep.subr.bf16.mxu0 0
    %3832 = vmatpush1.bf16.msra.mxu0 0
    %3833 = vmatprep.subr.bf16.mxu0 0
    %3834 = vmatpush1.bf16.msra.mxu0 0
    %3835 = vmatprep.subr.bf16.mxu0 0
    %3836 = vmatpush1.bf16.msra.mxu0 0
    %3837 = vmatprep.subr.bf16.mxu0 0
    %3838 = vmatpush1.bf16.msra.mxu0 0
    %3839 = vmatprep.subr.bf16.mxu0 0
    %3840 = vmatpush1.bf16.msra.mxu0 0
    %3841 = vmatprep.subr.bf16.mxu0 0
    %3842 = vmatpush1.bf16.msra.mxu0 0
    %3843 = vmatprep.mubr.bf16.mxu0 0
    %3844 = vmatmul.mubr.bf16.gmra.mrb[0].mxu0 %v3810
    %v3845 = vpop.f32.mrb[0].mxu0
    %v3846 = vadd.f32 0.0, %v3845
    %v3847 = vpop.f32.mrb[0].mxu0
    %v3848 = vpop.f32.mrb[0].mxu0
    %v3849 = vpop.f32.mrb[0].mxu0
    %3850 = vdwg.mxu0
    %v3851 = vsel %vm2168, %v3846, -inf
    %3852 = vmax.xlane.f32.xlu0 %v3851
    %v3853 = vpop.xlane.xlu0 %3852
    %v3854 = vsub.f32 %v3846, %v3853
    %v3855 = vmul.f32 %v3854, 1.442695
    %v3856 = vpow.pop %v3855
    %v3857 = vsel %vm2168, %v3856, 0.0
    %3858 = vadd.xlane.f32.xlu0 %v3857
    %v3859 = vpop.xlane.xlu0 %3858
    %v3860 = vrcp.pop %v3859
    %v3861 = vmul.f32 %v3856, %v3860
    %v3862 = vpack.c.bf16 %v3861, %v3861
    %v3864 = vsel %vm2181, %v3862, 0
    %3866 = vmatprep.subr.bf16.mxu0 0
    %3867 = vmatpush1.bf16.msra.mxu0 %v2186
    %3868 = vmatprep.subr.bf16.mxu0 0
    %3869 = vmatpush1.bf16.msra.mxu0 0
    %3870 = vmatprep.subr.bf16.mxu0 0
    %3871 = vmatpush1.bf16.msra.mxu0 0
    %3872 = vmatprep.subr.bf16.mxu0 0
    %3873 = vmatpush1.bf16.msra.mxu0 0
    %3874 = vmatprep.subr.bf16.mxu0 0
    %3875 = vmatpush1.bf16.msra.mxu0 0
    %3876 = vmatprep.subr.bf16.mxu0 0
    %3877 = vmatpush1.bf16.msra.mxu0 0
    %3878 = vmatprep.subr.bf16.mxu0 0
    %3879 = vmatpush1.bf16.msra.mxu0 0
    %3880 = vmatprep.subr.bf16.mxu0 0
    %3881 = vmatpush1.bf16.msra.mxu0 0
    %3882 = vmatprep.subr.bf16.mxu0 0
    %3883 = vmatpush1.bf16.msra.mxu0 0
    %3884 = vmatprep.subr.bf16.mxu0 0
    %3885 = vmatpush1.bf16.msra.mxu0 0
    %3886 = vmatprep.subr.bf16.mxu0 0
    %3887 = vmatpush1.bf16.msra.mxu0 0
    %3888 = vmatprep.subr.bf16.mxu0 0
    %3889 = vmatpush1.bf16.msra.mxu0 0
    %3890 = vmatprep.subr.bf16.mxu0 0
    %3891 = vmatpush1.bf16.msra.mxu0 0
    %3892 = vmatprep.subr.bf16.mxu0 0
    %3893 = vmatpush1.bf16.msra.mxu0 0
    %3894 = vmatprep.subr.bf16.mxu0 0
    %3895 = vmatpush1.bf16.msra.mxu0 0
    %3896 = vmatprep.subr.bf16.mxu0 0
    %3897 = vmatpush1.bf16.msra.mxu0 0
    %3898 = vmatprep.mubr.bf16.mxu0 0
    %3899 = vmatmul.mubr.bf16.gmra.mrb[0].mxu0 %v3864
    %v3900 = vpop.f32.mrb[0].mxu0
    %v3901 = vadd.f32 0.0, %v3900
    %v3902 = vpop.f32.mrb[0].mxu0
    %v3903 = vpop.f32.mrb[0].mxu0
    %v3904 = vpop.f32.mrb[0].mxu0
    %3905 = vdwg.mxu0
    %v3906 = vpack.c.bf16 %v3901, %v3901
    %v3907 = vld [vmem:[#allocation10] sm:$0xf]
    %v3908 = vld [vmem:[#allocation10 + $0x4] sm:$0xf]
    %v3909 = vld [vmem:[#allocation10 + $0x8] sm:$0xf]
    %v3910 = vld [vmem:[#allocation10 + $0xc] sm:$0xf]
    %v3911 = vld [vmem:[#allocation10 + $0x10] sm:$0xf]
    %v3912 = vld [vmem:[#allocation10 + $0x14] sm:$0xf]
    %v3913 = vld [vmem:[#allocation10 + $0x18] sm:$0xf]
    %v3914 = vld [vmem:[#allocation10 + $0x1c] sm:$0xf]
    %v3915 = vld [vmem:[#allocation10 + $0x20] sm:$0xf]
    %v3916 = vld [vmem:[#allocation10 + $0x24] sm:$0xf]
    %v3917 = vld [vmem:[#allocation10 + $0x28] sm:$0xf]
    %v3918 = vld [vmem:[#allocation10 + $0x2c] sm:$0xf]
    %v3919 = vld [vmem:[#allocation10 + $0x30] sm:$0xf]
    %v3920 = vld [vmem:[#allocation10 + $0x34] sm:$0xf]
    %v3921 = vld [vmem:[#allocation10 + $0x38] sm:$0xf]
    %v3922 = vld [vmem:[#allocation10 + $0x3c] sm:$0xf]
    %v3923 = vld [vmem:[#allocation10 + $0x40] sm:$0xf]
    %v3924 = vld [vmem:[#allocation10 + $0x44] sm:$0xf]
    %v3925 = vld [vmem:[#allocation10 + $0x48] sm:$0xf]
    %v3926 = vld [vmem:[#allocation10 + $0x4c] sm:$0xf]
    %v3927 = vld [vmem:[#allocation10 + $0x50] sm:$0xf]
    %v3928 = vld [vmem:[#allocation10 + $0x54] sm:$0xf]
    %v3929 = vld [vmem:[#allocation10 + $0x58] sm:$0xf]
    %v3930 = vld [vmem:[#allocation10 + $0x5c] sm:$0xf]
    %v3931 = vld [vmem:[#allocation10 + $0x60] sm:$0xf]
    %v3932 = vld [vmem:[#allocation10 + $0x64] sm:$0xf]
    %v3933 = vld [vmem:[#allocation10 + $0x68] sm:$0xf]
    %v3934 = vld [vmem:[#allocation10 + $0x6c] sm:$0xf]
    %v3935 = vld [vmem:[#allocation10 + $0x70] sm:$0xf]
    %v3936 = vld [vmem:[#allocation10 + $0x74] sm:$0xf]
    %v3937 = vld [vmem:[#allocation10 + $0x78] sm:$0xf]
    %v3938 = vld [vmem:[#allocation10 + $0x7c] sm:$0xf]
    %v3971 = vunpack.c.l.b16 %v3907
    %v3972 = vunpack.c.l.b16 %v3908
    %v3973 = vunpack.c.l.b16 %v3909
    %v3974 = vunpack.c.l.b16 %v3910
    %v3975 = vunpack.c.l.b16 %v3911
    %v3976 = vunpack.c.l.b16 %v3912
    %v3977 = vunpack.c.l.b16 %v3913
    %v3978 = vunpack.c.l.b16 %v3914
    %v3979 = vunpack.c.l.b16 %v3915
    %v3980 = vunpack.c.l.b16 %v3916
    %v3981 = vunpack.c.l.b16 %v3917
    %v3982 = vunpack.c.l.b16 %v3918
    %v3983 = vunpack.c.l.b16 %v3919
    %v3984 = vunpack.c.l.b16 %v3920
    %v3985 = vunpack.c.l.b16 %v3921
    %v3986 = vunpack.c.l.b16 %v3922
    %v3987 = vunpack.c.l.b16 %v3923
    %v3988 = vunpack.c.l.b16 %v3924
    %v3989 = vunpack.c.l.b16 %v3925
    %v3990 = vunpack.c.l.b16 %v3926
    %v3991 = vunpack.c.l.b16 %v3927
    %v3992 = vunpack.c.l.b16 %v3928
    %v3993 = vunpack.c.l.b16 %v3929
    %v3994 = vunpack.c.l.b16 %v3930
    %v3995 = vunpack.c.l.b16 %v3931
    %v3996 = vunpack.c.l.b16 %v3932
    %v3997 = vunpack.c.l.b16 %v3933
    %v3998 = vunpack.c.l.b16 %v3934
    %v3999 = vunpack.c.l.b16 %v3935
    %v4000 = vunpack.c.l.b16 %v3936
    %v4001 = vunpack.c.l.b16 %v3937
    %v4002 = vunpack.c.l.b16 %v3938
    %v4003 = vpack.c.b16 %v3972, %v3971
    %v4004 = vpack.c.b16 %v3974, %v3973
    %v4005 = vpack.c.b16 %v3976, %v3975
    %v4006 = vpack.c.b16 %v3978, %v3977
    %v4007 = vpack.c.b16 %v3980, %v3979
    %v4008 = vpack.c.b16 %v3982, %v3981
    %v4009 = vpack.c.b16 %v3984, %v3983
    %v4010 = vpack.c.b16 %v3986, %v3985
    %v4011 = vpack.c.b16 %v3988, %v3987
    %v4012 = vpack.c.b16 %v3990, %v3989
    %v4013 = vpack.c.b16 %v3992, %v3991
    %v4014 = vpack.c.b16 %v3994, %v3993
    %v4015 = vpack.c.b16 %v3996, %v3995
    %v4016 = vpack.c.b16 %v3998, %v3997
    %v4017 = vpack.c.b16 %v4000, %v3999
    %v4018 = vpack.c.b16 %v4002, %v4001
    %4035 = vmatprep.subr.bf16.mxu0 0
    %4036 = vmatpush1.bf16.msra.mxu0 %v4003
    %4037 = vmatprep.subr.bf16.mxu0 0
    %4038 = vmatpush1.bf16.msra.mxu0 %v4004
    %4039 = vmatprep.subr.bf16.mxu0 0
    %4040 = vmatpush1.bf16.msra.mxu0 %v4005
    %4041 = vmatprep.subr.bf16.mxu0 0
    %4042 = vmatpush1.bf16.msra.mxu0 %v4006
    %4043 = vmatprep.subr.bf16.mxu0 0
    %4044 = vmatpush1.bf16.msra.mxu0 %v4007
    %4045 = vmatprep.subr.bf16.mxu0 0
    %4046 = vmatpush1.bf16.msra.mxu0 %v4008
    %4047 = vmatprep.subr.bf16.mxu0 0
    %4048 = vmatpush1.bf16.msra.mxu0 %v4009
    %4049 = vmatprep.subr.bf16.mxu0 0
    %4050 = vmatpush1.bf16.msra.mxu0 %v4010
    %4051 = vmatprep.subr.bf16.mxu0 0
    %4052 = vmatpush1.bf16.msra.mxu0 %v4011
    %4053 = vmatprep.subr.bf16.mxu0 0
    %4054 = vmatpush1.bf16.msra.mxu0 %v4012
    %4055 = vmatprep.subr.bf16.mxu0 0
    %4056 = vmatpush1.bf16.msra.mxu0 %v4013
    %4057 = vmatprep.subr.bf16.mxu0 0
    %4058 = vmatpush1.bf16.msra.mxu0 %v4014
    %4059 = vmatprep.subr.bf16.mxu0 0
    %4060 = vmatpush1.bf16.msra.mxu0 %v4015
    %4061 = vmatprep.subr.bf16.mxu0 0
    %4062 = vmatpush1.bf16.msra.mxu0 %v4016
    %4063 = vmatprep.subr.bf16.mxu0 0
    %4064 = vmatpush1.bf16.msra.mxu0 %v4017
    %4065 = vmatprep.subr.bf16.mxu0 0
    %4066 = vmatpush1.bf16.msra.mxu0 %v4018
    %4067 = vmatprep.mubr.bf16.mxu0 %v3906
    %4068 = vmatmul.mubr.bf16.gmra.mrb[0].mxu0 %v3810
    %v4069 = vpop.f32.mrb[0].mxu0
    %v4070 = vadd.f32 %v2360, %v4069
    %v4071 = vpop.f32.mrb[0].mxu0
    %v4072 = vpop.f32.mrb[0].mxu0
    %v4073 = vpop.f32.mrb[0].mxu0
    %4074 = vdwg.mxu0
    %v4075 = vtanh.pop %v4070
    %v4076 = vpack.c.bf16 %v4075, %v4075
    %v4077 = vld [vmem:[#allocation10 + $0x80] sm:$0xf]
    %v4078 = vld [vmem:[#allocation10 + $0x84] sm:$0xf]
    %v4079 = vld [vmem:[#allocation10 + $0x88] sm:$0xf]
    %v4080 = vld [vmem:[#allocation10 + $0x8c] sm:$0xf]
    %v4081 = vld [vmem:[#allocation10 + $0x90] sm:$0xf]
    %v4082 = vld [vmem:[#allocation10 + $0x94] sm:$0xf]
    %v4083 = vld [vmem:[#allocation10 + $0x98] sm:$0xf]
    %v4084 = vld [vmem:[#allocation10 + $0x9c] sm:$0xf]
    %v4085 = vld [vmem:[#allocation10 + $0xa0] sm:$0xf]
    %v4086 = vld [vmem:[#allocation10 + $0xa4] sm:$0xf]
    %v4087 = vld [vmem:[#allocation10 + $0xa8] sm:$0xf]
    %v4088 = vld [vmem:[#allocation10 + $0xac] sm:$0xf]
    %v4089 = vld [vmem:[#allocation10 + $0xb0] sm:$0xf]
    %v4090 = vld [vmem:[#allocation10 + $0xb4] sm:$0xf]
    %v4091 = vld [vmem:[#allocation10 + $0xb8] sm:$0xf]
    %v4092 = vld [vmem:[#allocation10 + $0xbc] sm:$0xf]
    %v4109 = vunpack.c.l.b16 %v4077
    %v4110 = vunpack.c.l.b16 %v4078
    %v4111 = vunpack.c.l.b16 %v4079
    %v4112 = vunpack.c.l.b16 %v4080
    %v4113 = vunpack.c.l.b16 %v4081
    %v4114 = vunpack.c.l.b16 %v4082
    %v4115 = vunpack.c.l.b16 %v4083
    %v4116 = vunpack.c.l.b16 %v4084
    %v4117 = vunpack.c.l.b16 %v4085
    %v4118 = vunpack.c.l.b16 %v4086
    %v4119 = vunpack.c.l.b16 %v4087
    %v4120 = vunpack.c.l.b16 %v4088
    %v4121 = vunpack.c.l.b16 %v4089
    %v4122 = vunpack.c.l.b16 %v4090
    %v4123 = vunpack.c.l.b16 %v4091
    %v4124 = vunpack.c.l.b16 %v4092
    %v4125 = vpack.c.b16 %v4110, %v4109
    %v4126 = vpack.c.b16 %v4112, %v4111
    %v4127 = vpack.c.b16 %v4114, %v4113
    %v4128 = vpack.c.b16 %v4116, %v4115
    %v4129 = vpack.c.b16 %v4118, %v4117
    %v4130 = vpack.c.b16 %v4120, %v4119
    %v4131 = vpack.c.b16 %v4122, %v4121
    %v4132 = vpack.c.b16 %v4124, %v4123
    %4141 = vmatprep.subr.bf16.mxu0 0
    %4142 = vmatpush1.bf16.msra.mxu0 %v4125
    %4143 = vmatprep.subr.bf16.mxu0 0
    %4144 = vmatpush1.bf16.msra.mxu0 %v4126
    %4145 = vmatprep.subr.bf16.mxu0 0
    %4146 = vmatpush1.bf16.msra.mxu0 %v4127
    %4147 = vmatprep.subr.bf16.mxu0 0
    %4148 = vmatpush1.bf16.msra.mxu0 %v4128
    %4149 = vmatprep.subr.bf16.mxu0 0
    %4150 = vmatpush1.bf16.msra.mxu0 %v4129
    %4151 = vmatprep.subr.bf16.mxu0 0
    %4152 = vmatpush1.bf16.msra.mxu0 %v4130
    %4153 = vmatprep.subr.bf16.mxu0 0
    %4154 = vmatpush1.bf16.msra.mxu0 %v4131
    %4155 = vmatprep.subr.bf16.mxu0 0
    %4156 = vmatpush1.bf16.msra.mxu0 %v4132
    %4157 = vmatprep.subr.bf16.mxu0 0
    %4158 = vmatpush1.bf16.msra.mxu0 0
    %4159 = vmatprep.subr.bf16.mxu0 0
    %4160 = vmatpush1.bf16.msra.mxu0 0
    %4161 = vmatprep.subr.bf16.mxu0 0
    %4162 = vmatpush1.bf16.msra.mxu0 0
    %4163 = vmatprep.subr.bf16.mxu0 0
    %4164 = vmatpush1.bf16.msra.mxu0 0
    %4165 = vmatprep.subr.bf16.mxu0 0
    %4166 = vmatpush1.bf16.msra.mxu0 0
    %4167 = vmatprep.subr.bf16.mxu0 0
    %4168 = vmatpush1.bf16.msra.mxu0 0
    %4169 = vmatprep.subr.bf16.mxu0 0
    %4170 = vmatpush1.bf16.msra.mxu0 0
    %4171 = vmatprep.subr.bf16.mxu0 0
    %4172 = vmatpush1.bf16.msra.mxu0 0
    %4173 = vmatprep.mubr.bf16.mxu0 0
    %4174 = vmatmul.mubr.bf16.gmra.mrb[0].mxu0 %v4076
    %v4175 = vpop.f32.mrb[0].mxu0
    %v4176 = vadd.f32 %v2471, %v4175
    %v4177 = vpop.f32.mrb[0].mxu0
    %v4178 = vpop.f32.mrb[0].mxu0
    %v4179 = vpop.f32.mrb[0].mxu0
    %4180 = vdwg.mxu0
    %v4181 = vsel %vm139, %v4176, -inf
    %4182 = vmax.xlane.f32.xlu0 %v4181
    %v4183 = vpop.xlane.xlu0 %4182
    %v4184 = vsub.f32 %v4176, %v4183
    %v4185 = vmul.f32 %v4184, 1.442695
    %v4186 = vpow.pop %v4185
    %v4187 = vsel %vm139, %v4186, 0.0
    %4188 = vadd.xlane.f32.xlu0 %v4187
    %v4189 = vpop.xlane.xlu0 %4188
    %v4190 = vrcp.pop %v4189
    %v4191 = vmul.f32 1.0, %v4190
    %vm4192 = vcmp.eq.f32.partialorder %v4176, %v4183
    %v4193 = vsel %vm4192, %v98, 128
    %v4194 = vsel %vm139, %v4193, 2147483647
    %v4195 = vand.u32 %v4194, 65535
    %v4196 = vshra.s32 %v4194, 16
    %v4197 = vcvt.s32.f32 %v4195
    %v4198 = vcvt.s32.f32 %v4196
    %4199 = vmin.xlane.f32.xlu0 %v4198
    %v4200 = vpop.xlane.xlu0 %4199
    %vm4201 = vcmp.eq.f32.partialorder %v4198, %v4200
    %v4202 = vsel %vm4201, %v4197, inf
    %4203 = vmin.xlane.f32.xlu0 %v4202
    %v4204 = vpop.xlane.xlu0 %4203
    %v4205 = vcvt.f32.s32 %v4204
    %v4206 = vcvt.f32.s32 %v4200
    %v4207 = vshll.u32 %v4206, 16
    %v4208 = vadd.s32 %v4207, %v4205
    %vm4209 = vcmp.lt.s32.totalorder %v4208, 127
    %v4210 = vsel %vm4209, %v4208, 127
    %vm4211 = vcmp.eq.s32.totalorder %v98, %v4210
    %v4212 = vsel %vm4211, 1, 0
    %v4213 = vcvt.s32.f32 %v4212
    %v4214 = vpack.c.bf16 %v4213, %v4213
    %v4215 = vld [vmem:[#allocation8] sm:$0xff]
    %v4216 = vld [vmem:[#allocation8 + $0x8] sm:$0xf]
    %v4217 = vld [vmem:[#allocation8 + $0xc] sm:$0xff]
    %v4218 = vld [vmem:[#allocation8 + $0x14] sm:$0xf]
    %v4219 = vld [vmem:[#allocation8 + $0x18] sm:$0xff]
    %v4220 = vld [vmem:[#allocation8 + $0x20] sm:$0xf]
    %v4221 = vld [vmem:[#allocation8 + $0x24] sm:$0xff]
    %v4222 = vld [vmem:[#allocation8 + $0x2c] sm:$0xf]
    %v4223 = vld [vmem:[#allocation8 + $0x30] sm:$0xff]
    %v4224 = vld [vmem:[#allocation8 + $0x38] sm:$0xf]
    %v4225 = vld [vmem:[#allocation8 + $0x3c] sm:$0xff]
    %v4226 = vld [vmem:[#allocation8 + $0x44] sm:$0xf]
    %v4227 = vld [vmem:[#allocation8 + $0x48] sm:$0xff]
    %v4228 = vld [vmem:[#allocation8 + $0x50] sm:$0xf]
    %v4229 = vld [vmem:[#allocation8 + $0x54] sm:$0xff]
    %v4230 = vld [vmem:[#allocation8 + $0x5c] sm:$0xf]
    %v4231 = vld [vmem:[#allocation8 + $0x60] sm:$0xff]
    %v4232 = vld [vmem:[#allocation8 + $0x68] sm:$0xf]
    %v4233 = vld [vmem:[#allocation8 + $0x6c] sm:$0xff]
    %v4234 = vld [vmem:[#allocation8 + $0x74] sm:$0xf]
    %v4235 = vld [vmem:[#allocation8 + $0x78] sm:$0xff]
    %v4236 = vld [vmem:[#allocation8 + $0x80] sm:$0xf]
    %v4237 = vld [vmem:[#allocation8 + $0x84] sm:$0xff]
    %v4238 = vld [vmem:[#allocation8 + $0x8c] sm:$0xf]
    %v4239 = vld [vmem:[#allocation8 + $0x90] sm:$0xff]
    %v4240 = vld [vmem:[#allocation8 + $0x98] sm:$0xf]
    %v4241 = vld [vmem:[#allocation8 + $0x9c] sm:$0xff]
    %v4242 = vld [vmem:[#allocation8 + $0xa4] sm:$0xf]
    %v4243 = vld [vmem:[#allocation8 + $0xa8] sm:$0xff]
    %v4244 = vld [vmem:[#allocation8 + $0xb0] sm:$0xf]
    %v4245 = vld [vmem:[#allocation8 + $0xb4] sm:$0xff]
    %v4246 = vld [vmem:[#allocation8 + $0xbc] sm:$0xf]
    %v4279 = vunpack.c.l.b16 %v4215
    %v4280 = vunpack.c.h.b16 %v4215
    %v4281 = vunpack.c.l.b16 %v4216
    %v4282 = vunpack.c.l.b16 %v4217
    %v4283 = vunpack.c.h.b16 %v4217
    %v4284 = vunpack.c.l.b16 %v4218
    %v4285 = vunpack.c.l.b16 %v4219
    %v4286 = vunpack.c.h.b16 %v4219
    %v4287 = vunpack.c.l.b16 %v4220
    %v4288 = vunpack.c.l.b16 %v4221
    %v4289 = vunpack.c.h.b16 %v4221
    %v4290 = vunpack.c.l.b16 %v4222
    %v4291 = vunpack.c.l.b16 %v4223
    %v4292 = vunpack.c.h.b16 %v4223
    %v4293 = vunpack.c.l.b16 %v4224
    %v4294 = vunpack.c.l.b16 %v4225
    %v4295 = vunpack.c.h.b16 %v4225
    %v4296 = vunpack.c.l.b16 %v4226
    %v4297 = vunpack.c.l.b16 %v4227
    %v4298 = vunpack.c.h.b16 %v4227
    %v4299 = vunpack.c.l.b16 %v4228
    %v4300 = vunpack.c.l.b16 %v4229
    %v4301 = vunpack.c.h.b16 %v4229
    %v4302 = vunpack.c.l.b16 %v4230
    %v4303 = vunpack.c.l.b16 %v4231
    %v4304 = vunpack.c.h.b16 %v4231
    %v4305 = vunpack.c.l.b16 %v4232
    %v4306 = vunpack.c.l.b16 %v4233
    %v4307 = vunpack.c.h.b16 %v4233
    %v4308 = vunpack.c.l.b16 %v4234
    %v4309 = vunpack.c.l.b16 %v4235
    %v4310 = vunpack.c.h.b16 %v4235
    %v4311 = vunpack.c.l.b16 %v4236
    %v4312 = vunpack.c.l.b16 %v4237
    %v4313 = vunpack.c.h.b16 %v4237
    %v4314 = vunpack.c.l.b16 %v4238
    %v4315 = vunpack.c.l.b16 %v4239
    %v4316 = vunpack.c.h.b16 %v4239
    %v4317 = vunpack.c.l.b16 %v4240
    %v4318 = vunpack.c.l.b16 %v4241
    %v4319 = vunpack.c.h.b16 %v4241
    %v4320 = vunpack.c.l.b16 %v4242
    %v4321 = vunpack.c.l.b16 %v4243
    %v4322 = vunpack.c.h.b16 %v4243
    %v4323 = vunpack.c.l.b16 %v4244
    %v4324 = vunpack.c.l.b16 %v4245
    %v4325 = vunpack.c.h.b16 %v4245
    %v4326 = vunpack.c.l.b16 %v4246
    %v4327 = vpack.c.b16 %v4282, %v4279
    %v4328 = vpack.c.b16 %v4283, %v4280
    %v4329 = vpack.c.b16 %v4284, %v4281
    %v4330 = vpack.c.b16 %v4288, %v4285
    %v4331 = vpack.c.b16 %v4289, %v4286
    %v4332 = vpack.c.b16 %v4290, %v4287
    %v4333 = vpack.c.b16 %v4294, %v4291
    %v4334 = vpack.c.b16 %v4295, %v4292
    %v4335 = vpack.c.b16 %v4296, %v4293
    %v4336 = vpack.c.b16 %v4300, %v4297
    %v4337 = vpack.c.b16 %v4301, %v4298
    %v4338 = vpack.c.b16 %v4302, %v4299
    %v4339 = vpack.c.b16 %v4306, %v4303
    %v4340 = vpack.c.b16 %v4307, %v4304
    %v4341 = vpack.c.b16 %v4308, %v4305
    %v4342 = vpack.c.b16 %v4312, %v4309
    %v4343 = vpack.c.b16 %v4313, %v4310
    %v4344 = vpack.c.b16 %v4314, %v4311
    %v4345 = vpack.c.b16 %v4318, %v4315
    %v4346 = vpack.c.b16 %v4319, %v4316
    %v4347 = vpack.c.b16 %v4320, %v4317
    %v4348 = vpack.c.b16 %v4324, %v4321
    %v4349 = vpack.c.b16 %v4325, %v4322
    %v4350 = vpack.c.b16 %v4326, %v4323
    %4375 = vmatprep.subr.bf16.mxu0 %v4328
    %4376 = vmatpush1.bf16.msra.mxu0 %v4327
    %4377 = vmatprep.subr.bf16.mxu0 %v4331
    %4378 = vmatpush1.bf16.msra.mxu0 %v4330
    %4379 = vmatprep.subr.bf16.mxu0 %v4334
    %4380 = vmatpush1.bf16.msra.mxu0 %v4333
    %4381 = vmatprep.subr.bf16.mxu0 %v4337
    %4382 = vmatpush1.bf16.msra.mxu0 %v4336
    %4383 = vmatprep.subr.bf16.mxu0 %v4340
    %4384 = vmatpush1.bf16.msra.mxu0 %v4339
    %4385 = vmatprep.subr.bf16.mxu0 %v4343
    %4386 = vmatpush1.bf16.msra.mxu0 %v4342
    %4387 = vmatprep.subr.bf16.mxu0 %v4346
    %4388 = vmatpush1.bf16.msra.mxu0 %v4345
    %4389 = vmatprep.subr.bf16.mxu0 %v4349
    %4390 = vmatpush1.bf16.msra.mxu0 %v4348
    %4391 = vmatprep.subr.bf16.mxu0 0
    %4392 = vmatpush1.bf16.msra.mxu0 0
    %4393 = vmatprep.subr.bf16.mxu0 0
    %4394 = vmatpush1.bf16.msra.mxu0 0
    %4395 = vmatprep.subr.bf16.mxu0 0
    %4396 = vmatpush1.bf16.msra.mxu0 0
    %4397 = vmatprep.subr.bf16.mxu0 0
    %4398 = vmatpush1.bf16.msra.mxu0 0
    %4399 = vmatprep.subr.bf16.mxu0 0
    %4400 = vmatpush1.bf16.msra.mxu0 0
    %4401 = vmatprep.subr.bf16.mxu0 0
    %4402 = vmatpush1.bf16.msra.mxu0 0
    %4403 = vmatprep.subr.bf16.mxu0 0
    %4404 = vmatpush1.bf16.msra.mxu0 0
    %4405 = vmatprep.subr.bf16.mxu0 0
    %4406 = vmatpush1.bf16.msra.mxu0 0
    %4407 = vmatprep.mubr.bf16.mxu0 0
    %4408 = vmatmul.mubr.bf16.gmra.mrb[0].mxu0 %v4214
    %v4409 = vpop.f32.mrb[0].mxu0
    %v4410 = vadd.f32 0.0, %v4409
    %v4411 = vpop.f32.mrb[0].mxu0
    %v4412 = vadd.f32 0.0, %v4411
    %v4413 = vpop.f32.mrb[0].mxu0
    %v4414 = vpop.f32.mrb[0].mxu0
    %4415 = vdwg.mxu0
    %4416 = vmatprep.subr.bf16.mxu0 0
    %4417 = vmatpush1.bf16.msra.mxu0 %v4329
    %4418 = vmatprep.subr.bf16.mxu0 0
    %4419 = vmatpush1.bf16.msra.mxu0 %v4332
    %4420 = vmatprep.subr.bf16.mxu0 0
    %4421 = vmatpush1.bf16.msra.mxu0 %v4335
    %4422 = vmatprep.subr.bf16.mxu0 0
    %4423 = vmatpush1.bf16.msra.mxu0 %v4338
    %4424 = vmatprep.subr.bf16.mxu0 0
    %4425 = vmatpush1.bf16.msra.mxu0 %v4341
    %4426 = vmatprep.subr.bf16.mxu0 0
    %4427 = vmatpush1.bf16.msra.mxu0 %v4344
    %4428 = vmatprep.subr.bf16.mxu0 0
    %4429 = vmatpush1.bf16.msra.mxu0 %v4347
    %4430 = vmatprep.subr.bf16.mxu0 0
    %4431 = vmatpush1.bf16.msra.mxu0 %v4350
    %4432 = vmatprep.subr.bf16.mxu0 0
    %4433 = vmatpush1.bf16.msra.mxu0 0
    %4434 = vmatprep.subr.bf16.mxu0 0
    %4435 = vmatpush1.bf16.msra.mxu0 0
    %4436 = vmatprep.subr.bf16.mxu0 0
    %4437 = vmatpush1.bf16.msra.mxu0 0
    %4438 = vmatprep.subr.bf16.mxu0 0
    %4439 = vmatpush1.bf16.msra.mxu0 0
    %4440 = vmatprep.subr.bf16.mxu0 0
    %4441 = vmatpush1.bf16.msra.mxu0 0
    %4442 = vmatprep.subr.bf16.mxu0 0
    %4443 = vmatpush1.bf16.msra.mxu0 0
    %4444 = vmatprep.subr.bf16.mxu0 0
    %4445 = vmatpush1.bf16.msra.mxu0 0
    %4446 = vmatprep.subr.bf16.mxu0 0
    %4447 = vmatpush1.bf16.msra.mxu0 0
    %4448 = vmatprep.mubr.bf16.mxu0 0
    %4449 = vmatmul.mubr.bf16.gmra.mrb[0].mxu0 %v4214
    %v4450 = vpop.f32.mrb[0].mxu0
    %v4451 = vadd.f32 0.0, %v4450
    %v4452 = vpop.f32.mrb[0].mxu0
    %v4453 = vpop.f32.mrb[0].mxu0
    %v4454 = vpop.f32.mrb[0].mxu0
    %4455 = vdwg.mxu0
    %s4456 = vtos %v4210
    %s4457 = scalar_lea.smem [#allocation13], 2
    %4458 = sst [smem:[%s4457]] %s4456
    %s4459 = vtos %v4191
    %s4460 = scalar_lea.smem [#allocation14], 2
    %4461 = sst [smem:[%s4460]] %s4459
    %v4462 = vld [vmem:[#allocation8 + $0xc0] sm:$0xff]
    %v4463 = vld [vmem:[#allocation8 + $0xc8] sm:$0xf]
    %v4464 = vld [vmem:[#allocation8 + $0xcc] sm:$0xff]
    %v4465 = vld [vmem:[#allocation8 + $0xd4] sm:$0xf]
    %v4466 = vld [vmem:[#allocation8 + $0xd8] sm:$0xff]
    %v4467 = vld [vmem:[#allocation8 + $0xe0] sm:$0xf]
    %v4468 = vld [vmem:[#allocation8 + $0xe4] sm:$0xff]
    %v4469 = vld [vmem:[#allocation8 + $0xec] sm:$0xf]
    %v4470 = vld [vmem:[#allocation8 + $0xf0] sm:$0xff]
    %v4471 = vld [vmem:[#allocation8 + $0xf8] sm:$0xf]
    %v4472 = vld [vmem:[#allocation8 + $0xfc] sm:$0xff]
    %v4473 = vld [vmem:[#allocation8 + $0x104] sm:$0xf]
    %v4474 = vld [vmem:[#allocation8 + $0x108] sm:$0xff]
    %v4475 = vld [vmem:[#allocation8 + $0x110] sm:$0xf]
    %v4476 = vld [vmem:[#allocation8 + $0x114] sm:$0xff]
    %v4477 = vld [vmem:[#allocation8 + $0x11c] sm:$0xf]
    %v4478 = vld [vmem:[#allocation8 + $0x120] sm:$0xff]
    %v4479 = vld [vmem:[#allocation8 + $0x128] sm:$0xf]
    %v4480 = vld [vmem:[#allocation8 + $0x12c] sm:$0xff]
    %v4481 = vld [vmem:[#allocation8 + $0x134] sm:$0xf]
    %v4482 = vld [vmem:[#allocation8 + $0x138] sm:$0xff]
    %v4483 = vld [vmem:[#allocation8 + $0x140] sm:$0xf]
    %v4484 = vld [vmem:[#allocation8 + $0x144] sm:$0xff]
    %v4485 = vld [vmem:[#allocation8 + $0x14c] sm:$0xf]
    %v4486 = vld [vmem:[#allocation8 + $0x150] sm:$0xff]
    %v4487 = vld [vmem:[#allocation8 + $0x158] sm:$0xf]
    %v4488 = vld [vmem:[#allocation8 + $0x15c] sm:$0xff]
    %v4489 = vld [vmem:[#allocation8 + $0x164] sm:$0xf]
    %v4490 = vld [vmem:[#allocation8 + $0x168] sm:$0xff]
    %v4491 = vld [vmem:[#allocation8 + $0x170] sm:$0xf]
    %v4492 = vld [vmem:[#allocation8 + $0x174] sm:$0xff]
    %v4493 = vld [vmem:[#allocation8 + $0x17c] sm:$0xf]
    %v4526 = vunpack.c.l.b16 %v4462
    %v4527 = vunpack.c.h.b16 %v4462
    %v4528 = vunpack.c.l.b16 %v4463
    %v4529 = vunpack.c.l.b16 %v4464
    %v4530 = vunpack.c.h.b16 %v4464
    %v4531 = vunpack.c.l.b16 %v4465
    %v4532 = vunpack.c.l.b16 %v4466
    %v4533 = vunpack.c.h.b16 %v4466
    %v4534 = vunpack.c.l.b16 %v4467
    %v4535 = vunpack.c.l.b16 %v4468
    %v4536 = vunpack.c.h.b16 %v4468
    %v4537 = vunpack.c.l.b16 %v4469
    %v4538 = vunpack.c.l.b16 %v4470
    %v4539 = vunpack.c.h.b16 %v4470
    %v4540 = vunpack.c.l.b16 %v4471
    %v4541 = vunpack.c.l.b16 %v4472
    %v4542 = vunpack.c.h.b16 %v4472
    %v4543 = vunpack.c.l.b16 %v4473
    %v4544 = vunpack.c.l.b16 %v4474
    %v4545 = vunpack.c.h.b16 %v4474
    %v4546 = vunpack.c.l.b16 %v4475
    %v4547 = vunpack.c.l.b16 %v4476
    %v4548 = vunpack.c.h.b16 %v4476
    %v4549 = vunpack.c.l.b16 %v4477
    %v4550 = vunpack.c.l.b16 %v4478
    %v4551 = vunpack.c.h.b16 %v4478
    %v4552 = vunpack.c.l.b16 %v4479
    %v4553 = vunpack.c.l.b16 %v4480
    %v4554 = vunpack.c.h.b16 %v4480
    %v4555 = vunpack.c.l.b16 %v4481
    %v4556 = vunpack.c.l.b16 %v4482
    %v4557 = vunpack.c.h.b16 %v4482
    %v4558 = vunpack.c.l.b16 %v4483
    %v4559 = vunpack.c.l.b16 %v4484
    %v4560 = vunpack.c.h.b16 %v4484
    %v4561 = vunpack.c.l.b16 %v4485
    %v4562 = vunpack.c.l.b16 %v4486
    %v4563 = vunpack.c.h.b16 %v4486
    %v4564 = vunpack.c.l.b16 %v4487
    %v4565 = vunpack.c.l.b16 %v4488
    %v4566 = vunpack.c.h.b16 %v4488
    %v4567 = vunpack.c.l.b16 %v4489
    %v4568 = vunpack.c.l.b16 %v4490
    %v4569 = vunpack.c.h.b16 %v4490
    %v4570 = vunpack.c.l.b16 %v4491
    %v4571 = vunpack.c.l.b16 %v4492
    %v4572 = vunpack.c.h.b16 %v4492
    %v4573 = vunpack.c.l.b16 %v4493
    %v4574 = vpack.c.b16 %v4529, %v4526
    %v4575 = vpack.c.b16 %v4530, %v4527
    %v4576 = vpack.c.b16 %v4531, %v4528
    %v4577 = vpack.c.b16 %v4535, %v4532
    %v4578 = vpack.c.b16 %v4536, %v4533
    %v4579 = vpack.c.b16 %v4537, %v4534
    %v4580 = vpack.c.b16 %v4541, %v4538
    %v4581 = vpack.c.b16 %v4542, %v4539
    %v4582 = vpack.c.b16 %v4543, %v4540
    %v4583 = vpack.c.b16 %v4547, %v4544
    %v4584 = vpack.c.b16 %v4548, %v4545
    %v4585 = vpack.c.b16 %v4549, %v4546
    %v4586 = vpack.c.b16 %v4553, %v4550
    %v4587 = vpack.c.b16 %v4554, %v4551
    %v4588 = vpack.c.b16 %v4555, %v4552
    %v4589 = vpack.c.b16 %v4559, %v4556
    %v4590 = vpack.c.b16 %v4560, %v4557
    %v4591 = vpack.c.b16 %v4561, %v4558
    %v4592 = vpack.c.b16 %v4565, %v4562
    %v4593 = vpack.c.b16 %v4566, %v4563
    %v4594 = vpack.c.b16 %v4567, %v4564
    %v4595 = vpack.c.b16 %v4571, %v4568
    %v4596 = vpack.c.b16 %v4572, %v4569
    %v4597 = vpack.c.b16 %v4573, %v4570
    %4622 = vmatprep.subr.bf16.mxu0 %v4575
    %4623 = vmatpush1.bf16.msra.mxu0 %v4574
    %4624 = vmatprep.subr.bf16.mxu0 %v4578
    %4625 = vmatpush1.bf16.msra.mxu0 %v4577
    %4626 = vmatprep.subr.bf16.mxu0 %v4581
    %4627 = vmatpush1.bf16.msra.mxu0 %v4580
    %4628 = vmatprep.subr.bf16.mxu0 %v4584
    %4629 = vmatpush1.bf16.msra.mxu0 %v4583
    %4630 = vmatprep.subr.bf16.mxu0 %v4587
    %4631 = vmatpush1.bf16.msra.mxu0 %v4586
    %4632 = vmatprep.subr.bf16.mxu0 %v4590
    %4633 = vmatpush1.bf16.msra.mxu0 %v4589
    %4634 = vmatprep.subr.bf16.mxu0 %v4593
    %4635 = vmatpush1.bf16.msra.mxu0 %v4592
    %4636 = vmatprep.subr.bf16.mxu0 %v4596
    %4637 = vmatpush1.bf16.msra.mxu0 %v4595
    %4638 = vmatprep.subr.bf16.mxu0 0
    %4639 = vmatpush1.bf16.msra.mxu0 0
    %4640 = vmatprep.subr.bf16.mxu0 0
    %4641 = vmatpush1.bf16.msra.mxu0 0
    %4642 = vmatprep.subr.bf16.mxu0 0
    %4643 = vmatpush1.bf16.msra.mxu0 0
    %4644 = vmatprep.subr.bf16.mxu0 0
    %4645 = vmatpush1.bf16.msra.mxu0 0
    %4646 = vmatprep.subr.bf16.mxu0 0
    %4647 = vmatpush1.bf16.msra.mxu0 0
    %4648 = vmatprep.subr.bf16.mxu0 0
    %4649 = vmatpush1.bf16.msra.mxu0 0
    %4650 = vmatprep.subr.bf16.mxu0 0
    %4651 = vmatpush1.bf16.msra.mxu0 0
    %4652 = vmatprep.subr.bf16.mxu0 0
    %4653 = vmatpush1.bf16.msra.mxu0 0
    %4654 = vmatprep.mubr.bf16.mxu0 0
    %4655 = vmatmul.mubr.bf16.gmra.mrb[0].mxu0 %v3810
    %v4656 = vpop.f32.mrb[0].mxu0
    %v4657 = vadd.f32 %v2010, %v4656
    %v4658 = vpop.f32.mrb[0].mxu0
    %v4659 = vadd.f32 %v2014, %v4658
    %v4660 = vpop.f32.mrb[0].mxu0
    %v4661 = vpop.f32.mrb[0].mxu0
    %4662 = vdwg.mxu0
    %4663 = vmatprep.subr.bf16.mxu0 0
    %4664 = vmatpush1.bf16.msra.mxu0 %v4576
    %4665 = vmatprep.subr.bf16.mxu0 0
    %4666 = vmatpush1.bf16.msra.mxu0 %v4579
    %4667 = vmatprep.subr.bf16.mxu0 0
    %4668 = vmatpush1.bf16.msra.mxu0 %v4582
    %4669 = vmatprep.subr.bf16.mxu0 0
    %4670 = vmatpush1.bf16.msra.mxu0 %v4585
    %4671 = vmatprep.subr.bf16.mxu0 0
    %4672 = vmatpush1.bf16.msra.mxu0 %v4588
    %4673 = vmatprep.subr.bf16.mxu0 0
    %4674 = vmatpush1.bf16.msra.mxu0 %v4591
    %4675 = vmatprep.subr.bf16.mxu0 0
    %4676 = vmatpush1.bf16.msra.mxu0 %v4594
    %4677 = vmatprep.subr.bf16.mxu0 0
    %4678 = vmatpush1.bf16.msra.mxu0 %v4597
    %4679 = vmatprep.subr.bf16.mxu0 0
    %4680 = vmatpush1.bf16.msra.mxu0 0
    %4681 = vmatprep.subr.bf16.mxu0 0
    %4682 = vmatpush1.bf16.msra.mxu0 0
    %4683 = vmatprep.subr.bf16.mxu0 0
    %4684 = vmatpush1.bf16.msra.mxu0 0
    %4685 = vmatprep.subr.bf16.mxu0 0
    %4686 = vmatpush1.bf16.msra.mxu0 0
    %4687 = vmatprep.subr.bf16.mxu0 0
    %4688 = vmatpush1.bf16.msra.mxu0 0
    %4689 = vmatprep.subr.bf16.mxu0 0
    %4690 = vmatpush1.bf16.msra.mxu0 0
    %4691 = vmatprep.subr.bf16.mxu0 0
    %4692 = vmatpush1.bf16.msra.mxu0 0
    %4693 = vmatprep.subr.bf16.mxu0 0
    %4694 = vmatpush1.bf16.msra.mxu0 0
    %4695 = vmatprep.mubr.bf16.mxu0 0
    %4696 = vmatmul.mubr.bf16.gmra.mrb[0].mxu0 %v3810
    %v4697 = vpop.f32.mrb[0].mxu0
    %v4698 = vadd.f32 %v2018, %v4697
    %v4699 = vpop.f32.mrb[0].mxu0
    %v4700 = vpop.f32.mrb[0].mxu0
    %v4701 = vpop.f32.mrb[0].mxu0
    %4702 = vdwg.mxu0
    %v4703 = vadd.f32 %v4410, %v4657
    %v4704 = vxor.u32 %v4703, 2147483648
    %v4705 = vmul.f32 %v4704, 1.442695
    %v4706 = vpow.pop %v4705
    %v4707 = vadd.f32 %v4706, 1.0
    %v4708 = vrcp.pop %v4707
    %v4709 = vmul.f32 1.0, %v4708
    %v4710 = vadd.f32 %v4412, %v4659
    %v4711 = vxor.u32 %v4710, 2147483648
    %v4712 = vmul.f32 %v4711, 1.442695
    %v4713 = vpow.pop %v4712
    %v4714 = vadd.f32 %v4713, 1.0
    %v4715 = vrcp.pop %v4714
    %v4716 = vmul.f32 1.0, %v4715
    %v4717 = vmul.f32 %v4709, %v4698
    %v4718 = vadd.f32 %v4451, %v4717
    %v4719 = vtanh.pop %v4718
    %v4720 = vsub.f32 1.0, %v4716
    %v4721 = vmul.f32 %v4720, %v4719
    %v4722 = vmul.f32 %v4716, %v3809
    %v4723 = vadd.f32 %v4721, %v4722
    %v4724 = vpack.c.bf16 %v4723, %v4723
    %4725 = vmatprep.subr.bf16.mxu0 0
    %4726 = vmatpush1.bf16.msra.mxu0 %v1588
    %4727 = vmatprep.subr.bf16.mxu0 0
    %4728 = vmatpush1.bf16.msra.mxu0 %v1589
    %4729 = vmatprep.subr.bf16.mxu0 0
    %4730 = vmatpush1.bf16.msra.mxu0 %v1590
    %4731 = vmatprep.subr.bf16.mxu0 0
    %4732 = vmatpush1.bf16.msra.mxu0 %v1591
    %4733 = vmatprep.subr.bf16.mxu0 0
    %4734 = vmatpush1.bf16.msra.mxu0 %v1592
    %4735 = vmatprep.subr.bf16.mxu0 0
    %4736 = vmatpush1.bf16.msra.mxu0 %v1593
    %4737 = vmatprep.subr.bf16.mxu0 0
    %4738 = vmatpush1.bf16.msra.mxu0 %v1594
    %4739 = vmatprep.subr.bf16.mxu0 0
    %4740 = vmatpush1.bf16.msra.mxu0 %v1595
    %4741 = vmatprep.subr.bf16.mxu0 0
    %4742 = vmatpush1.bf16.msra.mxu0 0
    %4743 = vmatprep.subr.bf16.mxu0 0
    %4744 = vmatpush1.bf16.msra.mxu0 0
    %4745 = vmatprep.subr.bf16.mxu0 0
    %4746 = vmatpush1.bf16.msra.mxu0 0
    %4747 = vmatprep.subr.bf16.mxu0 0
    %4748 = vmatpush1.bf16.msra.mxu0 0
    %4749 = vmatprep.subr.bf16.mxu0 0
    %4750 = vmatpush1.bf16.msra.mxu0 0
    %4751 = vmatprep.subr.bf16.mxu0 0
    %4752 = vmatpush1.bf16.msra.mxu0 0
    %4753 = vmatprep.subr.bf16.mxu0 0
    %4754 = vmatpush1.bf16.msra.mxu0 0
    %4755 = vmatprep.subr.bf16.mxu0 0
    %4756 = vmatpush1.bf16.msra.mxu0 0
    %4757 = vmatprep.mubr.bf16.mxu0 0
    %4758 = vmatmul.mubr.bf16.gmra.mrb[0].mxu0 %v4724
    %v4759 = vpop.f32.mrb[0].mxu0
    %v4760 = vadd.f32 0.0, %v4759
    %v4761 = vpop.f32.mrb[0].mxu0
    %v4762 = vpop.f32.mrb[0].mxu0
    %v4763 = vpop.f32.mrb[0].mxu0
    %4764 = vdwg.mxu0
    %v4765 = vsel %vm2168, %v4760, -inf
    %4766 = vmax.xlane.f32.xlu0 %v4765
    %v4767 = vpop.xlane.xlu0 %4766
    %v4768 = vsub.f32 %v4760, %v4767
    %v4769 = vmul.f32 %v4768, 1.442695
    %v4770 = vpow.pop %v4769
    %v4771 = vsel %vm2168, %v4770, 0.0
    %4772 = vadd.xlane.f32.xlu0 %v4771
    %v4773 = vpop.xlane.xlu0 %4772
    %v4774 = vrcp.pop %v4773
    %v4775 = vmul.f32 %v4770, %v4774
    %v4776 = vpack.c.bf16 %v4775, %v4775
    %v4778 = vsel %vm2181, %v4776, 0
    %4780 = vmatprep.subr.bf16.mxu0 0
    %4781 = vmatpush1.bf16.msra.mxu0 %v2186
    %4782 = vmatprep.subr.bf16.mxu0 0
    %4783 = vmatpush1.bf16.msra.mxu0 0
    %4784 = vmatprep.subr.bf16.mxu0 0
    %4785 = vmatpush1.bf16.msra.mxu0 0
    %4786 = vmatprep.subr.bf16.mxu0 0
    %4787 = vmatpush1.bf16.msra.mxu0 0
    %4788 = vmatprep.subr.bf16.mxu0 0
    %4789 = vmatpush1.bf16.msra.mxu0 0
    %4790 = vmatprep.subr.bf16.mxu0 0
    %4791 = vmatpush1.bf16.msra.mxu0 0
    %4792 = vmatprep.subr.bf16.mxu0 0
    %4793 = vmatpush1.bf16.msra.mxu0 0
    %4794 = vmatprep.subr.bf16.mxu0 0
    %4795 = vmatpush1.bf16.msra.mxu0 0
    %4796 = vmatprep.subr.bf16.mxu0 0
    %4797 = vmatpush1.bf16.msra.mxu0 0
    %4798 = vmatprep.subr.bf16.mxu0 0
    %4799 = vmatpush1.bf16.msra.mxu0 0
    %4800 = vmatprep.subr.bf16.mxu0 0
    %4801 = vmatpush1.bf16.msra.mxu0 0
    %4802 = vmatprep.subr.bf16.mxu0 0
    %4803 = vmatpush1.bf16.msra.mxu0 0
    %4804 = vmatprep.subr.bf16.mxu0 0
    %4805 = vmatpush1.bf16.msra.mxu0 0
    %4806 = vmatprep.subr.bf16.mxu0 0
    %4807 = vmatpush1.bf16.msra.mxu0 0
    %4808 = vmatprep.subr.bf16.mxu0 0
    %4809 = vmatpush1.bf16.msra.mxu0 0
    %4810 = vmatprep.subr.bf16.mxu0 0
    %4811 = vmatpush1.bf16.msra.mxu0 0
    %4812 = vmatprep.mubr.bf16.mxu0 0
    %4813 = vmatmul.mubr.bf16.gmra.mrb[0].mxu0 %v4778
    %v4814 = vpop.f32.mrb[0].mxu0
    %v4815 = vadd.f32 0.0, %v4814
    %v4816 = vpop.f32.mrb[0].mxu0
    %v4817 = vpop.f32.mrb[0].mxu0
    %v4818 = vpop.f32.mrb[0].mxu0
    %4819 = vdwg.mxu0
    %v4820 = vpack.c.bf16 %v4815, %v4815
    %v4821 = vld [vmem:[#allocation10] sm:$0xf]
    %v4822 = vld [vmem:[#allocation10 + $0x4] sm:$0xf]
    %v4823 = vld [vmem:[#allocation10 + $0x8] sm:$0xf]
    %v4824 = vld [vmem:[#allocation10 + $0xc] sm:$0xf]
    %v4825 = vld [vmem:[#allocation10 + $0x10] sm:$0xf]
    %v4826 = vld [vmem:[#allocation10 + $0x14] sm:$0xf]
    %v4827 = vld [vmem:[#allocation10 + $0x18] sm:$0xf]
    %v4828 = vld [vmem:[#allocation10 + $0x1c] sm:$0xf]
    %v4829 = vld [vmem:[#allocation10 + $0x20] sm:$0xf]
    %v4830 = vld [vmem:[#allocation10 + $0x24] sm:$0xf]
    %v4831 = vld [vmem:[#allocation10 + $0x28] sm:$0xf]
    %v4832 = vld [vmem:[#allocation10 + $0x2c] sm:$0xf]
    %v4833 = vld [vmem:[#allocation10 + $0x30] sm:$0xf]
    %v4834 = vld [vmem:[#allocation10 + $0x34] sm:$0xf]
    %v4835 = vld [vmem:[#allocation10 + $0x38] sm:$0xf]
    %v4836 = vld [vmem:[#allocation10 + $0x3c] sm:$0xf]
    %v4837 = vld [vmem:[#allocation10 + $0x40] sm:$0xf]
    %v4838 = vld [vmem:[#allocation10 + $0x44] sm:$0xf]
    %v4839 = vld [vmem:[#allocation10 + $0x48] sm:$0xf]
    %v4840 = vld [vmem:[#allocation10 + $0x4c] sm:$0xf]
    %v4841 = vld [vmem:[#allocation10 + $0x50] sm:$0xf]
    %v4842 = vld [vmem:[#allocation10 + $0x54] sm:$0xf]
    %v4843 = vld [vmem:[#allocation10 + $0x58] sm:$0xf]
    %v4844 = vld [vmem:[#allocation10 + $0x5c] sm:$0xf]
    %v4845 = vld [vmem:[#allocation10 + $0x60] sm:$0xf]
    %v4846 = vld [vmem:[#allocation10 + $0x64] sm:$0xf]
    %v4847 = vld [vmem:[#allocation10 + $0x68] sm:$0xf]
    %v4848 = vld [vmem:[#allocation10 + $0x6c] sm:$0xf]
    %v4849 = vld [vmem:[#allocation10 + $0x70] sm:$0xf]
    %v4850 = vld [vmem:[#allocation10 + $0x74] sm:$0xf]
    %v4851 = vld [vmem:[#allocation10 + $0x78] sm:$0xf]
    %v4852 = vld [vmem:[#allocation10 + $0x7c] sm:$0xf]
    %v4885 = vunpack.c.l.b16 %v4821
    %v4886 = vunpack.c.l.b16 %v4822
    %v4887 = vunpack.c.l.b16 %v4823
    %v4888 = vunpack.c.l.b16 %v4824
    %v4889 = vunpack.c.l.b16 %v4825
    %v4890 = vunpack.c.l.b16 %v4826
    %v4891 = vunpack.c.l.b16 %v4827
    %v4892 = vunpack.c.l.b16 %v4828
    %v4893 = vunpack.c.l.b16 %v4829
    %v4894 = vunpack.c.l.b16 %v4830
    %v4895 = vunpack.c.l.b16 %v4831
    %v4896 = vunpack.c.l.b16 %v4832
    %v4897 = vunpack.c.l.b16 %v4833
    %v4898 = vunpack.c.l.b16 %v4834
    %v4899 = vunpack.c.l.b16 %v4835
    %v4900 = vunpack.c.l.b16 %v4836
    %v4901 = vunpack.c.l.b16 %v4837
    %v4902 = vunpack.c.l.b16 %v4838
    %v4903 = vunpack.c.l.b16 %v4839
    %v4904 = vunpack.c.l.b16 %v4840
    %v4905 = vunpack.c.l.b16 %v4841
    %v4906 = vunpack.c.l.b16 %v4842
    %v4907 = vunpack.c.l.b16 %v4843
    %v4908 = vunpack.c.l.b16 %v4844
    %v4909 = vunpack.c.l.b16 %v4845
    %v4910 = vunpack.c.l.b16 %v4846
    %v4911 = vunpack.c.l.b16 %v4847
    %v4912 = vunpack.c.l.b16 %v4848
    %v4913 = vunpack.c.l.b16 %v4849
    %v4914 = vunpack.c.l.b16 %v4850
    %v4915 = vunpack.c.l.b16 %v4851
    %v4916 = vunpack.c.l.b16 %v4852
    %v4917 = vpack.c.b16 %v4886, %v4885
    %v4918 = vpack.c.b16 %v4888, %v4887
    %v4919 = vpack.c.b16 %v4890, %v4889
    %v4920 = vpack.c.b16 %v4892, %v4891
    %v4921 = vpack.c.b16 %v4894, %v4893
    %v4922 = vpack.c.b16 %v4896, %v4895
    %v4923 = vpack.c.b16 %v4898, %v4897
    %v4924 = vpack.c.b16 %v4900, %v4899
    %v4925 = vpack.c.b16 %v4902, %v4901
    %v4926 = vpack.c.b16 %v4904, %v4903
    %v4927 = vpack.c.b16 %v4906, %v4905
    %v4928 = vpack.c.b16 %v4908, %v4907
    %v4929 = vpack.c.b16 %v4910, %v4909
    %v4930 = vpack.c.b16 %v4912, %v4911
    %v4931 = vpack.c.b16 %v4914, %v4913
    %v4932 = vpack.c.b16 %v4916, %v4915
    %4949 = vmatprep.subr.bf16.mxu0 0
    %4950 = vmatpush1.bf16.msra.mxu0 %v4917
    %4951 = vmatprep.subr.bf16.mxu0 0
    %4952 = vmatpush1.bf16.msra.mxu0 %v4918
    %4953 = vmatprep.subr.bf16.mxu0 0
    %4954 = vmatpush1.bf16.msra.mxu0 %v4919
    %4955 = vmatprep.subr.bf16.mxu0 0
    %4956 = vmatpush1.bf16.msra.mxu0 %v4920
    %4957 = vmatprep.subr.bf16.mxu0 0
    %4958 = vmatpush1.bf16.msra.mxu0 %v4921
    %4959 = vmatprep.subr.bf16.mxu0 0
    %4960 = vmatpush1.bf16.msra.mxu0 %v4922
    %4961 = vmatprep.subr.bf16.mxu0 0
    %4962 = vmatpush1.bf16.msra.mxu0 %v4923
    %4963 = vmatprep.subr.bf16.mxu0 0
    %4964 = vmatpush1.bf16.msra.mxu0 %v4924
    %4965 = vmatprep.subr.bf16.mxu0 0
    %4966 = vmatpush1.bf16.msra.mxu0 %v4925
    %4967 = vmatprep.subr.bf16.mxu0 0
    %4968 = vmatpush1.bf16.msra.mxu0 %v4926
    %4969 = vmatprep.subr.bf16.mxu0 0
    %4970 = vmatpush1.bf16.msra.mxu0 %v4927
    %4971 = vmatprep.subr.bf16.mxu0 0
    %4972 = vmatpush1.bf16.msra.mxu0 %v4928
    %4973 = vmatprep.subr.bf16.mxu0 0
    %4974 = vmatpush1.bf16.msra.mxu0 %v4929
    %4975 = vmatprep.subr.bf16.mxu0 0
    %4976 = vmatpush1.bf16.msra.mxu0 %v4930
    %4977 = vmatprep.subr.bf16.mxu0 0
    %4978 = vmatpush1.bf16.msra.mxu0 %v4931
    %4979 = vmatprep.subr.bf16.mxu0 0
    %4980 = vmatpush1.bf16.msra.mxu0 %v4932
    %4981 = vmatprep.mubr.bf16.mxu0 %v4820
    %4982 = vmatmul.mubr.bf16.gmra.mrb[0].mxu0 %v4724
    %v4983 = vpop.f32.mrb[0].mxu0
    %v4984 = vadd.f32 %v2360, %v4983
    %v4985 = vpop.f32.mrb[0].mxu0
    %v4986 = vpop.f32.mrb[0].mxu0
    %v4987 = vpop.f32.mrb[0].mxu0
    %4988 = vdwg.mxu0
    %v4989 = vtanh.pop %v4984
    %v4990 = vpack.c.bf16 %v4989, %v4989
    %v4991 = vld [vmem:[#allocation10 + $0x80] sm:$0xf]
    %v4992 = vld [vmem:[#allocation10 + $0x84] sm:$0xf]
    %v4993 = vld [vmem:[#allocation10 + $0x88] sm:$0xf]
    %v4994 = vld [vmem:[#allocation10 + $0x8c] sm:$0xf]
    %v4995 = vld [vmem:[#allocation10 + $0x90] sm:$0xf]
    %v4996 = vld [vmem:[#allocation10 + $0x94] sm:$0xf]
    %v4997 = vld [vmem:[#allocation10 + $0x98] sm:$0xf]
    %v4998 = vld [vmem:[#allocation10 + $0x9c] sm:$0xf]
    %v4999 = vld [vmem:[#allocation10 + $0xa0] sm:$0xf]
    %v5000 = vld [vmem:[#allocation10 + $0xa4] sm:$0xf]
    %v5001 = vld [vmem:[#allocation10 + $0xa8] sm:$0xf]
    %v5002 = vld [vmem:[#allocation10 + $0xac] sm:$0xf]
    %v5003 = vld [vmem:[#allocation10 + $0xb0] sm:$0xf]
    %v5004 = vld [vmem:[#allocation10 + $0xb4] sm:$0xf]
    %v5005 = vld [vmem:[#allocation10 + $0xb8] sm:$0xf]
    %v5006 = vld [vmem:[#allocation10 + $0xbc] sm:$0xf]
    %v5023 = vunpack.c.l.b16 %v4991
    %v5024 = vunpack.c.l.b16 %v4992
    %v5025 = vunpack.c.l.b16 %v4993
    %v5026 = vunpack.c.l.b16 %v4994
    %v5027 = vunpack.c.l.b16 %v4995
    %v5028 = vunpack.c.l.b16 %v4996
    %v5029 = vunpack.c.l.b16 %v4997
    %v5030 = vunpack.c.l.b16 %v4998
    %v5031 = vunpack.c.l.b16 %v4999
    %v5032 = vunpack.c.l.b16 %v5000
    %v5033 = vunpack.c.l.b16 %v5001
    %v5034 = vunpack.c.l.b16 %v5002
    %v5035 = vunpack.c.l.b16 %v5003
    %v5036 = vunpack.c.l.b16 %v5004
    %v5037 = vunpack.c.l.b16 %v5005
    %v5038 = vunpack.c.l.b16 %v5006
    %v5039 = vpack.c.b16 %v5024, %v5023
    %v5040 = vpack.c.b16 %v5026, %v5025
    %v5041 = vpack.c.b16 %v5028, %v5027
    %v5042 = vpack.c.b16 %v5030, %v5029
    %v5043 = vpack.c.b16 %v5032, %v5031
    %v5044 = vpack.c.b16 %v5034, %v5033
    %v5045 = vpack.c.b16 %v5036, %v5035
    %v5046 = vpack.c.b16 %v5038, %v5037
    %5055 = vmatprep.subr.bf16.mxu0 0
    %5056 = vmatpush1.bf16.msra.mxu0 %v5039
    %5057 = vmatprep.subr.bf16.mxu0 0
    %5058 = vmatpush1.bf16.msra.mxu0 %v5040
    %5059 = vmatprep.subr.bf16.mxu0 0
    %5060 = vmatpush1.bf16.msra.mxu0 %v5041
    %5061 = vmatprep.subr.bf16.mxu0 0
    %5062 = vmatpush1.bf16.msra.mxu0 %v5042
    %5063 = vmatprep.subr.bf16.mxu0 0
    %5064 = vmatpush1.bf16.msra.mxu0 %v5043
    %5065 = vmatprep.subr.bf16.mxu0 0
    %5066 = vmatpush1.bf16.msra.mxu0 %v5044
    %5067 = vmatprep.subr.bf16.mxu0 0
    %5068 = vmatpush1.bf16.msra.mxu0 %v5045
    %5069 = vmatprep.subr.bf16.mxu0 0
    %5070 = vmatpush1.bf16.msra.mxu0 %v5046
    %5071 = vmatprep.subr.bf16.mxu0 0
    %5072 = vmatpush1.bf16.msra.mxu0 0
    %5073 = vmatprep.subr.bf16.mxu0 0
    %5074 = vmatpush1.bf16.msra.mxu0 0
    %5075 = vmatprep.subr.bf16.mxu0 0
    %5076 = vmatpush1.bf16.msra.mxu0 0
    %5077 = vmatprep.subr.bf16.mxu0 0
    %5078 = vmatpush1.bf16.msra.mxu0 0
    %5079 = vmatprep.subr.bf16.mxu0 0
    %5080 = vmatpush1.bf16.msra.mxu0 0
    %5081 = vmatprep.subr.bf16.mxu0 0
    %5082 = vmatpush1.bf16.msra.mxu0 0
    %5083 = vmatprep.subr.bf16.mxu0 0
    %5084 = vmatpush1.bf16.msra.mxu0 0
    %5085 = vmatprep.subr.bf16.mxu0 0
    %5086 = vmatpush1.bf16.msra.mxu0 0
    %5087 = vmatprep.mubr.bf16.mxu0 0
    %5088 = vmatmul.mubr.bf16.gmra.mrb[0].mxu0 %v4990
    %v5089 = vpop.f32.mrb[0].mxu0
    %v5090 = vadd.f32 %v2471, %v5089
    %v5091 = vpop.f32.mrb[0].mxu0
    %v5092 = vpop.f32.mrb[0].mxu0
    %v5093 = vpop.f32.mrb[0].mxu0
    %5094 = vdwg.mxu0
    %v5095 = vsel %vm139, %v5090, -inf
    %5096 = vmax.xlane.f32.xlu0 %v5095
    %v5097 = vpop.xlane.xlu0 %5096
    %v5098 = vsub.f32 %v5090, %v5097
    %v5099 = vmul.f32 %v5098, 1.442695
    %v5100 = vpow.pop %v5099
    %v5101 = vsel %vm139, %v5100, 0.0
    %5102 = vadd.xlane.f32.xlu0 %v5101
    %v5103 = vpop.xlane.xlu0 %5102
    %v5104 = vrcp.pop %v5103
    %v5105 = vmul.f32 1.0, %v5104
    %vm5106 = vcmp.eq.f32.partialorder %v5090, %v5097
    %v5107 = vsel %vm5106, %v98, 128
    %v5108 = vsel %vm139, %v5107, 2147483647
    %v5109 = vand.u32 %v5108, 65535
    %v5110 = vshra.s32 %v5108, 16
    %v5111 = vcvt.s32.f32 %v5109
    %v5112 = vcvt.s32.f32 %v5110
    %5113 = vmin.xlane.f32.xlu0 %v5112
    %v5114 = vpop.xlane.xlu0 %5113
    %vm5115 = vcmp.eq.f32.partialorder %v5112, %v5114
    %v5116 = vsel %vm5115, %v5111, inf
    %5117 = vmin.xlane.f32.xlu0 %v5116
    %v5118 = vpop.xlane.xlu0 %5117
    %v5119 = vcvt.f32.s32 %v5118
    %v5120 = vcvt.f32.s32 %v5114
    %v5121 = vshll.u32 %v5120, 16
    %v5122 = vadd.s32 %v5121, %v5119
    %vm5123 = vcmp.lt.s32.totalorder %v5122, 127
    %v5124 = vsel %vm5123, %v5122, 127
    %vm5125 = vcmp.eq.s32.totalorder %v98, %v5124
    %v5126 = vsel %vm5125, 1, 0
    %v5127 = vcvt.s32.f32 %v5126
    %v5128 = vpack.c.bf16 %v5127, %v5127
    %v5129 = vld [vmem:[#allocation8] sm:$0xff]
    %v5130 = vld [vmem:[#allocation8 + $0x8] sm:$0xf]
    %v5131 = vld [vmem:[#allocation8 + $0xc] sm:$0xff]
    %v5132 = vld [vmem:[#allocation8 + $0x14] sm:$0xf]
    %v5133 = vld [vmem:[#allocation8 + $0x18] sm:$0xff]
    %v5134 = vld [vmem:[#allocation8 + $0x20] sm:$0xf]
    %v5135 = vld [vmem:[#allocation8 + $0x24] sm:$0xff]
    %v5136 = vld [vmem:[#allocation8 + $0x2c] sm:$0xf]
    %v5137 = vld [vmem:[#allocation8 + $0x30] sm:$0xff]
    %v5138 = vld [vmem:[#allocation8 + $0x38] sm:$0xf]
    %v5139 = vld [vmem:[#allocation8 + $0x3c] sm:$0xff]
    %v5140 = vld [vmem:[#allocation8 + $0x44] sm:$0xf]
    %v5141 = vld [vmem:[#allocation8 + $0x48] sm:$0xff]
    %v5142 = vld [vmem:[#allocation8 + $0x50] sm:$0xf]
    %v5143 = vld [vmem:[#allocation8 + $0x54] sm:$0xff]
    %v5144 = vld [vmem:[#allocation8 + $0x5c] sm:$0xf]
    %v5145 = vld [vmem:[#allocation8 + $0x60] sm:$0xff]
    %v5146 = vld [vmem:[#allocation8 + $0x68] sm:$0xf]
    %v5147 = vld [vmem:[#allocation8 + $0x6c] sm:$0xff]
    %v5148 = vld [vmem:[#allocation8 + $0x74] sm:$0xf]
    %v5149 = vld [vmem:[#allocation8 + $0x78] sm:$0xff]
    %v5150 = vld [vmem:[#allocation8 + $0x80] sm:$0xf]
    %v5151 = vld [vmem:[#allocation8 + $0x84] sm:$0xff]
    %v5152 = vld [vmem:[#allocation8 + $0x8c] sm:$0xf]
    %v5153 = vld [vmem:[#allocation8 + $0x90] sm:$0xff]
    %v5154 = vld [vmem:[#allocation8 + $0x98] sm:$0xf]
    %v5155 = vld [vmem:[#allocation8 + $0x9c] sm:$0xff]
    %v5156 = vld [vmem:[#allocation8 + $0xa4] sm:$0xf]
    %v5157 = vld [vmem:[#allocation8 + $0xa8] sm:$0xff]
    %v5158 = vld [vmem:[#allocation8 + $0xb0] sm:$0xf]
    %v5159 = vld [vmem:[#allocation8 + $0xb4] sm:$0xff]
    %v5160 = vld [vmem:[#allocation8 + $0xbc] sm:$0xf]
    %v5193 = vunpack.c.l.b16 %v5129
    %v5194 = vunpack.c.h.b16 %v5129
    %v5195 = vunpack.c.l.b16 %v5130
    %v5196 = vunpack.c.l.b16 %v5131
    %v5197 = vunpack.c.h.b16 %v5131
    %v5198 = vunpack.c.l.b16 %v5132
    %v5199 = vunpack.c.l.b16 %v5133
    %v5200 = vunpack.c.h.b16 %v5133
    %v5201 = vunpack.c.l.b16 %v5134
    %v5202 = vunpack.c.l.b16 %v5135
    %v5203 = vunpack.c.h.b16 %v5135
    %v5204 = vunpack.c.l.b16 %v5136
    %v5205 = vunpack.c.l.b16 %v5137
    %v5206 = vunpack.c.h.b16 %v5137
    %v5207 = vunpack.c.l.b16 %v5138
    %v5208 = vunpack.c.l.b16 %v5139
    %v5209 = vunpack.c.h.b16 %v5139
    %v5210 = vunpack.c.l.b16 %v5140
    %v5211 = vunpack.c.l.b16 %v5141
    %v5212 = vunpack.c.h.b16 %v5141
    %v5213 = vunpack.c.l.b16 %v5142
    %v5214 = vunpack.c.l.b16 %v5143
    %v5215 = vunpack.c.h.b16 %v5143
    %v5216 = vunpack.c.l.b16 %v5144
    %v5217 = vunpack.c.l.b16 %v5145
    %v5218 = vunpack.c.h.b16 %v5145
    %v5219 = vunpack.c.l.b16 %v5146
    %v5220 = vunpack.c.l.b16 %v5147
    %v5221 = vunpack.c.h.b16 %v5147
    %v5222 = vunpack.c.l.b16 %v5148
    %v5223 = vunpack.c.l.b16 %v5149
    %v5224 = vunpack.c.h.b16 %v5149
    %v5225 = vunpack.c.l.b16 %v5150
    %v5226 = vunpack.c.l.b16 %v5151
    %v5227 = vunpack.c.h.b16 %v5151
    %v5228 = vunpack.c.l.b16 %v5152
    %v5229 = vunpack.c.l.b16 %v5153
    %v5230 = vunpack.c.h.b16 %v5153
    %v5231 = vunpack.c.l.b16 %v5154
    %v5232 = vunpack.c.l.b16 %v5155
    %v5233 = vunpack.c.h.b16 %v5155
    %v5234 = vunpack.c.l.b16 %v5156
    %v5235 = vunpack.c.l.b16 %v5157
    %v5236 = vunpack.c.h.b16 %v5157
    %v5237 = vunpack.c.l.b16 %v5158
    %v5238 = vunpack.c.l.b16 %v5159
    %v5239 = vunpack.c.h.b16 %v5159
    %v5240 = vunpack.c.l.b16 %v5160
    %v5241 = vpack.c.b16 %v5196, %v5193
    %v5242 = vpack.c.b16 %v5197, %v5194
    %v5243 = vpack.c.b16 %v5198, %v5195
    %v5244 = vpack.c.b16 %v5202, %v5199
    %v5245 = vpack.c.b16 %v5203, %v5200
    %v5246 = vpack.c.b16 %v5204, %v5201
    %v5247 = vpack.c.b16 %v5208, %v5205
    %v5248 = vpack.c.b16 %v5209, %v5206
    %v5249 = vpack.c.b16 %v5210, %v5207
    %v5250 = vpack.c.b16 %v5214, %v5211
    %v5251 = vpack.c.b16 %v5215, %v5212
    %v5252 = vpack.c.b16 %v5216, %v5213
    %v5253 = vpack.c.b16 %v5220, %v5217
    %v5254 = vpack.c.b16 %v5221, %v5218
    %v5255 = vpack.c.b16 %v5222, %v5219
    %v5256 = vpack.c.b16 %v5226, %v5223
    %v5257 = vpack.c.b16 %v5227, %v5224
    %v5258 = vpack.c.b16 %v5228, %v5225
    %v5259 = vpack.c.b16 %v5232, %v5229
    %v5260 = vpack.c.b16 %v5233, %v5230
    %v5261 = vpack.c.b16 %v5234, %v5231
    %v5262 = vpack.c.b16 %v5238, %v5235
    %v5263 = vpack.c.b16 %v5239, %v5236
    %v5264 = vpack.c.b16 %v5240, %v5237
    %5289 = vmatprep.subr.bf16.mxu0 %v5242
    %5290 = vmatpush1.bf16.msra.mxu0 %v5241
    %5291 = vmatprep.subr.bf16.mxu0 %v5245
    %5292 = vmatpush1.bf16.msra.mxu0 %v5244
    %5293 = vmatprep.subr.bf16.mxu0 %v5248
    %5294 = vmatpush1.bf16.msra.mxu0 %v5247
    %5295 = vmatprep.subr.bf16.mxu0 %v5251
    %5296 = vmatpush1.bf16.msra.mxu0 %v5250
    %5297 = vmatprep.subr.bf16.mxu0 %v5254
    %5298 = vmatpush1.bf16.msra.mxu0 %v5253
    %5299 = vmatprep.subr.bf16.mxu0 %v5257
    %5300 = vmatpush1.bf16.msra.mxu0 %v5256
    %5301 = vmatprep.subr.bf16.mxu0 %v5260
    %5302 = vmatpush1.bf16.msra.mxu0 %v5259
    %5303 = vmatprep.subr.bf16.mxu0 %v5263
    %5304 = vmatpush1.bf16.msra.mxu0 %v5262
    %5305 = vmatprep.subr.bf16.mxu0 0
    %5306 = vmatpush1.bf16.msra.mxu0 0
    %5307 = vmatprep.subr.bf16.mxu0 0
    %5308 = vmatpush1.bf16.msra.mxu0 0
    %5309 = vmatprep.subr.bf16.mxu0 0
    %5310 = vmatpush1.bf16.msra.mxu0 0
    %5311 = vmatprep.subr.bf16.mxu0 0
    %5312 = vmatpush1.bf16.msra.mxu0 0
    %5313 = vmatprep.subr.bf16.mxu0 0
    %5314 = vmatpush1.bf16.msra.mxu0 0
    %5315 = vmatprep.subr.bf16.mxu0 0
    %5316 = vmatpush1.bf16.msra.mxu0 0
    %5317 = vmatprep.subr.bf16.mxu0 0
    %5318 = vmatpush1.bf16.msra.mxu0 0
    %5319 = vmatprep.subr.bf16.mxu0 0
    %5320 = vmatpush1.bf16.msra.mxu0 0
    %5321 = vmatprep.mubr.bf16.mxu0 0
    %5322 = vmatmul.mubr.bf16.gmra.mrb[0].mxu0 %v5128
    %v5323 = vpop.f32.mrb[0].mxu0
    %v5324 = vadd.f32 0.0, %v5323
    %v5325 = vpop.f32.mrb[0].mxu0
    %v5326 = vadd.f32 0.0, %v5325
    %v5327 = vpop.f32.mrb[0].mxu0
    %v5328 = vpop.f32.mrb[0].mxu0
    %5329 = vdwg.mxu0
    %5330 = vmatprep.subr.bf16.mxu0 0
    %5331 = vmatpush1.bf16.msra.mxu0 %v5243
    %5332 = vmatprep.subr.bf16.mxu0 0
    %5333 = vmatpush1.bf16.msra.mxu0 %v5246
    %5334 = vmatprep.subr.bf16.mxu0 0
    %5335 = vmatpush1.bf16.msra.mxu0 %v5249
    %5336 = vmatprep.subr.bf16.mxu0 0
    %5337 = vmatpush1.bf16.msra.mxu0 %v5252
    %5338 = vmatprep.subr.bf16.mxu0 0
    %5339 = vmatpush1.bf16.msra.mxu0 %v5255
    %5340 = vmatprep.subr.bf16.mxu0 0
    %5341 = vmatpush1.bf16.msra.mxu0 %v5258
    %5342 = vmatprep.subr.bf16.mxu0 0
    %5343 = vmatpush1.bf16.msra.mxu0 %v5261
    %5344 = vmatprep.subr.bf16.mxu0 0
    %5345 = vmatpush1.bf16.msra.mxu0 %v5264
    %5346 = vmatprep.subr.bf16.mxu0 0
    %5347 = vmatpush1.bf16.msra.mxu0 0
    %5348 = vmatprep.subr.bf16.mxu0 0
    %5349 = vmatpush1.bf16.msra.mxu0 0
    %5350 = vmatprep.subr.bf16.mxu0 0
    %5351 = vmatpush1.bf16.msra.mxu0 0
    %5352 = vmatprep.subr.bf16.mxu0 0
    %5353 = vmatpush1.bf16.msra.mxu0 0
    %5354 = vmatprep.subr.bf16.mxu0 0
    %5355 = vmatpush1.bf16.msra.mxu0 0
    %5356 = vmatprep.subr.bf16.mxu0 0
    %5357 = vmatpush1.bf16.msra.mxu0 0
    %5358 = vmatprep.subr.bf16.mxu0 0
    %5359 = vmatpush1.bf16.msra.mxu0 0
    %5360 = vmatprep.subr.bf16.mxu0 0
    %5361 = vmatpush1.bf16.msra.mxu0 0
    %5362 = vmatprep.mubr.bf16.mxu0 0
    %5363 = vmatmul.mubr.bf16.gmra.mrb[0].mxu0 %v5128
    %v5364 = vpop.f32.mrb[0].mxu0
    %v5365 = vadd.f32 0.0, %v5364
    %v5366 = vpop.f32.mrb[0].mxu0
    %v5367 = vpop.f32.mrb[0].mxu0
    %v5368 = vpop.f32.mrb[0].mxu0
    %5369 = vdwg.mxu0
    %s5370 = vtos %v5124
    %s5371 = scalar_lea.smem [#allocation13], 3
    %5372 = sst [smem:[%s5371]] %s5370
    %s5373 = vtos %v5105
    %s5374 = scalar_lea.smem [#allocation14], 3
    %5375 = sst [smem:[%s5374]] %s5373
    %v5376 = vld [vmem:[#allocation8 + $0xc0] sm:$0xff]
    %v5377 = vld [vmem:[#allocation8 + $0xc8] sm:$0xf]
    %v5378 = vld [vmem:[#allocation8 + $0xcc] sm:$0xff]
    %v5379 = vld [vmem:[#allocation8 + $0xd4] sm:$0xf]
    %v5380 = vld [vmem:[#allocation8 + $0xd8] sm:$0xff]
    %v5381 = vld [vmem:[#allocation8 + $0xe0] sm:$0xf]
    %v5382 = vld [vmem:[#allocation8 + $0xe4] sm:$0xff]
    %v5383 = vld [vmem:[#allocation8 + $0xec] sm:$0xf]
    %v5384 = vld [vmem:[#allocation8 + $0xf0] sm:$0xff]
    %v5385 = vld [vmem:[#allocation8 + $0xf8] sm:$0xf]
    %v5386 = vld [vmem:[#allocation8 + $0xfc] sm:$0xff]
    %v5387 = vld [vmem:[#allocation8 + $0x104] sm:$0xf]
    %v5388 = vld [vmem:[#allocation8 + $0x108] sm:$0xff]
    %v5389 = vld [vmem:[#allocation8 + $0x110] sm:$0xf]
    %v5390 = vld [vmem:[#allocation8 + $0x114] sm:$0xff]
    %v5391 = vld [vmem:[#allocation8 + $0x11c] sm:$0xf]
    %v5392 = vld [vmem:[#allocation8 + $0x120] sm:$0xff]
    %v5393 = vld [vmem:[#allocation8 + $0x128] sm:$0xf]
    %v5394 = vld [vmem:[#allocation8 + $0x12c] sm:$0xff]
    %v5395 = vld [vmem:[#allocation8 + $0x134] sm:$0xf]
    %v5396 = vld [vmem:[#allocation8 + $0x138] sm:$0xff]
    %v5397 = vld [vmem:[#allocation8 + $0x140] sm:$0xf]
    %v5398 = vld [vmem:[#allocation8 + $0x144] sm:$0xff]
    %v5399 = vld [vmem:[#allocation8 + $0x14c] sm:$0xf]
    %v5400 = vld [vmem:[#allocation8 + $0x150] sm:$0xff]
    %v5401 = vld [vmem:[#allocation8 + $0x158] sm:$0xf]
    %v5402 = vld [vmem:[#allocation8 + $0x15c] sm:$0xff]
    %v5403 = vld [vmem:[#allocation8 + $0x164] sm:$0xf]
    %v5404 = vld [vmem:[#allocation8 + $0x168] sm:$0xff]
    %v5405 = vld [vmem:[#allocation8 + $0x170] sm:$0xf]
    %v5406 = vld [vmem:[#allocation8 + $0x174] sm:$0xff]
    %v5407 = vld [vmem:[#allocation8 + $0x17c] sm:$0xf]
    %v5440 = vunpack.c.l.b16 %v5376
    %v5441 = vunpack.c.h.b16 %v5376
    %v5442 = vunpack.c.l.b16 %v5377
    %v5443 = vunpack.c.l.b16 %v5378
    %v5444 = vunpack.c.h.b16 %v5378
    %v5445 = vunpack.c.l.b16 %v5379
    %v5446 = vunpack.c.l.b16 %v5380
    %v5447 = vunpack.c.h.b16 %v5380
    %v5448 = vunpack.c.l.b16 %v5381
    %v5449 = vunpack.c.l.b16 %v5382
    %v5450 = vunpack.c.h.b16 %v5382
    %v5451 = vunpack.c.l.b16 %v5383
    %v5452 = vunpack.c.l.b16 %v5384
    %v5453 = vunpack.c.h.b16 %v5384
    %v5454 = vunpack.c.l.b16 %v5385
    %v5455 = vunpack.c.l.b16 %v5386
    %v5456 = vunpack.c.h.b16 %v5386
    %v5457 = vunpack.c.l.b16 %v5387
    %v5458 = vunpack.c.l.b16 %v5388
    %v5459 = vunpack.c.h.b16 %v5388
    %v5460 = vunpack.c.l.b16 %v5389
    %v5461 = vunpack.c.l.b16 %v5390
    %v5462 = vunpack.c.h.b16 %v5390
    %v5463 = vunpack.c.l.b16 %v5391
    %v5464 = vunpack.c.l.b16 %v5392
    %v5465 = vunpack.c.h.b16 %v5392
    %v5466 = vunpack.c.l.b16 %v5393
    %v5467 = vunpack.c.l.b16 %v5394
    %v5468 = vunpack.c.h.b16 %v5394
    %v5469 = vunpack.c.l.b16 %v5395
    %v5470 = vunpack.c.l.b16 %v5396
    %v5471 = vunpack.c.h.b16 %v5396
    %v5472 = vunpack.c.l.b16 %v5397
    %v5473 = vunpack.c.l.b16 %v5398
    %v5474 = vunpack.c.h.b16 %v5398
    %v5475 = vunpack.c.l.b16 %v5399
    %v5476 = vunpack.c.l.b16 %v5400
    %v5477 = vunpack.c.h.b16 %v5400
    %v5478 = vunpack.c.l.b16 %v5401
    %v5479 = vunpack.c.l.b16 %v5402
    %v5480 = vunpack.c.h.b16 %v5402
    %v5481 = vunpack.c.l.b16 %v5403
    %v5482 = vunpack.c.l.b16 %v5404
    %v5483 = vunpack.c.h.b16 %v5404
    %v5484 = vunpack.c.l.b16 %v5405
    %v5485 = vunpack.c.l.b16 %v5406
    %v5486 = vunpack.c.h.b16 %v5406
    %v5487 = vunpack.c.l.b16 %v5407
    %v5488 = vpack.c.b16 %v5443, %v5440
    %v5489 = vpack.c.b16 %v5444, %v5441
    %v5490 = vpack.c.b16 %v5445, %v5442
    %v5491 = vpack.c.b16 %v5449, %v5446
    %v5492 = vpack.c.b16 %v5450, %v5447
    %v5493 = vpack.c.b16 %v5451, %v5448
    %v5494 = vpack.c.b16 %v5455, %v5452
    %v5495 = vpack.c.b16 %v5456, %v5453
    %v5496 = vpack.c.b16 %v5457, %v5454
    %v5497 = vpack.c.b16 %v5461, %v5458
    %v5498 = vpack.c.b16 %v5462, %v5459
    %v5499 = vpack.c.b16 %v5463, %v5460
    %v5500 = vpack.c.b16 %v5467, %v5464
    %v5501 = vpack.c.b16 %v5468, %v5465
    %v5502 = vpack.c.b16 %v5469, %v5466
    %v5503 = vpack.c.b16 %v5473, %v5470
    %v5504 = vpack.c.b16 %v5474, %v5471
    %v5505 = vpack.c.b16 %v5475, %v5472
    %v5506 = vpack.c.b16 %v5479, %v5476
    %v5507 = vpack.c.b16 %v5480, %v5477
    %v5508 = vpack.c.b16 %v5481, %v5478
    %v5509 = vpack.c.b16 %v5485, %v5482
    %v5510 = vpack.c.b16 %v5486, %v5483
    %v5511 = vpack.c.b16 %v5487, %v5484
    %5536 = vmatprep.subr.bf16.mxu0 %v5489
    %5537 = vmatpush1.bf16.msra.mxu0 %v5488
    %5538 = vmatprep.subr.bf16.mxu0 %v5492
    %5539 = vmatpush1.bf16.msra.mxu0 %v5491
    %5540 = vmatprep.subr.bf16.mxu0 %v5495
    %5541 = vmatpush1.bf16.msra.mxu0 %v5494
    %5542 = vmatprep.subr.bf16.mxu0 %v5498
    %5543 = vmatpush1.bf16.msra.mxu0 %v5497
    %5544 = vmatprep.subr.bf16.mxu0 %v5501
    %5545 = vmatpush1.bf16.msra.mxu0 %v5500
    %5546 = vmatprep.subr.bf16.mxu0 %v5504
    %5547 = vmatpush1.bf16.msra.mxu0 %v5503
    %5548 = vmatprep.subr.bf16.mxu0 %v5507
    %5549 = vmatpush1.bf16.msra.mxu0 %v5506
    %5550 = vmatprep.subr.bf16.mxu0 %v5510
    %5551 = vmatpush1.bf16.msra.mxu0 %v5509
    %5552 = vmatprep.subr.bf16.mxu0 0
    %5553 = vmatpush1.bf16.msra.mxu0 0
    %5554 = vmatprep.subr.bf16.mxu0 0
    %5555 = vmatpush1.bf16.msra.mxu0 0
    %5556 = vmatprep.subr.bf16.mxu0 0
    %5557 = vmatpush1.bf16.msra.mxu0 0
    %5558 = vmatprep.subr.bf16.mxu0 0
    %5559 = vmatpush1.bf16.msra.mxu0 0
    %5560 = vmatprep.subr.bf16.mxu0 0
    %5561 = vmatpush1.bf16.msra.mxu0 0
    %5562 = vmatprep.subr.bf16.mxu0 0
    %5563 = vmatpush1.bf16.msra.mxu0 0
    %5564 = vmatprep.subr.bf16.mxu0 0
    %5565 = vmatpush1.bf16.msra.mxu0 0
    %5566 = vmatprep.subr.bf16.mxu0 0
    %5567 = vmatpush1.bf16.msra.mxu0 0
    %5568 = vmatprep.mubr.bf16.mxu0 0
    %5569 = vmatmul.mubr.bf16.gmra.mrb[0].mxu0 %v4724
    %v5570 = vpop.f32.mrb[0].mxu0
    %v5571 = vadd.f32 %v2010, %v5570
    %v5572 = vpop.f32.mrb[0].mxu0
    %v5573 = vadd.f32 %v2014, %v5572
    %v5574 = vpop.f32.mrb[0].mxu0
    %v5575 = vpop.f32.mrb[0].mxu0
    %5576 = vdwg.mxu0
    %5577 = vmatprep.subr.bf16.mxu0 0
    %5578 = vmatpush1.bf16.msra.mxu0 %v5490
    %5579 = vmatprep.subr.bf16.mxu0 0
    %5580 = vmatpush1.bf16.msra.mxu0 %v5493
    %5581 = vmatprep.subr.bf16.mxu0 0
    %5582 = vmatpush1.bf16.msra.mxu0 %v5496
    %5583 = vmatprep.subr.bf16.mxu0 0
    %5584 = vmatpush1.bf16.msra.mxu0 %v5499
    %5585 = vmatprep.subr.bf16.mxu0 0
    %5586 = vmatpush1.bf16.msra.mxu0 %v5502
    %5587 = vmatprep.subr.bf16.mxu0 0
    %5588 = vmatpush1.bf16.msra.mxu0 %v5505
    %5589 = vmatprep.subr.bf16.mxu0 0
    %5590 = vmatpush1.bf16.msra.mxu0 %v5508
    %5591 = vmatprep.subr.bf16.mxu0 0
    %5592 = vmatpush1.bf16.msra.mxu0 %v5511
    %5593 = vmatprep.subr.bf16.mxu0 0
    %5594 = vmatpush1.bf16.msra.mxu0 0
    %5595 = vmatprep.subr.bf16.mxu0 0
    %5596 = vmatpush1.bf16.msra.mxu0 0
    %5597 = vmatprep.subr.bf16.mxu0 0
    %5598 = vmatpush1.bf16.msra.mxu0 0
    %5599 = vmatprep.subr.bf16.mxu0 0
    %5600 = vmatpush1.bf16.msra.mxu0 0
    %5601 = vmatprep.subr.bf16.mxu0 0
    %5602 = vmatpush1.bf16.msra.mxu0 0
    %5603 = vmatprep.subr.bf16.mxu0 0
    %5604 = vmatpush1.bf16.msra.mxu0 0
    %5605 = vmatprep.subr.bf16.mxu0 0
    %5606 = vmatpush1.bf16.msra.mxu0 0
    %5607 = vmatprep.subr.bf16.mxu0 0
    %5608 = vmatpush1.bf16.msra.mxu0 0
    %5609 = vmatprep.mubr.bf16.mxu0 0
    %5610 = vmatmul.mubr.bf16.gmra.mrb[0].mxu0 %v4724
    %v5611 = vpop.f32.mrb[0].mxu0
    %v5612 = vadd.f32 %v2018, %v5611
    %v5613 = vpop.f32.mrb[0].mxu0
    %v5614 = vpop.f32.mrb[0].mxu0
    %v5615 = vpop.f32.mrb[0].mxu0
    %5616 = vdwg.mxu0
    %v5617 = vadd.f32 %v5324, %v5571
    %v5618 = vxor.u32 %v5617, 2147483648
    %v5619 = vmul.f32 %v5618, 1.442695
    %v5620 = vpow.pop %v5619
    %v5621 = vadd.f32 %v5620, 1.0
    %v5622 = vrcp.pop %v5621
    %v5623 = vmul.f32 1.0, %v5622
    %v5624 = vadd.f32 %v5326, %v5573
    %v5625 = vxor.u32 %v5624, 2147483648
    %v5626 = vmul.f32 %v5625, 1.442695
    %v5627 = vpow.pop %v5626
    %v5628 = vadd.f32 %v5627, 1.0
    %v5629 = vrcp.pop %v5628
    %v5630 = vmul.f32 1.0, %v5629
    %v5631 = vmul.f32 %v5623, %v5612
    %v5632 = vadd.f32 %v5365, %v5631
    %v5633 = vtanh.pop %v5632
    %v5634 = vsub.f32 1.0, %v5630
    %v5635 = vmul.f32 %v5634, %v5633
    %v5636 = vmul.f32 %v5630, %v4723
    %v5637 = vadd.f32 %v5635, %v5636
    %v5638 = vpack.c.bf16 %v5637, %v5637
    %5639 = vmatprep.subr.bf16.mxu0 0
    %5640 = vmatpush1.bf16.msra.mxu0 %v1588
    %5641 = vmatprep.subr.bf16.mxu0 0
    %5642 = vmatpush1.bf16.msra.mxu0 %v1589
    %5643 = vmatprep.subr.bf16.mxu0 0
    %5644 = vmatpush1.bf16.msra.mxu0 %v1590
    %5645 = vmatprep.subr.bf16.mxu0 0
    %5646 = vmatpush1.bf16.msra.mxu0 %v1591
    %5647 = vmatprep.subr.bf16.mxu0 0
    %5648 = vmatpush1.bf16.msra.mxu0 %v1592
    %5649 = vmatprep.subr.bf16.mxu0 0
    %5650 = vmatpush1.bf16.msra.mxu0 %v1593
    %5651 = vmatprep.subr.bf16.mxu0 0
    %5652 = vmatpush1.bf16.msra.mxu0 %v1594
    %5653 = vmatprep.subr.bf16.mxu0 0
    %5654 = vmatpush1.bf16.msra.mxu0 %v1595
    %5655 = vmatprep.subr.bf16.mxu0 0
    %5656 = vmatpush1.bf16.msra.mxu0 0
    %5657 = vmatprep.subr.bf16.mxu0 0
    %5658 = vmatpush1.bf16.msra.mxu0 0
    %5659 = vmatprep.subr.bf16.mxu0 0
    %5660 = vmatpush1.bf16.msra.mxu0 0
    %5661 = vmatprep.subr.bf16.mxu0 0
    %5662 = vmatpush1.bf16.msra.mxu0 0
    %5663 = vmatprep.subr.bf16.mxu0 0
    %5664 = vmatpush1.bf16.msra.mxu0 0
    %5665 = vmatprep.subr.bf16.mxu0 0
    %5666 = vmatpush1.bf16.msra.mxu0 0
    %5667 = vmatprep.subr.bf16.mxu0 0
    %5668 = vmatpush1.bf16.msra.mxu0 0
    %5669 = vmatprep.subr.bf16.mxu0 0
    %5670 = vmatpush1.bf16.msra.mxu0 0
    %5671 = vmatprep.mubr.bf16.mxu0 0
    %5672 = vmatmul.mubr.bf16.gmra.mrb[0].mxu0 %v5638
    %v5673 = vpop.f32.mrb[0].mxu0
    %v5674 = vadd.f32 0.0, %v5673
    %v5675 = vpop.f32.mrb[0].mxu0
    %v5676 = vpop.f32.mrb[0].mxu0
    %v5677 = vpop.f32.mrb[0].mxu0
    %5678 = vdwg.mxu0
    %v5679 = vsel %vm2168, %v5674, -inf
    %5680 = vmax.xlane.f32.xlu0 %v5679
    %v5681 = vpop.xlane.xlu0 %5680
    %v5682 = vsub.f32 %v5674, %v5681
    %v5683 = vmul.f32 %v5682, 1.442695
    %v5684 = vpow.pop %v5683
    %v5685 = vsel %vm2168, %v5684, 0.0
    %5686 = vadd.xlane.f32.xlu0 %v5685
    %v5687 = vpop.xlane.xlu0 %5686
    %v5688 = vrcp.pop %v5687
    %v5689 = vmul.f32 %v5684, %v5688
    %v5690 = vpack.c.bf16 %v5689, %v5689
    %v5692 = vsel %vm2181, %v5690, 0
    %5694 = vmatprep.subr.bf16.mxu0 0
    %5695 = vmatpush1.bf16.msra.mxu0 %v2186
    %5696 = vmatprep.subr.bf16.mxu0 0
    %5697 = vmatpush1.bf16.msra.mxu0 0
    %5698 = vmatprep.subr.bf16.mxu0 0
    %5699 = vmatpush1.bf16.msra.mxu0 0
    %5700 = vmatprep.subr.bf16.mxu0 0
    %5701 = vmatpush1.bf16.msra.mxu0 0
    %5702 = vmatprep.subr.bf16.mxu0 0
    %5703 = vmatpush1.bf16.msra.mxu0 0
    %5704 = vmatprep.subr.bf16.mxu0 0
    %5705 = vmatpush1.bf16.msra.mxu0 0
    %5706 = vmatprep.subr.bf16.mxu0 0
    %5707 = vmatpush1.bf16.msra.mxu0 0
    %5708 = vmatprep.subr.bf16.mxu0 0
    %5709 = vmatpush1.bf16.msra.mxu0 0
    %5710 = vmatprep.subr.bf16.mxu0 0
    %5711 = vmatpush1.bf16.msra.mxu0 0
    %5712 = vmatprep.subr.bf16.mxu0 0
    %5713 = vmatpush1.bf16.msra.mxu0 0
    %5714 = vmatprep.subr.bf16.mxu0 0
    %5715 = vmatpush1.bf16.msra.mxu0 0
    %5716 = vmatprep.subr.bf16.mxu0 0
    %5717 = vmatpush1.bf16.msra.mxu0 0
    %5718 = vmatprep.subr.bf16.mxu0 0
    %5719 = vmatpush1.bf16.msra.mxu0 0
    %5720 = vmatprep.subr.bf16.mxu0 0
    %5721 = vmatpush1.bf16.msra.mxu0 0
    %5722 = vmatprep.subr.bf16.mxu0 0
    %5723 = vmatpush1.bf16.msra.mxu0 0
    %5724 = vmatprep.subr.bf16.mxu0 0
    %5725 = vmatpush1.bf16.msra.mxu0 0
    %5726 = vmatprep.mubr.bf16.mxu0 0
    %5727 = vmatmul.mubr.bf16.gmra.mrb[0].mxu0 %v5692
    %v5728 = vpop.f32.mrb[0].mxu0
    %v5729 = vadd.f32 0.0, %v5728
    %v5730 = vpop.f32.mrb[0].mxu0
    %v5731 = vpop.f32.mrb[0].mxu0
    %v5732 = vpop.f32.mrb[0].mxu0
    %5733 = vdwg.mxu0
    %v5734 = vpack.c.bf16 %v5729, %v5729
    %v5735 = vld [vmem:[#allocation10] sm:$0xf]
    %v5736 = vld [vmem:[#allocation10 + $0x4] sm:$0xf]
    %v5737 = vld [vmem:[#allocation10 + $0x8] sm:$0xf]
    %v5738 = vld [vmem:[#allocation10 + $0xc] sm:$0xf]
    %v5739 = vld [vmem:[#allocation10 + $0x10] sm:$0xf]
    %v5740 = vld [vmem:[#allocation10 + $0x14] sm:$0xf]
    %v5741 = vld [vmem:[#allocation10 + $0x18] sm:$0xf]
    %v5742 = vld [vmem:[#allocation10 + $0x1c] sm:$0xf]
    %v5743 = vld [vmem:[#allocation10 + $0x20] sm:$0xf]
    %v5744 = vld [vmem:[#allocation10 + $0x24] sm:$0xf]
    %v5745 = vld [vmem:[#allocation10 + $0x28] sm:$0xf]
    %v5746 = vld [vmem:[#allocation10 + $0x2c] sm:$0xf]
    %v5747 = vld [vmem:[#allocation10 + $0x30] sm:$0xf]
    %v5748 = vld [vmem:[#allocation10 + $0x34] sm:$0xf]
    %v5749 = vld [vmem:[#allocation10 + $0x38] sm:$0xf]
    %v5750 = vld [vmem:[#allocation10 + $0x3c] sm:$0xf]
    %v5751 = vld [vmem:[#allocation10 + $0x40] sm:$0xf]
    %v5752 = vld [vmem:[#allocation10 + $0x44] sm:$0xf]
    %v5753 = vld [vmem:[#allocation10 + $0x48] sm:$0xf]
    %v5754 = vld [vmem:[#allocation10 + $0x4c] sm:$0xf]
    %v5755 = vld [vmem:[#allocation10 + $0x50] sm:$0xf]
    %v5756 = vld [vmem:[#allocation10 + $0x54] sm:$0xf]
    %v5757 = vld [vmem:[#allocation10 + $0x58] sm:$0xf]
    %v5758 = vld [vmem:[#allocation10 + $0x5c] sm:$0xf]
    %v5759 = vld [vmem:[#allocation10 + $0x60] sm:$0xf]
    %v5760 = vld [vmem:[#allocation10 + $0x64] sm:$0xf]
    %v5761 = vld [vmem:[#allocation10 + $0x68] sm:$0xf]
    %v5762 = vld [vmem:[#allocation10 + $0x6c] sm:$0xf]
    %v5763 = vld [vmem:[#allocation10 + $0x70] sm:$0xf]
    %v5764 = vld [vmem:[#allocation10 + $0x74] sm:$0xf]
    %v5765 = vld [vmem:[#allocation10 + $0x78] sm:$0xf]
    %v5766 = vld [vmem:[#allocation10 + $0x7c] sm:$0xf]
    %v5799 = vunpack.c.l.b16 %v5735
    %v5800 = vunpack.c.l.b16 %v5736
    %v5801 = vunpack.c.l.b16 %v5737
    %v5802 = vunpack.c.l.b16 %v5738
    %v5803 = vunpack.c.l.b16 %v5739
    %v5804 = vunpack.c.l.b16 %v5740
    %v5805 = vunpack.c.l.b16 %v5741
    %v5806 = vunpack.c.l.b16 %v5742
    %v5807 = vunpack.c.l.b16 %v5743
    %v5808 = vunpack.c.l.b16 %v5744
    %v5809 = vunpack.c.l.b16 %v5745
    %v5810 = vunpack.c.l.b16 %v5746
    %v5811 = vunpack.c.l.b16 %v5747
    %v5812 = vunpack.c.l.b16 %v5748
    %v5813 = vunpack.c.l.b16 %v5749
    %v5814 = vunpack.c.l.b16 %v5750
    %v5815 = vunpack.c.l.b16 %v5751
    %v5816 = vunpack.c.l.b16 %v5752
    %v5817 = vunpack.c.l.b16 %v5753
    %v5818 = vunpack.c.l.b16 %v5754
    %v5819 = vunpack.c.l.b16 %v5755
    %v5820 = vunpack.c.l.b16 %v5756
    %v5821 = vunpack.c.l.b16 %v5757
    %v5822 = vunpack.c.l.b16 %v5758
    %v5823 = vunpack.c.l.b16 %v5759
    %v5824 = vunpack.c.l.b16 %v5760
    %v5825 = vunpack.c.l.b16 %v5761
    %v5826 = vunpack.c.l.b16 %v5762
    %v5827 = vunpack.c.l.b16 %v5763
    %v5828 = vunpack.c.l.b16 %v5764
    %v5829 = vunpack.c.l.b16 %v5765
    %v5830 = vunpack.c.l.b16 %v5766
    %v5831 = vpack.c.b16 %v5800, %v5799
    %v5832 = vpack.c.b16 %v5802, %v5801
    %v5833 = vpack.c.b16 %v5804, %v5803
    %v5834 = vpack.c.b16 %v5806, %v5805
    %v5835 = vpack.c.b16 %v5808, %v5807
    %v5836 = vpack.c.b16 %v5810, %v5809
    %v5837 = vpack.c.b16 %v5812, %v5811
    %v5838 = vpack.c.b16 %v5814, %v5813
    %v5839 = vpack.c.b16 %v5816, %v5815
    %v5840 = vpack.c.b16 %v5818, %v5817
    %v5841 = vpack.c.b16 %v5820, %v5819
    %v5842 = vpack.c.b16 %v5822, %v5821
    %v5843 = vpack.c.b16 %v5824, %v5823
    %v5844 = vpack.c.b16 %v5826, %v5825
    %v5845 = vpack.c.b16 %v5828, %v5827
    %v5846 = vpack.c.b16 %v5830, %v5829
    %5863 = vmatprep.subr.bf16.mxu0 0
    %5864 = vmatpush1.bf16.msra.mxu0 %v5831
    %5865 = vmatprep.subr.bf16.mxu0 0
    %5866 = vmatpush1.bf16.msra.mxu0 %v5832
    %5867 = vmatprep.subr.bf16.mxu0 0
    %5868 = vmatpush1.bf16.msra.mxu0 %v5833
    %5869 = vmatprep.subr.bf16.mxu0 0
    %5870 = vmatpush1.bf16.msra.mxu0 %v5834
    %5871 = vmatprep.subr.bf16.mxu0 0
    %5872 = vmatpush1.bf16.msra.mxu0 %v5835
    %5873 = vmatprep.subr.bf16.mxu0 0
    %5874 = vmatpush1.bf16.msra.mxu0 %v5836
    %5875 = vmatprep.subr.bf16.mxu0 0
    %5876 = vmatpush1.bf16.msra.mxu0 %v5837
    %5877 = vmatprep.subr.bf16.mxu0 0
    %5878 = vmatpush1.bf16.msra.mxu0 %v5838
    %5879 = vmatprep.subr.bf16.mxu0 0
    %5880 = vmatpush1.bf16.msra.mxu0 %v5839
    %5881 = vmatprep.subr.bf16.mxu0 0
    %5882 = vmatpush1.bf16.msra.mxu0 %v5840
    %5883 = vmatprep.subr.bf16.mxu0 0
    %5884 = vmatpush1.bf16.msra.mxu0 %v5841
    %5885 = vmatprep.subr.bf16.mxu0 0
    %5886 = vmatpush1.bf16.msra.mxu0 %v5842
    %5887 = vmatprep.subr.bf16.mxu0 0
    %5888 = vmatpush1.bf16.msra.mxu0 %v5843
    %5889 = vmatprep.subr.bf16.mxu0 0
    %5890 = vmatpush1.bf16.msra.mxu0 %v5844
    %5891 = vmatprep.subr.bf16.mxu0 0
    %5892 = vmatpush1.bf16.msra.mxu0 %v5845
    %5893 = vmatprep.subr.bf16.mxu0 0
    %5894 = vmatpush1.bf16.msra.mxu0 %v5846
    %5895 = vmatprep.mubr.bf16.mxu0 %v5734
    %5896 = vmatmul.mubr.bf16.gmra.mrb[0].mxu0 %v5638
    %v5897 = vpop.f32.mrb[0].mxu0
    %v5898 = vadd.f32 %v2360, %v5897
    %v5899 = vpop.f32.mrb[0].mxu0
    %v5900 = vpop.f32.mrb[0].mxu0
    %v5901 = vpop.f32.mrb[0].mxu0
    %5902 = vdwg.mxu0
    %v5903 = vtanh.pop %v5898
    %v5904 = vpack.c.bf16 %v5903, %v5903
    %v5905 = vld [vmem:[#allocation10 + $0x80] sm:$0xf]
    %v5906 = vld [vmem:[#allocation10 + $0x84] sm:$0xf]
    %v5907 = vld [vmem:[#allocation10 + $0x88] sm:$0xf]
    %v5908 = vld [vmem:[#allocation10 + $0x8c] sm:$0xf]
    %v5909 = vld [vmem:[#allocation10 + $0x90] sm:$0xf]
    %v5910 = vld [vmem:[#allocation10 + $0x94] sm:$0xf]
    %v5911 = vld [vmem:[#allocation10 + $0x98] sm:$0xf]
    %v5912 = vld [vmem:[#allocation10 + $0x9c] sm:$0xf]
    %v5913 = vld [vmem:[#allocation10 + $0xa0] sm:$0xf]
    %v5914 = vld [vmem:[#allocation10 + $0xa4] sm:$0xf]
    %v5915 = vld [vmem:[#allocation10 + $0xa8] sm:$0xf]
    %v5916 = vld [vmem:[#allocation10 + $0xac] sm:$0xf]
    %v5917 = vld [vmem:[#allocation10 + $0xb0] sm:$0xf]
    %v5918 = vld [vmem:[#allocation10 + $0xb4] sm:$0xf]
    %v5919 = vld [vmem:[#allocation10 + $0xb8] sm:$0xf]
    %v5920 = vld [vmem:[#allocation10 + $0xbc] sm:$0xf]
    %v5937 = vunpack.c.l.b16 %v5905
    %v5938 = vunpack.c.l.b16 %v5906
    %v5939 = vunpack.c.l.b16 %v5907
    %v5940 = vunpack.c.l.b16 %v5908
    %v5941 = vunpack.c.l.b16 %v5909
    %v5942 = vunpack.c.l.b16 %v5910
    %v5943 = vunpack.c.l.b16 %v5911
    %v5944 = vunpack.c.l.b16 %v5912
    %v5945 = vunpack.c.l.b16 %v5913
    %v5946 = vunpack.c.l.b16 %v5914
    %v5947 = vunpack.c.l.b16 %v5915
    %v5948 = vunpack.c.l.b16 %v5916
    %v5949 = vunpack.c.l.b16 %v5917
    %v5950 = vunpack.c.l.b16 %v5918
    %v5951 = vunpack.c.l.b16 %v5919
    %v5952 = vunpack.c.l.b16 %v5920
    %v5953 = vpack.c.b16 %v5938, %v5937
    %v5954 = vpack.c.b16 %v5940, %v5939
    %v5955 = vpack.c.b16 %v5942, %v5941
    %v5956 = vpack.c.b16 %v5944, %v5943
    %v5957 = vpack.c.b16 %v5946, %v5945
    %v5958 = vpack.c.b16 %v5948, %v5947
    %v5959 = vpack.c.b16 %v5950, %v5949
    %v5960 = vpack.c.b16 %v5952, %v5951
    %5969 = vmatprep.subr.bf16.mxu0 0
    %5970 = vmatpush1.bf16.msra.mxu0 %v5953
    %5971 = vmatprep.subr.bf16.mxu0 0
    %5972 = vmatpush1.bf16.msra.mxu0 %v5954
    %5973 = vmatprep.subr.bf16.mxu0 0
    %5974 = vmatpush1.bf16.msra.mxu0 %v5955
    %5975 = vmatprep.subr.bf16.mxu0 0
    %5976 = vmatpush1.bf16.msra.mxu0 %v5956
    %5977 = vmatprep.subr.bf16.mxu0 0
    %5978 = vmatpush1.bf16.msra.mxu0 %v5957
    %5979 = vmatprep.subr.bf16.mxu0 0
    %5980 = vmatpush1.bf16.msra.mxu0 %v5958
    %5981 = vmatprep.subr.bf16.mxu0 0
    %5982 = vmatpush1.bf16.msra.mxu0 %v5959
    %5983 = vmatprep.subr.bf16.mxu0 0
    %5984 = vmatpush1.bf16.msra.mxu0 %v5960
    %5985 = vmatprep.subr.bf16.mxu0 0
    %5986 = vmatpush1.bf16.msra.mxu0 0
    %5987 = vmatprep.subr.bf16.mxu0 0
    %5988 = vmatpush1.bf16.msra.mxu0 0
    %5989 = vmatprep.subr.bf16.mxu0 0
    %5990 = vmatpush1.bf16.msra.mxu0 0
    %5991 = vmatprep.subr.bf16.mxu0 0
    %5992 = vmatpush1.bf16.msra.mxu0 0
    %5993 = vmatprep.subr.bf16.mxu0 0
    %5994 = vmatpush1.bf16.msra.mxu0 0
    %5995 = vmatprep.subr.bf16.mxu0 0
    %5996 = vmatpush1.bf16.msra.mxu0 0
    %5997 = vmatprep.subr.bf16.mxu0 0
    %5998 = vmatpush1.bf16.msra.mxu0 0
    %5999 = vmatprep.subr.bf16.mxu0 0
    %6000 = vmatpush1.bf16.msra.mxu0 0
    %6001 = vmatprep.mubr.bf16.mxu0 0
    %6002 = vmatmul.mubr.bf16.gmra.mrb[0].mxu0 %v5904
    %v6003 = vpop.f32.mrb[0].mxu0
    %v6004 = vadd.f32 %v2471, %v6003
    %v6005 = vpop.f32.mrb[0].mxu0
    %v6006 = vpop.f32.mrb[0].mxu0
    %v6007 = vpop.f32.mrb[0].mxu0
    %6008 = vdwg.mxu0
    %v6009 = vsel %vm139, %v6004, -inf
    %6010 = vmax.xlane.f32.xlu0 %v6009
    %v6011 = vpop.xlane.xlu0 %6010
    %v6012 = vsub.f32 %v6004, %v6011
    %v6013 = vmul.f32 %v6012, 1.442695
    %v6014 = vpow.pop %v6013
    %v6015 = vsel %vm139, %v6014, 0.0
    %6016 = vadd.xlane.f32.xlu0 %v6015
    %v6017 = vpop.xlane.xlu0 %6016
    %v6018 = vrcp.pop %v6017
    %v6019 = vmul.f32 1.0, %v6018
    %vm6020 = vcmp.eq.f32.partialorder %v6004, %v6011
    %v6021 = vsel %vm6020, %v98, 128
    %v6022 = vsel %vm139, %v6021, 2147483647
    %v6023 = vand.u32 %v6022, 65535
    %v6024 = vshra.s32 %v6022, 16
    %v6025 = vcvt.s32.f32 %v6023
    %v6026 = vcvt.s32.f32 %v6024
    %6027 = vmin.xlane.f32.xlu0 %v6026
    %v6028 = vpop.xlane.xlu0 %6027
    %vm6029 = vcmp.eq.f32.partialorder %v6026, %v6028
    %v6030 = vsel %vm6029, %v6025, inf
    %6031 = vmin.xlane.f32.xlu0 %v6030
    %v6032 = vpop.xlane.xlu0 %6031
    %v6033 = vcvt.f32.s32 %v6032
    %v6034 = vcvt.f32.s32 %v6028
    %v6035 = vshll.u32 %v6034, 16
    %v6036 = vadd.s32 %v6035, %v6033
    %vm6037 = vcmp.lt.s32.totalorder %v6036, 127
    %v6038 = vsel %vm6037, %v6036, 127
    %vm6039 = vcmp.eq.s32.totalorder %v98, %v6038
    %v6040 = vsel %vm6039, 1, 0
    %v6041 = vcvt.s32.f32 %v6040
    %v6042 = vpack.c.bf16 %v6041, %v6041
    %v6043 = vld [vmem:[#allocation8] sm:$0xff]
    %v6044 = vld [vmem:[#allocation8 + $0x8] sm:$0xf]
    %v6045 = vld [vmem:[#allocation8 + $0xc] sm:$0xff]
    %v6046 = vld [vmem:[#allocation8 + $0x14] sm:$0xf]
    %v6047 = vld [vmem:[#allocation8 + $0x18] sm:$0xff]
    %v6048 = vld [vmem:[#allocation8 + $0x20] sm:$0xf]
    %v6049 = vld [vmem:[#allocation8 + $0x24] sm:$0xff]
    %v6050 = vld [vmem:[#allocation8 + $0x2c] sm:$0xf]
    %v6051 = vld [vmem:[#allocation8 + $0x30] sm:$0xff]
    %v6052 = vld [vmem:[#allocation8 + $0x38] sm:$0xf]
    %v6053 = vld [vmem:[#allocation8 + $0x3c] sm:$0xff]
    %v6054 = vld [vmem:[#allocation8 + $0x44] sm:$0xf]
    %v6055 = vld [vmem:[#allocation8 + $0x48] sm:$0xff]
    %v6056 = vld [vmem:[#allocation8 + $0x50] sm:$0xf]
    %v6057 = vld [vmem:[#allocation8 + $0x54] sm:$0xff]
    %v6058 = vld [vmem:[#allocation8 + $0x5c] sm:$0xf]
    %v6059 = vld [vmem:[#allocation8 + $0x60] sm:$0xff]
    %v6060 = vld [vmem:[#allocation8 + $0x68] sm:$0xf]
    %v6061 = vld [vmem:[#allocation8 + $0x6c] sm:$0xff]
    %v6062 = vld [vmem:[#allocation8 + $0x74] sm:$0xf]
    %v6063 = vld [vmem:[#allocation8 + $0x78] sm:$0xff]
    %v6064 = vld [vmem:[#allocation8 + $0x80] sm:$0xf]
    %v6065 = vld [vmem:[#allocation8 + $0x84] sm:$0xff]
    %v6066 = vld [vmem:[#allocation8 + $0x8c] sm:$0xf]
    %v6067 = vld [vmem:[#allocation8 + $0x90] sm:$0xff]
    %v6068 = vld [vmem:[#allocation8 + $0x98] sm:$0xf]
    %v6069 = vld [vmem:[#allocation8 + $0x9c] sm:$0xff]
    %v6070 = vld [vmem:[#allocation8 + $0xa4] sm:$0xf]
    %v6071 = vld [vmem:[#allocation8 + $0xa8] sm:$0xff]
    %v6072 = vld [vmem:[#allocation8 + $0xb0] sm:$0xf]
    %v6073 = vld [vmem:[#allocation8 + $0xb4] sm:$0xff]
    %v6074 = vld [vmem:[#allocation8 + $0xbc] sm:$0xf]
    %v6107 = vunpack.c.l.b16 %v6043
    %v6108 = vunpack.c.h.b16 %v6043
    %v6109 = vunpack.c.l.b16 %v6044
    %v6110 = vunpack.c.l.b16 %v6045
    %v6111 = vunpack.c.h.b16 %v6045
    %v6112 = vunpack.c.l.b16 %v6046
    %v6113 = vunpack.c.l.b16 %v6047
    %v6114 = vunpack.c.h.b16 %v6047
    %v6115 = vunpack.c.l.b16 %v6048
    %v6116 = vunpack.c.l.b16 %v6049
    %v6117 = vunpack.c.h.b16 %v6049
    %v6118 = vunpack.c.l.b16 %v6050
    %v6119 = vunpack.c.l.b16 %v6051
    %v6120 = vunpack.c.h.b16 %v6051
    %v6121 = vunpack.c.l.b16 %v6052
    %v6122 = vunpack.c.l.b16 %v6053
    %v6123 = vunpack.c.h.b16 %v6053
    %v6124 = vunpack.c.l.b16 %v6054
    %v6125 = vunpack.c.l.b16 %v6055
    %v6126 = vunpack.c.h.b16 %v6055
    %v6127 = vunpack.c.l.b16 %v6056
    %v6128 = vunpack.c.l.b16 %v6057
    %v6129 = vunpack.c.h.b16 %v6057
    %v6130 = vunpack.c.l.b16 %v6058
    %v6131 = vunpack.c.l.b16 %v6059
    %v6132 = vunpack.c.h.b16 %v6059
    %v6133 = vunpack.c.l.b16 %v6060
    %v6134 = vunpack.c.l.b16 %v6061
    %v6135 = vunpack.c.h.b16 %v6061
    %v6136 = vunpack.c.l.b16 %v6062
    %v6137 = vunpack.c.l.b16 %v6063
    %v6138 = vunpack.c.h.b16 %v6063
    %v6139 = vunpack.c.l.b16 %v6064
    %v6140 = vunpack.c.l.b16 %v6065
    %v6141 = vunpack.c.h.b16 %v6065
    %v6142 = vunpack.c.l.b16 %v6066
    %v6143 = vunpack.c.l.b16 %v6067
    %v6144 = vunpack.c.h.b16 %v6067
    %v6145 = vunpack.c.l.b16 %v6068
    %v6146 = vunpack.c.l.b16 %v6069
    %v6147 = vunpack.c.h.b16 %v6069
    %v6148 = vunpack.c.l.b16 %v6070
    %v6149 = vunpack.c.l.b16 %v6071
    %v6150 = vunpack.c.h.b16 %v6071
    %v6151 = vunpack.c.l.b16 %v6072
    %v6152 = vunpack.c.l.b16 %v6073
    %v6153 = vunpack.c.h.b16 %v6073
    %v6154 = vunpack.c.l.b16 %v6074
    %v6155 = vpack.c.b16 %v6110, %v6107
    %v6156 = vpack.c.b16 %v6111, %v6108
    %v6157 = vpack.c.b16 %v6112, %v6109
    %v6158 = vpack.c.b16 %v6116, %v6113
    %v6159 = vpack.c.b16 %v6117, %v6114
    %v6160 = vpack.c.b16 %v6118, %v6115
    %v6161 = vpack.c.b16 %v6122, %v6119
    %v6162 = vpack.c.b16 %v6123, %v6120
    %v6163 = vpack.c.b16 %v6124, %v6121
    %v6164 = vpack.c.b16 %v6128, %v6125
    %v6165 = vpack.c.b16 %v6129, %v6126
    %v6166 = vpack.c.b16 %v6130, %v6127
    %v6167 = vpack.c.b16 %v6134, %v6131
    %v6168 = vpack.c.b16 %v6135, %v6132
    %v6169 = vpack.c.b16 %v6136, %v6133
    %v6170 = vpack.c.b16 %v6140, %v6137
    %v6171 = vpack.c.b16 %v6141, %v6138
    %v6172 = vpack.c.b16 %v6142, %v6139
    %v6173 = vpack.c.b16 %v6146, %v6143
    %v6174 = vpack.c.b16 %v6147, %v6144
    %v6175 = vpack.c.b16 %v6148, %v6145
    %v6176 = vpack.c.b16 %v6152, %v6149
    %v6177 = vpack.c.b16 %v6153, %v6150
    %v6178 = vpack.c.b16 %v6154, %v6151
    %6203 = vmatprep.subr.bf16.mxu0 %v6156
    %6204 = vmatpush1.bf16.msra.mxu0 %v6155
    %6205 = vmatprep.subr.bf16.mxu0 %v6159
    %6206 = vmatpush1.bf16.msra.mxu0 %v6158
    %6207 = vmatprep.subr.bf16.mxu0 %v6162
    %6208 = vmatpush1.bf16.msra.mxu0 %v6161
    %6209 = vmatprep.subr.bf16.mxu0 %v6165
    %6210 = vmatpush1.bf16.msra.mxu0 %v6164
    %6211 = vmatprep.subr.bf16.mxu0 %v6168
    %6212 = vmatpush1.bf16.msra.mxu0 %v6167
    %6213 = vmatprep.subr.bf16.mxu0 %v6171
    %6214 = vmatpush1.bf16.msra.mxu0 %v6170
    %6215 = vmatprep.subr.bf16.mxu0 %v6174
    %6216 = vmatpush1.bf16.msra.mxu0 %v6173
    %6217 = vmatprep.subr.bf16.mxu0 %v6177
    %6218 = vmatpush1.bf16.msra.mxu0 %v6176
    %6219 = vmatprep.subr.bf16.mxu0 0
    %6220 = vmatpush1.bf16.msra.mxu0 0
    %6221 = vmatprep.subr.bf16.mxu0 0
    %6222 = vmatpush1.bf16.msra.mxu0 0
    %6223 = vmatprep.subr.bf16.mxu0 0
    %6224 = vmatpush1.bf16.msra.mxu0 0
    %6225 = vmatprep.subr.bf16.mxu0 0
    %6226 = vmatpush1.bf16.msra.mxu0 0
    %6227 = vmatprep.subr.bf16.mxu0 0
    %6228 = vmatpush1.bf16.msra.mxu0 0
    %6229 = vmatprep.subr.bf16.mxu0 0
    %6230 = vmatpush1.bf16.msra.mxu0 0
    %6231 = vmatprep.subr.bf16.mxu0 0
    %6232 = vmatpush1.bf16.msra.mxu0 0
    %6233 = vmatprep.subr.bf16.mxu0 0
    %6234 = vmatpush1.bf16.msra.mxu0 0
    %6235 = vmatprep.mubr.bf16.mxu0 0
    %6236 = vmatmul.mubr.bf16.gmra.mrb[0].mxu0 %v6042
    %v6237 = vpop.f32.mrb[0].mxu0
    %v6238 = vadd.f32 0.0, %v6237
    %v6239 = vpop.f32.mrb[0].mxu0
    %v6240 = vadd.f32 0.0, %v6239
    %v6241 = vpop.f32.mrb[0].mxu0
    %v6242 = vpop.f32.mrb[0].mxu0
    %6243 = vdwg.mxu0
    %6244 = vmatprep.subr.bf16.mxu0 0
    %6245 = vmatpush1.bf16.msra.mxu0 %v6157
    %6246 = vmatprep.subr.bf16.mxu0 0
    %6247 = vmatpush1.bf16.msra.mxu0 %v6160
    %6248 = vmatprep.subr.bf16.mxu0 0
    %6249 = vmatpush1.bf16.msra.mxu0 %v6163
    %6250 = vmatprep.subr.bf16.mxu0 0
    %6251 = vmatpush1.bf16.msra.mxu0 %v6166
    %6252 = vmatprep.subr.bf16.mxu0 0
    %6253 = vmatpush1.bf16.msra.mxu0 %v6169
    %6254 = vmatprep.subr.bf16.mxu0 0
    %6255 = vmatpush1.bf16.msra.mxu0 %v6172
    %6256 = vmatprep.subr.bf16.mxu0 0
    %6257 = vmatpush1.bf16.msra.mxu0 %v6175
    %6258 = vmatprep.subr.bf16.mxu0 0
    %6259 = vmatpush1.bf16.msra.mxu0 %v6178
    %6260 = vmatprep.subr.bf16.mxu0 0
    %6261 = vmatpush1.bf16.msra.mxu0 0
    %6262 = vmatprep.subr.bf16.mxu0 0
    %6263 = vmatpush1.bf16.msra.mxu0 0
    %6264 = vmatprep.subr.bf16.mxu0 0
    %6265 = vmatpush1.bf16.msra.mxu0 0
    %6266 = vmatprep.subr.bf16.mxu0 0
    %6267 = vmatpush1.bf16.msra.mxu0 0
    %6268 = vmatprep.subr.bf16.mxu0 0
    %6269 = vmatpush1.bf16.msra.mxu0 0
    %6270 = vmatprep.subr.bf16.mxu0 0
    %6271 = vmatpush1.bf16.msra.mxu0 0
    %6272 = vmatprep.subr.bf16.mxu0 0
    %6273 = vmatpush1.bf16.msra.mxu0 0
    %6274 = vmatprep.subr.bf16.mxu0 0
    %6275 = vmatpush1.bf16.msra.mxu0 0
    %6276 = vmatprep.mubr.bf16.mxu0 0
    %6277 = vmatmul.mubr.bf16.gmra.mrb[0].mxu0 %v6042
    %v6278 = vpop.f32.mrb[0].mxu0
    %v6279 = vadd.f32 0.0, %v6278
    %v6280 = vpop.f32.mrb[0].mxu0
    %v6281 = vpop.f32.mrb[0].mxu0
    %v6282 = vpop.f32.mrb[0].mxu0
    %6283 = vdwg.mxu0
    %s6284 = vtos %v6038
    %s6285 = scalar_lea.smem [#allocation13], 4
    %6286 = sst [smem:[%s6285]] %s6284
    %s6287 = vtos %v6019
    %s6288 = scalar_lea.smem [#allocation14], 4
    %6289 = sst [smem:[%s6288]] %s6287
    %v6290 = vld [vmem:[#allocation8 + $0xc0] sm:$0xff]
    %v6291 = vld [vmem:[#allocation8 + $0xc8] sm:$0xf]
    %v6292 = vld [vmem:[#allocation8 + $0xcc] sm:$0xff]
    %v6293 = vld [vmem:[#allocation8 + $0xd4] sm:$0xf]
    %v6294 = vld [vmem:[#allocation8 + $0xd8] sm:$0xff]
    %v6295 = vld [vmem:[#allocation8 + $0xe0] sm:$0xf]
    %v6296 = vld [vmem:[#allocation8 + $0xe4] sm:$0xff]
    %v6297 = vld [vmem:[#allocation8 + $0xec] sm:$0xf]
    %v6298 = vld [vmem:[#allocation8 + $0xf0] sm:$0xff]
    %v6299 = vld [vmem:[#allocation8 + $0xf8] sm:$0xf]
    %v6300 = vld [vmem:[#allocation8 + $0xfc] sm:$0xff]
    %v6301 = vld [vmem:[#allocation8 + $0x104] sm:$0xf]
    %v6302 = vld [vmem:[#allocation8 + $0x108] sm:$0xff]
    %v6303 = vld [vmem:[#allocation8 + $0x110] sm:$0xf]
    %v6304 = vld [vmem:[#allocation8 + $0x114] sm:$0xff]
    %v6305 = vld [vmem:[#allocation8 + $0x11c] sm:$0xf]
    %v6306 = vld [vmem:[#allocation8 + $0x120] sm:$0xff]
    %v6307 = vld [vmem:[#allocation8 + $0x128] sm:$0xf]
    %v6308 = vld [vmem:[#allocation8 + $0x12c] sm:$0xff]
    %v6309 = vld [vmem:[#allocation8 + $0x134] sm:$0xf]
    %v6310 = vld [vmem:[#allocation8 + $0x138] sm:$0xff]
    %v6311 = vld [vmem:[#allocation8 + $0x140] sm:$0xf]
    %v6312 = vld [vmem:[#allocation8 + $0x144] sm:$0xff]
    %v6313 = vld [vmem:[#allocation8 + $0x14c] sm:$0xf]
    %v6314 = vld [vmem:[#allocation8 + $0x150] sm:$0xff]
    %v6315 = vld [vmem:[#allocation8 + $0x158] sm:$0xf]
    %v6316 = vld [vmem:[#allocation8 + $0x15c] sm:$0xff]
    %v6317 = vld [vmem:[#allocation8 + $0x164] sm:$0xf]
    %v6318 = vld [vmem:[#allocation8 + $0x168] sm:$0xff]
    %v6319 = vld [vmem:[#allocation8 + $0x170] sm:$0xf]
    %v6320 = vld [vmem:[#allocation8 + $0x174] sm:$0xff]
    %v6321 = vld [vmem:[#allocation8 + $0x17c] sm:$0xf]
    %v6354 = vunpack.c.l.b16 %v6290
    %v6355 = vunpack.c.h.b16 %v6290
    %v6356 = vunpack.c.l.b16 %v6291
    %v6357 = vunpack.c.l.b16 %v6292
    %v6358 = vunpack.c.h.b16 %v6292
    %v6359 = vunpack.c.l.b16 %v6293
    %v6360 = vunpack.c.l.b16 %v6294
    %v6361 = vunpack.c.h.b16 %v6294
    %v6362 = vunpack.c.l.b16 %v6295
    %v6363 = vunpack.c.l.b16 %v6296
    %v6364 = vunpack.c.h.b16 %v6296
    %v6365 = vunpack.c.l.b16 %v6297
    %v6366 = vunpack.c.l.b16 %v6298
    %v6367 = vunpack.c.h.b16 %v6298
    %v6368 = vunpack.c.l.b16 %v6299
    %v6369 = vunpack.c.l.b16 %v6300
    %v6370 = vunpack.c.h.b16 %v6300
    %v6371 = vunpack.c.l.b16 %v6301
    %v6372 = vunpack.c.l.b16 %v6302
    %v6373 = vunpack.c.h.b16 %v6302
    %v6374 = vunpack.c.l.b16 %v6303
    %v6375 = vunpack.c.l.b16 %v6304
    %v6376 = vunpack.c.h.b16 %v6304
    %v6377 = vunpack.c.l.b16 %v6305
    %v6378 = vunpack.c.l.b16 %v6306
    %v6379 = vunpack.c.h.b16 %v6306
    %v6380 = vunpack.c.l.b16 %v6307
    %v6381 = vunpack.c.l.b16 %v6308
    %v6382 = vunpack.c.h.b16 %v6308
    %v6383 = vunpack.c.l.b16 %v6309
    %v6384 = vunpack.c.l.b16 %v6310
    %v6385 = vunpack.c.h.b16 %v6310
    %v6386 = vunpack.c.l.b16 %v6311
    %v6387 = vunpack.c.l.b16 %v6312
    %v6388 = vunpack.c.h.b16 %v6312
    %v6389 = vunpack.c.l.b16 %v6313
    %v6390 = vunpack.c.l.b16 %v6314
    %v6391 = vunpack.c.h.b16 %v6314
    %v6392 = vunpack.c.l.b16 %v6315
    %v6393 = vunpack.c.l.b16 %v6316
    %v6394 = vunpack.c.h.b16 %v6316
    %v6395 = vunpack.c.l.b16 %v6317
    %v6396 = vunpack.c.l.b16 %v6318
    %v6397 = vunpack.c.h.b16 %v6318
    %v6398 = vunpack.c.l.b16 %v6319
    %v6399 = vunpack.c.l.b16 %v6320
    %v6400 = vunpack.c.h.b16 %v6320
    %v6401 = vunpack.c.l.b16 %v6321
    %v6402 = vpack.c.b16 %v6357, %v6354
    %v6403 = vpack.c.b16 %v6358, %v6355
    %v6404 = vpack.c.b16 %v6359, %v6356
    %v6405 = vpack.c.b16 %v6363, %v6360
    %v6406 = vpack.c.b16 %v6364, %v6361
    %v6407 = vpack.c.b16 %v6365, %v6362
    %v6408 = vpack.c.b16 %v6369, %v6366
    %v6409 = vpack.c.b16 %v6370, %v6367
    %v6410 = vpack.c.b16 %v6371, %v6368
    %v6411 = vpack.c.b16 %v6375, %v6372
    %v6412 = vpack.c.b16 %v6376, %v6373
    %v6413 = vpack.c.b16 %v6377, %v6374
    %v6414 = vpack.c.b16 %v6381, %v6378
    %v6415 = vpack.c.b16 %v6382, %v6379
    %v6416 = vpack.c.b16 %v6383, %v6380
    %v6417 = vpack.c.b16 %v6387, %v6384
    %v6418 = vpack.c.b16 %v6388, %v6385
    %v6419 = vpack.c.b16 %v6389, %v6386
    %v6420 = vpack.c.b16 %v6393, %v6390
    %v6421 = vpack.c.b16 %v6394, %v6391
    %v6422 = vpack.c.b16 %v6395, %v6392
    %v6423 = vpack.c.b16 %v6399, %v6396
    %v6424 = vpack.c.b16 %v6400, %v6397
    %v6425 = vpack.c.b16 %v6401, %v6398
    %6450 = vmatprep.subr.bf16.mxu0 %v6403
    %6451 = vmatpush1.bf16.msra.mxu0 %v6402
    %6452 = vmatprep.subr.bf16.mxu0 %v6406
    %6453 = vmatpush1.bf16.msra.mxu0 %v6405
    %6454 = vmatprep.subr.bf16.mxu0 %v6409
    %6455 = vmatpush1.bf16.msra.mxu0 %v6408
    %6456 = vmatprep.subr.bf16.mxu0 %v6412
    %6457 = vmatpush1.bf16.msra.mxu0 %v6411
    %6458 = vmatprep.subr.bf16.mxu0 %v6415
    %6459 = vmatpush1.bf16.msra.mxu0 %v6414
    %6460 = vmatprep.subr.bf16.mxu0 %v6418
    %6461 = vmatpush1.bf16.msra.mxu0 %v6417
    %6462 = vmatprep.subr.bf16.mxu0 %v6421
    %6463 = vmatpush1.bf16.msra.mxu0 %v6420
    %6464 = vmatprep.subr.bf16.mxu0 %v6424
    %6465 = vmatpush1.bf16.msra.mxu0 %v6423
    %6466 = vmatprep.subr.bf16.mxu0 0
    %6467 = vmatpush1.bf16.msra.mxu0 0
    %6468 = vmatprep.subr.bf16.mxu0 0
    %6469 = vmatpush1.bf16.msra.mxu0 0
    %6470 = vmatprep.subr.bf16.mxu0 0
    %6471 = vmatpush1.bf16.msra.mxu0 0
    %6472 = vmatprep.subr.bf16.mxu0 0
    %6473 = vmatpush1.bf16.msra.mxu0 0
    %6474 = vmatprep.subr.bf16.mxu0 0
    %6475 = vmatpush1.bf16.msra.mxu0 0
    %6476 = vmatprep.subr.bf16.mxu0 0
    %6477 = vmatpush1.bf16.msra.mxu0 0
    %6478 = vmatprep.subr.bf16.mxu0 0
    %6479 = vmatpush1.bf16.msra.mxu0 0
    %6480 = vmatprep.subr.bf16.mxu0 0
    %6481 = vmatpush1.bf16.msra.mxu0 0
    %6482 = vmatprep.mubr.bf16.mxu0 0
    %6483 = vmatmul.mubr.bf16.gmra.mrb[0].mxu0 %v5638
    %v6484 = vpop.f32.mrb[0].mxu0
    %v6485 = vadd.f32 %v2010, %v6484
    %v6486 = vpop.f32.mrb[0].mxu0
    %v6487 = vadd.f32 %v2014, %v6486
    %v6488 = vpop.f32.mrb[0].mxu0
    %v6489 = vpop.f32.mrb[0].mxu0
    %6490 = vdwg.mxu0
    %6491 = vmatprep.subr.bf16.mxu0 0
    %6492 = vmatpush1.bf16.msra.mxu0 %v6404
    %6493 = vmatprep.subr.bf16.mxu0 0
    %6494 = vmatpush1.bf16.msra.mxu0 %v6407
    %6495 = vmatprep.subr.bf16.mxu0 0
    %6496 = vmatpush1.bf16.msra.mxu0 %v6410
    %6497 = vmatprep.subr.bf16.mxu0 0
    %6498 = vmatpush1.bf16.msra.mxu0 %v6413
    %6499 = vmatprep.subr.bf16.mxu0 0
    %6500 = vmatpush1.bf16.msra.mxu0 %v6416
    %6501 = vmatprep.subr.bf16.mxu0 0
    %6502 = vmatpush1.bf16.msra.mxu0 %v6419
    %6503 = vmatprep.subr.bf16.mxu0 0
    %6504 = vmatpush1.bf16.msra.mxu0 %v6422
    %6505 = vmatprep.subr.bf16.mxu0 0
    %6506 = vmatpush1.bf16.msra.mxu0 %v6425
    %6507 = vmatprep.subr.bf16.mxu0 0
    %6508 = vmatpush1.bf16.msra.mxu0 0
    %6509 = vmatprep.subr.bf16.mxu0 0
    %6510 = vmatpush1.bf16.msra.mxu0 0
    %6511 = vmatprep.subr.bf16.mxu0 0
    %6512 = vmatpush1.bf16.msra.mxu0 0
    %6513 = vmatprep.subr.bf16.mxu0 0
    %6514 = vmatpush1.bf16.msra.mxu0 0
    %6515 = vmatprep.subr.bf16.mxu0 0
    %6516 = vmatpush1.bf16.msra.mxu0 0
    %6517 = vmatprep.subr.bf16.mxu0 0
    %6518 = vmatpush1.bf16.msra.mxu0 0
    %6519 = vmatprep.subr.bf16.mxu0 0
    %6520 = vmatpush1.bf16.msra.mxu0 0
    %6521 = vmatprep.subr.bf16.mxu0 0
    %6522 = vmatpush1.bf16.msra.mxu0 0
    %6523 = vmatprep.mubr.bf16.mxu0 0
    %6524 = vmatmul.mubr.bf16.gmra.mrb[0].mxu0 %v5638
    %v6525 = vpop.f32.mrb[0].mxu0
    %v6526 = vadd.f32 %v2018, %v6525
    %v6527 = vpop.f32.mrb[0].mxu0
    %v6528 = vpop.f32.mrb[0].mxu0
    %v6529 = vpop.f32.mrb[0].mxu0
    %6530 = vdwg.mxu0
    %v6531 = vadd.f32 %v6238, %v6485
    %v6532 = vxor.u32 %v6531, 2147483648
    %v6533 = vmul.f32 %v6532, 1.442695
    %v6534 = vpow.pop %v6533
    %v6535 = vadd.f32 %v6534, 1.0
    %v6536 = vrcp.pop %v6535
    %v6537 = vmul.f32 1.0, %v6536
    %v6538 = vadd.f32 %v6240, %v6487
    %v6539 = vxor.u32 %v6538, 2147483648
    %v6540 = vmul.f32 %v6539, 1.442695
    %v6541 = vpow.pop %v6540
    %v6542 = vadd.f32 %v6541, 1.0
    %v6543 = vrcp.pop %v6542
    %v6544 = vmul.f32 1.0, %v6543
    %v6545 = vmul.f32 %v6537, %v6526
    %v6546 = vadd.f32 %v6279, %v6545
    %v6547 = vtanh.pop %v6546
    %v6548 = vsub.f32 1.0, %v6544
    %v6549 = vmul.f32 %v6548, %v6547
    %v6550 = vmul.f32 %v6544, %v5637
    %v6551 = vadd.f32 %v6549, %v6550
    %v6552 = vpack.c.bf16 %v6551, %v6551
    %6553 = vmatprep.subr.bf16.mxu0 0
    %6554 = vmatpush1.bf16.msra.mxu0 %v1588
    %6555 = vmatprep.subr.bf16.mxu0 0
    %6556 = vmatpush1.bf16.msra.mxu0 %v1589
    %6557 = vmatprep.subr.bf16.mxu0 0
    %6558 = vmatpush1.bf16.msra.mxu0 %v1590
    %6559 = vmatprep.subr.bf16.mxu0 0
    %6560 = vmatpush1.bf16.msra.mxu0 %v1591
    %6561 = vmatprep.subr.bf16.mxu0 0
    %6562 = vmatpush1.bf16.msra.mxu0 %v1592
    %6563 = vmatprep.subr.bf16.mxu0 0
    %6564 = vmatpush1.bf16.msra.mxu0 %v1593
    %6565 = vmatprep.subr.bf16.mxu0 0
    %6566 = vmatpush1.bf16.msra.mxu0 %v1594
    %6567 = vmatprep.subr.bf16.mxu0 0
    %6568 = vmatpush1.bf16.msra.mxu0 %v1595
    %6569 = vmatprep.subr.bf16.mxu0 0
    %6570 = vmatpush1.bf16.msra.mxu0 0
    %6571 = vmatprep.subr.bf16.mxu0 0
    %6572 = vmatpush1.bf16.msra.mxu0 0
    %6573 = vmatprep.subr.bf16.mxu0 0
    %6574 = vmatpush1.bf16.msra.mxu0 0
    %6575 = vmatprep.subr.bf16.mxu0 0
    %6576 = vmatpush1.bf16.msra.mxu0 0
    %6577 = vmatprep.subr.bf16.mxu0 0
    %6578 = vmatpush1.bf16.msra.mxu0 0
    %6579 = vmatprep.subr.bf16.mxu0 0
    %6580 = vmatpush1.bf16.msra.mxu0 0
    %6581 = vmatprep.subr.bf16.mxu0 0
    %6582 = vmatpush1.bf16.msra.mxu0 0
    %6583 = vmatprep.subr.bf16.mxu0 0
    %6584 = vmatpush1.bf16.msra.mxu0 0
    %6585 = vmatprep.mubr.bf16.mxu0 0
    %6586 = vmatmul.mubr.bf16.gmra.mrb[0].mxu0 %v6552
    %v6587 = vpop.f32.mrb[0].mxu0
    %v6588 = vadd.f32 0.0, %v6587
    %v6589 = vpop.f32.mrb[0].mxu0
    %v6590 = vpop.f32.mrb[0].mxu0
    %v6591 = vpop.f32.mrb[0].mxu0
    %6592 = vdwg.mxu0
    %v6593 = vsel %vm2168, %v6588, -inf
    %6594 = vmax.xlane.f32.xlu0 %v6593
    %v6595 = vpop.xlane.xlu0 %6594
    %v6596 = vsub.f32 %v6588, %v6595
    %v6597 = vmul.f32 %v6596, 1.442695
    %v6598 = vpow.pop %v6597
    %v6599 = vsel %vm2168, %v6598, 0.0
    %6600 = vadd.xlane.f32.xlu0 %v6599
    %v6601 = vpop.xlane.xlu0 %6600
    %v6602 = vrcp.pop %v6601
    %v6603 = vmul.f32 %v6598, %v6602
    %v6604 = vpack.c.bf16 %v6603, %v6603
    %v6606 = vsel %vm2181, %v6604, 0
    %6608 = vmatprep.subr.bf16.mxu0 0
    %6609 = vmatpush1.bf16.msra.mxu0 %v2186
    %6610 = vmatprep.subr.bf16.mxu0 0
    %6611 = vmatpush1.bf16.msra.mxu0 0
    %6612 = vmatprep.subr.bf16.mxu0 0
    %6613 = vmatpush1.bf16.msra.mxu0 0
    %6614 = vmatprep.subr.bf16.mxu0 0
    %6615 = vmatpush1.bf16.msra.mxu0 0
    %6616 = vmatprep.subr.bf16.mxu0 0
    %6617 = vmatpush1.bf16.msra.mxu0 0
    %6618 = vmatprep.subr.bf16.mxu0 0
    %6619 = vmatpush1.bf16.msra.mxu0 0
    %6620 = vmatprep.subr.bf16.mxu0 0
    %6621 = vmatpush1.bf16.msra.mxu0 0
    %6622 = vmatprep.subr.bf16.mxu0 0
    %6623 = vmatpush1.bf16.msra.mxu0 0
    %6624 = vmatprep.subr.bf16.mxu0 0
    %6625 = vmatpush1.bf16.msra.mxu0 0
    %6626 = vmatprep.subr.bf16.mxu0 0
    %6627 = vmatpush1.bf16.msra.mxu0 0
    %6628 = vmatprep.subr.bf16.mxu0 0
    %6629 = vmatpush1.bf16.msra.mxu0 0
    %6630 = vmatprep.subr.bf16.mxu0 0
    %6631 = vmatpush1.bf16.msra.mxu0 0
    %6632 = vmatprep.subr.bf16.mxu0 0
    %6633 = vmatpush1.bf16.msra.mxu0 0
    %6634 = vmatprep.subr.bf16.mxu0 0
    %6635 = vmatpush1.bf16.msra.mxu0 0
    %6636 = vmatprep.subr.bf16.mxu0 0
    %6637 = vmatpush1.bf16.msra.mxu0 0
    %6638 = vmatprep.subr.bf16.mxu0 0
    %6639 = vmatpush1.bf16.msra.mxu0 0
    %6640 = vmatprep.mubr.bf16.mxu0 0
    %6641 = vmatmul.mubr.bf16.gmra.mrb[0].mxu0 %v6606
    %v6642 = vpop.f32.mrb[0].mxu0
    %v6643 = vadd.f32 0.0, %v6642
    %v6644 = vpop.f32.mrb[0].mxu0
    %v6645 = vpop.f32.mrb[0].mxu0
    %v6646 = vpop.f32.mrb[0].mxu0
    %6647 = vdwg.mxu0
    %v6648 = vpack.c.bf16 %v6643, %v6643
    %v6649 = vld [vmem:[#allocation10] sm:$0xf]
    %v6650 = vld [vmem:[#allocation10 + $0x4] sm:$0xf]
    %v6651 = vld [vmem:[#allocation10 + $0x8] sm:$0xf]
    %v6652 = vld [vmem:[#allocation10 + $0xc] sm:$0xf]
    %v6653 = vld [vmem:[#allocation10 + $0x10] sm:$0xf]
    %v6654 = vld [vmem:[#allocation10 + $0x14] sm:$0xf]
    %v6655 = vld [vmem:[#allocation10 + $0x18] sm:$0xf]
    %v6656 = vld [vmem:[#allocation10 + $0x1c] sm:$0xf]
    %v6657 = vld [vmem:[#allocation10 + $0x20] sm:$0xf]
    %v6658 = vld [vmem:[#allocation10 + $0x24] sm:$0xf]
    %v6659 = vld [vmem:[#allocation10 + $0x28] sm:$0xf]
    %v6660 = vld [vmem:[#allocation10 + $0x2c] sm:$0xf]
    %v6661 = vld [vmem:[#allocation10 + $0x30] sm:$0xf]
    %v6662 = vld [vmem:[#allocation10 + $0x34] sm:$0xf]
    %v6663 = vld [vmem:[#allocation10 + $0x38] sm:$0xf]
    %v6664 = vld [vmem:[#allocation10 + $0x3c] sm:$0xf]
    %v6665 = vld [vmem:[#allocation10 + $0x40] sm:$0xf]
    %v6666 = vld [vmem:[#allocation10 + $0x44] sm:$0xf]
    %v6667 = vld [vmem:[#allocation10 + $0x48] sm:$0xf]
    %v6668 = vld [vmem:[#allocation10 + $0x4c] sm:$0xf]
    %v6669 = vld [vmem:[#allocation10 + $0x50] sm:$0xf]
    %v6670 = vld [vmem:[#allocation10 + $0x54] sm:$0xf]
    %v6671 = vld [vmem:[#allocation10 + $0x58] sm:$0xf]
    %v6672 = vld [vmem:[#allocation10 + $0x5c] sm:$0xf]
    %v6673 = vld [vmem:[#allocation10 + $0x60] sm:$0xf]
    %v6674 = vld [vmem:[#allocation10 + $0x64] sm:$0xf]
    %v6675 = vld [vmem:[#allocation10 + $0x68] sm:$0xf]
    %v6676 = vld [vmem:[#allocation10 + $0x6c] sm:$0xf]
    %v6677 = vld [vmem:[#allocation10 + $0x70] sm:$0xf]
    %v6678 = vld [vmem:[#allocation10 + $0x74] sm:$0xf]
    %v6679 = vld [vmem:[#allocation10 + $0x78] sm:$0xf]
    %v6680 = vld [vmem:[#allocation10 + $0x7c] sm:$0xf]
    %v6713 = vunpack.c.l.b16 %v6649
    %v6714 = vunpack.c.l.b16 %v6650
    %v6715 = vunpack.c.l.b16 %v6651
    %v6716 = vunpack.c.l.b16 %v6652
    %v6717 = vunpack.c.l.b16 %v6653
    %v6718 = vunpack.c.l.b16 %v6654
    %v6719 = vunpack.c.l.b16 %v6655
    %v6720 = vunpack.c.l.b16 %v6656
    %v6721 = vunpack.c.l.b16 %v6657
    %v6722 = vunpack.c.l.b16 %v6658
    %v6723 = vunpack.c.l.b16 %v6659
    %v6724 = vunpack.c.l.b16 %v6660
    %v6725 = vunpack.c.l.b16 %v6661
    %v6726 = vunpack.c.l.b16 %v6662
    %v6727 = vunpack.c.l.b16 %v6663
    %v6728 = vunpack.c.l.b16 %v6664
    %v6729 = vunpack.c.l.b16 %v6665
    %v6730 = vunpack.c.l.b16 %v6666
    %v6731 = vunpack.c.l.b16 %v6667
    %v6732 = vunpack.c.l.b16 %v6668
    %v6733 = vunpack.c.l.b16 %v6669
    %v6734 = vunpack.c.l.b16 %v6670
    %v6735 = vunpack.c.l.b16 %v6671
    %v6736 = vunpack.c.l.b16 %v6672
    %v6737 = vunpack.c.l.b16 %v6673
    %v6738 = vunpack.c.l.b16 %v6674
    %v6739 = vunpack.c.l.b16 %v6675
    %v6740 = vunpack.c.l.b16 %v6676
    %v6741 = vunpack.c.l.b16 %v6677
    %v6742 = vunpack.c.l.b16 %v6678
    %v6743 = vunpack.c.l.b16 %v6679
    %v6744 = vunpack.c.l.b16 %v6680
    %v6745 = vpack.c.b16 %v6714, %v6713
    %v6746 = vpack.c.b16 %v6716, %v6715
    %v6747 = vpack.c.b16 %v6718, %v6717
    %v6748 = vpack.c.b16 %v6720, %v6719
    %v6749 = vpack.c.b16 %v6722, %v6721
    %v6750 = vpack.c.b16 %v6724, %v6723
    %v6751 = vpack.c.b16 %v6726, %v6725
    %v6752 = vpack.c.b16 %v6728, %v6727
    %v6753 = vpack.c.b16 %v6730, %v6729
    %v6754 = vpack.c.b16 %v6732, %v6731
    %v6755 = vpack.c.b16 %v6734, %v6733
    %v6756 = vpack.c.b16 %v6736, %v6735
    %v6757 = vpack.c.b16 %v6738, %v6737
    %v6758 = vpack.c.b16 %v6740, %v6739
    %v6759 = vpack.c.b16 %v6742, %v6741
    %v6760 = vpack.c.b16 %v6744, %v6743
    %6777 = vmatprep.subr.bf16.mxu0 0
    %6778 = vmatpush1.bf16.msra.mxu0 %v6745
    %6779 = vmatprep.subr.bf16.mxu0 0
    %6780 = vmatpush1.bf16.msra.mxu0 %v6746
    %6781 = vmatprep.subr.bf16.mxu0 0
    %6782 = vmatpush1.bf16.msra.mxu0 %v6747
    %6783 = vmatprep.subr.bf16.mxu0 0
    %6784 = vmatpush1.bf16.msra.mxu0 %v6748
    %6785 = vmatprep.subr.bf16.mxu0 0
    %6786 = vmatpush1.bf16.msra.mxu0 %v6749
    %6787 = vmatprep.subr.bf16.mxu0 0
    %6788 = vmatpush1.bf16.msra.mxu0 %v6750
    %6789 = vmatprep.subr.bf16.mxu0 0
    %6790 = vmatpush1.bf16.msra.mxu0 %v6751
    %6791 = vmatprep.subr.bf16.mxu0 0
    %6792 = vmatpush1.bf16.msra.mxu0 %v6752
    %6793 = vmatprep.subr.bf16.mxu0 0
    %6794 = vmatpush1.bf16.msra.mxu0 %v6753
    %6795 = vmatprep.subr.bf16.mxu0 0
    %6796 = vmatpush1.bf16.msra.mxu0 %v6754
    %6797 = vmatprep.subr.bf16.mxu0 0
    %6798 = vmatpush1.bf16.msra.mxu0 %v6755
    %6799 = vmatprep.subr.bf16.mxu0 0
    %6800 = vmatpush1.bf16.msra.mxu0 %v6756
    %6801 = vmatprep.subr.bf16.mxu0 0
    %6802 = vmatpush1.bf16.msra.mxu0 %v6757
    %6803 = vmatprep.subr.bf16.mxu0 0
    %6804 = vmatpush1.bf16.msra.mxu0 %v6758
    %6805 = vmatprep.subr.bf16.mxu0 0
    %6806 = vmatpush1.bf16.msra.mxu0 %v6759
    %6807 = vmatprep.subr.bf16.mxu0 0
    %6808 = vmatpush1.bf16.msra.mxu0 %v6760
    %6809 = vmatprep.mubr.bf16.mxu0 %v6648
    %6810 = vmatmul.mubr.bf16.gmra.mrb[0].mxu0 %v6552
    %v6811 = vpop.f32.mrb[0].mxu0
    %v6812 = vadd.f32 %v2360, %v6811
    %v6813 = vpop.f32.mrb[0].mxu0
    %v6814 = vpop.f32.mrb[0].mxu0
    %v6815 = vpop.f32.mrb[0].mxu0
    %6816 = vdwg.mxu0
    %v6817 = vtanh.pop %v6812
    %v6818 = vpack.c.bf16 %v6817, %v6817
    %v6819 = vld [vmem:[#allocation10 + $0x80] sm:$0xf]
    %v6820 = vld [vmem:[#allocation10 + $0x84] sm:$0xf]
    %v6821 = vld [vmem:[#allocation10 + $0x88] sm:$0xf]
    %v6822 = vld [vmem:[#allocation10 + $0x8c] sm:$0xf]
    %v6823 = vld [vmem:[#allocation10 + $0x90] sm:$0xf]
    %v6824 = vld [vmem:[#allocation10 + $0x94] sm:$0xf]
    %v6825 = vld [vmem:[#allocation10 + $0x98] sm:$0xf]
    %v6826 = vld [vmem:[#allocation10 + $0x9c] sm:$0xf]
    %v6827 = vld [vmem:[#allocation10 + $0xa0] sm:$0xf]
    %v6828 = vld [vmem:[#allocation10 + $0xa4] sm:$0xf]
    %v6829 = vld [vmem:[#allocation10 + $0xa8] sm:$0xf]
    %v6830 = vld [vmem:[#allocation10 + $0xac] sm:$0xf]
    %v6831 = vld [vmem:[#allocation10 + $0xb0] sm:$0xf]
    %v6832 = vld [vmem:[#allocation10 + $0xb4] sm:$0xf]
    %v6833 = vld [vmem:[#allocation10 + $0xb8] sm:$0xf]
    %v6834 = vld [vmem:[#allocation10 + $0xbc] sm:$0xf]
    %v6851 = vunpack.c.l.b16 %v6819
    %v6852 = vunpack.c.l.b16 %v6820
    %v6853 = vunpack.c.l.b16 %v6821
    %v6854 = vunpack.c.l.b16 %v6822
    %v6855 = vunpack.c.l.b16 %v6823
    %v6856 = vunpack.c.l.b16 %v6824
    %v6857 = vunpack.c.l.b16 %v6825
    %v6858 = vunpack.c.l.b16 %v6826
    %v6859 = vunpack.c.l.b16 %v6827
    %v6860 = vunpack.c.l.b16 %v6828
    %v6861 = vunpack.c.l.b16 %v6829
    %v6862 = vunpack.c.l.b16 %v6830
    %v6863 = vunpack.c.l.b16 %v6831
    %v6864 = vunpack.c.l.b16 %v6832
    %v6865 = vunpack.c.l.b16 %v6833
    %v6866 = vunpack.c.l.b16 %v6834
    %v6867 = vpack.c.b16 %v6852, %v6851
    %v6868 = vpack.c.b16 %v6854, %v6853
    %v6869 = vpack.c.b16 %v6856, %v6855
    %v6870 = vpack.c.b16 %v6858, %v6857
    %v6871 = vpack.c.b16 %v6860, %v6859
    %v6872 = vpack.c.b16 %v6862, %v6861
    %v6873 = vpack.c.b16 %v6864, %v6863
    %v6874 = vpack.c.b16 %v6866, %v6865
    %6883 = vmatprep.subr.bf16.mxu0 0
    %6884 = vmatpush1.bf16.msra.mxu0 %v6867
    %6885 = vmatprep.subr.bf16.mxu0 0
    %6886 = vmatpush1.bf16.msra.mxu0 %v6868
    %6887 = vmatprep.subr.bf16.mxu0 0
    %6888 = vmatpush1.bf16.msra.mxu0 %v6869
    %6889 = vmatprep.subr.bf16.mxu0 0
    %6890 = vmatpush1.bf16.msra.mxu0 %v6870
    %6891 = vmatprep.subr.bf16.mxu0 0
    %6892 = vmatpush1.bf16.msra.mxu0 %v6871
    %6893 = vmatprep.subr.bf16.mxu0 0
    %6894 = vmatpush1.bf16.msra.mxu0 %v6872
    %6895 = vmatprep.subr.bf16.mxu0 0
    %6896 = vmatpush1.bf16.msra.mxu0 %v6873
    %6897 = vmatprep.subr.bf16.mxu0 0
    %6898 = vmatpush1.bf16.msra.mxu0 %v6874
    %6899 = vmatprep.subr.bf16.mxu0 0
    %6900 = vmatpush1.bf16.msra.mxu0 0
    %6901 = vmatprep.subr.bf16.mxu0 0
    %6902 = vmatpush1.bf16.msra.mxu0 0
    %6903 = vmatprep.subr.bf16.mxu0 0
    %6904 = vmatpush1.bf16.msra.mxu0 0
    %6905 = vmatprep.subr.bf16.mxu0 0
    %6906 = vmatpush1.bf16.msra.mxu0 0
    %6907 = vmatprep.subr.bf16.mxu0 0
    %6908 = vmatpush1.bf16.msra.mxu0 0
    %6909 = vmatprep.subr.bf16.mxu0 0
    %6910 = vmatpush1.bf16.msra.mxu0 0
    %6911 = vmatprep.subr.bf16.mxu0 0
    %6912 = vmatpush1.bf16.msra.mxu0 0
    %6913 = vmatprep.subr.bf16.mxu0 0
    %6914 = vmatpush1.bf16.msra.mxu0 0
    %6915 = vmatprep.mubr.bf16.mxu0 0
    %6916 = vmatmul.mubr.bf16.gmra.mrb[0].mxu0 %v6818
    %v6917 = vpop.f32.mrb[0].mxu0
    %v6918 = vadd.f32 %v2471, %v6917
    %v6919 = vpop.f32.mrb[0].mxu0
    %v6920 = vpop.f32.mrb[0].mxu0
    %v6921 = vpop.f32.mrb[0].mxu0
    %6922 = vdwg.mxu0
    %v6923 = vsel %vm139, %v6918, -inf
    %6924 = vmax.xlane.f32.xlu0 %v6923
    %v6925 = vpop.xlane.xlu0 %6924
    %v6926 = vsub.f32 %v6918, %v6925
    %v6927 = vmul.f32 %v6926, 1.442695
    %v6928 = vpow.pop %v6927
    %v6929 = vsel %vm139, %v6928, 0.0
    %6930 = vadd.xlane.f32.xlu0 %v6929
    %v6931 = vpop.xlane.xlu0 %6930
    %v6932 = vrcp.pop %v6931
    %v6933 = vmul.f32 1.0, %v6932
    %vm6934 = vcmp.eq.f32.partialorder %v6918, %v6925
    %v6935 = vsel %vm6934, %v98, 128
    %v6936 = vsel %vm139, %v6935, 2147483647
    %v6937 = vand.u32 %v6936, 65535
    %v6938 = vshra.s32 %v6936, 16
    %v6939 = vcvt.s32.f32 %v6937
    %v6940 = vcvt.s32.f32 %v6938
    %6941 = vmin.xlane.f32.xlu0 %v6940
    %v6942 = vpop.xlane.xlu0 %6941
    %vm6943 = vcmp.eq.f32.partialorder %v6940, %v6942
    %v6944 = vsel %vm6943, %v6939, inf
    %6945 = vmin.xlane.f32.xlu0 %v6944
    %v6946 = vpop.xlane.xlu0 %6945
    %v6947 = vcvt.f32.s32 %v6946
    %v6948 = vcvt.f32.s32 %v6942
    %v6949 = vshll.u32 %v6948, 16
    %v6950 = vadd.s32 %v6949, %v6947
    %vm6951 = vcmp.lt.s32.totalorder %v6950, 127
    %v6952 = vsel %vm6951, %v6950, 127
    %vm6953 = vcmp.eq.s32.totalorder %v98, %v6952
    %v6954 = vsel %vm6953, 1, 0
    %v6955 = vcvt.s32.f32 %v6954
    %v6956 = vpack.c.bf16 %v6955, %v6955
    %v6957 = vld [vmem:[#allocation8] sm:$0xff]
    %v6958 = vld [vmem:[#allocation8 + $0x8] sm:$0xf]
    %v6959 = vld [vmem:[#allocation8 + $0xc] sm:$0xff]
    %v6960 = vld [vmem:[#allocation8 + $0x14] sm:$0xf]
    %v6961 = vld [vmem:[#allocation8 + $0x18] sm:$0xff]
    %v6962 = vld [vmem:[#allocation8 + $0x20] sm:$0xf]
    %v6963 = vld [vmem:[#allocation8 + $0x24] sm:$0xff]
    %v6964 = vld [vmem:[#allocation8 + $0x2c] sm:$0xf]
    %v6965 = vld [vmem:[#allocation8 + $0x30] sm:$0xff]
    %v6966 = vld [vmem:[#allocation8 + $0x38] sm:$0xf]
    %v6967 = vld [vmem:[#allocation8 + $0x3c] sm:$0xff]
    %v6968 = vld [vmem:[#allocation8 + $0x44] sm:$0xf]
    %v6969 = vld [vmem:[#allocation8 + $0x48] sm:$0xff]
    %v6970 = vld [vmem:[#allocation8 + $0x50] sm:$0xf]
    %v6971 = vld [vmem:[#allocation8 + $0x54] sm:$0xff]
    %v6972 = vld [vmem:[#allocation8 + $0x5c] sm:$0xf]
    %v6973 = vld [vmem:[#allocation8 + $0x60] sm:$0xff]
    %v6974 = vld [vmem:[#allocation8 + $0x68] sm:$0xf]
    %v6975 = vld [vmem:[#allocation8 + $0x6c] sm:$0xff]
    %v6976 = vld [vmem:[#allocation8 + $0x74] sm:$0xf]
    %v6977 = vld [vmem:[#allocation8 + $0x78] sm:$0xff]
    %v6978 = vld [vmem:[#allocation8 + $0x80] sm:$0xf]
    %v6979 = vld [vmem:[#allocation8 + $0x84] sm:$0xff]
    %v6980 = vld [vmem:[#allocation8 + $0x8c] sm:$0xf]
    %v6981 = vld [vmem:[#allocation8 + $0x90] sm:$0xff]
    %v6982 = vld [vmem:[#allocation8 + $0x98] sm:$0xf]
    %v6983 = vld [vmem:[#allocation8 + $0x9c] sm:$0xff]
    %v6984 = vld [vmem:[#allocation8 + $0xa4] sm:$0xf]
    %v6985 = vld [vmem:[#allocation8 + $0xa8] sm:$0xff]
    %v6986 = vld [vmem:[#allocation8 + $0xb0] sm:$0xf]
    %v6987 = vld [vmem:[#allocation8 + $0xb4] sm:$0xff]
    %v6988 = vld [vmem:[#allocation8 + $0xbc] sm:$0xf]
    %v7021 = vunpack.c.l.b16 %v6957
    %v7022 = vunpack.c.h.b16 %v6957
    %v7023 = vunpack.c.l.b16 %v6958
    %v7024 = vunpack.c.l.b16 %v6959
    %v7025 = vunpack.c.h.b16 %v6959
    %v7026 = vunpack.c.l.b16 %v6960
    %v7027 = vunpack.c.l.b16 %v6961
    %v7028 = vunpack.c.h.b16 %v6961
    %v7029 = vunpack.c.l.b16 %v6962
    %v7030 = vunpack.c.l.b16 %v6963
    %v7031 = vunpack.c.h.b16 %v6963
    %v7032 = vunpack.c.l.b16 %v6964
    %v7033 = vunpack.c.l.b16 %v6965
    %v7034 = vunpack.c.h.b16 %v6965
    %v7035 = vunpack.c.l.b16 %v6966
    %v7036 = vunpack.c.l.b16 %v6967
    %v7037 = vunpack.c.h.b16 %v6967
    %v7038 = vunpack.c.l.b16 %v6968
    %v7039 = vunpack.c.l.b16 %v6969
    %v7040 = vunpack.c.h.b16 %v6969
    %v7041 = vunpack.c.l.b16 %v6970
    %v7042 = vunpack.c.l.b16 %v6971
    %v7043 = vunpack.c.h.b16 %v6971
    %v7044 = vunpack.c.l.b16 %v6972
    %v7045 = vunpack.c.l.b16 %v6973
    %v7046 = vunpack.c.h.b16 %v6973
    %v7047 = vunpack.c.l.b16 %v6974
    %v7048 = vunpack.c.l.b16 %v6975
    %v7049 = vunpack.c.h.b16 %v6975
    %v7050 = vunpack.c.l.b16 %v6976
    %v7051 = vunpack.c.l.b16 %v6977
    %v7052 = vunpack.c.h.b16 %v6977
    %v7053 = vunpack.c.l.b16 %v6978
    %v7054 = vunpack.c.l.b16 %v6979
    %v7055 = vunpack.c.h.b16 %v6979
    %v7056 = vunpack.c.l.b16 %v6980
    %v7057 = vunpack.c.l.b16 %v6981
    %v7058 = vunpack.c.h.b16 %v6981
    %v7059 = vunpack.c.l.b16 %v6982
    %v7060 = vunpack.c.l.b16 %v6983
    %v7061 = vunpack.c.h.b16 %v6983
    %v7062 = vunpack.c.l.b16 %v6984
    %v7063 = vunpack.c.l.b16 %v6985
    %v7064 = vunpack.c.h.b16 %v6985
    %v7065 = vunpack.c.l.b16 %v6986
    %v7066 = vunpack.c.l.b16 %v6987
    %v7067 = vunpack.c.h.b16 %v6987
    %v7068 = vunpack.c.l.b16 %v6988
    %v7069 = vpack.c.b16 %v7024, %v7021
    %v7070 = vpack.c.b16 %v7025, %v7022
    %v7071 = vpack.c.b16 %v7026, %v7023
    %v7072 = vpack.c.b16 %v7030, %v7027
    %v7073 = vpack.c.b16 %v7031, %v7028
    %v7074 = vpack.c.b16 %v7032, %v7029
    %v7075 = vpack.c.b16 %v7036, %v7033
    %v7076 = vpack.c.b16 %v7037, %v7034
    %v7077 = vpack.c.b16 %v7038, %v7035
    %v7078 = vpack.c.b16 %v7042, %v7039
    %v7079 = vpack.c.b16 %v7043, %v7040
    %v7080 = vpack.c.b16 %v7044, %v7041
    %v7081 = vpack.c.b16 %v7048, %v7045
    %v7082 = vpack.c.b16 %v7049, %v7046
    %v7083 = vpack.c.b16 %v7050, %v7047
    %v7084 = vpack.c.b16 %v7054, %v7051
    %v7085 = vpack.c.b16 %v7055, %v7052
    %v7086 = vpack.c.b16 %v7056, %v7053
    %v7087 = vpack.c.b16 %v7060, %v7057
    %v7088 = vpack.c.b16 %v7061, %v7058
    %v7089 = vpack.c.b16 %v7062, %v7059
    %v7090 = vpack.c.b16 %v7066, %v7063
    %v7091 = vpack.c.b16 %v7067, %v7064
    %v7092 = vpack.c.b16 %v7068, %v7065
    %7117 = vmatprep.subr.bf16.mxu0 %v7070
    %7118 = vmatpush1.bf16.msra.mxu0 %v7069
    %7119 = vmatprep.subr.bf16.mxu0 %v7073
    %7120 = vmatpush1.bf16.msra.mxu0 %v7072
    %7121 = vmatprep.subr.bf16.mxu0 %v7076
    %7122 = vmatpush1.bf16.msra.mxu0 %v7075
    %7123 = vmatprep.subr.bf16.mxu0 %v7079
    %7124 = vmatpush1.bf16.msra.mxu0 %v7078
    %7125 = vmatprep.subr.bf16.mxu0 %v7082
    %7126 = vmatpush1.bf16.msra.mxu0 %v7081
    %7127 = vmatprep.subr.bf16.mxu0 %v7085
    %7128 = vmatpush1.bf16.msra.mxu0 %v7084
    %7129 = vmatprep.subr.bf16.mxu0 %v7088
    %7130 = vmatpush1.bf16.msra.mxu0 %v7087
    %7131 = vmatprep.subr.bf16.mxu0 %v7091
    %7132 = vmatpush1.bf16.msra.mxu0 %v7090
    %7133 = vmatprep.subr.bf16.mxu0 0
    %7134 = vmatpush1.bf16.msra.mxu0 0
    %7135 = vmatprep.subr.bf16.mxu0 0
    %7136 = vmatpush1.bf16.msra.mxu0 0
    %7137 = vmatprep.subr.bf16.mxu0 0
    %7138 = vmatpush1.bf16.msra.mxu0 0
    %7139 = vmatprep.subr.bf16.mxu0 0
    %7140 = vmatpush1.bf16.msra.mxu0 0
    %7141 = vmatprep.subr.bf16.mxu0 0
    %7142 = vmatpush1.bf16.msra.mxu0 0
    %7143 = vmatprep.subr.bf16.mxu0 0
    %7144 = vmatpush1.bf16.msra.mxu0 0
    %7145 = vmatprep.subr.bf16.mxu0 0
    %7146 = vmatpush1.bf16.msra.mxu0 0
    %7147 = vmatprep.subr.bf16.mxu0 0
    %7148 = vmatpush1.bf16.msra.mxu0 0
    %7149 = vmatprep.mubr.bf16.mxu0 0
    %7150 = vmatmul.mubr.bf16.gmra.mrb[0].mxu0 %v6956
    %v7151 = vpop.f32.mrb[0].mxu0
    %v7152 = vadd.f32 0.0, %v7151
    %v7153 = vpop.f32.mrb[0].mxu0
    %v7154 = vadd.f32 0.0, %v7153
    %v7155 = vpop.f32.mrb[0].mxu0
    %v7156 = vpop.f32.mrb[0].mxu0
    %7157 = vdwg.mxu0
    %7158 = vmatprep.subr.bf16.mxu0 0
    %7159 = vmatpush1.bf16.msra.mxu0 %v7071
    %7160 = vmatprep.subr.bf16.mxu0 0
    %7161 = vmatpush1.bf16.msra.mxu0 %v7074
    %7162 = vmatprep.subr.bf16.mxu0 0
    %7163 = vmatpush1.bf16.msra.mxu0 %v7077
    %7164 = vmatprep.subr.bf16.mxu0 0
    %7165 = vmatpush1.bf16.msra.mxu0 %v7080
    %7166 = vmatprep.subr.bf16.mxu0 0
    %7167 = vmatpush1.bf16.msra.mxu0 %v7083
    %7168 = vmatprep.subr.bf16.mxu0 0
    %7169 = vmatpush1.bf16.msra.mxu0 %v7086
    %7170 = vmatprep.subr.bf16.mxu0 0
    %7171 = vmatpush1.bf16.msra.mxu0 %v7089
    %7172 = vmatprep.subr.bf16.mxu0 0
    %7173 = vmatpush1.bf16.msra.mxu0 %v7092
    %7174 = vmatprep.subr.bf16.mxu0 0
    %7175 = vmatpush1.bf16.msra.mxu0 0
    %7176 = vmatprep.subr.bf16.mxu0 0
    %7177 = vmatpush1.bf16.msra.mxu0 0
    %7178 = vmatprep.subr.bf16.mxu0 0
    %7179 = vmatpush1.bf16.msra.mxu0 0
    %7180 = vmatprep.subr.bf16.mxu0 0
    %7181 = vmatpush1.bf16.msra.mxu0 0
    %7182 = vmatprep.subr.bf16.mxu0 0
    %7183 = vmatpush1.bf16.msra.mxu0 0
    %7184 = vmatprep.subr.bf16.mxu0 0
    %7185 = vmatpush1.bf16.msra.mxu0 0
    %7186 = vmatprep.subr.bf16.mxu0 0
    %7187 = vmatpush1.bf16.msra.mxu0 0
    %7188 = vmatprep.subr.bf16.mxu0 0
    %7189 = vmatpush1.bf16.msra.mxu0 0
    %7190 = vmatprep.mubr.bf16.mxu0 0
    %7191 = vmatmul.mubr.bf16.gmra.mrb[0].mxu0 %v6956
    %v7192 = vpop.f32.mrb[0].mxu0
    %v7193 = vadd.f32 0.0, %v7192
    %v7194 = vpop.f32.mrb[0].mxu0
    %v7195 = vpop.f32.mrb[0].mxu0
    %v7196 = vpop.f32.mrb[0].mxu0
    %7197 = vdwg.mxu0
    %s7198 = vtos %v6952
    %s7199 = scalar_lea.smem [#allocation13], 5
    %7200 = sst [smem:[%s7199]] %s7198
    %s7201 = vtos %v6933
    %s7202 = scalar_lea.smem [#allocation14], 5
    %7203 = sst [smem:[%s7202]] %s7201
    %v7204 = vld [vmem:[#allocation8 + $0xc0] sm:$0xff]
    %v7205 = vld [vmem:[#allocation8 + $0xc8] sm:$0xf]
    %v7206 = vld [vmem:[#allocation8 + $0xcc] sm:$0xff]
    %v7207 = vld [vmem:[#allocation8 + $0xd4] sm:$0xf]
    %v7208 = vld [vmem:[#allocation8 + $0xd8] sm:$0xff]
    %v7209 = vld [vmem:[#allocation8 + $0xe0] sm:$0xf]
    %v7210 = vld [vmem:[#allocation8 + $0xe4] sm:$0xff]
    %v7211 = vld [vmem:[#allocation8 + $0xec] sm:$0xf]
    %v7212 = vld [vmem:[#allocation8 + $0xf0] sm:$0xff]
    %v7213 = vld [vmem:[#allocation8 + $0xf8] sm:$0xf]
    %v7214 = vld [vmem:[#allocation8 + $0xfc] sm:$0xff]
    %v7215 = vld [vmem:[#allocation8 + $0x104] sm:$0xf]
    %v7216 = vld [vmem:[#allocation8 + $0x108] sm:$0xff]
    %v7217 = vld [vmem:[#allocation8 + $0x110] sm:$0xf]
    %v7218 = vld [vmem:[#allocation8 + $0x114] sm:$0xff]
    %v7219 = vld [vmem:[#allocation8 + $0x11c] sm:$0xf]
    %v7220 = vld [vmem:[#allocation8 + $0x120] sm:$0xff]
    %v7221 = vld [vmem:[#allocation8 + $0x128] sm:$0xf]
    %v7222 = vld [vmem:[#allocation8 + $0x12c] sm:$0xff]
    %v7223 = vld [vmem:[#allocation8 + $0x134] sm:$0xf]
    %v7224 = vld [vmem:[#allocation8 + $0x138] sm:$0xff]
    %v7225 = vld [vmem:[#allocation8 + $0x140] sm:$0xf]
    %v7226 = vld [vmem:[#allocation8 + $0x144] sm:$0xff]
    %v7227 = vld [vmem:[#allocation8 + $0x14c] sm:$0xf]
    %v7228 = vld [vmem:[#allocation8 + $0x150] sm:$0xff]
    %v7229 = vld [vmem:[#allocation8 + $0x158] sm:$0xf]
    %v7230 = vld [vmem:[#allocation8 + $0x15c] sm:$0xff]
    %v7231 = vld [vmem:[#allocation8 + $0x164] sm:$0xf]
    %v7232 = vld [vmem:[#allocation8 + $0x168] sm:$0xff]
    %v7233 = vld [vmem:[#allocation8 + $0x170] sm:$0xf]
    %v7234 = vld [vmem:[#allocation8 + $0x174] sm:$0xff]
    %v7235 = vld [vmem:[#allocation8 + $0x17c] sm:$0xf]
    %v7268 = vunpack.c.l.b16 %v7204
    %v7269 = vunpack.c.h.b16 %v7204
    %v7270 = vunpack.c.l.b16 %v7205
    %v7271 = vunpack.c.l.b16 %v7206
    %v7272 = vunpack.c.h.b16 %v7206
    %v7273 = vunpack.c.l.b16 %v7207
    %v7274 = vunpack.c.l.b16 %v7208
    %v7275 = vunpack.c.h.b16 %v7208
    %v7276 = vunpack.c.l.b16 %v7209
    %v7277 = vunpack.c.l.b16 %v7210
    %v7278 = vunpack.c.h.b16 %v7210
    %v7279 = vunpack.c.l.b16 %v7211
    %v7280 = vunpack.c.l.b16 %v7212
    %v7281 = vunpack.c.h.b16 %v7212
    %v7282 = vunpack.c.l.b16 %v7213
    %v7283 = vunpack.c.l.b16 %v7214
    %v7284 = vunpack.c.h.b16 %v7214
    %v7285 = vunpack.c.l.b16 %v7215
    %v7286 = vunpack.c.l.b16 %v7216
    %v7287 = vunpack.c.h.b16 %v7216
    %v7288 = vunpack.c.l.b16 %v7217
    %v7289 = vunpack.c.l.b16 %v7218
    %v7290 = vunpack.c.h.b16 %v7218
    %v7291 = vunpack.c.l.b16 %v7219
    %v7292 = vunpack.c.l.b16 %v7220
    %v7293 = vunpack.c.h.b16 %v7220
    %v7294 = vunpack.c.l.b16 %v7221
    %v7295 = vunpack.c.l.b16 %v7222
    %v7296 = vunpack.c.h.b16 %v7222
    %v7297 = vunpack.c.l.b16 %v7223
    %v7298 = vunpack.c.l.b16 %v7224
    %v7299 = vunpack.c.h.b16 %v7224
    %v7300 = vunpack.c.l.b16 %v7225
    %v7301 = vunpack.c.l.b16 %v7226
    %v7302 = vunpack.c.h.b16 %v7226
    %v7303 = vunpack.c.l.b16 %v7227
    %v7304 = vunpack.c.l.b16 %v7228
    %v7305 = vunpack.c.h.b16 %v7228
    %v7306 = vunpack.c.l.b16 %v7229
    %v7307 = vunpack.c.l.b16 %v7230
    %v7308 = vunpack.c.h.b16 %v7230
    %v7309 = vunpack.c.l.b16 %v7231
    %v7310 = vunpack.c.l.b16 %v7232
    %v7311 = vunpack.c.h.b16 %v7232
    %v7312 = vunpack.c.l.b16 %v7233
    %v7313 = vunpack.c.l.b16 %v7234
    %v7314 = vunpack.c.h.b16 %v7234
    %v7315 = vunpack.c.l.b16 %v7235
    %v7316 = vpack.c.b16 %v7271, %v7268
    %v7317 = vpack.c.b16 %v7272, %v7269
    %v7318 = vpack.c.b16 %v7273, %v7270
    %v7319 = vpack.c.b16 %v7277, %v7274
    %v7320 = vpack.c.b16 %v7278, %v7275
    %v7321 = vpack.c.b16 %v7279, %v7276
    %v7322 = vpack.c.b16 %v7283, %v7280
    %v7323 = vpack.c.b16 %v7284, %v7281
    %v7324 = vpack.c.b16 %v7285, %v7282
    %v7325 = vpack.c.b16 %v7289, %v7286
    %v7326 = vpack.c.b16 %v7290, %v7287
    %v7327 = vpack.c.b16 %v7291, %v7288
    %v7328 = vpack.c.b16 %v7295, %v7292
    %v7329 = vpack.c.b16 %v7296, %v7293
    %v7330 = vpack.c.b16 %v7297, %v7294
    %v7331 = vpack.c.b16 %v7301, %v7298
    %v7332 = vpack.c.b16 %v7302, %v7299
    %v7333 = vpack.c.b16 %v7303, %v7300
    %v7334 = vpack.c.b16 %v7307, %v7304
    %v7335 = vpack.c.b16 %v7308, %v7305
    %v7336 = vpack.c.b16 %v7309, %v7306
    %v7337 = vpack.c.b16 %v7313, %v7310
    %v7338 = vpack.c.b16 %v7314, %v7311
    %v7339 = vpack.c.b16 %v7315, %v7312
    %7364 = vmatprep.subr.bf16.mxu0 %v7317
    %7365 = vmatpush1.bf16.msra.mxu0 %v7316
    %7366 = vmatprep.subr.bf16.mxu0 %v7320
    %7367 = vmatpush1.bf16.msra.mxu0 %v7319
    %7368 = vmatprep.subr.bf16.mxu0 %v7323
    %7369 = vmatpush1.bf16.msra.mxu0 %v7322
    %7370 = vmatprep.subr.bf16.mxu0 %v7326
    %7371 = vmatpush1.bf16.msra.mxu0 %v7325
    %7372 = vmatprep.subr.bf16.mxu0 %v7329
    %7373 = vmatpush1.bf16.msra.mxu0 %v7328
    %7374 = vmatprep.subr.bf16.mxu0 %v7332
    %7375 = vmatpush1.bf16.msra.mxu0 %v7331
    %7376 = vmatprep.subr.bf16.mxu0 %v7335
    %7377 = vmatpush1.bf16.msra.mxu0 %v7334
    %7378 = vmatprep.subr.bf16.mxu0 %v7338
    %7379 = vmatpush1.bf16.msra.mxu0 %v7337
    %7380 = vmatprep.subr.bf16.mxu0 0
    %7381 = vmatpush1.bf16.msra.mxu0 0
    %7382 = vmatprep.subr.bf16.mxu0 0
    %7383 = vmatpush1.bf16.msra.mxu0 0
    %7384 = vmatprep.subr.bf16.mxu0 0
    %7385 = vmatpush1.bf16.msra.mxu0 0
    %7386 = vmatprep.subr.bf16.mxu0 0
    %7387 = vmatpush1.bf16.msra.mxu0 0
    %7388 = vmatprep.subr.bf16.mxu0 0
    %7389 = vmatpush1.bf16.msra.mxu0 0
    %7390 = vmatprep.subr.bf16.mxu0 0
    %7391 = vmatpush1.bf16.msra.mxu0 0
    %7392 = vmatprep.subr.bf16.mxu0 0
    %7393 = vmatpush1.bf16.msra.mxu0 0
    %7394 = vmatprep.subr.bf16.mxu0 0
    %7395 = vmatpush1.bf16.msra.mxu0 0
    %7396 = vmatprep.mubr.bf16.mxu0 0
    %7397 = vmatmul.mubr.bf16.gmra.mrb[0].mxu0 %v6552
    %v7398 = vpop.f32.mrb[0].mxu0
    %v7399 = vadd.f32 %v2010, %v7398
    %v7400 = vpop.f32.mrb[0].mxu0
    %v7401 = vadd.f32 %v2014, %v7400
    %v7402 = vpop.f32.mrb[0].mxu0
    %v7403 = vpop.f32.mrb[0].mxu0
    %7404 = vdwg.mxu0
    %7405 = vmatprep.subr.bf16.mxu0 0
    %7406 = vmatpush1.bf16.msra.mxu0 %v7318
    %7407 = vmatprep.subr.bf16.mxu0 0
    %7408 = vmatpush1.bf16.msra.mxu0 %v7321
    %7409 = vmatprep.subr.bf16.mxu0 0
    %7410 = vmatpush1.bf16.msra.mxu0 %v7324
    %7411 = vmatprep.subr.bf16.mxu0 0
    %7412 = vmatpush1.bf16.msra.mxu0 %v7327
    %7413 = vmatprep.subr.bf16.mxu0 0
    %7414 = vmatpush1.bf16.msra.mxu0 %v7330
    %7415 = vmatprep.subr.bf16.mxu0 0
    %7416 = vmatpush1.bf16.msra.mxu0 %v7333
    %7417 = vmatprep.subr.bf16.mxu0 0
    %7418 = vmatpush1.bf16.msra.mxu0 %v7336
    %7419 = vmatprep.subr.bf16.mxu0 0
    %7420 = vmatpush1.bf16.msra.mxu0 %v7339
    %7421 = vmatprep.subr.bf16.mxu0 0
    %7422 = vmatpush1.bf16.msra.mxu0 0
    %7423 = vmatprep.subr.bf16.mxu0 0
    %7424 = vmatpush1.bf16.msra.mxu0 0
    %7425 = vmatprep.subr.bf16.mxu0 0
    %7426 = vmatpush1.bf16.msra.mxu0 0
    %7427 = vmatprep.subr.bf16.mxu0 0
    %7428 = vmatpush1.bf16.msra.mxu0 0
    %7429 = vmatprep.subr.bf16.mxu0 0
    %7430 = vmatpush1.bf16.msra.mxu0 0
    %7431 = vmatprep.subr.bf16.mxu0 0
    %7432 = vmatpush1.bf16.msra.mxu0 0
    %7433 = vmatprep.subr.bf16.mxu0 0
    %7434 = vmatpush1.bf16.msra.mxu0 0
    %7435 = vmatprep.subr.bf16.mxu0 0
    %7436 = vmatpush1.bf16.msra.mxu0 0
    %7437 = vmatprep.mubr.bf16.mxu0 0
    %7438 = vmatmul.mubr.bf16.gmra.mrb[0].mxu0 %v6552
    %v7439 = vpop.f32.mrb[0].mxu0
    %v7440 = vadd.f32 %v2018, %v7439
    %v7441 = vpop.f32.mrb[0].mxu0
    %v7442 = vpop.f32.mrb[0].mxu0
    %v7443 = vpop.f32.mrb[0].mxu0
    %7444 = vdwg.mxu0
    %v7445 = vadd.f32 %v7152, %v7399
    %v7446 = vxor.u32 %v7445, 2147483648
    %v7447 = vmul.f32 %v7446, 1.442695
    %v7448 = vpow.pop %v7447
    %v7449 = vadd.f32 %v7448, 1.0
    %v7450 = vrcp.pop %v7449
    %v7451 = vmul.f32 1.0, %v7450
    %v7452 = vadd.f32 %v7154, %v7401
    %v7453 = vxor.u32 %v7452, 2147483648
    %v7454 = vmul.f32 %v7453, 1.442695
    %v7455 = vpow.pop %v7454
    %v7456 = vadd.f32 %v7455, 1.0
    %v7457 = vrcp.pop %v7456
    %v7458 = vmul.f32 1.0, %v7457
    %v7459 = vmul.f32 %v7451, %v7440
    %v7460 = vadd.f32 %v7193, %v7459
    %v7461 = vtanh.pop %v7460
    %v7462 = vsub.f32 1.0, %v7458
    %v7463 = vmul.f32 %v7462, %v7461
    %v7464 = vmul.f32 %v7458, %v6551
    %v7465 = vadd.f32 %v7463, %v7464
    %v7466 = vpack.c.bf16 %v7465, %v7465
    %7467 = vmatprep.subr.bf16.mxu0 0
    %7468 = vmatpush1.bf16.msra.mxu0 %v1588
    %7469 = vmatprep.subr.bf16.mxu0 0
    %7470 = vmatpush1.bf16.msra.mxu0 %v1589
    %7471 = vmatprep.subr.bf16.mxu0 0
    %7472 = vmatpush1.bf16.msra.mxu0 %v1590
    %7473 = vmatprep.subr.bf16.mxu0 0
    %7474 = vmatpush1.bf16.msra.mxu0 %v1591
    %7475 = vmatprep.subr.bf16.mxu0 0
    %7476 = vmatpush1.bf16.msra.mxu0 %v1592
    %7477 = vmatprep.subr.bf16.mxu0 0
    %7478 = vmatpush1.bf16.msra.mxu0 %v1593
    %7479 = vmatprep.subr.bf16.mxu0 0
    %7480 = vmatpush1.bf16.msra.mxu0 %v1594
    %7481 = vmatprep.subr.bf16.mxu0 0
    %7482 = vmatpush1.bf16.msra.mxu0 %v1595
    %7483 = vmatprep.subr.bf16.mxu0 0
    %7484 = vmatpush1.bf16.msra.mxu0 0
    %7485 = vmatprep.subr.bf16.mxu0 0
    %7486 = vmatpush1.bf16.msra.mxu0 0
    %7487 = vmatprep.subr.bf16.mxu0 0
    %7488 = vmatpush1.bf16.msra.mxu0 0
    %7489 = vmatprep.subr.bf16.mxu0 0
    %7490 = vmatpush1.bf16.msra.mxu0 0
    %7491 = vmatprep.subr.bf16.mxu0 0
    %7492 = vmatpush1.bf16.msra.mxu0 0
    %7493 = vmatprep.subr.bf16.mxu0 0
    %7494 = vmatpush1.bf16.msra.mxu0 0
    %7495 = vmatprep.subr.bf16.mxu0 0
    %7496 = vmatpush1.bf16.msra.mxu0 0
    %7497 = vmatprep.subr.bf16.mxu0 0
    %7498 = vmatpush1.bf16.msra.mxu0 0
    %7499 = vmatprep.mubr.bf16.mxu0 0
    %7500 = vmatmul.mubr.bf16.gmra.mrb[0].mxu0 %v7466
    %v7501 = vpop.f32.mrb[0].mxu0
    %v7502 = vadd.f32 0.0, %v7501
    %v7503 = vpop.f32.mrb[0].mxu0
    %v7504 = vpop.f32.mrb[0].mxu0
    %v7505 = vpop.f32.mrb[0].mxu0
    %7506 = vdwg.mxu0
    %v7507 = vsel %vm2168, %v7502, -inf
    %7508 = vmax.xlane.f32.xlu0 %v7507
    %v7509 = vpop.xlane.xlu0 %7508
    %v7510 = vsub.f32 %v7502, %v7509
    %v7511 = vmul.f32 %v7510, 1.442695
    %v7512 = vpow.pop %v7511
    %v7513 = vsel %vm2168, %v7512, 0.0
    %7514 = vadd.xlane.f32.xlu0 %v7513
    %v7515 = vpop.xlane.xlu0 %7514
    %v7516 = vrcp.pop %v7515
    %v7517 = vmul.f32 %v7512, %v7516
    %v7518 = vpack.c.bf16 %v7517, %v7517
    %v7520 = vsel %vm2181, %v7518, 0
    %7522 = vmatprep.subr.bf16.mxu0 0
    %7523 = vmatpush1.bf16.msra.mxu0 %v2186
    %7524 = vmatprep.subr.bf16.mxu0 0
    %7525 = vmatpush1.bf16.msra.mxu0 0
    %7526 = vmatprep.subr.bf16.mxu0 0
    %7527 = vmatpush1.bf16.msra.mxu0 0
    %7528 = vmatprep.subr.bf16.mxu0 0
    %7529 = vmatpush1.bf16.msra.mxu0 0
    %7530 = vmatprep.subr.bf16.mxu0 0
    %7531 = vmatpush1.bf16.msra.mxu0 0
    %7532 = vmatprep.subr.bf16.mxu0 0
    %7533 = vmatpush1.bf16.msra.mxu0 0
    %7534 = vmatprep.subr.bf16.mxu0 0
    %7535 = vmatpush1.bf16.msra.mxu0 0
    %7536 = vmatprep.subr.bf16.mxu0 0
    %7537 = vmatpush1.bf16.msra.mxu0 0
    %7538 = vmatprep.subr.bf16.mxu0 0
    %7539 = vmatpush1.bf16.msra.mxu0 0
    %7540 = vmatprep.subr.bf16.mxu0 0
    %7541 = vmatpush1.bf16.msra.mxu0 0
    %7542 = vmatprep.subr.bf16.mxu0 0
    %7543 = vmatpush1.bf16.msra.mxu0 0
    %7544 = vmatprep.subr.bf16.mxu0 0
    %7545 = vmatpush1.bf16.msra.mxu0 0
    %7546 = vmatprep.subr.bf16.mxu0 0
    %7547 = vmatpush1.bf16.msra.mxu0 0
    %7548 = vmatprep.subr.bf16.mxu0 0
    %7549 = vmatpush1.bf16.msra.mxu0 0
    %7550 = vmatprep.subr.bf16.mxu0 0
    %7551 = vmatpush1.bf16.msra.mxu0 0
    %7552 = vmatprep.subr.bf16.mxu0 0
    %7553 = vmatpush1.bf16.msra.mxu0 0
    %7554 = vmatprep.mubr.bf16.mxu0 0
    %7555 = vmatmul.mubr.bf16.gmra.mrb[0].mxu0 %v7520
    %v7556 = vpop.f32.mrb[0].mxu0
    %v7557 = vadd.f32 0.0, %v7556
    %v7558 = vpop.f32.mrb[0].mxu0
    %v7559 = vpop.f32.mrb[0].mxu0
    %v7560 = vpop.f32.mrb[0].mxu0
    %7561 = vdwg.mxu0
    %v7562 = vpack.c.bf16 %v7557, %v7557
    %v7563 = vld [vmem:[#allocation10] sm:$0xf]
    %v7564 = vld [vmem:[#allocation10 + $0x4] sm:$0xf]
    %v7565 = vld [vmem:[#allocation10 + $0x8] sm:$0xf]
    %v7566 = vld [vmem:[#allocation10 + $0xc] sm:$0xf]
    %v7567 = vld [vmem:[#allocation10 + $0x10] sm:$0xf]
    %v7568 = vld [vmem:[#allocation10 + $0x14] sm:$0xf]
    %v7569 = vld [vmem:[#allocation10 + $0x18] sm:$0xf]
    %v7570 = vld [vmem:[#allocation10 + $0x1c] sm:$0xf]
    %v7571 = vld [vmem:[#allocation10 + $0x20] sm:$0xf]
    %v7572 = vld [vmem:[#allocation10 + $0x24] sm:$0xf]
    %v7573 = vld [vmem:[#allocation10 + $0x28] sm:$0xf]
    %v7574 = vld [vmem:[#allocation10 + $0x2c] sm:$0xf]
    %v7575 = vld [vmem:[#allocation10 + $0x30] sm:$0xf]
    %v7576 = vld [vmem:[#allocation10 + $0x34] sm:$0xf]
    %v7577 = vld [vmem:[#allocation10 + $0x38] sm:$0xf]
    %v7578 = vld [vmem:[#allocation10 + $0x3c] sm:$0xf]
    %v7579 = vld [vmem:[#allocation10 + $0x40] sm:$0xf]
    %v7580 = vld [vmem:[#allocation10 + $0x44] sm:$0xf]
    %v7581 = vld [vmem:[#allocation10 + $0x48] sm:$0xf]
    %v7582 = vld [vmem:[#allocation10 + $0x4c] sm:$0xf]
    %v7583 = vld [vmem:[#allocation10 + $0x50] sm:$0xf]
    %v7584 = vld [vmem:[#allocation10 + $0x54] sm:$0xf]
    %v7585 = vld [vmem:[#allocation10 + $0x58] sm:$0xf]
    %v7586 = vld [vmem:[#allocation10 + $0x5c] sm:$0xf]
    %v7587 = vld [vmem:[#allocation10 + $0x60] sm:$0xf]
    %v7588 = vld [vmem:[#allocation10 + $0x64] sm:$0xf]
    %v7589 = vld [vmem:[#allocation10 + $0x68] sm:$0xf]
    %v7590 = vld [vmem:[#allocation10 + $0x6c] sm:$0xf]
    %v7591 = vld [vmem:[#allocation10 + $0x70] sm:$0xf]
    %v7592 = vld [vmem:[#allocation10 + $0x74] sm:$0xf]
    %v7593 = vld [vmem:[#allocation10 + $0x78] sm:$0xf]
    %v7594 = vld [vmem:[#allocation10 + $0x7c] sm:$0xf]
    %v7627 = vunpack.c.l.b16 %v7563
    %v7628 = vunpack.c.l.b16 %v7564
    %v7629 = vunpack.c.l.b16 %v7565
    %v7630 = vunpack.c.l.b16 %v7566
    %v7631 = vunpack.c.l.b16 %v7567
    %v7632 = vunpack.c.l.b16 %v7568
    %v7633 = vunpack.c.l.b16 %v7569
    %v7634 = vunpack.c.l.b16 %v7570
    %v7635 = vunpack.c.l.b16 %v7571
    %v7636 = vunpack.c.l.b16 %v7572
    %v7637 = vunpack.c.l.b16 %v7573
    %v7638 = vunpack.c.l.b16 %v7574
    %v7639 = vunpack.c.l.b16 %v7575
    %v7640 = vunpack.c.l.b16 %v7576
    %v7641 = vunpack.c.l.b16 %v7577
    %v7642 = vunpack.c.l.b16 %v7578
    %v7643 = vunpack.c.l.b16 %v7579
    %v7644 = vunpack.c.l.b16 %v7580
    %v7645 = vunpack.c.l.b16 %v7581
    %v7646 = vunpack.c.l.b16 %v7582
    %v7647 = vunpack.c.l.b16 %v7583
    %v7648 = vunpack.c.l.b16 %v7584
    %v7649 = vunpack.c.l.b16 %v7585
    %v7650 = vunpack.c.l.b16 %v7586
    %v7651 = vunpack.c.l.b16 %v7587
    %v7652 = vunpack.c.l.b16 %v7588
    %v7653 = vunpack.c.l.b16 %v7589
    %v7654 = vunpack.c.l.b16 %v7590
    %v7655 = vunpack.c.l.b16 %v7591
    %v7656 = vunpack.c.l.b16 %v7592
    %v7657 = vunpack.c.l.b16 %v7593
    %v7658 = vunpack.c.l.b16 %v7594
    %v7659 = vpack.c.b16 %v7628, %v7627
    %v7660 = vpack.c.b16 %v7630, %v7629
    %v7661 = vpack.c.b16 %v7632, %v7631
    %v7662 = vpack.c.b16 %v7634, %v7633
    %v7663 = vpack.c.b16 %v7636, %v7635
    %v7664 = vpack.c.b16 %v7638, %v7637
    %v7665 = vpack.c.b16 %v7640, %v7639
    %v7666 = vpack.c.b16 %v7642, %v7641
    %v7667 = vpack.c.b16 %v7644, %v7643
    %v7668 = vpack.c.b16 %v7646, %v7645
    %v7669 = vpack.c.b16 %v7648, %v7647
    %v7670 = vpack.c.b16 %v7650, %v7649
    %v7671 = vpack.c.b16 %v7652, %v7651
    %v7672 = vpack.c.b16 %v7654, %v7653
    %v7673 = vpack.c.b16 %v7656, %v7655
    %v7674 = vpack.c.b16 %v7658, %v7657
    %7691 = vmatprep.subr.bf16.mxu0 0
    %7692 = vmatpush1.bf16.msra.mxu0 %v7659
    %7693 = vmatprep.subr.bf16.mxu0 0
    %7694 = vmatpush1.bf16.msra.mxu0 %v7660
    %7695 = vmatprep.subr.bf16.mxu0 0
    %7696 = vmatpush1.bf16.msra.mxu0 %v7661
    %7697 = vmatprep.subr.bf16.mxu0 0
    %7698 = vmatpush1.bf16.msra.mxu0 %v7662
    %7699 = vmatprep.subr.bf16.mxu0 0
    %7700 = vmatpush1.bf16.msra.mxu0 %v7663
    %7701 = vmatprep.subr.bf16.mxu0 0
    %7702 = vmatpush1.bf16.msra.mxu0 %v7664
    %7703 = vmatprep.subr.bf16.mxu0 0
    %7704 = vmatpush1.bf16.msra.mxu0 %v7665
    %7705 = vmatprep.subr.bf16.mxu0 0
    %7706 = vmatpush1.bf16.msra.mxu0 %v7666
    %7707 = vmatprep.subr.bf16.mxu0 0
    %7708 = vmatpush1.bf16.msra.mxu0 %v7667
    %7709 = vmatprep.subr.bf16.mxu0 0
    %7710 = vmatpush1.bf16.msra.mxu0 %v7668
    %7711 = vmatprep.subr.bf16.mxu0 0
    %7712 = vmatpush1.bf16.msra.mxu0 %v7669
    %7713 = vmatprep.subr.bf16.mxu0 0
    %7714 = vmatpush1.bf16.msra.mxu0 %v7670
    %7715 = vmatprep.subr.bf16.mxu0 0
    %7716 = vmatpush1.bf16.msra.mxu0 %v7671
    %7717 = vmatprep.subr.bf16.mxu0 0
    %7718 = vmatpush1.bf16.msra.mxu0 %v7672
    %7719 = vmatprep.subr.bf16.mxu0 0
    %7720 = vmatpush1.bf16.msra.mxu0 %v7673
    %7721 = vmatprep.subr.bf16.mxu0 0
    %7722 = vmatpush1.bf16.msra.mxu0 %v7674
    %7723 = vmatprep.mubr.bf16.mxu0 %v7562
    %7724 = vmatmul.mubr.bf16.gmra.mrb[0].mxu0 %v7466
    %v7725 = vpop.f32.mrb[0].mxu0
    %v7726 = vadd.f32 %v2360, %v7725
    %v7727 = vpop.f32.mrb[0].mxu0
    %v7728 = vpop.f32.mrb[0].mxu0
    %v7729 = vpop.f32.mrb[0].mxu0
    %7730 = vdwg.mxu0
    %v7731 = vtanh.pop %v7726
    %v7732 = vpack.c.bf16 %v7731, %v7731
    %v7733 = vld [vmem:[#allocation10 + $0x80] sm:$0xf]
    %v7734 = vld [vmem:[#allocation10 + $0x84] sm:$0xf]
    %v7735 = vld [vmem:[#allocation10 + $0x88] sm:$0xf]
    %v7736 = vld [vmem:[#allocation10 + $0x8c] sm:$0xf]
    %v7737 = vld [vmem:[#allocation10 + $0x90] sm:$0xf]
    %v7738 = vld [vmem:[#allocation10 + $0x94] sm:$0xf]
    %v7739 = vld [vmem:[#allocation10 + $0x98] sm:$0xf]
    %v7740 = vld [vmem:[#allocation10 + $0x9c] sm:$0xf]
    %v7741 = vld [vmem:[#allocation10 + $0xa0] sm:$0xf]
    %v7742 = vld [vmem:[#allocation10 + $0xa4] sm:$0xf]
    %v7743 = vld [vmem:[#allocation10 + $0xa8] sm:$0xf]
    %v7744 = vld [vmem:[#allocation10 + $0xac] sm:$0xf]
    %v7745 = vld [vmem:[#allocation10 + $0xb0] sm:$0xf]
    %v7746 = vld [vmem:[#allocation10 + $0xb4] sm:$0xf]
    %v7747 = vld [vmem:[#allocation10 + $0xb8] sm:$0xf]
    %v7748 = vld [vmem:[#allocation10 + $0xbc] sm:$0xf]
    %v7765 = vunpack.c.l.b16 %v7733
    %v7766 = vunpack.c.l.b16 %v7734
    %v7767 = vunpack.c.l.b16 %v7735
    %v7768 = vunpack.c.l.b16 %v7736
    %v7769 = vunpack.c.l.b16 %v7737
    %v7770 = vunpack.c.l.b16 %v7738
    %v7771 = vunpack.c.l.b16 %v7739
    %v7772 = vunpack.c.l.b16 %v7740
    %v7773 = vunpack.c.l.b16 %v7741
    %v7774 = vunpack.c.l.b16 %v7742
    %v7775 = vunpack.c.l.b16 %v7743
    %v7776 = vunpack.c.l.b16 %v7744
    %v7777 = vunpack.c.l.b16 %v7745
    %v7778 = vunpack.c.l.b16 %v7746
    %v7779 = vunpack.c.l.b16 %v7747
    %v7780 = vunpack.c.l.b16 %v7748
    %v7781 = vpack.c.b16 %v7766, %v7765
    %v7782 = vpack.c.b16 %v7768, %v7767
    %v7783 = vpack.c.b16 %v7770, %v7769
    %v7784 = vpack.c.b16 %v7772, %v7771
    %v7785 = vpack.c.b16 %v7774, %v7773
    %v7786 = vpack.c.b16 %v7776, %v7775
    %v7787 = vpack.c.b16 %v7778, %v7777
    %v7788 = vpack.c.b16 %v7780, %v7779
    %7797 = vmatprep.subr.bf16.mxu0 0
    %7798 = vmatpush1.bf16.msra.mxu0 %v7781
    %7799 = vmatprep.subr.bf16.mxu0 0
    %7800 = vmatpush1.bf16.msra.mxu0 %v7782
    %7801 = vmatprep.subr.bf16.mxu0 0
    %7802 = vmatpush1.bf16.msra.mxu0 %v7783
    %7803 = vmatprep.subr.bf16.mxu0 0
    %7804 = vmatpush1.bf16.msra.mxu0 %v7784
    %7805 = vmatprep.subr.bf16.mxu0 0
    %7806 = vmatpush1.bf16.msra.mxu0 %v7785
    %7807 = vmatprep.subr.bf16.mxu0 0
    %7808 = vmatpush1.bf16.msra.mxu0 %v7786
    %7809 = vmatprep.subr.bf16.mxu0 0
    %7810 = vmatpush1.bf16.msra.mxu0 %v7787
    %7811 = vmatprep.subr.bf16.mxu0 0
    %7812 = vmatpush1.bf16.msra.mxu0 %v7788
    %7813 = vmatprep.subr.bf16.mxu0 0
    %7814 = vmatpush1.bf16.msra.mxu0 0
    %7815 = vmatprep.subr.bf16.mxu0 0
    %7816 = vmatpush1.bf16.msra.mxu0 0
    %7817 = vmatprep.subr.bf16.mxu0 0
    %7818 = vmatpush1.bf16.msra.mxu0 0
    %7819 = vmatprep.subr.bf16.mxu0 0
    %7820 = vmatpush1.bf16.msra.mxu0 0
    %7821 = vmatprep.subr.bf16.mxu0 0
    %7822 = vmatpush1.bf16.msra.mxu0 0
    %7823 = vmatprep.subr.bf16.mxu0 0
    %7824 = vmatpush1.bf16.msra.mxu0 0
    %7825 = vmatprep.subr.bf16.mxu0 0
    %7826 = vmatpush1.bf16.msra.mxu0 0
    %7827 = vmatprep.subr.bf16.mxu0 0
    %7828 = vmatpush1.bf16.msra.mxu0 0
    %7829 = vmatprep.mubr.bf16.mxu0 0
    %7830 = vmatmul.mubr.bf16.gmra.mrb[0].mxu0 %v7732
    %v7831 = vpop.f32.mrb[0].mxu0
    %v7832 = vadd.f32 %v2471, %v7831
    %v7833 = vpop.f32.mrb[0].mxu0
    %v7834 = vpop.f32.mrb[0].mxu0
    %v7835 = vpop.f32.mrb[0].mxu0
    %7836 = vdwg.mxu0
    %v7837 = vsel %vm139, %v7832, -inf
    %7838 = vmax.xlane.f32.xlu0 %v7837
    %v7839 = vpop.xlane.xlu0 %7838
    %v7840 = vsub.f32 %v7832, %v7839
    %v7841 = vmul.f32 %v7840, 1.442695
    %v7842 = vpow.pop %v7841
    %v7843 = vsel %vm139, %v7842, 0.0
    %7844 = vadd.xlane.f32.xlu0 %v7843
    %v7845 = vpop.xlane.xlu0 %7844
    %v7846 = vrcp.pop %v7845
    %v7847 = vmul.f32 1.0, %v7846
    %vm7848 = vcmp.eq.f32.partialorder %v7832, %v7839
    %v7849 = vsel %vm7848, %v98, 128
    %v7850 = vsel %vm139, %v7849, 2147483647
    %v7851 = vand.u32 %v7850, 65535
    %v7852 = vshra.s32 %v7850, 16
    %v7853 = vcvt.s32.f32 %v7851
    %v7854 = vcvt.s32.f32 %v7852
    %7855 = vmin.xlane.f32.xlu0 %v7854
    %v7856 = vpop.xlane.xlu0 %7855
    %vm7857 = vcmp.eq.f32.partialorder %v7854, %v7856
    %v7858 = vsel %vm7857, %v7853, inf
    %7859 = vmin.xlane.f32.xlu0 %v7858
    %v7860 = vpop.xlane.xlu0 %7859
    %v7861 = vcvt.f32.s32 %v7860
    %v7862 = vcvt.f32.s32 %v7856
    %v7863 = vshll.u32 %v7862, 16
    %v7864 = vadd.s32 %v7863, %v7861
    %vm7865 = vcmp.lt.s32.totalorder %v7864, 127
    %v7866 = vsel %vm7865, %v7864, 127
    %vm7867 = vcmp.eq.s32.totalorder %v98, %v7866
    %v7868 = vsel %vm7867, 1, 0
    %v7869 = vcvt.s32.f32 %v7868
    %v7870 = vpack.c.bf16 %v7869, %v7869
    %v7871 = vld [vmem:[#allocation8] sm:$0xff]
    %v7872 = vld [vmem:[#allocation8 + $0x8] sm:$0xf]
    %v7873 = vld [vmem:[#allocation8 + $0xc] sm:$0xff]
    %v7874 = vld [vmem:[#allocation8 + $0x14] sm:$0xf]
    %v7875 = vld [vmem:[#allocation8 + $0x18] sm:$0xff]
    %v7876 = vld [vmem:[#allocation8 + $0x20] sm:$0xf]
    %v7877 = vld [vmem:[#allocation8 + $0x24] sm:$0xff]
    %v7878 = vld [vmem:[#allocation8 + $0x2c] sm:$0xf]
    %v7879 = vld [vmem:[#allocation8 + $0x30] sm:$0xff]
    %v7880 = vld [vmem:[#allocation8 + $0x38] sm:$0xf]
    %v7881 = vld [vmem:[#allocation8 + $0x3c] sm:$0xff]
    %v7882 = vld [vmem:[#allocation8 + $0x44] sm:$0xf]
    %v7883 = vld [vmem:[#allocation8 + $0x48] sm:$0xff]
    %v7884 = vld [vmem:[#allocation8 + $0x50] sm:$0xf]
    %v7885 = vld [vmem:[#allocation8 + $0x54] sm:$0xff]
    %v7886 = vld [vmem:[#allocation8 + $0x5c] sm:$0xf]
    %v7887 = vld [vmem:[#allocation8 + $0x60] sm:$0xff]
    %v7888 = vld [vmem:[#allocation8 + $0x68] sm:$0xf]
    %v7889 = vld [vmem:[#allocation8 + $0x6c] sm:$0xff]
    %v7890 = vld [vmem:[#allocation8 + $0x74] sm:$0xf]
    %v7891 = vld [vmem:[#allocation8 + $0x78] sm:$0xff]
    %v7892 = vld [vmem:[#allocation8 + $0x80] sm:$0xf]
    %v7893 = vld [vmem:[#allocation8 + $0x84] sm:$0xff]
    %v7894 = vld [vmem:[#allocation8 + $0x8c] sm:$0xf]
    %v7895 = vld [vmem:[#allocation8 + $0x90] sm:$0xff]
    %v7896 = vld [vmem:[#allocation8 + $0x98] sm:$0xf]
    %v7897 = vld [vmem:[#allocation8 + $0x9c] sm:$0xff]
    %v7898 = vld [vmem:[#allocation8 + $0xa4] sm:$0xf]
    %v7899 = vld [vmem:[#allocation8 + $0xa8] sm:$0xff]
    %v7900 = vld [vmem:[#allocation8 + $0xb0] sm:$0xf]
    %v7901 = vld [vmem:[#allocation8 + $0xb4] sm:$0xff]
    %v7902 = vld [vmem:[#allocation8 + $0xbc] sm:$0xf]
    %v7935 = vunpack.c.l.b16 %v7871
    %v7936 = vunpack.c.h.b16 %v7871
    %v7937 = vunpack.c.l.b16 %v7872
    %v7938 = vunpack.c.l.b16 %v7873
    %v7939 = vunpack.c.h.b16 %v7873
    %v7940 = vunpack.c.l.b16 %v7874
    %v7941 = vunpack.c.l.b16 %v7875
    %v7942 = vunpack.c.h.b16 %v7875
    %v7943 = vunpack.c.l.b16 %v7876
    %v7944 = vunpack.c.l.b16 %v7877
    %v7945 = vunpack.c.h.b16 %v7877
    %v7946 = vunpack.c.l.b16 %v7878
    %v7947 = vunpack.c.l.b16 %v7879
    %v7948 = vunpack.c.h.b16 %v7879
    %v7949 = vunpack.c.l.b16 %v7880
    %v7950 = vunpack.c.l.b16 %v7881
    %v7951 = vunpack.c.h.b16 %v7881
    %v7952 = vunpack.c.l.b16 %v7882
    %v7953 = vunpack.c.l.b16 %v7883
    %v7954 = vunpack.c.h.b16 %v7883
    %v7955 = vunpack.c.l.b16 %v7884
    %v7956 = vunpack.c.l.b16 %v7885
    %v7957 = vunpack.c.h.b16 %v7885
    %v7958 = vunpack.c.l.b16 %v7886
    %v7959 = vunpack.c.l.b16 %v7887
    %v7960 = vunpack.c.h.b16 %v7887
    %v7961 = vunpack.c.l.b16 %v7888
    %v7962 = vunpack.c.l.b16 %v7889
    %v7963 = vunpack.c.h.b16 %v7889
    %v7964 = vunpack.c.l.b16 %v7890
    %v7965 = vunpack.c.l.b16 %v7891
    %v7966 = vunpack.c.h.b16 %v7891
    %v7967 = vunpack.c.l.b16 %v7892
    %v7968 = vunpack.c.l.b16 %v7893
    %v7969 = vunpack.c.h.b16 %v7893
    %v7970 = vunpack.c.l.b16 %v7894
    %v7971 = vunpack.c.l.b16 %v7895
    %v7972 = vunpack.c.h.b16 %v7895
    %v7973 = vunpack.c.l.b16 %v7896
    %v7974 = vunpack.c.l.b16 %v7897
    %v7975 = vunpack.c.h.b16 %v7897
    %v7976 = vunpack.c.l.b16 %v7898
    %v7977 = vunpack.c.l.b16 %v7899
    %v7978 = vunpack.c.h.b16 %v7899
    %v7979 = vunpack.c.l.b16 %v7900
    %v7980 = vunpack.c.l.b16 %v7901
    %v7981 = vunpack.c.h.b16 %v7901
    %v7982 = vunpack.c.l.b16 %v7902
    %v7983 = vpack.c.b16 %v7938, %v7935
    %v7984 = vpack.c.b16 %v7939, %v7936
    %v7985 = vpack.c.b16 %v7940, %v7937
    %v7986 = vpack.c.b16 %v7944, %v7941
    %v7987 = vpack.c.b16 %v7945, %v7942
    %v7988 = vpack.c.b16 %v7946, %v7943
    %v7989 = vpack.c.b16 %v7950, %v7947
    %v7990 = vpack.c.b16 %v7951, %v7948
    %v7991 = vpack.c.b16 %v7952, %v7949
    %v7992 = vpack.c.b16 %v7956, %v7953
    %v7993 = vpack.c.b16 %v7957, %v7954
    %v7994 = vpack.c.b16 %v7958, %v7955
    %v7995 = vpack.c.b16 %v7962, %v7959
    %v7996 = vpack.c.b16 %v7963, %v7960
    %v7997 = vpack.c.b16 %v7964, %v7961
    %v7998 = vpack.c.b16 %v7968, %v7965
    %v7999 = vpack.c.b16 %v7969, %v7966
    %v8000 = vpack.c.b16 %v7970, %v7967
    %v8001 = vpack.c.b16 %v7974, %v7971
    %v8002 = vpack.c.b16 %v7975, %v7972
    %v8003 = vpack.c.b16 %v7976, %v7973
    %v8004 = vpack.c.b16 %v7980, %v7977
    %v8005 = vpack.c.b16 %v7981, %v7978
    %v8006 = vpack.c.b16 %v7982, %v7979
    %8031 = vmatprep.subr.bf16.mxu0 %v7984
    %8032 = vmatpush1.bf16.msra.mxu0 %v7983
    %8033 = vmatprep.subr.bf16.mxu0 %v7987
    %8034 = vmatpush1.bf16.msra.mxu0 %v7986
    %8035 = vmatprep.subr.bf16.mxu0 %v7990
    %8036 = vmatpush1.bf16.msra.mxu0 %v7989
    %8037 = vmatprep.subr.bf16.mxu0 %v7993
    %8038 = vmatpush1.bf16.msra.mxu0 %v7992
    %8039 = vmatprep.subr.bf16.mxu0 %v7996
    %8040 = vmatpush1.bf16.msra.mxu0 %v7995
    %8041 = vmatprep.subr.bf16.mxu0 %v7999
    %8042 = vmatpush1.bf16.msra.mxu0 %v7998
    %8043 = vmatprep.subr.bf16.mxu0 %v8002
    %8044 = vmatpush1.bf16.msra.mxu0 %v8001
    %8045 = vmatprep.subr.bf16.mxu0 %v8005
    %8046 = vmatpush1.bf16.msra.mxu0 %v8004
    %8047 = vmatprep.subr.bf16.mxu0 0
    %8048 = vmatpush1.bf16.msra.mxu0 0
    %8049 = vmatprep.subr.bf16.mxu0 0
    %8050 = vmatpush1.bf16.msra.mxu0 0
    %8051 = vmatprep.subr.bf16.mxu0 0
    %8052 = vmatpush1.bf16.msra.mxu0 0
    %8053 = vmatprep.subr.bf16.mxu0 0
    %8054 = vmatpush1.bf16.msra.mxu0 0
    %8055 = vmatprep.subr.bf16.mxu0 0
    %8056 = vmatpush1.bf16.msra.mxu0 0
    %8057 = vmatprep.subr.bf16.mxu0 0
    %8058 = vmatpush1.bf16.msra.mxu0 0
    %8059 = vmatprep.subr.bf16.mxu0 0
    %8060 = vmatpush1.bf16.msra.mxu0 0
    %8061 = vmatprep.subr.bf16.mxu0 0
    %8062 = vmatpush1.bf16.msra.mxu0 0
    %8063 = vmatprep.mubr.bf16.mxu0 0
    %8064 = vmatmul.mubr.bf16.gmra.mrb[0].mxu0 %v7870
    %v8065 = vpop.f32.mrb[0].mxu0
    %v8066 = vadd.f32 0.0, %v8065
    %v8067 = vpop.f32.mrb[0].mxu0
    %v8068 = vadd.f32 0.0, %v8067
    %v8069 = vpop.f32.mrb[0].mxu0
    %v8070 = vpop.f32.mrb[0].mxu0
    %8071 = vdwg.mxu0
    %8072 = vmatprep.subr.bf16.mxu0 0
    %8073 = vmatpush1.bf16.msra.mxu0 %v7985
    %8074 = vmatprep.subr.bf16.mxu0 0
    %8075 = vmatpush1.bf16.msra.mxu0 %v7988
    %8076 = vmatprep.subr.bf16.mxu0 0
    %8077 = vmatpush1.bf16.msra.mxu0 %v7991
    %8078 = vmatprep.subr.bf16.mxu0 0
    %8079 = vmatpush1.bf16.msra.mxu0 %v7994
    %8080 = vmatprep.subr.bf16.mxu0 0
    %8081 = vmatpush1.bf16.msra.mxu0 %v7997
    %8082 = vmatprep.subr.bf16.mxu0 0
    %8083 = vmatpush1.bf16.msra.mxu0 %v8000
    %8084 = vmatprep.subr.bf16.mxu0 0
    %8085 = vmatpush1.bf16.msra.mxu0 %v8003
    %8086 = vmatprep.subr.bf16.mxu0 0
    %8087 = vmatpush1.bf16.msra.mxu0 %v8006
    %8088 = vmatprep.subr.bf16.mxu0 0
    %8089 = vmatpush1.bf16.msra.mxu0 0
    %8090 = vmatprep.subr.bf16.mxu0 0
    %8091 = vmatpush1.bf16.msra.mxu0 0
    %8092 = vmatprep.subr.bf16.mxu0 0
    %8093 = vmatpush1.bf16.msra.mxu0 0
    %8094 = vmatprep.subr.bf16.mxu0 0
    %8095 = vmatpush1.bf16.msra.mxu0 0
    %8096 = vmatprep.subr.bf16.mxu0 0
    %8097 = vmatpush1.bf16.msra.mxu0 0
    %8098 = vmatprep.subr.bf16.mxu0 0
    %8099 = vmatpush1.bf16.msra.mxu0 0
    %8100 = vmatprep.subr.bf16.mxu0 0
    %8101 = vmatpush1.bf16.msra.mxu0 0
    %8102 = vmatprep.subr.bf16.mxu0 0
    %8103 = vmatpush1.bf16.msra.mxu0 0
    %8104 = vmatprep.mubr.bf16.mxu0 0
    %8105 = vmatmul.mubr.bf16.gmra.mrb[0].mxu0 %v7870
    %v8106 = vpop.f32.mrb[0].mxu0
    %v8107 = vadd.f32 0.0, %v8106
    %v8108 = vpop.f32.mrb[0].mxu0
    %v8109 = vpop.f32.mrb[0].mxu0
    %v8110 = vpop.f32.mrb[0].mxu0
    %8111 = vdwg.mxu0
    %s8112 = vtos %v7866
    %s8113 = scalar_lea.smem [#allocation13], 6
    %8114 = sst [smem:[%s8113]] %s8112
    %s8115 = vtos %v7847
    %s8116 = scalar_lea.smem [#allocation14], 6
    %8117 = sst [smem:[%s8116]] %s8115
    %v8118 = vld [vmem:[#allocation8 + $0xc0] sm:$0xff]
    %v8119 = vld [vmem:[#allocation8 + $0xc8] sm:$0xf]
    %v8120 = vld [vmem:[#allocation8 + $0xcc] sm:$0xff]
    %v8121 = vld [vmem:[#allocation8 + $0xd4] sm:$0xf]
    %v8122 = vld [vmem:[#allocation8 + $0xd8] sm:$0xff]
    %v8123 = vld [vmem:[#allocation8 + $0xe0] sm:$0xf]
    %v8124 = vld [vmem:[#allocation8 + $0xe4] sm:$0xff]
    %v8125 = vld [vmem:[#allocation8 + $0xec] sm:$0xf]
    %v8126 = vld [vmem:[#allocation8 + $0xf0] sm:$0xff]
    %v8127 = vld [vmem:[#allocation8 + $0xf8] sm:$0xf]
    %v8128 = vld [vmem:[#allocation8 + $0xfc] sm:$0xff]
    %v8129 = vld [vmem:[#allocation8 + $0x104] sm:$0xf]
    %v8130 = vld [vmem:[#allocation8 + $0x108] sm:$0xff]
    %v8131 = vld [vmem:[#allocation8 + $0x110] sm:$0xf]
    %v8132 = vld [vmem:[#allocation8 + $0x114] sm:$0xff]
    %v8133 = vld [vmem:[#allocation8 + $0x11c] sm:$0xf]
    %v8134 = vld [vmem:[#allocation8 + $0x120] sm:$0xff]
    %v8135 = vld [vmem:[#allocation8 + $0x128] sm:$0xf]
    %v8136 = vld [vmem:[#allocation8 + $0x12c] sm:$0xff]
    %v8137 = vld [vmem:[#allocation8 + $0x134] sm:$0xf]
    %v8138 = vld [vmem:[#allocation8 + $0x138] sm:$0xff]
    %v8139 = vld [vmem:[#allocation8 + $0x140] sm:$0xf]
    %v8140 = vld [vmem:[#allocation8 + $0x144] sm:$0xff]
    %v8141 = vld [vmem:[#allocation8 + $0x14c] sm:$0xf]
    %v8142 = vld [vmem:[#allocation8 + $0x150] sm:$0xff]
    %v8143 = vld [vmem:[#allocation8 + $0x158] sm:$0xf]
    %v8144 = vld [vmem:[#allocation8 + $0x15c] sm:$0xff]
    %v8145 = vld [vmem:[#allocation8 + $0x164] sm:$0xf]
    %v8146 = vld [vmem:[#allocation8 + $0x168] sm:$0xff]
    %v8147 = vld [vmem:[#allocation8 + $0x170] sm:$0xf]
    %v8148 = vld [vmem:[#allocation8 + $0x174] sm:$0xff]
    %v8149 = vld [vmem:[#allocation8 + $0x17c] sm:$0xf]
    %v8182 = vunpack.c.l.b16 %v8118
    %v8183 = vunpack.c.h.b16 %v8118
    %v8184 = vunpack.c.l.b16 %v8119
    %v8185 = vunpack.c.l.b16 %v8120
    %v8186 = vunpack.c.h.b16 %v8120
    %v8187 = vunpack.c.l.b16 %v8121
    %v8188 = vunpack.c.l.b16 %v8122
    %v8189 = vunpack.c.h.b16 %v8122
    %v8190 = vunpack.c.l.b16 %v8123
    %v8191 = vunpack.c.l.b16 %v8124
    %v8192 = vunpack.c.h.b16 %v8124
    %v8193 = vunpack.c.l.b16 %v8125
    %v8194 = vunpack.c.l.b16 %v8126
    %v8195 = vunpack.c.h.b16 %v8126
    %v8196 = vunpack.c.l.b16 %v8127
    %v8197 = vunpack.c.l.b16 %v8128
    %v8198 = vunpack.c.h.b16 %v8128
    %v8199 = vunpack.c.l.b16 %v8129
    %v8200 = vunpack.c.l.b16 %v8130
    %v8201 = vunpack.c.h.b16 %v8130
    %v8202 = vunpack.c.l.b16 %v8131
    %v8203 = vunpack.c.l.b16 %v8132
    %v8204 = vunpack.c.h.b16 %v8132
    %v8205 = vunpack.c.l.b16 %v8133
    %v8206 = vunpack.c.l.b16 %v8134
    %v8207 = vunpack.c.h.b16 %v8134
    %v8208 = vunpack.c.l.b16 %v8135
    %v8209 = vunpack.c.l.b16 %v8136
    %v8210 = vunpack.c.h.b16 %v8136
    %v8211 = vunpack.c.l.b16 %v8137
    %v8212 = vunpack.c.l.b16 %v8138
    %v8213 = vunpack.c.h.b16 %v8138
    %v8214 = vunpack.c.l.b16 %v8139
    %v8215 = vunpack.c.l.b16 %v8140
    %v8216 = vunpack.c.h.b16 %v8140
    %v8217 = vunpack.c.l.b16 %v8141
    %v8218 = vunpack.c.l.b16 %v8142
    %v8219 = vunpack.c.h.b16 %v8142
    %v8220 = vunpack.c.l.b16 %v8143
    %v8221 = vunpack.c.l.b16 %v8144
    %v8222 = vunpack.c.h.b16 %v8144
    %v8223 = vunpack.c.l.b16 %v8145
    %v8224 = vunpack.c.l.b16 %v8146
    %v8225 = vunpack.c.h.b16 %v8146
    %v8226 = vunpack.c.l.b16 %v8147
    %v8227 = vunpack.c.l.b16 %v8148
    %v8228 = vunpack.c.h.b16 %v8148
    %v8229 = vunpack.c.l.b16 %v8149
    %v8230 = vpack.c.b16 %v8185, %v8182
    %v8231 = vpack.c.b16 %v8186, %v8183
    %v8232 = vpack.c.b16 %v8187, %v8184
    %v8233 = vpack.c.b16 %v8191, %v8188
    %v8234 = vpack.c.b16 %v8192, %v8189
    %v8235 = vpack.c.b16 %v8193, %v8190
    %v8236 = vpack.c.b16 %v8197, %v8194
    %v8237 = vpack.c.b16 %v8198, %v8195
    %v8238 = vpack.c.b16 %v8199, %v8196
    %v8239 = vpack.c.b16 %v8203, %v8200
    %v8240 = vpack.c.b16 %v8204, %v8201
    %v8241 = vpack.c.b16 %v8205, %v8202
    %v8242 = vpack.c.b16 %v8209, %v8206
    %v8243 = vpack.c.b16 %v8210, %v8207
    %v8244 = vpack.c.b16 %v8211, %v8208
    %v8245 = vpack.c.b16 %v8215, %v8212
    %v8246 = vpack.c.b16 %v8216, %v8213
    %v8247 = vpack.c.b16 %v8217, %v8214
    %v8248 = vpack.c.b16 %v8221, %v8218
    %v8249 = vpack.c.b16 %v8222, %v8219
    %v8250 = vpack.c.b16 %v8223, %v8220
    %v8251 = vpack.c.b16 %v8227, %v8224
    %v8252 = vpack.c.b16 %v8228, %v8225
    %v8253 = vpack.c.b16 %v8229, %v8226
    %8278 = vmatprep.subr.bf16.mxu0 %v8231
    %8279 = vmatpush1.bf16.msra.mxu0 %v8230
    %8280 = vmatprep.subr.bf16.mxu0 %v8234
    %8281 = vmatpush1.bf16.msra.mxu0 %v8233
    %8282 = vmatprep.subr.bf16.mxu0 %v8237
    %8283 = vmatpush1.bf16.msra.mxu0 %v8236
    %8284 = vmatprep.subr.bf16.mxu0 %v8240
    %8285 = vmatpush1.bf16.msra.mxu0 %v8239
    %8286 = vmatprep.subr.bf16.mxu0 %v8243
    %8287 = vmatpush1.bf16.msra.mxu0 %v8242
    %8288 = vmatprep.subr.bf16.mxu0 %v8246
    %8289 = vmatpush1.bf16.msra.mxu0 %v8245
    %8290 = vmatprep.subr.bf16.mxu0 %v8249
    %8291 = vmatpush1.bf16.msra.mxu0 %v8248
    %8292 = vmatprep.subr.bf16.mxu0 %v8252
    %8293 = vmatpush1.bf16.msra.mxu0 %v8251
    %8294 = vmatprep.subr.bf16.mxu0 0
    %8295 = vmatpush1.bf16.msra.mxu0 0
    %8296 = vmatprep.subr.bf16.mxu0 0
    %8297 = vmatpush1.bf16.msra.mxu0 0
    %8298 = vmatprep.subr.bf16.mxu0 0
    %8299 = vmatpush1.bf16.msra.mxu0 0
    %8300 = vmatprep.subr.bf16.mxu0 0
    %8301 = vmatpush1.bf16.msra.mxu0 0
    %8302 = vmatprep.subr.bf16.mxu0 0
    %8303 = vmatpush1.bf16.msra.mxu0 0
    %8304 = vmatprep.subr.bf16.mxu0 0
    %8305 = vmatpush1.bf16.msra.mxu0 0
    %8306 = vmatprep.subr.bf16.mxu0 0
    %8307 = vmatpush1.bf16.msra.mxu0 0
    %8308 = vmatprep.subr.bf16.mxu0 0
    %8309 = vmatpush1.bf16.msra.mxu0 0
    %8310 = vmatprep.mubr.bf16.mxu0 0
    %8311 = vmatmul.mubr.bf16.gmra.mrb[0].mxu0 %v7466
    %v8312 = vpop.f32.mrb[0].mxu0
    %v8313 = vadd.f32 %v2010, %v8312
    %v8314 = vpop.f32.mrb[0].mxu0
    %v8315 = vadd.f32 %v2014, %v8314
    %v8316 = vpop.f32.mrb[0].mxu0
    %v8317 = vpop.f32.mrb[0].mxu0
    %8318 = vdwg.mxu0
    %8319 = vmatprep.subr.bf16.mxu0 0
    %8320 = vmatpush1.bf16.msra.mxu0 %v8232
    %8321 = vmatprep.subr.bf16.mxu0 0
    %8322 = vmatpush1.bf16.msra.mxu0 %v8235
    %8323 = vmatprep.subr.bf16.mxu0 0
    %8324 = vmatpush1.bf16.msra.mxu0 %v8238
    %8325 = vmatprep.subr.bf16.mxu0 0
    %8326 = vmatpush1.bf16.msra.mxu0 %v8241
    %8327 = vmatprep.subr.bf16.mxu0 0
    %8328 = vmatpush1.bf16.msra.mxu0 %v8244
    %8329 = vmatprep.subr.bf16.mxu0 0
    %8330 = vmatpush1.bf16.msra.mxu0 %v8247
    %8331 = vmatprep.subr.bf16.mxu0 0
    %8332 = vmatpush1.bf16.msra.mxu0 %v8250
    %8333 = vmatprep.subr.bf16.mxu0 0
    %8334 = vmatpush1.bf16.msra.mxu0 %v8253
    %8335 = vmatprep.subr.bf16.mxu0 0
    %8336 = vmatpush1.bf16.msra.mxu0 0
    %8337 = vmatprep.subr.bf16.mxu0 0
    %8338 = vmatpush1.bf16.msra.mxu0 0
    %8339 = vmatprep.subr.bf16.mxu0 0
    %8340 = vmatpush1.bf16.msra.mxu0 0
    %8341 = vmatprep.subr.bf16.mxu0 0
    %8342 = vmatpush1.bf16.msra.mxu0 0
    %8343 = vmatprep.subr.bf16.mxu0 0
    %8344 = vmatpush1.bf16.msra.mxu0 0
    %8345 = vmatprep.subr.bf16.mxu0 0
    %8346 = vmatpush1.bf16.msra.mxu0 0
    %8347 = vmatprep.subr.bf16.mxu0 0
    %8348 = vmatpush1.bf16.msra.mxu0 0
    %8349 = vmatprep.subr.bf16.mxu0 0
    %8350 = vmatpush1.bf16.msra.mxu0 0
    %8351 = vmatprep.mubr.bf16.mxu0 0
    %8352 = vmatmul.mubr.bf16.gmra.mrb[0].mxu0 %v7466
    %v8353 = vpop.f32.mrb[0].mxu0
    %v8354 = vadd.f32 %v2018, %v8353
    %v8355 = vpop.f32.mrb[0].mxu0
    %v8356 = vpop.f32.mrb[0].mxu0
    %v8357 = vpop.f32.mrb[0].mxu0
    %8358 = vdwg.mxu0
    %v8359 = vadd.f32 %v8066, %v8313
    %v8360 = vxor.u32 %v8359, 2147483648
    %v8361 = vmul.f32 %v8360, 1.442695
    %v8362 = vpow.pop %v8361
    %v8363 = vadd.f32 %v8362, 1.0
    %v8364 = vrcp.pop %v8363
    %v8365 = vmul.f32 1.0, %v8364
    %v8366 = vadd.f32 %v8068, %v8315
    %v8367 = vxor.u32 %v8366, 2147483648
    %v8368 = vmul.f32 %v8367, 1.442695
    %v8369 = vpow.pop %v8368
    %v8370 = vadd.f32 %v8369, 1.0
    %v8371 = vrcp.pop %v8370
    %v8372 = vmul.f32 1.0, %v8371
    %v8373 = vmul.f32 %v8365, %v8354
    %v8374 = vadd.f32 %v8107, %v8373
    %v8375 = vtanh.pop %v8374
    %v8376 = vsub.f32 1.0, %v8372
    %v8377 = vmul.f32 %v8376, %v8375
    %v8378 = vmul.f32 %v8372, %v7465
    %v8379 = vadd.f32 %v8377, %v8378
    %v8380 = vpack.c.bf16 %v8379, %v8379
    %8381 = vmatprep.subr.bf16.mxu0 0
    %8382 = vmatpush1.bf16.msra.mxu0 %v1588
    %8383 = vmatprep.subr.bf16.mxu0 0
    %8384 = vmatpush1.bf16.msra.mxu0 %v1589
    %8385 = vmatprep.subr.bf16.mxu0 0
    %8386 = vmatpush1.bf16.msra.mxu0 %v1590
    %8387 = vmatprep.subr.bf16.mxu0 0
    %8388 = vmatpush1.bf16.msra.mxu0 %v1591
    %8389 = vmatprep.subr.bf16.mxu0 0
    %8390 = vmatpush1.bf16.msra.mxu0 %v1592
    %8391 = vmatprep.subr.bf16.mxu0 0
    %8392 = vmatpush1.bf16.msra.mxu0 %v1593
    %8393 = vmatprep.subr.bf16.mxu0 0
    %8394 = vmatpush1.bf16.msra.mxu0 %v1594
    %8395 = vmatprep.subr.bf16.mxu0 0
    %8396 = vmatpush1.bf16.msra.mxu0 %v1595
    %8397 = vmatprep.subr.bf16.mxu0 0
    %8398 = vmatpush1.bf16.msra.mxu0 0
    %8399 = vmatprep.subr.bf16.mxu0 0
    %8400 = vmatpush1.bf16.msra.mxu0 0
    %8401 = vmatprep.subr.bf16.mxu0 0
    %8402 = vmatpush1.bf16.msra.mxu0 0
    %8403 = vmatprep.subr.bf16.mxu0 0
    %8404 = vmatpush1.bf16.msra.mxu0 0
    %8405 = vmatprep.subr.bf16.mxu0 0
    %8406 = vmatpush1.bf16.msra.mxu0 0
    %8407 = vmatprep.subr.bf16.mxu0 0
    %8408 = vmatpush1.bf16.msra.mxu0 0
    %8409 = vmatprep.subr.bf16.mxu0 0
    %8410 = vmatpush1.bf16.msra.mxu0 0
    %8411 = vmatprep.subr.bf16.mxu0 0
    %8412 = vmatpush1.bf16.msra.mxu0 0
    %8413 = vmatprep.mubr.bf16.mxu0 0
    %8414 = vmatmul.mubr.bf16.gmra.mrb[0].mxu0 %v8380
    %v8415 = vpop.f32.mrb[0].mxu0
    %v8416 = vadd.f32 0.0, %v8415
    %v8417 = vpop.f32.mrb[0].mxu0
    %v8418 = vpop.f32.mrb[0].mxu0
    %v8419 = vpop.f32.mrb[0].mxu0
    %8420 = vdwg.mxu0
    %v8421 = vsel %vm2168, %v8416, -inf
    %8422 = vmax.xlane.f32.xlu0 %v8421
    %v8423 = vpop.xlane.xlu0 %8422
    %v8424 = vsub.f32 %v8416, %v8423
    %v8425 = vmul.f32 %v8424, 1.442695
    %v8426 = vpow.pop %v8425
    %v8427 = vsel %vm2168, %v8426, 0.0
    %8428 = vadd.xlane.f32.xlu0 %v8427
    %v8429 = vpop.xlane.xlu0 %8428
    %v8430 = vrcp.pop %v8429
    %v8431 = vmul.f32 %v8426, %v8430
    %v8432 = vpack.c.bf16 %v8431, %v8431
    %v8434 = vsel %vm2181, %v8432, 0
    %8436 = vmatprep.subr.bf16.mxu0 0
    %8437 = vmatpush1.bf16.msra.mxu0 %v2186
    %8438 = vmatprep.subr.bf16.mxu0 0
    %8439 = vmatpush1.bf16.msra.mxu0 0
    %8440 = vmatprep.subr.bf16.mxu0 0
    %8441 = vmatpush1.bf16.msra.mxu0 0
    %8442 = vmatprep.subr.bf16.mxu0 0
    %8443 = vmatpush1.bf16.msra.mxu0 0
    %8444 = vmatprep.subr.bf16.mxu0 0
    %8445 = vmatpush1.bf16.msra.mxu0 0
    %8446 = vmatprep.subr.bf16.mxu0 0
    %8447 = vmatpush1.bf16.msra.mxu0 0
    %8448 = vmatprep.subr.bf16.mxu0 0
    %8449 = vmatpush1.bf16.msra.mxu0 0
    %8450 = vmatprep.subr.bf16.mxu0 0
    %8451 = vmatpush1.bf16.msra.mxu0 0
    %8452 = vmatprep.subr.bf16.mxu0 0
    %8453 = vmatpush1.bf16.msra.mxu0 0
    %8454 = vmatprep.subr.bf16.mxu0 0
    %8455 = vmatpush1.bf16.msra.mxu0 0
    %8456 = vmatprep.subr.bf16.mxu0 0
    %8457 = vmatpush1.bf16.msra.mxu0 0
    %8458 = vmatprep.subr.bf16.mxu0 0
    %8459 = vmatpush1.bf16.msra.mxu0 0
    %8460 = vmatprep.subr.bf16.mxu0 0
    %8461 = vmatpush1.bf16.msra.mxu0 0
    %8462 = vmatprep.subr.bf16.mxu0 0
    %8463 = vmatpush1.bf16.msra.mxu0 0
    %8464 = vmatprep.subr.bf16.mxu0 0
    %8465 = vmatpush1.bf16.msra.mxu0 0
    %8466 = vmatprep.subr.bf16.mxu0 0
    %8467 = vmatpush1.bf16.msra.mxu0 0
    %8468 = vmatprep.mubr.bf16.mxu0 0
    %8469 = vmatmul.mubr.bf16.gmra.mrb[0].mxu0 %v8434
    %v8470 = vpop.f32.mrb[0].mxu0
    %v8471 = vadd.f32 0.0, %v8470
    %v8472 = vpop.f32.mrb[0].mxu0
    %v8473 = vpop.f32.mrb[0].mxu0
    %v8474 = vpop.f32.mrb[0].mxu0
    %8475 = vdwg.mxu0
    %v8476 = vpack.c.bf16 %v8471, %v8471
    %v8477 = vld [vmem:[#allocation10] sm:$0xf]
    %v8478 = vld [vmem:[#allocation10 + $0x4] sm:$0xf]
    %v8479 = vld [vmem:[#allocation10 + $0x8] sm:$0xf]
    %v8480 = vld [vmem:[#allocation10 + $0xc] sm:$0xf]
    %v8481 = vld [vmem:[#allocation10 + $0x10] sm:$0xf]
    %v8482 = vld [vmem:[#allocation10 + $0x14] sm:$0xf]
    %v8483 = vld [vmem:[#allocation10 + $0x18] sm:$0xf]
    %v8484 = vld [vmem:[#allocation10 + $0x1c] sm:$0xf]
    %v8485 = vld [vmem:[#allocation10 + $0x20] sm:$0xf]
    %v8486 = vld [vmem:[#allocation10 + $0x24] sm:$0xf]
    %v8487 = vld [vmem:[#allocation10 + $0x28] sm:$0xf]
    %v8488 = vld [vmem:[#allocation10 + $0x2c] sm:$0xf]
    %v8489 = vld [vmem:[#allocation10 + $0x30] sm:$0xf]
    %v8490 = vld [vmem:[#allocation10 + $0x34] sm:$0xf]
    %v8491 = vld [vmem:[#allocation10 + $0x38] sm:$0xf]
    %v8492 = vld [vmem:[#allocation10 + $0x3c] sm:$0xf]
    %v8493 = vld [vmem:[#allocation10 + $0x40] sm:$0xf]
    %v8494 = vld [vmem:[#allocation10 + $0x44] sm:$0xf]
    %v8495 = vld [vmem:[#allocation10 + $0x48] sm:$0xf]
    %v8496 = vld [vmem:[#allocation10 + $0x4c] sm:$0xf]
    %v8497 = vld [vmem:[#allocation10 + $0x50] sm:$0xf]
    %v8498 = vld [vmem:[#allocation10 + $0x54] sm:$0xf]
    %v8499 = vld [vmem:[#allocation10 + $0x58] sm:$0xf]
    %v8500 = vld [vmem:[#allocation10 + $0x5c] sm:$0xf]
    %v8501 = vld [vmem:[#allocation10 + $0x60] sm:$0xf]
    %v8502 = vld [vmem:[#allocation10 + $0x64] sm:$0xf]
    %v8503 = vld [vmem:[#allocation10 + $0x68] sm:$0xf]
    %v8504 = vld [vmem:[#allocation10 + $0x6c] sm:$0xf]
    %v8505 = vld [vmem:[#allocation10 + $0x70] sm:$0xf]
    %v8506 = vld [vmem:[#allocation10 + $0x74] sm:$0xf]
    %v8507 = vld [vmem:[#allocation10 + $0x78] sm:$0xf]
    %v8508 = vld [vmem:[#allocation10 + $0x7c] sm:$0xf]
    %v8541 = vunpack.c.l.b16 %v8477
    %v8542 = vunpack.c.l.b16 %v8478
    %v8543 = vunpack.c.l.b16 %v8479
    %v8544 = vunpack.c.l.b16 %v8480
    %v8545 = vunpack.c.l.b16 %v8481
    %v8546 = vunpack.c.l.b16 %v8482
    %v8547 = vunpack.c.l.b16 %v8483
    %v8548 = vunpack.c.l.b16 %v8484
    %v8549 = vunpack.c.l.b16 %v8485
    %v8550 = vunpack.c.l.b16 %v8486
    %v8551 = vunpack.c.l.b16 %v8487
    %v8552 = vunpack.c.l.b16 %v8488
    %v8553 = vunpack.c.l.b16 %v8489
    %v8554 = vunpack.c.l.b16 %v8490
    %v8555 = vunpack.c.l.b16 %v8491
    %v8556 = vunpack.c.l.b16 %v8492
    %v8557 = vunpack.c.l.b16 %v8493
    %v8558 = vunpack.c.l.b16 %v8494
    %v8559 = vunpack.c.l.b16 %v8495
    %v8560 = vunpack.c.l.b16 %v8496
    %v8561 = vunpack.c.l.b16 %v8497
    %v8562 = vunpack.c.l.b16 %v8498
    %v8563 = vunpack.c.l.b16 %v8499
    %v8564 = vunpack.c.l.b16 %v8500
    %v8565 = vunpack.c.l.b16 %v8501
    %v8566 = vunpack.c.l.b16 %v8502
    %v8567 = vunpack.c.l.b16 %v8503
    %v8568 = vunpack.c.l.b16 %v8504
    %v8569 = vunpack.c.l.b16 %v8505
    %v8570 = vunpack.c.l.b16 %v8506
    %v8571 = vunpack.c.l.b16 %v8507
    %v8572 = vunpack.c.l.b16 %v8508
    %v8573 = vpack.c.b16 %v8542, %v8541
    %v8574 = vpack.c.b16 %v8544, %v8543
    %v8575 = vpack.c.b16 %v8546, %v8545
    %v8576 = vpack.c.b16 %v8548, %v8547
    %v8577 = vpack.c.b16 %v8550, %v8549
    %v8578 = vpack.c.b16 %v8552, %v8551
    %v8579 = vpack.c.b16 %v8554, %v8553
    %v8580 = vpack.c.b16 %v8556, %v8555
    %v8581 = vpack.c.b16 %v8558, %v8557
    %v8582 = vpack.c.b16 %v8560, %v8559
    %v8583 = vpack.c.b16 %v8562, %v8561
    %v8584 = vpack.c.b16 %v8564, %v8563
    %v8585 = vpack.c.b16 %v8566, %v8565
    %v8586 = vpack.c.b16 %v8568, %v8567
    %v8587 = vpack.c.b16 %v8570, %v8569
    %v8588 = vpack.c.b16 %v8572, %v8571
    %8605 = vmatprep.subr.bf16.mxu0 0
    %8606 = vmatpush1.bf16.msra.mxu0 %v8573
    %8607 = vmatprep.subr.bf16.mxu0 0
    %8608 = vmatpush1.bf16.msra.mxu0 %v8574
    %8609 = vmatprep.subr.bf16.mxu0 0
    %8610 = vmatpush1.bf16.msra.mxu0 %v8575
    %8611 = vmatprep.subr.bf16.mxu0 0
    %8612 = vmatpush1.bf16.msra.mxu0 %v8576
    %8613 = vmatprep.subr.bf16.mxu0 0
    %8614 = vmatpush1.bf16.msra.mxu0 %v8577
    %8615 = vmatprep.subr.bf16.mxu0 0
    %8616 = vmatpush1.bf16.msra.mxu0 %v8578
    %8617 = vmatprep.subr.bf16.mxu0 0
    %8618 = vmatpush1.bf16.msra.mxu0 %v8579
    %8619 = vmatprep.subr.bf16.mxu0 0
    %8620 = vmatpush1.bf16.msra.mxu0 %v8580
    %8621 = vmatprep.subr.bf16.mxu0 0
    %8622 = vmatpush1.bf16.msra.mxu0 %v8581
    %8623 = vmatprep.subr.bf16.mxu0 0
    %8624 = vmatpush1.bf16.msra.mxu0 %v8582
    %8625 = vmatprep.subr.bf16.mxu0 0
    %8626 = vmatpush1.bf16.msra.mxu0 %v8583
    %8627 = vmatprep.subr.bf16.mxu0 0
    %8628 = vmatpush1.bf16.msra.mxu0 %v8584
    %8629 = vmatprep.subr.bf16.mxu0 0
    %8630 = vmatpush1.bf16.msra.mxu0 %v8585
    %8631 = vmatprep.subr.bf16.mxu0 0
    %8632 = vmatpush1.bf16.msra.mxu0 %v8586
    %8633 = vmatprep.subr.bf16.mxu0 0
    %8634 = vmatpush1.bf16.msra.mxu0 %v8587
    %8635 = vmatprep.subr.bf16.mxu0 0
    %8636 = vmatpush1.bf16.msra.mxu0 %v8588
    %8637 = vmatprep.mubr.bf16.mxu0 %v8476
    %8638 = vmatmul.mubr.bf16.gmra.mrb[0].mxu0 %v8380
    %v8639 = vpop.f32.mrb[0].mxu0
    %v8640 = vadd.f32 %v2360, %v8639
    %v8641 = vpop.f32.mrb[0].mxu0
    %v8642 = vpop.f32.mrb[0].mxu0
    %v8643 = vpop.f32.mrb[0].mxu0
    %8644 = vdwg.mxu0
    %v8645 = vtanh.pop %v8640
    %v8646 = vpack.c.bf16 %v8645, %v8645
    %v8647 = vld [vmem:[#allocation10 + $0x80] sm:$0xf]
    %v8648 = vld [vmem:[#allocation10 + $0x84] sm:$0xf]
    %v8649 = vld [vmem:[#allocation10 + $0x88] sm:$0xf]
    %v8650 = vld [vmem:[#allocation10 + $0x8c] sm:$0xf]
    %v8651 = vld [vmem:[#allocation10 + $0x90] sm:$0xf]
    %v8652 = vld [vmem:[#allocation10 + $0x94] sm:$0xf]
    %v8653 = vld [vmem:[#allocation10 + $0x98] sm:$0xf]
    %v8654 = vld [vmem:[#allocation10 + $0x9c] sm:$0xf]
    %v8655 = vld [vmem:[#allocation10 + $0xa0] sm:$0xf]
    %v8656 = vld [vmem:[#allocation10 + $0xa4] sm:$0xf]
    %v8657 = vld [vmem:[#allocation10 + $0xa8] sm:$0xf]
    %v8658 = vld [vmem:[#allocation10 + $0xac] sm:$0xf]
    %v8659 = vld [vmem:[#allocation10 + $0xb0] sm:$0xf]
    %v8660 = vld [vmem:[#allocation10 + $0xb4] sm:$0xf]
    %v8661 = vld [vmem:[#allocation10 + $0xb8] sm:$0xf]
    %v8662 = vld [vmem:[#allocation10 + $0xbc] sm:$0xf]
    %v8679 = vunpack.c.l.b16 %v8647
    %v8680 = vunpack.c.l.b16 %v8648
    %v8681 = vunpack.c.l.b16 %v8649
    %v8682 = vunpack.c.l.b16 %v8650
    %v8683 = vunpack.c.l.b16 %v8651
    %v8684 = vunpack.c.l.b16 %v8652
    %v8685 = vunpack.c.l.b16 %v8653
    %v8686 = vunpack.c.l.b16 %v8654
    %v8687 = vunpack.c.l.b16 %v8655
    %v8688 = vunpack.c.l.b16 %v8656
    %v8689 = vunpack.c.l.b16 %v8657
    %v8690 = vunpack.c.l.b16 %v8658
    %v8691 = vunpack.c.l.b16 %v8659
    %v8692 = vunpack.c.l.b16 %v8660
    %v8693 = vunpack.c.l.b16 %v8661
    %v8694 = vunpack.c.l.b16 %v8662
    %v8695 = vpack.c.b16 %v8680, %v8679
    %v8696 = vpack.c.b16 %v8682, %v8681
    %v8697 = vpack.c.b16 %v8684, %v8683
    %v8698 = vpack.c.b16 %v8686, %v8685
    %v8699 = vpack.c.b16 %v8688, %v8687
    %v8700 = vpack.c.b16 %v8690, %v8689
    %v8701 = vpack.c.b16 %v8692, %v8691
    %v8702 = vpack.c.b16 %v8694, %v8693
    %8711 = vmatprep.subr.bf16.mxu0 0
    %8712 = vmatpush1.bf16.msra.mxu0 %v8695
    %8713 = vmatprep.subr.bf16.mxu0 0
    %8714 = vmatpush1.bf16.msra.mxu0 %v8696
    %8715 = vmatprep.subr.bf16.mxu0 0
    %8716 = vmatpush1.bf16.msra.mxu0 %v8697
    %8717 = vmatprep.subr.bf16.mxu0 0
    %8718 = vmatpush1.bf16.msra.mxu0 %v8698
    %8719 = vmatprep.subr.bf16.mxu0 0
    %8720 = vmatpush1.bf16.msra.mxu0 %v8699
    %8721 = vmatprep.subr.bf16.mxu0 0
    %8722 = vmatpush1.bf16.msra.mxu0 %v8700
    %8723 = vmatprep.subr.bf16.mxu0 0
    %8724 = vmatpush1.bf16.msra.mxu0 %v8701
    %8725 = vmatprep.subr.bf16.mxu0 0
    %8726 = vmatpush1.bf16.msra.mxu0 %v8702
    %8727 = vmatprep.subr.bf16.mxu0 0
    %8728 = vmatpush1.bf16.msra.mxu0 0
    %8729 = vmatprep.subr.bf16.mxu0 0
    %8730 = vmatpush1.bf16.msra.mxu0 0
    %8731 = vmatprep.subr.bf16.mxu0 0
    %8732 = vmatpush1.bf16.msra.mxu0 0
    %8733 = vmatprep.subr.bf16.mxu0 0
    %8734 = vmatpush1.bf16.msra.mxu0 0
    %8735 = vmatprep.subr.bf16.mxu0 0
    %8736 = vmatpush1.bf16.msra.mxu0 0
    %8737 = vmatprep.subr.bf16.mxu0 0
    %8738 = vmatpush1.bf16.msra.mxu0 0
    %8739 = vmatprep.subr.bf16.mxu0 0
    %8740 = vmatpush1.bf16.msra.mxu0 0
    %8741 = vmatprep.subr.bf16.mxu0 0
    %8742 = vmatpush1.bf16.msra.mxu0 0
    %8743 = vmatprep.mubr.bf16.mxu0 0
    %8744 = vmatmul.mubr.bf16.gmra.mrb[0].mxu0 %v8646
    %v8745 = vpop.f32.mrb[0].mxu0
    %v8746 = vadd.f32 %v2471, %v8745
    %v8747 = vpop.f32.mrb[0].mxu0
    %v8748 = vpop.f32.mrb[0].mxu0
    %v8749 = vpop.f32.mrb[0].mxu0
    %8750 = vdwg.mxu0
    %v8751 = vsel %vm139, %v8746, -inf
    %8752 = vmax.xlane.f32.xlu0 %v8751
    %v8753 = vpop.xlane.xlu0 %8752
    %v8754 = vsub.f32 %v8746, %v8753
    %v8755 = vmul.f32 %v8754, 1.442695
    %v8756 = vpow.pop %v8755
    %v8757 = vsel %vm139, %v8756, 0.0
    %8758 = vadd.xlane.f32.xlu0 %v8757
    %v8759 = vpop.xlane.xlu0 %8758
    %v8760 = vrcp.pop %v8759
    %v8761 = vmul.f32 1.0, %v8760
    %vm8762 = vcmp.eq.f32.partialorder %v8746, %v8753
    %v8763 = vsel %vm8762, %v98, 128
    %v8764 = vsel %vm139, %v8763, 2147483647
    %v8765 = vand.u32 %v8764, 65535
    %v8766 = vshra.s32 %v8764, 16
    %v8767 = vcvt.s32.f32 %v8765
    %v8768 = vcvt.s32.f32 %v8766
    %8769 = vmin.xlane.f32.xlu0 %v8768
    %v8770 = vpop.xlane.xlu0 %8769
    %vm8771 = vcmp.eq.f32.partialorder %v8768, %v8770
    %v8772 = vsel %vm8771, %v8767, inf
    %8773 = vmin.xlane.f32.xlu0 %v8772
    %v8774 = vpop.xlane.xlu0 %8773
    %v8775 = vcvt.f32.s32 %v8774
    %v8776 = vcvt.f32.s32 %v8770
    %v8777 = vshll.u32 %v8776, 16
    %v8778 = vadd.s32 %v8777, %v8775
    %vm8779 = vcmp.lt.s32.totalorder %v8778, 127
    %v8780 = vsel %vm8779, %v8778, 127
    %vm8781 = vcmp.eq.s32.totalorder %v98, %v8780
    %v8782 = vsel %vm8781, 1, 0
    %v8783 = vcvt.s32.f32 %v8782
    %v8784 = vpack.c.bf16 %v8783, %v8783
    %v8785 = vld [vmem:[#allocation8] sm:$0xff]
    %v8786 = vld [vmem:[#allocation8 + $0x8] sm:$0xf]
    %v8787 = vld [vmem:[#allocation8 + $0xc] sm:$0xff]
    %v8788 = vld [vmem:[#allocation8 + $0x14] sm:$0xf]
    %v8789 = vld [vmem:[#allocation8 + $0x18] sm:$0xff]
    %v8790 = vld [vmem:[#allocation8 + $0x20] sm:$0xf]
    %v8791 = vld [vmem:[#allocation8 + $0x24] sm:$0xff]
    %v8792 = vld [vmem:[#allocation8 + $0x2c] sm:$0xf]
    %v8793 = vld [vmem:[#allocation8 + $0x30] sm:$0xff]
    %v8794 = vld [vmem:[#allocation8 + $0x38] sm:$0xf]
    %v8795 = vld [vmem:[#allocation8 + $0x3c] sm:$0xff]
    %v8796 = vld [vmem:[#allocation8 + $0x44] sm:$0xf]
    %v8797 = vld [vmem:[#allocation8 + $0x48] sm:$0xff]
    %v8798 = vld [vmem:[#allocation8 + $0x50] sm:$0xf]
    %v8799 = vld [vmem:[#allocation8 + $0x54] sm:$0xff]
    %v8800 = vld [vmem:[#allocation8 + $0x5c] sm:$0xf]
    %v8801 = vld [vmem:[#allocation8 + $0x60] sm:$0xff]
    %v8802 = vld [vmem:[#allocation8 + $0x68] sm:$0xf]
    %v8803 = vld [vmem:[#allocation8 + $0x6c] sm:$0xff]
    %v8804 = vld [vmem:[#allocation8 + $0x74] sm:$0xf]
    %v8805 = vld [vmem:[#allocation8 + $0x78] sm:$0xff]
    %v8806 = vld [vmem:[#allocation8 + $0x80] sm:$0xf]
    %v8807 = vld [vmem:[#allocation8 + $0x84] sm:$0xff]
    %v8808 = vld [vmem:[#allocation8 + $0x8c] sm:$0xf]
    %v8809 = vld [vmem:[#allocation8 + $0x90] sm:$0xff]
    %v8810 = vld [vmem:[#allocation8 + $0x98] sm:$0xf]
    %v8811 = vld [vmem:[#allocation8 + $0x9c] sm:$0xff]
    %v8812 = vld [vmem:[#allocation8 + $0xa4] sm:$0xf]
    %v8813 = vld [vmem:[#allocation8 + $0xa8] sm:$0xff]
    %v8814 = vld [vmem:[#allocation8 + $0xb0] sm:$0xf]
    %v8815 = vld [vmem:[#allocation8 + $0xb4] sm:$0xff]
    %v8816 = vld [vmem:[#allocation8 + $0xbc] sm:$0xf]
    %v8849 = vunpack.c.l.b16 %v8785
    %v8850 = vunpack.c.h.b16 %v8785
    %v8851 = vunpack.c.l.b16 %v8786
    %v8852 = vunpack.c.l.b16 %v8787
    %v8853 = vunpack.c.h.b16 %v8787
    %v8854 = vunpack.c.l.b16 %v8788
    %v8855 = vunpack.c.l.b16 %v8789
    %v8856 = vunpack.c.h.b16 %v8789
    %v8857 = vunpack.c.l.b16 %v8790
    %v8858 = vunpack.c.l.b16 %v8791
    %v8859 = vunpack.c.h.b16 %v8791
    %v8860 = vunpack.c.l.b16 %v8792
    %v8861 = vunpack.c.l.b16 %v8793
    %v8862 = vunpack.c.h.b16 %v8793
    %v8863 = vunpack.c.l.b16 %v8794
    %v8864 = vunpack.c.l.b16 %v8795
    %v8865 = vunpack.c.h.b16 %v8795
    %v8866 = vunpack.c.l.b16 %v8796
    %v8867 = vunpack.c.l.b16 %v8797
    %v8868 = vunpack.c.h.b16 %v8797
    %v8869 = vunpack.c.l.b16 %v8798
    %v8870 = vunpack.c.l.b16 %v8799
    %v8871 = vunpack.c.h.b16 %v8799
    %v8872 = vunpack.c.l.b16 %v8800
    %v8873 = vunpack.c.l.b16 %v8801
    %v8874 = vunpack.c.h.b16 %v8801
    %v8875 = vunpack.c.l.b16 %v8802
    %v8876 = vunpack.c.l.b16 %v8803
    %v8877 = vunpack.c.h.b16 %v8803
    %v8878 = vunpack.c.l.b16 %v8804
    %v8879 = vunpack.c.l.b16 %v8805
    %v8880 = vunpack.c.h.b16 %v8805
    %v8881 = vunpack.c.l.b16 %v8806
    %v8882 = vunpack.c.l.b16 %v8807
    %v8883 = vunpack.c.h.b16 %v8807
    %v8884 = vunpack.c.l.b16 %v8808
    %v8885 = vunpack.c.l.b16 %v8809
    %v8886 = vunpack.c.h.b16 %v8809
    %v8887 = vunpack.c.l.b16 %v8810
    %v8888 = vunpack.c.l.b16 %v8811
    %v8889 = vunpack.c.h.b16 %v8811
    %v8890 = vunpack.c.l.b16 %v8812
    %v8891 = vunpack.c.l.b16 %v8813
    %v8892 = vunpack.c.h.b16 %v8813
    %v8893 = vunpack.c.l.b16 %v8814
    %v8894 = vunpack.c.l.b16 %v8815
    %v8895 = vunpack.c.h.b16 %v8815
    %v8896 = vunpack.c.l.b16 %v8816
    %v8897 = vpack.c.b16 %v8852, %v8849
    %v8898 = vpack.c.b16 %v8853, %v8850
    %v8899 = vpack.c.b16 %v8854, %v8851
    %v8900 = vpack.c.b16 %v8858, %v8855
    %v8901 = vpack.c.b16 %v8859, %v8856
    %v8902 = vpack.c.b16 %v8860, %v8857
    %v8903 = vpack.c.b16 %v8864, %v8861
    %v8904 = vpack.c.b16 %v8865, %v8862
    %v8905 = vpack.c.b16 %v8866, %v8863
    %v8906 = vpack.c.b16 %v8870, %v8867
    %v8907 = vpack.c.b16 %v8871, %v8868
    %v8908 = vpack.c.b16 %v8872, %v8869
    %v8909 = vpack.c.b16 %v8876, %v8873
    %v8910 = vpack.c.b16 %v8877, %v8874
    %v8911 = vpack.c.b16 %v8878, %v8875
    %v8912 = vpack.c.b16 %v8882, %v8879
    %v8913 = vpack.c.b16 %v8883, %v8880
    %v8914 = vpack.c.b16 %v8884, %v8881
    %v8915 = vpack.c.b16 %v8888, %v8885
    %v8916 = vpack.c.b16 %v8889, %v8886
    %v8917 = vpack.c.b16 %v8890, %v8887
    %v8918 = vpack.c.b16 %v8894, %v8891
    %v8919 = vpack.c.b16 %v8895, %v8892
    %v8920 = vpack.c.b16 %v8896, %v8893
    %8945 = vmatprep.subr.bf16.mxu0 %v8898
    %8946 = vmatpush1.bf16.msra.mxu0 %v8897
    %8947 = vmatprep.subr.bf16.mxu0 %v8901
    %8948 = vmatpush1.bf16.msra.mxu0 %v8900
    %8949 = vmatprep.subr.bf16.mxu0 %v8904
    %8950 = vmatpush1.bf16.msra.mxu0 %v8903
    %8951 = vmatprep.subr.bf16.mxu0 %v8907
    %8952 = vmatpush1.bf16.msra.mxu0 %v8906
    %8953 = vmatprep.subr.bf16.mxu0 %v8910
    %8954 = vmatpush1.bf16.msra.mxu0 %v8909
    %8955 = vmatprep.subr.bf16.mxu0 %v8913
    %8956 = vmatpush1.bf16.msra.mxu0 %v8912
    %8957 = vmatprep.subr.bf16.mxu0 %v8916
    %8958 = vmatpush1.bf16.msra.mxu0 %v8915
    %8959 = vmatprep.subr.bf16.mxu0 %v8919
    %8960 = vmatpush1.bf16.msra.mxu0 %v8918
    %8961 = vmatprep.subr.bf16.mxu0 0
    %8962 = vmatpush1.bf16.msra.mxu0 0
    %8963 = vmatprep.subr.bf16.mxu0 0
    %8964 = vmatpush1.bf16.msra.mxu0 0
    %8965 = vmatprep.subr.bf16.mxu0 0
    %8966 = vmatpush1.bf16.msra.mxu0 0
    %8967 = vmatprep.subr.bf16.mxu0 0
    %8968 = vmatpush1.bf16.msra.mxu0 0
    %8969 = vmatprep.subr.bf16.mxu0 0
    %8970 = vmatpush1.bf16.msra.mxu0 0
    %8971 = vmatprep.subr.bf16.mxu0 0
    %8972 = vmatpush1.bf16.msra.mxu0 0
    %8973 = vmatprep.subr.bf16.mxu0 0
    %8974 = vmatpush1.bf16.msra.mxu0 0
    %8975 = vmatprep.subr.bf16.mxu0 0
    %8976 = vmatpush1.bf16.msra.mxu0 0
    %8977 = vmatprep.mubr.bf16.mxu0 0
    %8978 = vmatmul.mubr.bf16.gmra.mrb[0].mxu0 %v8784
    %v8979 = vpop.f32.mrb[0].mxu0
    %v8980 = vadd.f32 0.0, %v8979
    %v8981 = vpop.f32.mrb[0].mxu0
    %v8982 = vadd.f32 0.0, %v8981
    %v8983 = vpop.f32.mrb[0].mxu0
    %v8984 = vpop.f32.mrb[0].mxu0
    %8985 = vdwg.mxu0
    %8986 = vmatprep.subr.bf16.mxu0 0
    %8987 = vmatpush1.bf16.msra.mxu0 %v8899
    %8988 = vmatprep.subr.bf16.mxu0 0
    %8989 = vmatpush1.bf16.msra.mxu0 %v8902
    %8990 = vmatprep.subr.bf16.mxu0 0
    %8991 = vmatpush1.bf16.msra.mxu0 %v8905
    %8992 = vmatprep.subr.bf16.mxu0 0
    %8993 = vmatpush1.bf16.msra.mxu0 %v8908
    %8994 = vmatprep.subr.bf16.mxu0 0
    %8995 = vmatpush1.bf16.msra.mxu0 %v8911
    %8996 = vmatprep.subr.bf16.mxu0 0
    %8997 = vmatpush1.bf16.msra.mxu0 %v8914
    %8998 = vmatprep.subr.bf16.mxu0 0
    %8999 = vmatpush1.bf16.msra.mxu0 %v8917
    %9000 = vmatprep.subr.bf16.mxu0 0
    %9001 = vmatpush1.bf16.msra.mxu0 %v8920
    %9002 = vmatprep.subr.bf16.mxu0 0
    %9003 = vmatpush1.bf16.msra.mxu0 0
    %9004 = vmatprep.subr.bf16.mxu0 0
    %9005 = vmatpush1.bf16.msra.mxu0 0
    %9006 = vmatprep.subr.bf16.mxu0 0
    %9007 = vmatpush1.bf16.msra.mxu0 0
    %9008 = vmatprep.subr.bf16.mxu0 0
    %9009 = vmatpush1.bf16.msra.mxu0 0
    %9010 = vmatprep.subr.bf16.mxu0 0
    %9011 = vmatpush1.bf16.msra.mxu0 0
    %9012 = vmatprep.subr.bf16.mxu0 0
    %9013 = vmatpush1.bf16.msra.mxu0 0
    %9014 = vmatprep.subr.bf16.mxu0 0
    %9015 = vmatpush1.bf16.msra.mxu0 0
    %9016 = vmatprep.subr.bf16.mxu0 0
    %9017 = vmatpush1.bf16.msra.mxu0 0
    %9018 = vmatprep.mubr.bf16.mxu0 0
    %9019 = vmatmul.mubr.bf16.gmra.mrb[0].mxu0 %v8784
    %v9020 = vpop.f32.mrb[0].mxu0
    %v9021 = vadd.f32 0.0, %v9020
    %v9022 = vpop.f32.mrb[0].mxu0
    %v9023 = vpop.f32.mrb[0].mxu0
    %v9024 = vpop.f32.mrb[0].mxu0
    %9025 = vdwg.mxu0
    %s9026 = vtos %v8780
    %s9027 = scalar_lea.smem [#allocation13], 7
    %9028 = sst [smem:[%s9027]] %s9026
    %s9029 = vtos %v8761
    %s9030 = scalar_lea.smem [#allocation14], 7
    %9031 = sst [smem:[%s9030]] %s9029
    %v9032 = vld [vmem:[#allocation8 + $0xc0] sm:$0xff]
    %v9033 = vld [vmem:[#allocation8 + $0xc8] sm:$0xf]
    %v9034 = vld [vmem:[#allocation8 + $0xcc] sm:$0xff]
    %v9035 = vld [vmem:[#allocation8 + $0xd4] sm:$0xf]
    %v9036 = vld [vmem:[#allocation8 + $0xd8] sm:$0xff]
    %v9037 = vld [vmem:[#allocation8 + $0xe0] sm:$0xf]
    %v9038 = vld [vmem:[#allocation8 + $0xe4] sm:$0xff]
    %v9039 = vld [vmem:[#allocation8 + $0xec] sm:$0xf]
    %v9040 = vld [vmem:[#allocation8 + $0xf0] sm:$0xff]
    %v9041 = vld [vmem:[#allocation8 + $0xf8] sm:$0xf]
    %v9042 = vld [vmem:[#allocation8 + $0xfc] sm:$0xff]
    %v9043 = vld [vmem:[#allocation8 + $0x104] sm:$0xf]
    %v9044 = vld [vmem:[#allocation8 + $0x108] sm:$0xff]
    %v9045 = vld [vmem:[#allocation8 + $0x110] sm:$0xf]
    %v9046 = vld [vmem:[#allocation8 + $0x114] sm:$0xff]
    %v9047 = vld [vmem:[#allocation8 + $0x11c] sm:$0xf]
    %v9048 = vld [vmem:[#allocation8 + $0x120] sm:$0xff]
    %v9049 = vld [vmem:[#allocation8 + $0x128] sm:$0xf]
    %v9050 = vld [vmem:[#allocation8 + $0x12c] sm:$0xff]
    %v9051 = vld [vmem:[#allocation8 + $0x134] sm:$0xf]
    %v9052 = vld [vmem:[#allocation8 + $0x138] sm:$0xff]
    %v9053 = vld [vmem:[#allocation8 + $0x140] sm:$0xf]
    %v9054 = vld [vmem:[#allocation8 + $0x144] sm:$0xff]
    %v9055 = vld [vmem:[#allocation8 + $0x14c] sm:$0xf]
    %v9056 = vld [vmem:[#allocation8 + $0x150] sm:$0xff]
    %v9057 = vld [vmem:[#allocation8 + $0x158] sm:$0xf]
    %v9058 = vld [vmem:[#allocation8 + $0x15c] sm:$0xff]
    %v9059 = vld [vmem:[#allocation8 + $0x164] sm:$0xf]
    %v9060 = vld [vmem:[#allocation8 + $0x168] sm:$0xff]
    %v9061 = vld [vmem:[#allocation8 + $0x170] sm:$0xf]
    %v9062 = vld [vmem:[#allocation8 + $0x174] sm:$0xff]
    %v9063 = vld [vmem:[#allocation8 + $0x17c] sm:$0xf]
    %v9096 = vunpack.c.l.b16 %v9032
    %v9097 = vunpack.c.h.b16 %v9032
    %v9098 = vunpack.c.l.b16 %v9033
    %v9099 = vunpack.c.l.b16 %v9034
    %v9100 = vunpack.c.h.b16 %v9034
    %v9101 = vunpack.c.l.b16 %v9035
    %v9102 = vunpack.c.l.b16 %v9036
    %v9103 = vunpack.c.h.b16 %v9036
    %v9104 = vunpack.c.l.b16 %v9037
    %v9105 = vunpack.c.l.b16 %v9038
    %v9106 = vunpack.c.h.b16 %v9038
    %v9107 = vunpack.c.l.b16 %v9039
    %v9108 = vunpack.c.l.b16 %v9040
    %v9109 = vunpack.c.h.b16 %v9040
    %v9110 = vunpack.c.l.b16 %v9041
    %v9111 = vunpack.c.l.b16 %v9042
    %v9112 = vunpack.c.h.b16 %v9042
    %v9113 = vunpack.c.l.b16 %v9043
    %v9114 = vunpack.c.l.b16 %v9044
    %v9115 = vunpack.c.h.b16 %v9044
    %v9116 = vunpack.c.l.b16 %v9045
    %v9117 = vunpack.c.l.b16 %v9046
    %v9118 = vunpack.c.h.b16 %v9046
    %v9119 = vunpack.c.l.b16 %v9047
    %v9120 = vunpack.c.l.b16 %v9048
    %v9121 = vunpack.c.h.b16 %v9048
    %v9122 = vunpack.c.l.b16 %v9049
    %v9123 = vunpack.c.l.b16 %v9050
    %v9124 = vunpack.c.h.b16 %v9050
    %v9125 = vunpack.c.l.b16 %v9051
    %v9126 = vunpack.c.l.b16 %v9052
    %v9127 = vunpack.c.h.b16 %v9052
    %v9128 = vunpack.c.l.b16 %v9053
    %v9129 = vunpack.c.l.b16 %v9054
    %v9130 = vunpack.c.h.b16 %v9054
    %v9131 = vunpack.c.l.b16 %v9055
    %v9132 = vunpack.c.l.b16 %v9056
    %v9133 = vunpack.c.h.b16 %v9056
    %v9134 = vunpack.c.l.b16 %v9057
    %v9135 = vunpack.c.l.b16 %v9058
    %v9136 = vunpack.c.h.b16 %v9058
    %v9137 = vunpack.c.l.b16 %v9059
    %v9138 = vunpack.c.l.b16 %v9060
    %v9139 = vunpack.c.h.b16 %v9060
    %v9140 = vunpack.c.l.b16 %v9061
    %v9141 = vunpack.c.l.b16 %v9062
    %v9142 = vunpack.c.h.b16 %v9062
    %v9143 = vunpack.c.l.b16 %v9063
    %v9144 = vpack.c.b16 %v9099, %v9096
    %v9145 = vpack.c.b16 %v9100, %v9097
    %v9146 = vpack.c.b16 %v9101, %v9098
    %v9147 = vpack.c.b16 %v9105, %v9102
    %v9148 = vpack.c.b16 %v9106, %v9103
    %v9149 = vpack.c.b16 %v9107, %v9104
    %v9150 = vpack.c.b16 %v9111, %v9108
    %v9151 = vpack.c.b16 %v9112, %v9109
    %v9152 = vpack.c.b16 %v9113, %v9110
    %v9153 = vpack.c.b16 %v9117, %v9114
    %v9154 = vpack.c.b16 %v9118, %v9115
    %v9155 = vpack.c.b16 %v9119, %v9116
    %v9156 = vpack.c.b16 %v9123, %v9120
    %v9157 = vpack.c.b16 %v9124, %v9121
    %v9158 = vpack.c.b16 %v9125, %v9122
    %v9159 = vpack.c.b16 %v9129, %v9126
    %v9160 = vpack.c.b16 %v9130, %v9127
    %v9161 = vpack.c.b16 %v9131, %v9128
    %v9162 = vpack.c.b16 %v9135, %v9132
    %v9163 = vpack.c.b16 %v9136, %v9133
    %v9164 = vpack.c.b16 %v9137, %v9134
    %v9165 = vpack.c.b16 %v9141, %v9138
    %v9166 = vpack.c.b16 %v9142, %v9139
    %v9167 = vpack.c.b16 %v9143, %v9140
    %9192 = vmatprep.subr.bf16.mxu0 %v9145
    %9193 = vmatpush1.bf16.msra.mxu0 %v9144
    %9194 = vmatprep.subr.bf16.mxu0 %v9148
    %9195 = vmatpush1.bf16.msra.mxu0 %v9147
    %9196 = vmatprep.subr.bf16.mxu0 %v9151
    %9197 = vmatpush1.bf16.msra.mxu0 %v9150
    %9198 = vmatprep.subr.bf16.mxu0 %v9154
    %9199 = vmatpush1.bf16.msra.mxu0 %v9153
    %9200 = vmatprep.subr.bf16.mxu0 %v9157
    %9201 = vmatpush1.bf16.msra.mxu0 %v9156
    %9202 = vmatprep.subr.bf16.mxu0 %v9160
    %9203 = vmatpush1.bf16.msra.mxu0 %v9159
    %9204 = vmatprep.subr.bf16.mxu0 %v9163
    %9205 = vmatpush1.bf16.msra.mxu0 %v9162
    %9206 = vmatprep.subr.bf16.mxu0 %v9166
    %9207 = vmatpush1.bf16.msra.mxu0 %v9165
    %9208 = vmatprep.subr.bf16.mxu0 0
    %9209 = vmatpush1.bf16.msra.mxu0 0
    %9210 = vmatprep.subr.bf16.mxu0 0
    %9211 = vmatpush1.bf16.msra.mxu0 0
    %9212 = vmatprep.subr.bf16.mxu0 0
    %9213 = vmatpush1.bf16.msra.mxu0 0
    %9214 = vmatprep.subr.bf16.mxu0 0
    %9215 = vmatpush1.bf16.msra.mxu0 0
    %9216 = vmatprep.subr.bf16.mxu0 0
    %9217 = vmatpush1.bf16.msra.mxu0 0
    %9218 = vmatprep.subr.bf16.mxu0 0
    %9219 = vmatpush1.bf16.msra.mxu0 0
    %9220 = vmatprep.subr.bf16.mxu0 0
    %9221 = vmatpush1.bf16.msra.mxu0 0
    %9222 = vmatprep.subr.bf16.mxu0 0
    %9223 = vmatpush1.bf16.msra.mxu0 0
    %9224 = vmatprep.mubr.bf16.mxu0 0
    %9225 = vmatmul.mubr.bf16.gmra.mrb[0].mxu0 %v8380
    %v9226 = vpop.f32.mrb[0].mxu0
    %v9227 = vadd.f32 %v2010, %v9226
    %v9228 = vpop.f32.mrb[0].mxu0
    %v9229 = vadd.f32 %v2014, %v9228
    %v9230 = vpop.f32.mrb[0].mxu0
    %v9231 = vpop.f32.mrb[0].mxu0
    %9232 = vdwg.mxu0
    %9233 = vmatprep.subr.bf16.mxu0 0
    %9234 = vmatpush1.bf16.msra.mxu0 %v9146
    %9235 = vmatprep.subr.bf16.mxu0 0
    %9236 = vmatpush1.bf16.msra.mxu0 %v9149
    %9237 = vmatprep.subr.bf16.mxu0 0
    %9238 = vmatpush1.bf16.msra.mxu0 %v9152
    %9239 = vmatprep.subr.bf16.mxu0 0
    %9240 = vmatpush1.bf16.msra.mxu0 %v9155
    %9241 = vmatprep.subr.bf16.mxu0 0
    %9242 = vmatpush1.bf16.msra.mxu0 %v9158
    %9243 = vmatprep.subr.bf16.mxu0 0
    %9244 = vmatpush1.bf16.msra.mxu0 %v9161
    %9245 = vmatprep.subr.bf16.mxu0 0
    %9246 = vmatpush1.bf16.msra.mxu0 %v9164
    %9247 = vmatprep.subr.bf16.mxu0 0
    %9248 = vmatpush1.bf16.msra.mxu0 %v9167
    %9249 = vmatprep.subr.bf16.mxu0 0
    %9250 = vmatpush1.bf16.msra.mxu0 0
    %9251 = vmatprep.subr.bf16.mxu0 0
    %9252 = vmatpush1.bf16.msra.mxu0 0
    %9253 = vmatprep.subr.bf16.mxu0 0
    %9254 = vmatpush1.bf16.msra.mxu0 0
    %9255 = vmatprep.subr.bf16.mxu0 0
    %9256 = vmatpush1.bf16.msra.mxu0 0
    %9257 = vmatprep.subr.bf16.mxu0 0
    %9258 = vmatpush1.bf16.msra.mxu0 0
    %9259 = vmatprep.subr.bf16.mxu0 0
    %9260 = vmatpush1.bf16.msra.mxu0 0
    %9261 = vmatprep.subr.bf16.mxu0 0
    %9262 = vmatpush1.bf16.msra.mxu0 0
    %9263 = vmatprep.subr.bf16.mxu0 0
    %9264 = vmatpush1.bf16.msra.mxu0 0
    %9265 = vmatprep.mubr.bf16.mxu0 0
    %9266 = vmatmul.mubr.bf16.gmra.mrb[0].mxu0 %v8380
    %v9267 = vpop.f32.mrb[0].mxu0
    %v9268 = vadd.f32 %v2018, %v9267
    %v9269 = vpop.f32.mrb[0].mxu0
    %v9270 = vpop.f32.mrb[0].mxu0
    %v9271 = vpop.f32.mrb[0].mxu0
    %9272 = vdwg.mxu0
    %v9273 = vadd.f32 %v8980, %v9227
    %v9274 = vxor.u32 %v9273, 2147483648
    %v9275 = vmul.f32 %v9274, 1.442695
    %v9276 = vpow.pop %v9275
    %v9277 = vadd.f32 %v9276, 1.0
    %v9278 = vrcp.pop %v9277
    %v9279 = vmul.f32 1.0, %v9278
    %v9280 = vadd.f32 %v8982, %v9229
    %v9281 = vxor.u32 %v9280, 2147483648
    %v9282 = vmul.f32 %v9281, 1.442695
    %v9283 = vpow.pop %v9282
    %v9284 = vadd.f32 %v9283, 1.0
    %v9285 = vrcp.pop %v9284
    %v9286 = vmul.f32 1.0, %v9285
    %v9287 = vmul.f32 %v9279, %v9268
    %v9288 = vadd.f32 %v9021, %v9287
    %v9289 = vtanh.pop %v9288
    %v9290 = vsub.f32 1.0, %v9286
    %v9291 = vmul.f32 %v9290, %v9289
    %v9292 = vmul.f32 %v9286, %v8379
    %v9293 = vadd.f32 %v9291, %v9292
    %v9294 = vpack.c.bf16 %v9293, %v9293
    %9295 = vmatprep.subr.bf16.mxu0 0
    %9296 = vmatpush1.bf16.msra.mxu0 %v1588
    %9297 = vmatprep.subr.bf16.mxu0 0
    %9298 = vmatpush1.bf16.msra.mxu0 %v1589
    %9299 = vmatprep.subr.bf16.mxu0 0
    %9300 = vmatpush1.bf16.msra.mxu0 %v1590
    %9301 = vmatprep.subr.bf16.mxu0 0
    %9302 = vmatpush1.bf16.msra.mxu0 %v1591
    %9303 = vmatprep.subr.bf16.mxu0 0
    %9304 = vmatpush1.bf16.msra.mxu0 %v1592
    %9305 = vmatprep.subr.bf16.mxu0 0
    %9306 = vmatpush1.bf16.msra.mxu0 %v1593
    %9307 = vmatprep.subr.bf16.mxu0 0
    %9308 = vmatpush1.bf16.msra.mxu0 %v1594
    %9309 = vmatprep.subr.bf16.mxu0 0
    %9310 = vmatpush1.bf16.msra.mxu0 %v1595
    %9311 = vmatprep.subr.bf16.mxu0 0
    %9312 = vmatpush1.bf16.msra.mxu0 0
    %9313 = vmatprep.subr.bf16.mxu0 0
    %9314 = vmatpush1.bf16.msra.mxu0 0
    %9315 = vmatprep.subr.bf16.mxu0 0
    %9316 = vmatpush1.bf16.msra.mxu0 0
    %9317 = vmatprep.subr.bf16.mxu0 0
    %9318 = vmatpush1.bf16.msra.mxu0 0
    %9319 = vmatprep.subr.bf16.mxu0 0
    %9320 = vmatpush1.bf16.msra.mxu0 0
    %9321 = vmatprep.subr.bf16.mxu0 0
    %9322 = vmatpush1.bf16.msra.mxu0 0
    %9323 = vmatprep.subr.bf16.mxu0 0
    %9324 = vmatpush1.bf16.msra.mxu0 0
    %9325 = vmatprep.subr.bf16.mxu0 0
    %9326 = vmatpush1.bf16.msra.mxu0 0
    %9327 = vmatprep.mubr.bf16.mxu0 0
    %9328 = vmatmul.mubr.bf16.gmra.mrb[0].mxu0 %v9294
    %v9329 = vpop.f32.mrb[0].mxu0
    %v9330 = vadd.f32 0.0, %v9329
    %v9331 = vpop.f32.mrb[0].mxu0
    %v9332 = vpop.f32.mrb[0].mxu0
    %v9333 = vpop.f32.mrb[0].mxu0
    %9334 = vdwg.mxu0
    %v9335 = vsel %vm2168, %v9330, -inf
    %9336 = vmax.xlane.f32.xlu0 %v9335
    %v9337 = vpop.xlane.xlu0 %9336
    %v9338 = vsub.f32 %v9330, %v9337
    %v9339 = vmul.f32 %v9338, 1.442695
    %v9340 = vpow.pop %v9339
    %v9341 = vsel %vm2168, %v9340, 0.0
    %9342 = vadd.xlane.f32.xlu0 %v9341
    %v9343 = vpop.xlane.xlu0 %9342
    %v9344 = vrcp.pop %v9343
    %v9345 = vmul.f32 %v9340, %v9344
    %v9346 = vpack.c.bf16 %v9345, %v9345
    %v9348 = vsel %vm2181, %v9346, 0
    %9350 = vmatprep.subr.bf16.mxu0 0
    %9351 = vmatpush1.bf16.msra.mxu0 %v2186
    %9352 = vmatprep.subr.bf16.mxu0 0
    %9353 = vmatpush1.bf16.msra.mxu0 0
    %9354 = vmatprep.subr.bf16.mxu0 0
    %9355 = vmatpush1.bf16.msra.mxu0 0
    %9356 = vmatprep.subr.bf16.mxu0 0
    %9357 = vmatpush1.bf16.msra.mxu0 0
    %9358 = vmatprep.subr.bf16.mxu0 0
    %9359 = vmatpush1.bf16.msra.mxu0 0
    %9360 = vmatprep.subr.bf16.mxu0 0
    %9361 = vmatpush1.bf16.msra.mxu0 0
    %9362 = vmatprep.subr.bf16.mxu0 0
    %9363 = vmatpush1.bf16.msra.mxu0 0
    %9364 = vmatprep.subr.bf16.mxu0 0
    %9365 = vmatpush1.bf16.msra.mxu0 0
    %9366 = vmatprep.subr.bf16.mxu0 0
    %9367 = vmatpush1.bf16.msra.mxu0 0
    %9368 = vmatprep.subr.bf16.mxu0 0
    %9369 = vmatpush1.bf16.msra.mxu0 0
    %9370 = vmatprep.subr.bf16.mxu0 0
    %9371 = vmatpush1.bf16.msra.mxu0 0
    %9372 = vmatprep.subr.bf16.mxu0 0
    %9373 = vmatpush1.bf16.msra.mxu0 0
    %9374 = vmatprep.subr.bf16.mxu0 0
    %9375 = vmatpush1.bf16.msra.mxu0 0
    %9376 = vmatprep.subr.bf16.mxu0 0
    %9377 = vmatpush1.bf16.msra.mxu0 0
    %9378 = vmatprep.subr.bf16.mxu0 0
    %9379 = vmatpush1.bf16.msra.mxu0 0
    %9380 = vmatprep.subr.bf16.mxu0 0
    %9381 = vmatpush1.bf16.msra.mxu0 0
    %9382 = vmatprep.mubr.bf16.mxu0 0
    %9383 = vmatmul.mubr.bf16.gmra.mrb[0].mxu0 %v9348
    %v9384 = vpop.f32.mrb[0].mxu0
    %v9385 = vadd.f32 0.0, %v9384
    %v9386 = vpop.f32.mrb[0].mxu0
    %v9387 = vpop.f32.mrb[0].mxu0
    %v9388 = vpop.f32.mrb[0].mxu0
    %9389 = vdwg.mxu0
    %v9390 = vpack.c.bf16 %v9385, %v9385
    %v9391 = vld [vmem:[#allocation10] sm:$0xf]
    %v9392 = vld [vmem:[#allocation10 + $0x4] sm:$0xf]
    %v9393 = vld [vmem:[#allocation10 + $0x8] sm:$0xf]
    %v9394 = vld [vmem:[#allocation10 + $0xc] sm:$0xf]
    %v9395 = vld [vmem:[#allocation10 + $0x10] sm:$0xf]
    %v9396 = vld [vmem:[#allocation10 + $0x14] sm:$0xf]
    %v9397 = vld [vmem:[#allocation10 + $0x18] sm:$0xf]
    %v9398 = vld [vmem:[#allocation10 + $0x1c] sm:$0xf]
    %v9399 = vld [vmem:[#allocation10 + $0x20] sm:$0xf]
    %v9400 = vld [vmem:[#allocation10 + $0x24] sm:$0xf]
    %v9401 = vld [vmem:[#allocation10 + $0x28] sm:$0xf]
    %v9402 = vld [vmem:[#allocation10 + $0x2c] sm:$0xf]
    %v9403 = vld [vmem:[#allocation10 + $0x30] sm:$0xf]
    %v9404 = vld [vmem:[#allocation10 + $0x34] sm:$0xf]
    %v9405 = vld [vmem:[#allocation10 + $0x38] sm:$0xf]
    %v9406 = vld [vmem:[#allocation10 + $0x3c] sm:$0xf]
    %v9407 = vld [vmem:[#allocation10 + $0x40] sm:$0xf]
    %v9408 = vld [vmem:[#allocation10 + $0x44] sm:$0xf]
    %v9409 = vld [vmem:[#allocation10 + $0x48] sm:$0xf]
    %v9410 = vld [vmem:[#allocation10 + $0x4c] sm:$0xf]
    %v9411 = vld [vmem:[#allocation10 + $0x50] sm:$0xf]
    %v9412 = vld [vmem:[#allocation10 + $0x54] sm:$0xf]
    %v9413 = vld [vmem:[#allocation10 + $0x58] sm:$0xf]
    %v9414 = vld [vmem:[#allocation10 + $0x5c] sm:$0xf]
    %v9415 = vld [vmem:[#allocation10 + $0x60] sm:$0xf]
    %v9416 = vld [vmem:[#allocation10 + $0x64] sm:$0xf]
    %v9417 = vld [vmem:[#allocation10 + $0x68] sm:$0xf]
    %v9418 = vld [vmem:[#allocation10 + $0x6c] sm:$0xf]
    %v9419 = vld [vmem:[#allocation10 + $0x70] sm:$0xf]
    %v9420 = vld [vmem:[#allocation10 + $0x74] sm:$0xf]
    %v9421 = vld [vmem:[#allocation10 + $0x78] sm:$0xf]
    %v9422 = vld [vmem:[#allocation10 + $0x7c] sm:$0xf]
    %v9455 = vunpack.c.l.b16 %v9391
    %v9456 = vunpack.c.l.b16 %v9392
    %v9457 = vunpack.c.l.b16 %v9393
    %v9458 = vunpack.c.l.b16 %v9394
    %v9459 = vunpack.c.l.b16 %v9395
    %v9460 = vunpack.c.l.b16 %v9396
    %v9461 = vunpack.c.l.b16 %v9397
    %v9462 = vunpack.c.l.b16 %v9398
    %v9463 = vunpack.c.l.b16 %v9399
    %v9464 = vunpack.c.l.b16 %v9400
    %v9465 = vunpack.c.l.b16 %v9401
    %v9466 = vunpack.c.l.b16 %v9402
    %v9467 = vunpack.c.l.b16 %v9403
    %v9468 = vunpack.c.l.b16 %v9404
    %v9469 = vunpack.c.l.b16 %v9405
    %v9470 = vunpack.c.l.b16 %v9406
    %v9471 = vunpack.c.l.b16 %v9407
    %v9472 = vunpack.c.l.b16 %v9408
    %v9473 = vunpack.c.l.b16 %v9409
    %v9474 = vunpack.c.l.b16 %v9410
    %v9475 = vunpack.c.l.b16 %v9411
    %v9476 = vunpack.c.l.b16 %v9412
    %v9477 = vunpack.c.l.b16 %v9413
    %v9478 = vunpack.c.l.b16 %v9414
    %v9479 = vunpack.c.l.b16 %v9415
    %v9480 = vunpack.c.l.b16 %v9416
    %v9481 = vunpack.c.l.b16 %v9417
    %v9482 = vunpack.c.l.b16 %v9418
    %v9483 = vunpack.c.l.b16 %v9419
    %v9484 = vunpack.c.l.b16 %v9420
    %v9485 = vunpack.c.l.b16 %v9421
    %v9486 = vunpack.c.l.b16 %v9422
    %v9487 = vpack.c.b16 %v9456, %v9455
    %v9488 = vpack.c.b16 %v9458, %v9457
    %v9489 = vpack.c.b16 %v9460, %v9459
    %v9490 = vpack.c.b16 %v9462, %v9461
    %v9491 = vpack.c.b16 %v9464, %v9463
    %v9492 = vpack.c.b16 %v9466, %v9465
    %v9493 = vpack.c.b16 %v9468, %v9467
    %v9494 = vpack.c.b16 %v9470, %v9469
    %v9495 = vpack.c.b16 %v9472, %v9471
    %v9496 = vpack.c.b16 %v9474, %v9473
    %v9497 = vpack.c.b16 %v9476, %v9475
    %v9498 = vpack.c.b16 %v9478, %v9477
    %v9499 = vpack.c.b16 %v9480, %v9479
    %v9500 = vpack.c.b16 %v9482, %v9481
    %v9501 = vpack.c.b16 %v9484, %v9483
    %v9502 = vpack.c.b16 %v9486, %v9485
    %9519 = vmatprep.subr.bf16.mxu0 0
    %9520 = vmatpush1.bf16.msra.mxu0 %v9487
    %9521 = vmatprep.subr.bf16.mxu0 0
    %9522 = vmatpush1.bf16.msra.mxu0 %v9488
    %9523 = vmatprep.subr.bf16.mxu0 0
    %9524 = vmatpush1.bf16.msra.mxu0 %v9489
    %9525 = vmatprep.subr.bf16.mxu0 0
    %9526 = vmatpush1.bf16.msra.mxu0 %v9490
    %9527 = vmatprep.subr.bf16.mxu0 0
    %9528 = vmatpush1.bf16.msra.mxu0 %v9491
    %9529 = vmatprep.subr.bf16.mxu0 0
    %9530 = vmatpush1.bf16.msra.mxu0 %v9492
    %9531 = vmatprep.subr.bf16.mxu0 0
    %9532 = vmatpush1.bf16.msra.mxu0 %v9493
    %9533 = vmatprep.subr.bf16.mxu0 0
    %9534 = vmatpush1.bf16.msra.mxu0 %v9494
    %9535 = vmatprep.subr.bf16.mxu0 0
    %9536 = vmatpush1.bf16.msra.mxu0 %v9495
    %9537 = vmatprep.subr.bf16.mxu0 0
    %9538 = vmatpush1.bf16.msra.mxu0 %v9496
    %9539 = vmatprep.subr.bf16.mxu0 0
    %9540 = vmatpush1.bf16.msra.mxu0 %v9497
    %9541 = vmatprep.subr.bf16.mxu0 0
    %9542 = vmatpush1.bf16.msra.mxu0 %v9498
    %9543 = vmatprep.subr.bf16.mxu0 0
    %9544 = vmatpush1.bf16.msra.mxu0 %v9499
    %9545 = vmatprep.subr.bf16.mxu0 0
    %9546 = vmatpush1.bf16.msra.mxu0 %v9500
    %9547 = vmatprep.subr.bf16.mxu0 0
    %9548 = vmatpush1.bf16.msra.mxu0 %v9501
    %9549 = vmatprep.subr.bf16.mxu0 0
    %9550 = vmatpush1.bf16.msra.mxu0 %v9502
    %9551 = vmatprep.mubr.bf16.mxu0 %v9390
    %9552 = vmatmul.mubr.bf16.gmra.mrb[0].mxu0 %v9294
    %v9553 = vpop.f32.mrb[0].mxu0
    %v9554 = vadd.f32 %v2360, %v9553
    %v9555 = vpop.f32.mrb[0].mxu0
    %v9556 = vpop.f32.mrb[0].mxu0
    %v9557 = vpop.f32.mrb[0].mxu0
    %9558 = vdwg.mxu0
    %v9559 = vtanh.pop %v9554
    %v9560 = vpack.c.bf16 %v9559, %v9559
    %v9561 = vld [vmem:[#allocation10 + $0x80] sm:$0xf]
    %v9562 = vld [vmem:[#allocation10 + $0x84] sm:$0xf]
    %v9563 = vld [vmem:[#allocation10 + $0x88] sm:$0xf]
    %v9564 = vld [vmem:[#allocation10 + $0x8c] sm:$0xf]
    %v9565 = vld [vmem:[#allocation10 + $0x90] sm:$0xf]
    %v9566 = vld [vmem:[#allocation10 + $0x94] sm:$0xf]
    %v9567 = vld [vmem:[#allocation10 + $0x98] sm:$0xf]
    %v9568 = vld [vmem:[#allocation10 + $0x9c] sm:$0xf]
    %v9569 = vld [vmem:[#allocation10 + $0xa0] sm:$0xf]
    %v9570 = vld [vmem:[#allocation10 + $0xa4] sm:$0xf]
    %v9571 = vld [vmem:[#allocation10 + $0xa8] sm:$0xf]
    %v9572 = vld [vmem:[#allocation10 + $0xac] sm:$0xf]
    %v9573 = vld [vmem:[#allocation10 + $0xb0] sm:$0xf]
    %v9574 = vld [vmem:[#allocation10 + $0xb4] sm:$0xf]
    %v9575 = vld [vmem:[#allocation10 + $0xb8] sm:$0xf]
    %v9576 = vld [vmem:[#allocation10 + $0xbc] sm:$0xf]
    %v9593 = vunpack.c.l.b16 %v9561
    %v9594 = vunpack.c.l.b16 %v9562
    %v9595 = vunpack.c.l.b16 %v9563
    %v9596 = vunpack.c.l.b16 %v9564
    %v9597 = vunpack.c.l.b16 %v9565
    %v9598 = vunpack.c.l.b16 %v9566
    %v9599 = vunpack.c.l.b16 %v9567
    %v9600 = vunpack.c.l.b16 %v9568
    %v9601 = vunpack.c.l.b16 %v9569
    %v9602 = vunpack.c.l.b16 %v9570
    %v9603 = vunpack.c.l.b16 %v9571
    %v9604 = vunpack.c.l.b16 %v9572
    %v9605 = vunpack.c.l.b16 %v9573
    %v9606 = vunpack.c.l.b16 %v9574
    %v9607 = vunpack.c.l.b16 %v9575
    %v9608 = vunpack.c.l.b16 %v9576
    %v9609 = vpack.c.b16 %v9594, %v9593
    %v9610 = vpack.c.b16 %v9596, %v9595
    %v9611 = vpack.c.b16 %v9598, %v9597
    %v9612 = vpack.c.b16 %v9600, %v9599
    %v9613 = vpack.c.b16 %v9602, %v9601
    %v9614 = vpack.c.b16 %v9604, %v9603
    %v9615 = vpack.c.b16 %v9606, %v9605
    %v9616 = vpack.c.b16 %v9608, %v9607
    %9625 = vmatprep.subr.bf16.mxu0 0
    %9626 = vmatpush1.bf16.msra.mxu0 %v9609
    %9627 = vmatprep.subr.bf16.mxu0 0
    %9628 = vmatpush1.bf16.msra.mxu0 %v9610
    %9629 = vmatprep.subr.bf16.mxu0 0
    %9630 = vmatpush1.bf16.msra.mxu0 %v9611
    %9631 = vmatprep.subr.bf16.mxu0 0
    %9632 = vmatpush1.bf16.msra.mxu0 %v9612
    %9633 = vmatprep.subr.bf16.mxu0 0
    %9634 = vmatpush1.bf16.msra.mxu0 %v9613
    %9635 = vmatprep.subr.bf16.mxu0 0
    %9636 = vmatpush1.bf16.msra.mxu0 %v9614
    %9637 = vmatprep.subr.bf16.mxu0 0
    %9638 = vmatpush1.bf16.msra.mxu0 %v9615
    %9639 = vmatprep.subr.bf16.mxu0 0
    %9640 = vmatpush1.bf16.msra.mxu0 %v9616
    %9641 = vmatprep.subr.bf16.mxu0 0
    %9642 = vmatpush1.bf16.msra.mxu0 0
    %9643 = vmatprep.subr.bf16.mxu0 0
    %9644 = vmatpush1.bf16.msra.mxu0 0
    %9645 = vmatprep.subr.bf16.mxu0 0
    %9646 = vmatpush1.bf16.msra.mxu0 0
    %9647 = vmatprep.subr.bf16.mxu0 0
    %9648 = vmatpush1.bf16.msra.mxu0 0
    %9649 = vmatprep.subr.bf16.mxu0 0
    %9650 = vmatpush1.bf16.msra.mxu0 0
    %9651 = vmatprep.subr.bf16.mxu0 0
    %9652 = vmatpush1.bf16.msra.mxu0 0
    %9653 = vmatprep.subr.bf16.mxu0 0
    %9654 = vmatpush1.bf16.msra.mxu0 0
    %9655 = vmatprep.subr.bf16.mxu0 0
    %9656 = vmatpush1.bf16.msra.mxu0 0
    %9657 = vmatprep.mubr.bf16.mxu0 0
    %9658 = vmatmul.mubr.bf16.gmra.mrb[0].mxu0 %v9560
    %v9659 = vpop.f32.mrb[0].mxu0
    %v9660 = vadd.f32 %v2471, %v9659
    %v9661 = vpop.f32.mrb[0].mxu0
    %v9662 = vpop.f32.mrb[0].mxu0
    %v9663 = vpop.f32.mrb[0].mxu0
    %9664 = vdwg.mxu0
    %v9665 = vsel %vm139, %v9660, -inf
    %9666 = vmax.xlane.f32.xlu0 %v9665
    %v9667 = vpop.xlane.xlu0 %9666
    %v9668 = vsub.f32 %v9660, %v9667
    %v9669 = vmul.f32 %v9668, 1.442695
    %v9670 = vpow.pop %v9669
    %v9671 = vsel %vm139, %v9670, 0.0
    %9672 = vadd.xlane.f32.xlu0 %v9671
    %v9673 = vpop.xlane.xlu0 %9672
    %v9674 = vrcp.pop %v9673
    %v9675 = vmul.f32 1.0, %v9674
    %vm9676 = vcmp.eq.f32.partialorder %v9660, %v9667
    %v9677 = vsel %vm9676, %v98, 128
    %v9678 = vsel %vm139, %v9677, 2147483647
    %v9679 = vand.u32 %v9678, 65535
    %v9680 = vshra.s32 %v9678, 16
    %v9681 = vcvt.s32.f32 %v9679
    %v9682 = vcvt.s32.f32 %v9680
    %9683 = vmin.xlane.f32.xlu0 %v9682
    %v9684 = vpop.xlane.xlu0 %9683
    %vm9685 = vcmp.eq.f32.partialorder %v9682, %v9684
    %v9686 = vsel %vm9685, %v9681, inf
    %9687 = vmin.xlane.f32.xlu0 %v9686
    %v9688 = vpop.xlane.xlu0 %9687
    %v9689 = vcvt.f32.s32 %v9688
    %v9690 = vcvt.f32.s32 %v9684
    %v9691 = vshll.u32 %v9690, 16
    %v9692 = vadd.s32 %v9691, %v9689
    %vm9693 = vcmp.lt.s32.totalorder %v9692, 127
    %v9694 = vsel %vm9693, %v9692, 127
    %vm9695 = vcmp.eq.s32.totalorder %v98, %v9694
    %v9696 = vsel %vm9695, 1, 0
    %v9697 = vcvt.s32.f32 %v9696
    %v9698 = vpack.c.bf16 %v9697, %v9697
    %v9699 = vld [vmem:[#allocation8] sm:$0xff]
    %v9700 = vld [vmem:[#allocation8 + $0x8] sm:$0xf]
    %v9701 = vld [vmem:[#allocation8 + $0xc] sm:$0xff]
    %v9702 = vld [vmem:[#allocation8 + $0x14] sm:$0xf]
    %v9703 = vld [vmem:[#allocation8 + $0x18] sm:$0xff]
    %v9704 = vld [vmem:[#allocation8 + $0x20] sm:$0xf]
    %v9705 = vld [vmem:[#allocation8 + $0x24] sm:$0xff]
    %v9706 = vld [vmem:[#allocation8 + $0x2c] sm:$0xf]
    %v9707 = vld [vmem:[#allocation8 + $0x30] sm:$0xff]
    %v9708 = vld [vmem:[#allocation8 + $0x38] sm:$0xf]
    %v9709 = vld [vmem:[#allocation8 + $0x3c] sm:$0xff]
    %v9710 = vld [vmem:[#allocation8 + $0x44] sm:$0xf]
    %v9711 = vld [vmem:[#allocation8 + $0x48] sm:$0xff]
    %v9712 = vld [vmem:[#allocation8 + $0x50] sm:$0xf]
    %v9713 = vld [vmem:[#allocation8 + $0x54] sm:$0xff]
    %v9714 = vld [vmem:[#allocation8 + $0x5c] sm:$0xf]
    %v9715 = vld [vmem:[#allocation8 + $0x60] sm:$0xff]
    %v9716 = vld [vmem:[#allocation8 + $0x68] sm:$0xf]
    %v9717 = vld [vmem:[#allocation8 + $0x6c] sm:$0xff]
    %v9718 = vld [vmem:[#allocation8 + $0x74] sm:$0xf]
    %v9719 = vld [vmem:[#allocation8 + $0x78] sm:$0xff]
    %v9720 = vld [vmem:[#allocation8 + $0x80] sm:$0xf]
    %v9721 = vld [vmem:[#allocation8 + $0x84] sm:$0xff]
    %v9722 = vld [vmem:[#allocation8 + $0x8c] sm:$0xf]
    %v9723 = vld [vmem:[#allocation8 + $0x90] sm:$0xff]
    %v9724 = vld [vmem:[#allocation8 + $0x98] sm:$0xf]
    %v9725 = vld [vmem:[#allocation8 + $0x9c] sm:$0xff]
    %v9726 = vld [vmem:[#allocation8 + $0xa4] sm:$0xf]
    %v9727 = vld [vmem:[#allocation8 + $0xa8] sm:$0xff]
    %v9728 = vld [vmem:[#allocation8 + $0xb0] sm:$0xf]
    %v9729 = vld [vmem:[#allocation8 + $0xb4] sm:$0xff]
    %v9730 = vld [vmem:[#allocation8 + $0xbc] sm:$0xf]
    %v9763 = vunpack.c.l.b16 %v9699
    %v9764 = vunpack.c.h.b16 %v9699
    %v9765 = vunpack.c.l.b16 %v9700
    %v9766 = vunpack.c.l.b16 %v9701
    %v9767 = vunpack.c.h.b16 %v9701
    %v9768 = vunpack.c.l.b16 %v9702
    %v9769 = vunpack.c.l.b16 %v9703
    %v9770 = vunpack.c.h.b16 %v9703
    %v9771 = vunpack.c.l.b16 %v9704
    %v9772 = vunpack.c.l.b16 %v9705
    %v9773 = vunpack.c.h.b16 %v9705
    %v9774 = vunpack.c.l.b16 %v9706
    %v9775 = vunpack.c.l.b16 %v9707
    %v9776 = vunpack.c.h.b16 %v9707
    %v9777 = vunpack.c.l.b16 %v9708
    %v9778 = vunpack.c.l.b16 %v9709
    %v9779 = vunpack.c.h.b16 %v9709
    %v9780 = vunpack.c.l.b16 %v9710
    %v9781 = vunpack.c.l.b16 %v9711
    %v9782 = vunpack.c.h.b16 %v9711
    %v9783 = vunpack.c.l.b16 %v9712
    %v9784 = vunpack.c.l.b16 %v9713
    %v9785 = vunpack.c.h.b16 %v9713
    %v9786 = vunpack.c.l.b16 %v9714
    %v9787 = vunpack.c.l.b16 %v9715
    %v9788 = vunpack.c.h.b16 %v9715
    %v9789 = vunpack.c.l.b16 %v9716
    %v9790 = vunpack.c.l.b16 %v9717
    %v9791 = vunpack.c.h.b16 %v9717
    %v9792 = vunpack.c.l.b16 %v9718
    %v9793 = vunpack.c.l.b16 %v9719
    %v9794 = vunpack.c.h.b16 %v9719
    %v9795 = vunpack.c.l.b16 %v9720
    %v9796 = vunpack.c.l.b16 %v9721
    %v9797 = vunpack.c.h.b16 %v9721
    %v9798 = vunpack.c.l.b16 %v9722
    %v9799 = vunpack.c.l.b16 %v9723
    %v9800 = vunpack.c.h.b16 %v9723
    %v9801 = vunpack.c.l.b16 %v9724
    %v9802 = vunpack.c.l.b16 %v9725
    %v9803 = vunpack.c.h.b16 %v9725
    %v9804 = vunpack.c.l.b16 %v9726
    %v9805 = vunpack.c.l.b16 %v9727
    %v9806 = vunpack.c.h.b16 %v9727
    %v9807 = vunpack.c.l.b16 %v9728
    %v9808 = vunpack.c.l.b16 %v9729
    %v9809 = vunpack.c.h.b16 %v9729
    %v9810 = vunpack.c.l.b16 %v9730
    %v9811 = vpack.c.b16 %v9766, %v9763
    %v9812 = vpack.c.b16 %v9767, %v9764
    %v9813 = vpack.c.b16 %v9768, %v9765
    %v9814 = vpack.c.b16 %v9772, %v9769
    %v9815 = vpack.c.b16 %v9773, %v9770
    %v9816 = vpack.c.b16 %v9774, %v9771
    %v9817 = vpack.c.b16 %v9778, %v9775
    %v9818 = vpack.c.b16 %v9779, %v9776
    %v9819 = vpack.c.b16 %v9780, %v9777
    %v9820 = vpack.c.b16 %v9784, %v9781
    %v9821 = vpack.c.b16 %v9785, %v9782
    %v9822 = vpack.c.b16 %v9786, %v9783
    %v9823 = vpack.c.b16 %v9790, %v9787
    %v9824 = vpack.c.b16 %v9791, %v9788
    %v9825 = vpack.c.b16 %v9792, %v9789
    %v9826 = vpack.c.b16 %v9796, %v9793
    %v9827 = vpack.c.b16 %v9797, %v9794
    %v9828 = vpack.c.b16 %v9798, %v9795
    %v9829 = vpack.c.b16 %v9802, %v9799
    %v9830 = vpack.c.b16 %v9803, %v9800
    %v9831 = vpack.c.b16 %v9804, %v9801
    %v9832 = vpack.c.b16 %v9808, %v9805
    %v9833 = vpack.c.b16 %v9809, %v9806
    %v9834 = vpack.c.b16 %v9810, %v9807
    %9859 = vmatprep.subr.bf16.mxu0 %v9812
    %9860 = vmatpush1.bf16.msra.mxu0 %v9811
    %9861 = vmatprep.subr.bf16.mxu0 %v9815
    %9862 = vmatpush1.bf16.msra.mxu0 %v9814
    %9863 = vmatprep.subr.bf16.mxu0 %v9818
    %9864 = vmatpush1.bf16.msra.mxu0 %v9817
    %9865 = vmatprep.subr.bf16.mxu0 %v9821
    %9866 = vmatpush1.bf16.msra.mxu0 %v9820
    %9867 = vmatprep.subr.bf16.mxu0 %v9824
    %9868 = vmatpush1.bf16.msra.mxu0 %v9823
    %9869 = vmatprep.subr.bf16.mxu0 %v9827
    %9870 = vmatpush1.bf16.msra.mxu0 %v9826
    %9871 = vmatprep.subr.bf16.mxu0 %v9830
    %9872 = vmatpush1.bf16.msra.mxu0 %v9829
    %9873 = vmatprep.subr.bf16.mxu0 %v9833
    %9874 = vmatpush1.bf16.msra.mxu0 %v9832
    %9875 = vmatprep.subr.bf16.mxu0 0
    %9876 = vmatpush1.bf16.msra.mxu0 0
    %9877 = vmatprep.subr.bf16.mxu0 0
    %9878 = vmatpush1.bf16.msra.mxu0 0
    %9879 = vmatprep.subr.bf16.mxu0 0
    %9880 = vmatpush1.bf16.msra.mxu0 0
    %9881 = vmatprep.subr.bf16.mxu0 0
    %9882 = vmatpush1.bf16.msra.mxu0 0
    %9883 = vmatprep.subr.bf16.mxu0 0
    %9884 = vmatpush1.bf16.msra.mxu0 0
    %9885 = vmatprep.subr.bf16.mxu0 0
    %9886 = vmatpush1.bf16.msra.mxu0 0
    %9887 = vmatprep.subr.bf16.mxu0 0
    %9888 = vmatpush1.bf16.msra.mxu0 0
    %9889 = vmatprep.subr.bf16.mxu0 0
    %9890 = vmatpush1.bf16.msra.mxu0 0
    %9891 = vmatprep.mubr.bf16.mxu0 0
    %9892 = vmatmul.mubr.bf16.gmra.mrb[0].mxu0 %v9698
    %v9893 = vpop.f32.mrb[0].mxu0
    %v9894 = vadd.f32 0.0, %v9893
    %v9895 = vpop.f32.mrb[0].mxu0
    %v9896 = vadd.f32 0.0, %v9895
    %v9897 = vpop.f32.mrb[0].mxu0
    %v9898 = vpop.f32.mrb[0].mxu0
    %9899 = vdwg.mxu0
    %9900 = vmatprep.subr.bf16.mxu0 0
    %9901 = vmatpush1.bf16.msra.mxu0 %v9813
    %9902 = vmatprep.subr.bf16.mxu0 0
    %9903 = vmatpush1.bf16.msra.mxu0 %v9816
    %9904 = vmatprep.subr.bf16.mxu0 0
    %9905 = vmatpush1.bf16.msra.mxu0 %v9819
    %9906 = vmatprep.subr.bf16.mxu0 0
    %9907 = vmatpush1.bf16.msra.mxu0 %v9822
    %9908 = vmatprep.subr.bf16.mxu0 0
    %9909 = vmatpush1.bf16.msra.mxu0 %v9825
    %9910 = vmatprep.subr.bf16.mxu0 0
    %9911 = vmatpush1.bf16.msra.mxu0 %v9828
    %9912 = vmatprep.subr.bf16.mxu0 0
    %9913 = vmatpush1.bf16.msra.mxu0 %v9831
    %9914 = vmatprep.subr.bf16.mxu0 0
    %9915 = vmatpush1.bf16.msra.mxu0 %v9834
    %9916 = vmatprep.subr.bf16.mxu0 0
    %9917 = vmatpush1.bf16.msra.mxu0 0
    %9918 = vmatprep.subr.bf16.mxu0 0
    %9919 = vmatpush1.bf16.msra.mxu0 0
    %9920 = vmatprep.subr.bf16.mxu0 0
    %9921 = vmatpush1.bf16.msra.mxu0 0
    %9922 = vmatprep.subr.bf16.mxu0 0
    %9923 = vmatpush1.bf16.msra.mxu0 0
    %9924 = vmatprep.subr.bf16.mxu0 0
    %9925 = vmatpush1.bf16.msra.mxu0 0
    %9926 = vmatprep.subr.bf16.mxu0 0
    %9927 = vmatpush1.bf16.msra.mxu0 0
    %9928 = vmatprep.subr.bf16.mxu0 0
    %9929 = vmatpush1.bf16.msra.mxu0 0
    %9930 = vmatprep.subr.bf16.mxu0 0
    %9931 = vmatpush1.bf16.msra.mxu0 0
    %9932 = vmatprep.mubr.bf16.mxu0 0
    %9933 = vmatmul.mubr.bf16.gmra.mrb[0].mxu0 %v9698
    %v9934 = vpop.f32.mrb[0].mxu0
    %v9935 = vadd.f32 0.0, %v9934
    %v9936 = vpop.f32.mrb[0].mxu0
    %v9937 = vpop.f32.mrb[0].mxu0
    %v9938 = vpop.f32.mrb[0].mxu0
    %9939 = vdwg.mxu0
    %s9940 = vtos %v9694
    %s9941 = scalar_lea.smem [#allocation13], 8
    %9942 = sst [smem:[%s9941]] %s9940
    %s9943 = vtos %v9675
    %s9944 = scalar_lea.smem [#allocation14], 8
    %9945 = sst [smem:[%s9944]] %s9943
    %v9946 = vld [vmem:[#allocation8 + $0xc0] sm:$0xff]
    %v9947 = vld [vmem:[#allocation8 + $0xc8] sm:$0xf]
    %v9948 = vld [vmem:[#allocation8 + $0xcc] sm:$0xff]
    %v9949 = vld [vmem:[#allocation8 + $0xd4] sm:$0xf]
    %v9950 = vld [vmem:[#allocation8 + $0xd8] sm:$0xff]
    %v9951 = vld [vmem:[#allocation8 + $0xe0] sm:$0xf]
    %v9952 = vld [vmem:[#allocation8 + $0xe4] sm:$0xff]
    %v9953 = vld [vmem:[#allocation8 + $0xec] sm:$0xf]
    %v9954 = vld [vmem:[#allocation8 + $0xf0] sm:$0xff]
    %v9955 = vld [vmem:[#allocation8 + $0xf8] sm:$0xf]
    %v9956 = vld [vmem:[#allocation8 + $0xfc] sm:$0xff]
    %v9957 = vld [vmem:[#allocation8 + $0x104] sm:$0xf]
    %v9958 = vld [vmem:[#allocation8 + $0x108] sm:$0xff]
    %v9959 = vld [vmem:[#allocation8 + $0x110] sm:$0xf]
    %v9960 = vld [vmem:[#allocation8 + $0x114] sm:$0xff]
    %v9961 = vld [vmem:[#allocation8 + $0x11c] sm:$0xf]
    %v9962 = vld [vmem:[#allocation8 + $0x120] sm:$0xff]
    %v9963 = vld [vmem:[#allocation8 + $0x128] sm:$0xf]
    %v9964 = vld [vmem:[#allocation8 + $0x12c] sm:$0xff]
    %v9965 = vld [vmem:[#allocation8 + $0x134] sm:$0xf]
    %v9966 = vld [vmem:[#allocation8 + $0x138] sm:$0xff]
    %v9967 = vld [vmem:[#allocation8 + $0x140] sm:$0xf]
    %v9968 = vld [vmem:[#allocation8 + $0x144] sm:$0xff]
    %v9969 = vld [vmem:[#allocation8 + $0x14c] sm:$0xf]
    %v9970 = vld [vmem:[#allocation8 + $0x150] sm:$0xff]
    %v9971 = vld [vmem:[#allocation8 + $0x158] sm:$0xf]
    %v9972 = vld [vmem:[#allocation8 + $0x15c] sm:$0xff]
    %v9973 = vld [vmem:[#allocation8 + $0x164] sm:$0xf]
    %v9974 = vld [vmem:[#allocation8 + $0x168] sm:$0xff]
    %v9975 = vld [vmem:[#allocation8 + $0x170] sm:$0xf]
    %v9976 = vld [vmem:[#allocation8 + $0x174] sm:$0xff]
    %v9977 = vld [vmem:[#allocation8 + $0x17c] sm:$0xf]
    %v10010 = vunpack.c.l.b16 %v9946
    %v10011 = vunpack.c.h.b16 %v9946
    %v10012 = vunpack.c.l.b16 %v9947
    %v10013 = vunpack.c.l.b16 %v9948
    %v10014 = vunpack.c.h.b16 %v9948
    %v10015 = vunpack.c.l.b16 %v9949
    %v10016 = vunpack.c.l.b16 %v9950
    %v10017 = vunpack.c.h.b16 %v9950
    %v10018 = vunpack.c.l.b16 %v9951
    %v10019 = vunpack.c.l.b16 %v9952
    %v10020 = vunpack.c.h.b16 %v9952
    %v10021 = vunpack.c.l.b16 %v9953
    %v10022 = vunpack.c.l.b16 %v9954
    %v10023 = vunpack.c.h.b16 %v9954
    %v10024 = vunpack.c.l.b16 %v9955
    %v10025 = vunpack.c.l.b16 %v9956
    %v10026 = vunpack.c.h.b16 %v9956
    %v10027 = vunpack.c.l.b16 %v9957
    %v10028 = vunpack.c.l.b16 %v9958
    %v10029 = vunpack.c.h.b16 %v9958
    %v10030 = vunpack.c.l.b16 %v9959
    %v10031 = vunpack.c.l.b16 %v9960
    %v10032 = vunpack.c.h.b16 %v9960
    %v10033 = vunpack.c.l.b16 %v9961
    %v10034 = vunpack.c.l.b16 %v9962
    %v10035 = vunpack.c.h.b16 %v9962
    %v10036 = vunpack.c.l.b16 %v9963
    %v10037 = vunpack.c.l.b16 %v9964
    %v10038 = vunpack.c.h.b16 %v9964
    %v10039 = vunpack.c.l.b16 %v9965
    %v10040 = vunpack.c.l.b16 %v9966
    %v10041 = vunpack.c.h.b16 %v9966
    %v10042 = vunpack.c.l.b16 %v9967
    %v10043 = vunpack.c.l.b16 %v9968
    %v10044 = vunpack.c.h.b16 %v9968
    %v10045 = vunpack.c.l.b16 %v9969
    %v10046 = vunpack.c.l.b16 %v9970
    %v10047 = vunpack.c.h.b16 %v9970
    %v10048 = vunpack.c.l.b16 %v9971
    %v10049 = vunpack.c.l.b16 %v9972
    %v10050 = vunpack.c.h.b16 %v9972
    %v10051 = vunpack.c.l.b16 %v9973
    %v10052 = vunpack.c.l.b16 %v9974
    %v10053 = vunpack.c.h.b16 %v9974
    %v10054 = vunpack.c.l.b16 %v9975
    %v10055 = vunpack.c.l.b16 %v9976
    %v10056 = vunpack.c.h.b16 %v9976
    %v10057 = vunpack.c.l.b16 %v9977
    %v10058 = vpack.c.b16 %v10013, %v10010
    %v10059 = vpack.c.b16 %v10014, %v10011
    %v10060 = vpack.c.b16 %v10015, %v10012
    %v10061 = vpack.c.b16 %v10019, %v10016
    %v10062 = vpack.c.b16 %v10020, %v10017
    %v10063 = vpack.c.b16 %v10021, %v10018
    %v10064 = vpack.c.b16 %v10025, %v10022
    %v10065 = vpack.c.b16 %v10026, %v10023
    %v10066 = vpack.c.b16 %v10027, %v10024
    %v10067 = vpack.c.b16 %v10031, %v10028
    %v10068 = vpack.c.b16 %v10032, %v10029
    %v10069 = vpack.c.b16 %v10033, %v10030
    %v10070 = vpack.c.b16 %v10037, %v10034
    %v10071 = vpack.c.b16 %v10038, %v10035
    %v10072 = vpack.c.b16 %v10039, %v10036
    %v10073 = vpack.c.b16 %v10043, %v10040
    %v10074 = vpack.c.b16 %v10044, %v10041
    %v10075 = vpack.c.b16 %v10045, %v10042
    %v10076 = vpack.c.b16 %v10049, %v10046
    %v10077 = vpack.c.b16 %v10050, %v10047
    %v10078 = vpack.c.b16 %v10051, %v10048
    %v10079 = vpack.c.b16 %v10055, %v10052
    %v10080 = vpack.c.b16 %v10056, %v10053
    %v10081 = vpack.c.b16 %v10057, %v10054
    %10106 = vmatprep.subr.bf16.mxu0 %v10059
    %10107 = vmatpush1.bf16.msra.mxu0 %v10058
    %10108 = vmatprep.subr.bf16.mxu0 %v10062
    %10109 = vmatpush1.bf16.msra.mxu0 %v10061
    %10110 = vmatprep.subr.bf16.mxu0 %v10065
    %10111 = vmatpush1.bf16.msra.mxu0 %v10064
    %10112 = vmatprep.subr.bf16.mxu0 %v10068
    %10113 = vmatpush1.bf16.msra.mxu0 %v10067
    %10114 = vmatprep.subr.bf16.mxu0 %v10071
    %10115 = vmatpush1.bf16.msra.mxu0 %v10070
    %10116 = vmatprep.subr.bf16.mxu0 %v10074
    %10117 = vmatpush1.bf16.msra.mxu0 %v10073
    %10118 = vmatprep.subr.bf16.mxu0 %v10077
    %10119 = vmatpush1.bf16.msra.mxu0 %v10076
    %10120 = vmatprep.subr.bf16.mxu0 %v10080
    %10121 = vmatpush1.bf16.msra.mxu0 %v10079
    %10122 = vmatprep.subr.bf16.mxu0 0
    %10123 = vmatpush1.bf16.msra.mxu0 0
    %10124 = vmatprep.subr.bf16.mxu0 0
    %10125 = vmatpush1.bf16.msra.mxu0 0
    %10126 = vmatprep.subr.bf16.mxu0 0
    %10127 = vmatpush1.bf16.msra.mxu0 0
    %10128 = vmatprep.subr.bf16.mxu0 0
    %10129 = vmatpush1.bf16.msra.mxu0 0
    %10130 = vmatprep.subr.bf16.mxu0 0
    %10131 = vmatpush1.bf16.msra.mxu0 0
    %10132 = vmatprep.subr.bf16.mxu0 0
    %10133 = vmatpush1.bf16.msra.mxu0 0
    %10134 = vmatprep.subr.bf16.mxu0 0
    %10135 = vmatpush1.bf16.msra.mxu0 0
    %10136 = vmatprep.subr.bf16.mxu0 0
    %10137 = vmatpush1.bf16.msra.mxu0 0
    %10138 = vmatprep.mubr.bf16.mxu0 0
    %10139 = vmatmul.mubr.bf16.gmra.mrb[0].mxu0 %v9294
    %v10140 = vpop.f32.mrb[0].mxu0
    %v10141 = vadd.f32 %v2010, %v10140
    %v10142 = vpop.f32.mrb[0].mxu0
    %v10143 = vadd.f32 %v2014, %v10142
    %v10144 = vpop.f32.mrb[0].mxu0
    %v10145 = vpop.f32.mrb[0].mxu0
    %10146 = vdwg.mxu0
    %10147 = vmatprep.subr.bf16.mxu0 0
    %10148 = vmatpush1.bf16.msra.mxu0 %v10060
    %10149 = vmatprep.subr.bf16.mxu0 0
    %10150 = vmatpush1.bf16.msra.mxu0 %v10063
    %10151 = vmatprep.subr.bf16.mxu0 0
    %10152 = vmatpush1.bf16.msra.mxu0 %v10066
    %10153 = vmatprep.subr.bf16.mxu0 0
    %10154 = vmatpush1.bf16.msra.mxu0 %v10069
    %10155 = vmatprep.subr.bf16.mxu0 0
    %10156 = vmatpush1.bf16.msra.mxu0 %v10072
    %10157 = vmatprep.subr.bf16.mxu0 0
    %10158 = vmatpush1.bf16.msra.mxu0 %v10075
    %10159 = vmatprep.subr.bf16.mxu0 0
    %10160 = vmatpush1.bf16.msra.mxu0 %v10078
    %10161 = vmatprep.subr.bf16.mxu0 0
    %10162 = vmatpush1.bf16.msra.mxu0 %v10081
    %10163 = vmatprep.subr.bf16.mxu0 0
    %10164 = vmatpush1.bf16.msra.mxu0 0
    %10165 = vmatprep.subr.bf16.mxu0 0
    %10166 = vmatpush1.bf16.msra.mxu0 0
    %10167 = vmatprep.subr.bf16.mxu0 0
    %10168 = vmatpush1.bf16.msra.mxu0 0
    %10169 = vmatprep.subr.bf16.mxu0 0
    %10170 = vmatpush1.bf16.msra.mxu0 0
    %10171 = vmatprep.subr.bf16.mxu0 0
    %10172 = vmatpush1.bf16.msra.mxu0 0
    %10173 = vmatprep.subr.bf16.mxu0 0
    %10174 = vmatpush1.bf16.msra.mxu0 0
    %10175 = vmatprep.subr.bf16.mxu0 0
    %10176 = vmatpush1.bf16.msra.mxu0 0
    %10177 = vmatprep.subr.bf16.mxu0 0
    %10178 = vmatpush1.bf16.msra.mxu0 0
    %10179 = vmatprep.mubr.bf16.mxu0 0
    %10180 = vmatmul.mubr.bf16.gmra.mrb[0].mxu0 %v9294
    %v10181 = vpop.f32.mrb[0].mxu0
    %v10182 = vadd.f32 %v2018, %v10181
    %v10183 = vpop.f32.mrb[0].mxu0
    %v10184 = vpop.f32.mrb[0].mxu0
    %v10185 = vpop.f32.mrb[0].mxu0
    %10186 = vdwg.mxu0
    %v10187 = vadd.f32 %v9894, %v10141
    %v10188 = vxor.u32 %v10187, 2147483648
    %v10189 = vmul.f32 %v10188, 1.442695
    %v10190 = vpow.pop %v10189
    %v10191 = vadd.f32 %v10190, 1.0
    %v10192 = vrcp.pop %v10191
    %v10193 = vmul.f32 1.0, %v10192
    %v10194 = vadd.f32 %v9896, %v10143
    %v10195 = vxor.u32 %v10194, 2147483648
    %v10196 = vmul.f32 %v10195, 1.442695
    %v10197 = vpow.pop %v10196
    %v10198 = vadd.f32 %v10197, 1.0
    %v10199 = vrcp.pop %v10198
    %v10200 = vmul.f32 1.0, %v10199
    %v10201 = vmul.f32 %v10193, %v10182
    %v10202 = vadd.f32 %v9935, %v10201
    %v10203 = vtanh.pop %v10202
    %v10204 = vsub.f32 1.0, %v10200
    %v10205 = vmul.f32 %v10204, %v10203
    %v10206 = vmul.f32 %v10200, %v9293
    %v10207 = vadd.f32 %v10205, %v10206
    %v10208 = vpack.c.bf16 %v10207, %v10207
    %10209 = vmatprep.subr.bf16.mxu0 0
    %10210 = vmatpush1.bf16.msra.mxu0 %v1588
    %10211 = vmatprep.subr.bf16.mxu0 0
    %10212 = vmatpush1.bf16.msra.mxu0 %v1589
    %10213 = vmatprep.subr.bf16.mxu0 0
    %10214 = vmatpush1.bf16.msra.mxu0 %v1590
    %10215 = vmatprep.subr.bf16.mxu0 0
    %10216 = vmatpush1.bf16.msra.mxu0 %v1591
    %10217 = vmatprep.subr.bf16.mxu0 0
    %10218 = vmatpush1.bf16.msra.mxu0 %v1592
    %10219 = vmatprep.subr.bf16.mxu0 0
    %10220 = vmatpush1.bf16.msra.mxu0 %v1593
    %10221 = vmatprep.subr.bf16.mxu0 0
    %10222 = vmatpush1.bf16.msra.mxu0 %v1594
    %10223 = vmatprep.subr.bf16.mxu0 0
    %10224 = vmatpush1.bf16.msra.mxu0 %v1595
    %10225 = vmatprep.subr.bf16.mxu0 0
    %10226 = vmatpush1.bf16.msra.mxu0 0
    %10227 = vmatprep.subr.bf16.mxu0 0
    %10228 = vmatpush1.bf16.msra.mxu0 0
    %10229 = vmatprep.subr.bf16.mxu0 0
    %10230 = vmatpush1.bf16.msra.mxu0 0
    %10231 = vmatprep.subr.bf16.mxu0 0
    %10232 = vmatpush1.bf16.msra.mxu0 0
    %10233 = vmatprep.subr.bf16.mxu0 0
    %10234 = vmatpush1.bf16.msra.mxu0 0
    %10235 = vmatprep.subr.bf16.mxu0 0
    %10236 = vmatpush1.bf16.msra.mxu0 0
    %10237 = vmatprep.subr.bf16.mxu0 0
    %10238 = vmatpush1.bf16.msra.mxu0 0
    %10239 = vmatprep.subr.bf16.mxu0 0
    %10240 = vmatpush1.bf16.msra.mxu0 0
    %10241 = vmatprep.mubr.bf16.mxu0 0
    %10242 = vmatmul.mubr.bf16.gmra.mrb[0].mxu0 %v10208
    %v10243 = vpop.f32.mrb[0].mxu0
    %v10244 = vadd.f32 0.0, %v10243
    %v10245 = vpop.f32.mrb[0].mxu0
    %v10246 = vpop.f32.mrb[0].mxu0
    %v10247 = vpop.f32.mrb[0].mxu0
    %10248 = vdwg.mxu0
    %v10249 = vsel %vm2168, %v10244, -inf
    %10250 = vmax.xlane.f32.xlu0 %v10249
    %v10251 = vpop.xlane.xlu0 %10250
    %v10252 = vsub.f32 %v10244, %v10251
    %v10253 = vmul.f32 %v10252, 1.442695
    %v10254 = vpow.pop %v10253
    %v10255 = vsel %vm2168, %v10254, 0.0
    %10256 = vadd.xlane.f32.xlu0 %v10255
    %v10257 = vpop.xlane.xlu0 %10256
    %v10258 = vrcp.pop %v10257
    %v10259 = vmul.f32 %v10254, %v10258
    %v10260 = vpack.c.bf16 %v10259, %v10259
    %v10262 = vsel %vm2181, %v10260, 0
    %10264 = vmatprep.subr.bf16.mxu0 0
    %10265 = vmatpush1.bf16.msra.mxu0 %v2186
    %10266 = vmatprep.subr.bf16.mxu0 0
    %10267 = vmatpush1.bf16.msra.mxu0 0
    %10268 = vmatprep.subr.bf16.mxu0 0
    %10269 = vmatpush1.bf16.msra.mxu0 0
    %10270 = vmatprep.subr.bf16.mxu0 0
    %10271 = vmatpush1.bf16.msra.mxu0 0
    %10272 = vmatprep.subr.bf16.mxu0 0
    %10273 = vmatpush1.bf16.msra.mxu0 0
    %10274 = vmatprep.subr.bf16.mxu0 0
    %10275 = vmatpush1.bf16.msra.mxu0 0
    %10276 = vmatprep.subr.bf16.mxu0 0
    %10277 = vmatpush1.bf16.msra.mxu0 0
    %10278 = vmatprep.subr.bf16.mxu0 0
    %10279 = vmatpush1.bf16.msra.mxu0 0
    %10280 = vmatprep.subr.bf16.mxu0 0
    %10281 = vmatpush1.bf16.msra.mxu0 0
    %10282 = vmatprep.subr.bf16.mxu0 0
    %10283 = vmatpush1.bf16.msra.mxu0 0
    %10284 = vmatprep.subr.bf16.mxu0 0
    %10285 = vmatpush1.bf16.msra.mxu0 0
    %10286 = vmatprep.subr.bf16.mxu0 0
    %10287 = vmatpush1.bf16.msra.mxu0 0
    %10288 = vmatprep.subr.bf16.mxu0 0
    %10289 = vmatpush1.bf16.msra.mxu0 0
    %10290 = vmatprep.subr.bf16.mxu0 0
    %10291 = vmatpush1.bf16.msra.mxu0 0
    %10292 = vmatprep.subr.bf16.mxu0 0
    %10293 = vmatpush1.bf16.msra.mxu0 0
    %10294 = vmatprep.subr.bf16.mxu0 0
    %10295 = vmatpush1.bf16.msra.mxu0 0
    %10296 = vmatprep.mubr.bf16.mxu0 0
    %10297 = vmatmul.mubr.bf16.gmra.mrb[0].mxu0 %v10262
    %v10298 = vpop.f32.mrb[0].mxu0
    %v10299 = vadd.f32 0.0, %v10298
    %v10300 = vpop.f32.mrb[0].mxu0
    %v10301 = vpop.f32.mrb[0].mxu0
    %v10302 = vpop.f32.mrb[0].mxu0
    %10303 = vdwg.mxu0
    %v10304 = vpack.c.bf16 %v10299, %v10299
    %v10305 = vld [vmem:[#allocation10] sm:$0xf]
    %v10306 = vld [vmem:[#allocation10 + $0x4] sm:$0xf]
    %v10307 = vld [vmem:[#allocation10 + $0x8] sm:$0xf]
    %v10308 = vld [vmem:[#allocation10 + $0xc] sm:$0xf]
    %v10309 = vld [vmem:[#allocation10 + $0x10] sm:$0xf]
    %v10310 = vld [vmem:[#allocation10 + $0x14] sm:$0xf]
    %v10311 = vld [vmem:[#allocation10 + $0x18] sm:$0xf]
    %v10312 = vld [vmem:[#allocation10 + $0x1c] sm:$0xf]
    %v10313 = vld [vmem:[#allocation10 + $0x20] sm:$0xf]
    %v10314 = vld [vmem:[#allocation10 + $0x24] sm:$0xf]
    %v10315 = vld [vmem:[#allocation10 + $0x28] sm:$0xf]
    %v10316 = vld [vmem:[#allocation10 + $0x2c] sm:$0xf]
    %v10317 = vld [vmem:[#allocation10 + $0x30] sm:$0xf]
    %v10318 = vld [vmem:[#allocation10 + $0x34] sm:$0xf]
    %v10319 = vld [vmem:[#allocation10 + $0x38] sm:$0xf]
    %v10320 = vld [vmem:[#allocation10 + $0x3c] sm:$0xf]
    %v10321 = vld [vmem:[#allocation10 + $0x40] sm:$0xf]
    %v10322 = vld [vmem:[#allocation10 + $0x44] sm:$0xf]
    %v10323 = vld [vmem:[#allocation10 + $0x48] sm:$0xf]
    %v10324 = vld [vmem:[#allocation10 + $0x4c] sm:$0xf]
    %v10325 = vld [vmem:[#allocation10 + $0x50] sm:$0xf]
    %v10326 = vld [vmem:[#allocation10 + $0x54] sm:$0xf]
    %v10327 = vld [vmem:[#allocation10 + $0x58] sm:$0xf]
    %v10328 = vld [vmem:[#allocation10 + $0x5c] sm:$0xf]
    %v10329 = vld [vmem:[#allocation10 + $0x60] sm:$0xf]
    %v10330 = vld [vmem:[#allocation10 + $0x64] sm:$0xf]
    %v10331 = vld [vmem:[#allocation10 + $0x68] sm:$0xf]
    %v10332 = vld [vmem:[#allocation10 + $0x6c] sm:$0xf]
    %v10333 = vld [vmem:[#allocation10 + $0x70] sm:$0xf]
    %v10334 = vld [vmem:[#allocation10 + $0x74] sm:$0xf]
    %v10335 = vld [vmem:[#allocation10 + $0x78] sm:$0xf]
    %v10336 = vld [vmem:[#allocation10 + $0x7c] sm:$0xf]
    %v10369 = vunpack.c.l.b16 %v10305
    %v10370 = vunpack.c.l.b16 %v10306
    %v10371 = vunpack.c.l.b16 %v10307
    %v10372 = vunpack.c.l.b16 %v10308
    %v10373 = vunpack.c.l.b16 %v10309
    %v10374 = vunpack.c.l.b16 %v10310
    %v10375 = vunpack.c.l.b16 %v10311
    %v10376 = vunpack.c.l.b16 %v10312
    %v10377 = vunpack.c.l.b16 %v10313
    %v10378 = vunpack.c.l.b16 %v10314
    %v10379 = vunpack.c.l.b16 %v10315
    %v10380 = vunpack.c.l.b16 %v10316
    %v10381 = vunpack.c.l.b16 %v10317
    %v10382 = vunpack.c.l.b16 %v10318
    %v10383 = vunpack.c.l.b16 %v10319
    %v10384 = vunpack.c.l.b16 %v10320
    %v10385 = vunpack.c.l.b16 %v10321
    %v10386 = vunpack.c.l.b16 %v10322
    %v10387 = vunpack.c.l.b16 %v10323
    %v10388 = vunpack.c.l.b16 %v10324
    %v10389 = vunpack.c.l.b16 %v10325
    %v10390 = vunpack.c.l.b16 %v10326
    %v10391 = vunpack.c.l.b16 %v10327
    %v10392 = vunpack.c.l.b16 %v10328
    %v10393 = vunpack.c.l.b16 %v10329
    %v10394 = vunpack.c.l.b16 %v10330
    %v10395 = vunpack.c.l.b16 %v10331
    %v10396 = vunpack.c.l.b16 %v10332
    %v10397 = vunpack.c.l.b16 %v10333
    %v10398 = vunpack.c.l.b16 %v10334
    %v10399 = vunpack.c.l.b16 %v10335
    %v10400 = vunpack.c.l.b16 %v10336
    %v10401 = vpack.c.b16 %v10370, %v10369
    %v10402 = vpack.c.b16 %v10372, %v10371
    %v10403 = vpack.c.b16 %v10374, %v10373
    %v10404 = vpack.c.b16 %v10376, %v10375
    %v10405 = vpack.c.b16 %v10378, %v10377
    %v10406 = vpack.c.b16 %v10380, %v10379
    %v10407 = vpack.c.b16 %v10382, %v10381
    %v10408 = vpack.c.b16 %v10384, %v10383
    %v10409 = vpack.c.b16 %v10386, %v10385
    %v10410 = vpack.c.b16 %v10388, %v10387
    %v10411 = vpack.c.b16 %v10390, %v10389
    %v10412 = vpack.c.b16 %v10392, %v10391
    %v10413 = vpack.c.b16 %v10394, %v10393
    %v10414 = vpack.c.b16 %v10396, %v10395
    %v10415 = vpack.c.b16 %v10398, %v10397
    %v10416 = vpack.c.b16 %v10400, %v10399
    %10433 = vmatprep.subr.bf16.mxu0 0
    %10434 = vmatpush1.bf16.msra.mxu0 %v10401
    %10435 = vmatprep.subr.bf16.mxu0 0
    %10436 = vmatpush1.bf16.msra.mxu0 %v10402
    %10437 = vmatprep.subr.bf16.mxu0 0
    %10438 = vmatpush1.bf16.msra.mxu0 %v10403
    %10439 = vmatprep.subr.bf16.mxu0 0
    %10440 = vmatpush1.bf16.msra.mxu0 %v10404
    %10441 = vmatprep.subr.bf16.mxu0 0
    %10442 = vmatpush1.bf16.msra.mxu0 %v10405
    %10443 = vmatprep.subr.bf16.mxu0 0
    %10444 = vmatpush1.bf16.msra.mxu0 %v10406
    %10445 = vmatprep.subr.bf16.mxu0 0
    %10446 = vmatpush1.bf16.msra.mxu0 %v10407
    %10447 = vmatprep.subr.bf16.mxu0 0
    %10448 = vmatpush1.bf16.msra.mxu0 %v10408
    %10449 = vmatprep.subr.bf16.mxu0 0
    %10450 = vmatpush1.bf16.msra.mxu0 %v10409
    %10451 = vmatprep.subr.bf16.mxu0 0
    %10452 = vmatpush1.bf16.msra.mxu0 %v10410
    %10453 = vmatprep.subr.bf16.mxu0 0
    %10454 = vmatpush1.bf16.msra.mxu0 %v10411
    %10455 = vmatprep.subr.bf16.mxu0 0
    %10456 = vmatpush1.bf16.msra.mxu0 %v10412
    %10457 = vmatprep.subr.bf16.mxu0 0
    %10458 = vmatpush1.bf16.msra.mxu0 %v10413
    %10459 = vmatprep.subr.bf16.mxu0 0
    %10460 = vmatpush1.bf16.msra.mxu0 %v10414
    %10461 = vmatprep.subr.bf16.mxu0 0
    %10462 = vmatpush1.bf16.msra.mxu0 %v10415
    %10463 = vmatprep.subr.bf16.mxu0 0
    %10464 = vmatpush1.bf16.msra.mxu0 %v10416
    %10465 = vmatprep.mubr.bf16.mxu0 %v10304
    %10466 = vmatmul.mubr.bf16.gmra.mrb[0].mxu0 %v10208
    %v10467 = vpop.f32.mrb[0].mxu0
    %v10468 = vadd.f32 %v2360, %v10467
    %v10469 = vpop.f32.mrb[0].mxu0
    %v10470 = vpop.f32.mrb[0].mxu0
    %v10471 = vpop.f32.mrb[0].mxu0
    %10472 = vdwg.mxu0
    %v10473 = vtanh.pop %v10468
    %v10474 = vpack.c.bf16 %v10473, %v10473
    %v10475 = vld [vmem:[#allocation10 + $0x80] sm:$0xf]
    %v10476 = vld [vmem:[#allocation10 + $0x84] sm:$0xf]
    %v10477 = vld [vmem:[#allocation10 + $0x88] sm:$0xf]
    %v10478 = vld [vmem:[#allocation10 + $0x8c] sm:$0xf]
    %v10479 = vld [vmem:[#allocation10 + $0x90] sm:$0xf]
    %v10480 = vld [vmem:[#allocation10 + $0x94] sm:$0xf]
    %v10481 = vld [vmem:[#allocation10 + $0x98] sm:$0xf]
    %v10482 = vld [vmem:[#allocation10 + $0x9c] sm:$0xf]
    %v10483 = vld [vmem:[#allocation10 + $0xa0] sm:$0xf]
    %v10484 = vld [vmem:[#allocation10 + $0xa4] sm:$0xf]
    %v10485 = vld [vmem:[#allocation10 + $0xa8] sm:$0xf]
    %v10486 = vld [vmem:[#allocation10 + $0xac] sm:$0xf]
    %v10487 = vld [vmem:[#allocation10 + $0xb0] sm:$0xf]
    %v10488 = vld [vmem:[#allocation10 + $0xb4] sm:$0xf]
    %v10489 = vld [vmem:[#allocation10 + $0xb8] sm:$0xf]
    %v10490 = vld [vmem:[#allocation10 + $0xbc] sm:$0xf]
    %v10507 = vunpack.c.l.b16 %v10475
    %v10508 = vunpack.c.l.b16 %v10476
    %v10509 = vunpack.c.l.b16 %v10477
    %v10510 = vunpack.c.l.b16 %v10478
    %v10511 = vunpack.c.l.b16 %v10479
    %v10512 = vunpack.c.l.b16 %v10480
    %v10513 = vunpack.c.l.b16 %v10481
    %v10514 = vunpack.c.l.b16 %v10482
    %v10515 = vunpack.c.l.b16 %v10483
    %v10516 = vunpack.c.l.b16 %v10484
    %v10517 = vunpack.c.l.b16 %v10485
    %v10518 = vunpack.c.l.b16 %v10486
    %v10519 = vunpack.c.l.b16 %v10487
    %v10520 = vunpack.c.l.b16 %v10488
    %v10521 = vunpack.c.l.b16 %v10489
    %v10522 = vunpack.c.l.b16 %v10490
    %v10523 = vpack.c.b16 %v10508, %v10507
    %v10524 = vpack.c.b16 %v10510, %v10509
    %v10525 = vpack.c.b16 %v10512, %v10511
    %v10526 = vpack.c.b16 %v10514, %v10513
    %v10527 = vpack.c.b16 %v10516, %v10515
    %v10528 = vpack.c.b16 %v10518, %v10517
    %v10529 = vpack.c.b16 %v10520, %v10519
    %v10530 = vpack.c.b16 %v10522, %v10521
    %10539 = vmatprep.subr.bf16.mxu0 0
    %10540 = vmatpush1.bf16.msra.mxu0 %v10523
    %10541 = vmatprep.subr.bf16.mxu0 0
    %10542 = vmatpush1.bf16.msra.mxu0 %v10524
    %10543 = vmatprep.subr.bf16.mxu0 0
    %10544 = vmatpush1.bf16.msra.mxu0 %v10525
    %10545 = vmatprep.subr.bf16.mxu0 0
    %10546 = vmatpush1.bf16.msra.mxu0 %v10526
    %10547 = vmatprep.subr.bf16.mxu0 0
    %10548 = vmatpush1.bf16.msra.mxu0 %v10527
    %10549 = vmatprep.subr.bf16.mxu0 0
    %10550 = vmatpush1.bf16.msra.mxu0 %v10528
    %10551 = vmatprep.subr.bf16.mxu0 0
    %10552 = vmatpush1.bf16.msra.mxu0 %v10529
    %10553 = vmatprep.subr.bf16.mxu0 0
    %10554 = vmatpush1.bf16.msra.mxu0 %v10530
    %10555 = vmatprep.subr.bf16.mxu0 0
    %10556 = vmatpush1.bf16.msra.mxu0 0
    %10557 = vmatprep.subr.bf16.mxu0 0
    %10558 = vmatpush1.bf16.msra.mxu0 0
    %10559 = vmatprep.subr.bf16.mxu0 0
    %10560 = vmatpush1.bf16.msra.mxu0 0
    %10561 = vmatprep.subr.bf16.mxu0 0
    %10562 = vmatpush1.bf16.msra.mxu0 0
    %10563 = vmatprep.subr.bf16.mxu0 0
    %10564 = vmatpush1.bf16.msra.mxu0 0
    %10565 = vmatprep.subr.bf16.mxu0 0
    %10566 = vmatpush1.bf16.msra.mxu0 0
    %10567 = vmatprep.subr.bf16.mxu0 0
    %10568 = vmatpush1.bf16.msra.mxu0 0
    %10569 = vmatprep.subr.bf16.mxu0 0
    %10570 = vmatpush1.bf16.msra.mxu0 0
    %10571 = vmatprep.mubr.bf16.mxu0 0
    %10572 = vmatmul.mubr.bf16.gmra.mrb[0].mxu0 %v10474
    %v10573 = vpop.f32.mrb[0].mxu0
    %v10574 = vadd.f32 %v2471, %v10573
    %v10575 = vpop.f32.mrb[0].mxu0
    %v10576 = vpop.f32.mrb[0].mxu0
    %v10577 = vpop.f32.mrb[0].mxu0
    %10578 = vdwg.mxu0
    %v10579 = vsel %vm139, %v10574, -inf
    %10580 = vmax.xlane.f32.xlu0 %v10579
    %v10581 = vpop.xlane.xlu0 %10580
    %v10582 = vsub.f32 %v10574, %v10581
    %v10583 = vmul.f32 %v10582, 1.442695
    %v10584 = vpow.pop %v10583
    %v10585 = vsel %vm139, %v10584, 0.0
    %10586 = vadd.xlane.f32.xlu0 %v10585
    %v10587 = vpop.xlane.xlu0 %10586
    %v10588 = vrcp.pop %v10587
    %v10589 = vmul.f32 1.0, %v10588
    %vm10590 = vcmp.eq.f32.partialorder %v10574, %v10581
    %v10591 = vsel %vm10590, %v98, 128
    %v10592 = vsel %vm139, %v10591, 2147483647
    %v10593 = vand.u32 %v10592, 65535
    %v10594 = vshra.s32 %v10592, 16
    %v10595 = vcvt.s32.f32 %v10593
    %v10596 = vcvt.s32.f32 %v10594
    %10597 = vmin.xlane.f32.xlu0 %v10596
    %v10598 = vpop.xlane.xlu0 %10597
    %vm10599 = vcmp.eq.f32.partialorder %v10596, %v10598
    %v10600 = vsel %vm10599, %v10595, inf
    %10601 = vmin.xlane.f32.xlu0 %v10600
    %v10602 = vpop.xlane.xlu0 %10601
    %v10603 = vcvt.f32.s32 %v10602
    %v10604 = vcvt.f32.s32 %v10598
    %v10605 = vshll.u32 %v10604, 16
    %v10606 = vadd.s32 %v10605, %v10603
    %vm10607 = vcmp.lt.s32.totalorder %v10606, 127
    %v10608 = vsel %vm10607, %v10606, 127
    %s10609 = vtos %v10608
    %s10610 = scalar_lea.smem [#allocation13], 9
    %10611 = sst [smem:[%s10610]] %s10609
    %s10612 = vtos %v10589
    %s10613 = scalar_lea.smem [#allocation14], 9
    %10614 = sst [smem:[%s10613]] %s10612
    // Predicated region
    $region46: #{greedy_search_decode.1} parent=1 // pred_check
      _
    $region47: #{greedy_search_decode.1} parent=1 // pred_check_branch
      %10616 = sbr.rel (0) target = $region49
    $region48: #{greedy_search_decode.1} parent=1 // pred_region
      %s10618 = ssub.s32 16, 16
      %10619 = vsyncadd [#allocation5], %s10618
      %10622 = dma.smem_to_hbm [#allocation13], 16, %s6, [#allocation5]
    $region49: #{greedy_search_decode.1} parent=1 // pred_fallthru
      _
    // Predicated region
    $region50: #{greedy_search_decode.1} parent=1 // pred_check
      _
    $region51: #{greedy_search_decode.1} parent=1 // pred_check_branch
      %10624 = sbr.rel (0) target = $region53
    $region52: #{greedy_search_decode.1} parent=1 // pred_region
      %s10626 = ssub.s32 16, 16
      %10627 = vsyncadd [#allocation15], %s10626
      %10630 = dma.smem_to_hbm [#allocation14], 16, %s7, [#allocation15]
    $region53: #{greedy_search_decode.1} parent=1 // pred_fallthru
      _
    // Predicated region
    $region54: #{greedy_search_decode.1} parent=1 // pred_check
      _
    $region55: #{greedy_search_decode.1} parent=1 // pred_check_branch
      %10632 = sbr.rel (0) target = $region57
    $region56: #{greedy_search_decode.1} parent=1 // pred_region
      %10633 = dma.done [#allocation5], 16
    $region57: #{greedy_search_decode.1} parent=1 // pred_fallthru
      _
    // Predicated region
    $region58: #{greedy_search_decode.1} parent=1 // pred_check
      _
    $region59: #{greedy_search_decode.1} parent=1 // pred_check_branch
      %10635 = sbr.rel (0) target = $region61
    $region60: #{greedy_search_decode.1} parent=1 // pred_region
      %10636 = dma.done [#allocation15], 16
    $region61: #{greedy_search_decode.1} parent=1 // pred_fallthru
      _
    %10637 = sfence
    %10638 = vsyncpa [#allocation4], 1
    %10639 = vsyncpa [#allocation9], 1
    %10640 = vsyncpa [#allocation12], 1
    %10641 = vsyncpa [#allocation5], 1
    %10642 = vsyncpa [#allocation15], 1
    %10643 = vsyncpa [#allocation6], 1

</llo_original>
